<compile_context>
chip_gen: v7x
topology: tpu7x:2x2x1
jax: 0.10.0
libtpu: 0.0.40
codegen_flags: <defaults>
</compile_context>

<pallas_src>
import functools
import math

import jax
import jax.numpy as jnp
from jax import lax
from jax.experimental import pallas as pl
from jax.experimental.pallas import tpu as pltpu

_LN_EPS = 1e-5
_ROW_TILE = 256   # target rows per grid step for row-tiled matmul kernels
_Q_TILE = 128     # target query rows per grid step for attention kernels


def _round_up(x, m):
    return ((x + m - 1) // m) * m


def _adaptive_tile(n, target):
    """Tile size near `target` minimizing padding; >=2 grid steps when possible."""
    if n <= 8:
        return n
    steps = max(2, (n + target // 2) // target)
    return _round_up(-(-n // steps), 8)


# ----------------------------------------------------------------------------
# Pallas kernels
# ----------------------------------------------------------------------------
def _ln(z, g, b):
    z = z.astype(jnp.float32)
    mean = jnp.mean(z, axis=-1, keepdims=True)
    var = jnp.mean((z - mean) ** 2, axis=-1, keepdims=True)
    return (z - mean) * lax.rsqrt(var + _LN_EPS) * g + b


def _linear_kernel(x_ref, w_ref, b_ref, o_ref):
    y = jnp.dot(x_ref[...], w_ref[...], preferred_element_type=jnp.float32) + b_ref[...]
    o_ref[...] = y.astype(o_ref.dtype)


def _linear_pos_kernel(x_ref, p_ref, w_ref, b_ref, o_ref):
    # y = (x + pos) @ w + b   (scale already folded into w/b where applicable)
    y = jnp.dot(x_ref[...] + p_ref[...], w_ref[...],
                preferred_element_type=jnp.float32) + b_ref[...]
    o_ref[...] = y.astype(o_ref.dtype)


def _qkv_enc_kernel(x_ref, wq_ref, bq_ref, wkv_ref, bkv_ref, oq_ref, okv_ref):
    # Encoder self-attn projections: pos(+1) & 1/sqrt(hd) already folded into
    # wq/bq and bkv at prep time.  Two matmuls, two lane-dense stores.
    x = x_ref[...]
    q = jnp.dot(x, wq_ref[...], preferred_element_type=jnp.float32) + bq_ref[...]
    kv = jnp.dot(x, wkv_ref[...], preferred_element_type=jnp.float32) + bkv_ref[...]
    oq_ref[...] = q.astype(oq_ref.dtype)
    okv_ref[...] = kv.astype(okv_ref.dtype)


def _qkv_dec_kernel(x_ref, p_ref, wq_ref, bq_ref, wk_ref, bk_ref, wv_ref, bv_ref,
                    oq_ref, okv_ref):
    # Decoder self-attn: q/k see (tgt + query_pos), v sees tgt.
    d = wq_ref.shape[1]
    x = x_ref[...]
    xp = x + p_ref[...]
    q = jnp.dot(xp, wq_ref[...], preferred_element_type=jnp.float32) + bq_ref[...]
    k = jnp.dot(xp, wk_ref[...], preferred_element_type=jnp.float32) + bk_ref[...]
    v = jnp.dot(x, wv_ref[...], preferred_element_type=jnp.float32) + bv_ref[...]
    oq_ref[...] = q.astype(oq_ref.dtype)
    okv_ref[:, :d] = k.astype(okv_ref.dtype)     # lane slices (128-aligned at d=256)
    okv_ref[:, d:] = v.astype(okv_ref.dtype)


def _proj_res_ln_kernel(a_ref, r_ref, w_ref, b_ref, g_ref, be_ref, o_ref):
    # LayerNorm(residual + attn @ Wo + bo) -- fused attention epilogue.
    y = jnp.dot(a_ref[...], w_ref[...], preferred_element_type=jnp.float32) + b_ref[...]
    z = r_ref[...].astype(jnp.float32) + y
    o_ref[...] = _ln(z, g_ref[...], be_ref[...]).astype(o_ref.dtype)


def _ffn_res_ln_kernel(x_ref, w1_ref, b1_ref, w2_ref, b2_ref, g_ref, be_ref, o_ref):
    # LayerNorm(x + relu(x@W1+b1)@W2 + b2); (tile, dim_ff) intermediate stays in VMEM.
    x = x_ref[...]
    h = jnp.maximum(jnp.dot(x, w1_ref[...], preferred_element_type=jnp.float32)
                    + b1_ref[...], 0.0)
    y = jnp.dot(h.astype(w2_ref.dtype), w2_ref[...],
                preferred_element_type=jnp.float32) + b2_ref[...]
    o_ref[...] = _ln(x.astype(jnp.float32) + y, g_ref[...], be_ref[...]).astype(o_ref.dtype)


def _ln_bbox_kernel(x_ref, g_ref, b_ref, w1_ref, b1_ref, w2_ref, b2_ref,
                    w3_ref, b3_ref, o_ref):
    # Fused final decoder LayerNorm + 3-layer bbox MLP + sigmoid.
    z = _ln(x_ref[...], g_ref[...], b_ref[...]).astype(w1_ref.dtype)
    h = jnp.maximum(jnp.dot(z, w1_ref[...], preferred_element_type=jnp.float32)
                    + b1_ref[...], 0.0)
    h = jnp.maximum(jnp.dot(h.astype(w2_ref.dtype), w2_ref[...],
                            preferred_element_type=jnp.float32) + b2_ref[...], 0.0)
    y = jnp.dot(h.astype(w3_ref.dtype), w3_ref[...],
                preferred_element_type=jnp.float32) + b3_ref[...]
    o_ref[...] = jax.nn.sigmoid(y).astype(o_ref.dtype)


def _attn_kernel(q_ref, kv_ref, o_ref, *, nheads):
    # One query tile of one batch; K/V block resident; all heads in-kernel.
    # 1/sqrt(head_dim) is folded into Wq at prep time (no score scaling here).
    q = q_ref[0]                       # (TQ, D) bf16
    kv = kv_ref[0]                     # (Lk, 2D) bf16
    d = q.shape[-1]
    hd = d // nheads
    outs = []
    for h in range(nheads):
        qh = q[:, h * hd:(h + 1) * hd]
        kh = kv[:, h * hd:(h + 1) * hd]
        vh = kv[:, d + h * hd: d + (h + 1) * hd]
        s = lax.dot_general(qh, kh, (((1,), (1,)), ((), ())),
                            preferred_element_type=jnp.float32)
        s = s - jnp.max(s, axis=-1, keepdims=True)
        p = jnp.exp(s)
        p = p * pl.reciprocal(jnp.sum(p, axis=-1, keepdims=True), approx=True)
        outs.append(jnp.dot(p.astype(vh.dtype), vh, preferred_element_type=jnp.float32))
    o_ref[0] = jnp.concatenate(outs, axis=-1).astype(o_ref.dtype)   # lane-dense (TQ, D)


# ----------------------------------------------------------------------------
# pallas_call wrappers
# ----------------------------------------------------------------------------
def _row_call(kernel, args, out_dims, out_dtypes=None):
    """Row-tiled pallas_call.  args: list of (2-D array, is_row_tiled).
    Row-tiled arrays share row count N and are tiled (TM, cols); the rest
    (weights / biases / LN params) are resident full blocks.  Supports one or
    several (N, out_dim) outputs."""
    n = next(a.shape[0] for a, tiled in args if tiled)
    tm = _adaptive_tile(n, _ROW_TILE)
    in_specs = []
    for a, tiled in args:
        if tiled:
            in_specs.append(pl.BlockSpec((tm, a.shape[1]), lambda i: (i, 0)))
        else:
            in_specs.append(pl.BlockSpec(a.shape, lambda i, nd=a.ndim: (0,) * nd))

    single = isinstance(out_dims, int)
    dims = (out_dims,) if single else tuple(out_dims)
    if out_dtypes is None:
        dtypes = (jnp.bfloat16,) * len(dims)
    elif isinstance(out_dtypes, (tuple, list)):
        dtypes = tuple(out_dtypes)
    else:
        dtypes = (out_dtypes,) * len(dims)

    out_shape = tuple(jax.ShapeDtypeStruct((n, dd), dt) for dd, dt in zip(dims, dtypes))
    out_specs = tuple(pl.BlockSpec((tm, dd), lambda i: (i, 0)) for dd in dims)

    res = pl.pallas_call(
        kernel,
        out_shape=out_shape[0] if single else out_shape,
        grid=(pl.cdiv(n, tm),),
        in_specs=in_specs,
        out_specs=out_specs[0] if single else out_specs,
        compiler_params=pltpu.CompilerParams(dimension_semantics=("parallel",)),
    )(*[a for a, _ in args])
    return res


def attention(q_bld, kv_bld, nheads):
    """q: (B, Lq, D), kv: (B, Lk, 2D) -> (B, Lq, D).  Query-tiled, KV resident."""
    B, Lq, d = q_bld.shape
    Lk = kv_bld.shape[1]
    tq = _adaptive_tile(Lq, _Q_TILE)
    return pl.pallas_call(
        functools.partial(_attn_kernel, nheads=nheads),
        out_shape=jax.ShapeDtypeStruct((B, Lq, d), jnp.bfloat16),
        grid=(B, pl.cdiv(Lq, tq)),
        in_specs=[pl.BlockSpec((1, tq, d), lambda b, qi: (b, qi, 0)),
                  pl.BlockSpec((1, Lk, 2 * d), lambda b, qi: (b, 0, 0))],
        out_specs=pl.BlockSpec((1, tq, d), lambda b, qi: (b, qi, 0)),
        compiler_params=pltpu.CompilerParams(
            dimension_semantics=("parallel", "parallel")),
    )(q_bld, kv_bld)


# ----------------------------------------------------------------------------
# Model glue (activations are batch-first rows (B*L, D) in bf16)
# ----------------------------------------------------------------------------
def encoder_layer(src_rows, B, L, p, nheads):
    d = src_rows.shape[1]
    q, kv = _row_call(_qkv_enc_kernel,
                      [(src_rows, True),
                       (p["sa_wq"], False), (p["sa_bq"], False),
                       (p["sa_wkv"], False), (p["sa_bkv"], False)],
                      (d, 2 * d))
    attn = attention(q.reshape(B, L, d), kv.reshape(B, L, 2 * d), nheads).reshape(B * L, d)
    src_rows = _row_call(_proj_res_ln_kernel,
                         [(attn, True), (src_rows, True),
                          (p["sa_wo"], False), (p["sa_bo"], False),
                          (p["norm1_g"], False), (p["norm1_b"], False)], d)
    src_rows = _row_call(_ffn_res_ln_kernel,
                         [(src_rows, True),
                          (p["lin1_w"], False), (p["lin1_b"], False),
                          (p["lin2_w"], False), (p["lin2_b"], False),
                          (p["norm2_g"], False), (p["norm2_b"], False)], d)
    return src_rows


def decoder_layer(tgt_rows, mem_rows, qpos_rows, B, Lq, Lk, p, nheads):
    d = tgt_rows.shape[1]
    # self-attention: q/k see tgt+query_pos, v sees tgt (fused, two outputs)
    q, kv = _row_call(_qkv_dec_kernel,
                      [(tgt_rows, True), (qpos_rows, True),
                       (p["sa_wq"], False), (p["sa_bq"], False),
                       (p["sa_wk"], False), (p["sa_bk"], False),
                       (p["sa_wv"], False), (p["sa_bv"], False)],
                      (d, 2 * d))
    attn = attention(q.reshape(B, Lq, d), kv.reshape(B, Lq, 2 * d), nheads).reshape(B * Lq, d)
    tgt_rows = _row_call(_proj_res_ln_kernel,
                         [(attn, True), (tgt_rows, True),
                          (p["sa_wo"], False), (p["sa_bo"], False),
                          (p["norm1_g"], False), (p["norm1_b"], False)], d)

    # cross-attention: q = (tgt+query_pos)Wq (scale folded), k = (mem+1)Wk (fold), v = mem Wv
    q = _row_call(_linear_pos_kernel,
                  [(tgt_rows, True), (qpos_rows, True),
                   (p["ca_wq"], False), (p["ca_bq"], False)], d)
    kv = _row_call(_linear_kernel,
                   [(mem_rows, True), (p["ca_wkv"], False), (p["ca_bkv"], False)], 2 * d)
    attn = attention(q.reshape(B, Lq, d), kv.reshape(B, Lk, 2 * d), nheads).reshape(B * Lq, d)
    tgt_rows = _row_call(_proj_res_ln_kernel,
                         [(attn, True), (tgt_rows, True),
                          (p["ca_wo"], False), (p["ca_bo"], False),
                          (p["norm2_g"], False), (p["norm2_b"], False)], d)

    tgt_rows = _row_call(_ffn_res_ln_kernel,
                         [(tgt_rows, True),
                          (p["lin1_w"], False), (p["lin1_b"], False),
                          (p["lin2_w"], False), (p["lin2_b"], False),
                          (p["norm3_g"], False), (p["norm3_b"], False)], d)
    return tgt_rows


def detr_head_forward(src_nchw, prep, cfg):
    B, C, H, W = src_nchw.shape
    d = cfg["d_model"]
    nq = cfg["num_queries"]
    nheads = cfg["nheads"]
    HW = H * W

    # input_proj: 1x1 conv == per-pixel linear over channels (NCHW -> NHWC -> rows)
    x = jnp.transpose(src_nchw, (0, 2, 3, 1)).reshape(B * HW, C).astype(jnp.bfloat16)
    mem_rows = _row_call(_linear_kernel,
                         [(x, True), (prep["proj_w"], False), (prep["proj_b"], False)], d)

    # TODO(synk): float key_padding_mask of ones is an additive softmax constant -> no-op; omitted.
    qpos_rows = jnp.broadcast_to(prep["query_embed"][None, :, :],
                                 (B, nq, d)).reshape(B * nq, d)
    tgt_rows = jnp.zeros((B * nq, d), jnp.bfloat16)

    for lp in prep["enc_layers"]:
        mem_rows = encoder_layer(mem_rows, B, HW, lp, nheads)

    for lp in prep["dec_layers"]:
        tgt_rows = decoder_layer(tgt_rows, mem_rows, qpos_rows, B, nq, HW, lp, nheads)

    # Fused final decoder LayerNorm + bbox MLP; only the last decoder layer feeds
    # the returned coords.
    coords = _row_call(_ln_bbox_kernel,
                       [(tgt_rows, True),
                        (prep["dec_norm_g"], False), (prep["dec_norm_b"], False),
                        (prep["bbox_w1"], False), (prep["bbox_b1"], False),
                        (prep["bbox_w2"], False), (prep["bbox_b2"], False),
                        (prep["bbox_w3"], False), (prep["bbox_b3"], False)],
                       4, out_dtypes=jnp.float32)
    return coords.reshape(B, nq, 4)


# ----------------------------------------------------------------------------
# One-time parameter preparation: bf16 cast, weight concat, pos/scale folds.
# ----------------------------------------------------------------------------
def prepare_params(params, cfg):
    d = cfg["d_model"]
    scale = 1.0 / math.sqrt(d // cfg["nheads"])

    def bf(w):
        return w.astype(jnp.bfloat16)

    def row(b):
        return b.reshape(1, -1).astype(jnp.float32)

    def prep_enc(lp):
        a = lp["self_attn"]
        return dict(
            # q = scale*((x+1)@Wq + bq) ; k = (x+1)@Wk + bk ; v = x@Wv + bv
            sa_wq=bf(a["wq"] * scale),
            sa_bq=row((a["bq"] + a["wq"].sum(0)) * scale),
            sa_wkv=bf(jnp.concatenate([a["wk"], a["wv"]], axis=1)),
            sa_bkv=row(jnp.concatenate([a["bk"] + a["wk"].sum(0), a["bv"]])),
            sa_wo=bf(a["wo"]), sa_bo=row(a["bo"]),
            lin1_w=bf(lp["lin1_w"]), lin1_b=row(lp["lin1_b"]),
            lin2_w=bf(lp["lin2_w"]), lin2_b=row(lp["lin2_b"]),
            norm1_g=row(lp["norm1"]["g"]), norm1_b=row(lp["norm1"]["b"]),
            norm2_g=row(lp["norm2"]["g"]), norm2_b=row(lp["norm2"]["b"]),
        )

    def prep_dec(lp):
        sa, ca = lp["self_attn"], lp["cross_attn"]
        return dict(
            sa_wq=bf(sa["wq"] * scale), sa_bq=row(sa["bq"] * scale),
            sa_wk=bf(sa["wk"]), sa_bk=row(sa["bk"]),
            sa_wv=bf(sa["wv"]), sa_bv=row(sa["bv"]),
            sa_wo=bf(sa["wo"]), sa_bo=row(sa["bo"]),
            ca_wq=bf(ca["wq"] * scale), ca_bq=row(ca["bq"] * scale),
            ca_wkv=bf(jnp.concatenate([ca["wk"], ca["wv"]], axis=1)),
            ca_bkv=row(jnp.concatenate([ca["bk"] + ca["wk"].sum(0), ca["bv"]])),
            ca_wo=bf(ca["wo"]), ca_bo=row(ca["bo"]),
            lin1_w=bf(lp["lin1_w"]), lin1_b=row(lp["lin1_b"]),
            lin2_w=bf(lp["lin2_w"]), lin2_b=row(lp["lin2_b"]),
            norm1_g=row(lp["norm1"]["g"]), norm1_b=row(lp["norm1"]["b"]),
            norm2_g=row(lp["norm2"]["g"]), norm2_b=row(lp["norm2"]["b"]),
            norm3_g=row(lp["norm3"]["g"]), norm3_b=row(lp["norm3"]["b"]),
        )

    return dict(
        proj_w=bf(params["proj_w"]), proj_b=row(params["proj_b"]),
        query_embed=bf(params["query_embed"]),
        enc_layers=[prep_enc(lp) for lp in params["enc_layers"]],
        dec_layers=[prep_dec(lp) for lp in params["dec_layers"]],
        dec_norm_g=row(params["dec_norm"]["g"]), dec_norm_b=row(params["dec_norm"]["b"]),
        bbox_w1=bf(params["bbox_w1"]), bbox_b1=row(params["bbox_b1"]),
        bbox_w2=bf(params["bbox_w2"]), bbox_b2=row(params["bbox_b2"]),
        bbox_w3=bf(params["bbox_w3"]), bbox_b3=row(params["bbox_b3"]),
    )


# ----------------------------------------------------------------------------
# Deterministic synthetic parameter initialization (raw f32, PyTorch-like)
# ----------------------------------------------------------------------------
def init_params(key, cfg, in_ch):
    d = cfg["d_model"]
    dff = cfg["dim_ff"]
    nq = cfg["num_queries"]

    keys = iter(jax.random.split(key, 512))

    def dense(din, dout):
        w = jax.random.normal(next(keys), (din, dout), jnp.float32) / math.sqrt(din)
        b = jax.random.normal(next(keys), (dout,), jnp.float32) * 0.01
        return w, b

    def mha_params():
        wq, bq = dense(d, d)
        wk, bk = dense(d, d)
        wv, bv = dense(d, d)
        wo, bo = dense(d, d)
        return dict(wq=wq, bq=bq, wk=wk, bk=bk, wv=wv, bv=bv, wo=wo, bo=bo)

    def ln_params():
        return dict(g=jnp.ones((d,), jnp.float32), b=jnp.zeros((d,), jnp.float32))

    def enc_layer():
        l1w, l1b = dense(d, dff)
        l2w, l2b = dense(dff, d)
        return dict(self_attn=mha_params(), lin1_w=l1w, lin1_b=l1b,
                    lin2_w=l2w, lin2_b=l2b, norm1=ln_params(), norm2=ln_params())

    def dec_layer():
        l1w, l1b = dense(d, dff)
        l2w, l2b = dense(dff, d)
        return dict(self_attn=mha_params(), cross_attn=mha_params(),
                    lin1_w=l1w, lin1_b=l1b, lin2_w=l2w, lin2_b=l2b,
                    norm1=ln_params(), norm2=ln_params(), norm3=ln_params())

    proj_w, proj_b = dense(in_ch, d)
    b1w, b1b = dense(d, d)
    b2w, b2b = dense(d, d)
    b3w, b3b = dense(d, 4)

    return dict(
        proj_w=proj_w, proj_b=proj_b,
        query_embed=jax.random.normal(next(keys), (nq, d), jnp.float32),
        enc_layers=[enc_layer() for _ in range(cfg["enc_layers"])],
        dec_layers=[dec_layer() for _ in range(cfg["dec_layers"])],
        dec_norm=ln_params(),
        bbox_w1=b1w, bbox_b1=b1b, bbox_w2=b2w, bbox_b2=b2b, bbox_w3=b3w, bbox_b3=b3b,
    )


# ----------------------------------------------------------------------------
if __name__ == "__main__":
    # Small shapes consistent with the module's forward (original: 1x1024x23x23,
    # hidden=256, 8 heads, ffn=2048, 6+6 layers, 100 queries).
    cfg = dict(d_model=32, nheads=4, dim_ff=64, enc_layers=2, dec_layers=2,
               num_queries=8)
    B, C, H, W = 2, 32, 8, 8

    key = jax.random.PRNGKey(0)
    k_x, k_p = jax.random.split(key)
    src = jax.random.normal(k_x, (B, C, H, W), jnp.float32)
    raw_params = init_params(k_p, cfg, in_ch=C)
    prep = prepare_params(raw_params, cfg)   # one-time fold/concat/bf16 cast

    fwd = jax.jit(lambda s, p: detr_head_forward(s, p, cfg))
    out = fwd(src, prep)
    out = jax.block_until_ready(out)

    assert out.shape == (B, cfg["num_queries"], 4)
    assert bool(jnp.all(jnp.isfinite(out)))
    print("KERNEL_OK")
</pallas_src>

<mosaic_0001>
module attributes {stable_mosaic.version = 11 : i64} {
  func.func @_linear_kernel(%arg0: i32, %arg1: memref<64x32xbf16, #tpu.memory_space<vmem>>, %arg2: memref<32x32xbf16, #tpu.memory_space<vmem>>, %arg3: memref<1x32xf32, #tpu.memory_space<vmem>>, %arg4: memref<64x32xbf16, #tpu.memory_space<vmem>>) attributes {dimension_semantics = [#tpu.dimension_semantics<parallel>], iteration_bounds = array<i64: 2>, scalar_prefetch = 0 : i64, scratch_operands = 0 : i64, tpu.core_type = #tpu.core_type<tc>, window_params = [{transform_indices = @transform_0, window_bounds = array<i64: 64, 32>}, {pipeline_mode = #tpu.pipeline_mode<synchronous>, transform_indices = @transform_1, window_bounds = array<i64: 32, 32>}, {pipeline_mode = #tpu.pipeline_mode<synchronous>, transform_indices = @transform_2, window_bounds = array<i64: 1, 32>}, {transform_indices = @transform_3, window_bounds = array<i64: 64, 32>}]} {
    %c0 = arith.constant 0 : index
    %c0_0 = arith.constant 0 : index
    %0 = vector.load %arg1[%c0, %c0_0] : memref<64x32xbf16, #tpu.memory_space<vmem>>, vector<64x32xbf16>
    %c0_1 = arith.constant 0 : index
    %c0_2 = arith.constant 0 : index
    %1 = vector.load %arg2[%c0_1, %c0_2] : memref<32x32xbf16, #tpu.memory_space<vmem>>, vector<32x32xbf16>
    %cst = arith.constant dense<0.000000e+00> : vector<64x32xf32>
    %2 = tpu.matmul %0, %1, %cst {dimension_numbers = #tpu.dot_dimension_numbers<[1], [0], [0], [1], [0, 0, 1, 1], [], []>} : vector<64x32xbf16>, vector<32x32xbf16>, vector<64x32xf32> -> vector<64x32xf32>
    %c0_3 = arith.constant 0 : index
    %c0_4 = arith.constant 0 : index
    %3 = vector.load %arg3[%c0_3, %c0_4] : memref<1x32xf32, #tpu.memory_space<vmem>>, vector<1x32xf32>
    %4 = vector.broadcast %3 : vector<1x32xf32> to vector<64x32xf32>
    %5 = arith.addf %2, %4 : vector<64x32xf32>
    %6 = arith.truncf %5 : vector<64x32xf32> to vector<64x32xbf16>
    %c0_5 = arith.constant 0 : index
    %c0_6 = arith.constant 0 : index
    %7 = vector.load %arg4[%c0_5, %c0_6] : memref<64x32xbf16, #tpu.memory_space<vmem>>, vector<64x32xbf16>
    tpu.vector_store %arg4[%c0_5, %c0_6], %6 {strides = array<i32>} : memref<64x32xbf16, #tpu.memory_space<vmem>>, vector<64x32xbf16>,
    return
  }
  func.func @transform_0(%arg0: i32) -> (i32, i32) {
    %c0_i32 = arith.constant 0 : i32
    %c0_i32_0 = arith.constant 0 : i32
    return %arg0, %c0_i32 : i32, i32
  }
  func.func @transform_1(%arg0: i32) -> (i32, i32) {
    %c0_i32 = arith.constant 0 : i32
    %c0_i32_0 = arith.constant 0 : i32
    %c0_i32_1 = arith.constant 0 : i32
    return %c0_i32, %c0_i32_0 : i32, i32
  }
  func.func @transform_2(%arg0: i32) -> (i32, i32) {
    %c0_i32 = arith.constant 0 : i32
    %c0_i32_0 = arith.constant 0 : i32
    %c0_i32_1 = arith.constant 0 : i32
    return %c0_i32, %c0_i32_0 : i32, i32
  }
  func.func @transform_3(%arg0: i32) -> (i32, i32) {
    %c0_i32 = arith.constant 0 : i32
    %c0_i32_0 = arith.constant 0 : i32
    return %arg0, %c0_i32 : i32, i32
  }
}

module attributes {stable_mosaic.version = 11 : i64} {
  func.func @_attn_kernel(%arg0: i32, %arg1: i32, %arg2: memref<1x32x32xbf16, #tpu.memory_space<vmem>>, %arg3: memref<1x64x64xbf16, #tpu.memory_space<vmem>>, %arg4: memref<1x32x32xbf16, #tpu.memory_space<vmem>>) attributes {dimension_semantics = [#tpu.dimension_semantics<parallel>, #tpu.dimension_semantics<parallel>], iteration_bounds = array<i64: 2, 2>, scalar_prefetch = 0 : i64, scratch_operands = 0 : i64, tpu.core_type = #tpu.core_type<tc>, window_params = [{transform_indices = @transform_0, window_bounds = array<i64: 1, 32, 32>}, {transform_indices = @transform_1, window_bounds = array<i64: 1, 64, 64>}, {transform_indices = @transform_2, window_bounds = array<i64: 1, 32, 32>}]} {
    %c0 = arith.constant 0 : index
    %c0_0 = arith.constant 0 : index
    %c0_1 = arith.constant 0 : index
    %0 = vector.load %arg2[%c0, %c0_0, %c0_1] : memref<1x32x32xbf16, #tpu.memory_space<vmem>>, vector<1x32x32xbf16>
    %1 = vector.shape_cast %0 : vector<1x32x32xbf16> to vector<32x32xbf16>
    %c0_2 = arith.constant 0 : index
    %c0_3 = arith.constant 0 : index
    %c0_4 = arith.constant 0 : index
    %2 = vector.load %arg3[%c0_2, %c0_3, %c0_4] : memref<1x64x64xbf16, #tpu.memory_space<vmem>>, vector<1x64x64xbf16>
    %3 = vector.shape_cast %2 : vector<1x64x64xbf16> to vector<64x64xbf16>
    %4 = vector.extract_strided_slice %1 {offsets = [0, 0], sizes = [32, 8], strides = [1, 1]} : vector<32x32xbf16> to vector<32x8xbf16>
    %5 = vector.extract_strided_slice %3 {offsets = [0, 0], sizes = [64, 8], strides = [1, 1]} : vector<64x64xbf16> to vector<64x8xbf16>
    %6 = vector.extract_strided_slice %3 {offsets = [0, 32], sizes = [64, 8], strides = [1, 1]} : vector<64x64xbf16> to vector<64x8xbf16>
    %cst = arith.constant dense<0.000000e+00> : vector<32x64xf32>
    %7 = tpu.matmul %4, %5, %cst {dimension_numbers = #tpu.dot_dimension_numbers<[1], [1], [0], [0], [0, 0, 1, 0], [], []>} : vector<32x8xbf16>, vector<64x8xbf16>, vector<32x64xf32> -> vector<32x64xf32>
    %cst_5 = arith.constant dense<0xFF800000> : vector<32xf32>
    %8 = vector.multi_reduction <maximumf>, %7, %cst_5 [1] : vector<32x64xf32> to vector<32xf32>
    %9 = vector.shape_cast %8 : vector<32xf32> to vector<32x1xf32>
    %10 = vector.broadcast %9 : vector<32x1xf32> to vector<32x64xf32>
    %11 = arith.subf %7, %10 : vector<32x64xf32>
    %12 = math.exp %11 : vector<32x64xf32>
    %cst_6 = arith.constant dense<0.000000e+00> : vector<32xf32>
    %13 = vector.multi_reduction <add>, %12, %cst_6 [1] : vector<32x64xf32> to vector<32xf32>
    %14 = vector.shape_cast %13 : vector<32xf32> to vector<32x1xf32>
    %15 = tpu.reciprocal %14 {approx = true} : vector<32x1xf32> -> vector<32x1xf32>
    %16 = vector.broadcast %15 : vector<32x1xf32> to vector<32x64xf32>
    %17 = arith.mulf %12, %16 : vector<32x64xf32>
    %18 = arith.truncf %17 : vector<32x64xf32> to vector<32x64xbf16>
    %cst_7 = arith.constant dense<0.000000e+00> : vector<32x8xf32>
    %19 = tpu.matmul %18, %6, %cst_7 {dimension_numbers = #tpu.dot_dimension_numbers<[1], [0], [0], [1], [0, 0, 1, 1], [], []>} : vector<32x64xbf16>, vector<64x8xbf16>, vector<32x8xf32> -> vector<32x8xf32>
    %20 = vector.extract_strided_slice %1 {offsets = [0, 8], sizes = [32, 8], strides = [1, 1]} : vector<32x32xbf16> to vector<32x8xbf16>
    %21 = vector.extract_strided_slice %3 {offsets = [0, 8], sizes = [64, 8], strides = [1, 1]} : vector<64x64xbf16> to vector<64x8xbf16>
    %22 = vector.extract_strided_slice %3 {offsets = [0, 40], sizes = [64, 8], strides = [1, 1]} : vector<64x64xbf16> to vector<64x8xbf16>
    %cst_8 = arith.constant dense<0.000000e+00> : vector<32x64xf32>
    %23 = tpu.matmul %20, %21, %cst_8 {dimension_numbers = #tpu.dot_dimension_numbers<[1], [1], [0], [0], [0, 0, 1, 0], [], []>} : vector<32x8xbf16>, vector<64x8xbf16>, vector<32x64xf32> -> vector<32x64xf32>
    %cst_9 = arith.constant dense<0xFF800000> : vector<32xf32>
    %24 = vector.multi_reduction <maximumf>, %23, %cst_9 [1] : vector<32x64xf32> to vector<32xf32>
    %25 = vector.shape_cast %24 : vector<32xf32> to vector<32x1xf32>
    %26 = vector.broadcast %25 : vector<32x1xf32> to vector<32x64xf32>
    %27 = arith.subf %23, %26 : vector<32x64xf32>
    %28 = math.exp %27 : vector<32x64xf32>
    %cst_10 = arith.constant dense<0.000000e+00> : vector<32xf32>
    %29 = vector.multi_reduction <add>, %28, %cst_10 [1] : vector<32x64xf32> to vector<32xf32>
    %30 = vector.shape_cast %29 : vector<32xf32> to vector<32x1xf32>
    %31 = tpu.reciprocal %30 {approx = true} : vector<32x1xf32> -> vector<32x1xf32>
    %32 = vector.broadcast %31 : vector<32x1xf32> to vector<32x64xf32>
    %33 = arith.mulf %28, %32 : vector<32x64xf32>
    %34 = arith.truncf %33 : vector<32x64xf32> to vector<32x64xbf16>
    %cst_11 = arith.constant dense<0.000000e+00> : vector<32x8xf32>
    %35 = tpu.matmul %34, %22, %cst_11 {dimension_numbers = #tpu.dot_dimension_numbers<[1], [0], [0], [1], [0, 0, 1, 1], [], []>} : vector<32x64xbf16>, vector<64x8xbf16>, vector<32x8xf32> -> vector<32x8xf32>
    %36 = vector.extract_strided_slice %1 {offsets = [0, 16], sizes = [32, 8], strides = [1, 1]} : vector<32x32xbf16> to vector<32x8xbf16>
    %37 = vector.extract_strided_slice %3 {offsets = [0, 16], sizes = [64, 8], strides = [1, 1]} : vector<64x64xbf16> to vector<64x8xbf16>
    %38 = vector.extract_strided_slice %3 {offsets = [0, 48], sizes = [64, 8], strides = [1, 1]} : vector<64x64xbf16> to vector<64x8xbf16>
    %cst_12 = arith.constant dense<0.000000e+00> : vector<32x64xf32>
    %39 = tpu.matmul %36, %37, %cst_12 {dimension_numbers = #tpu.dot_dimension_numbers<[1], [1], [0], [0], [0, 0, 1, 0], [], []>} : vector<32x8xbf16>, vector<64x8xbf16>, vector<32x64xf32> -> vector<32x64xf32>
    %cst_13 = arith.constant dense<0xFF800000> : vector<32xf32>
    %40 = vector.multi_reduction <maximumf>, %39, %cst_13 [1] : vector<32x64xf32> to vector<32xf32>
    %41 = vector.shape_cast %40 : vector<32xf32> to vector<32x1xf32>
    %42 = vector.broadcast %41 : vector<32x1xf32> to vector<32x64xf32>
    %43 = arith.subf %39, %42 : vector<32x64xf32>
    %44 = math.exp %43 : vector<32x64xf32>
    %cst_14 = arith.constant dense<0.000000e+00> : vector<32xf32>
    %45 = vector.multi_reduction <add>, %44, %cst_14 [1] : vector<32x64xf32> to vector<32xf32>
    %46 = vector.shape_cast %45 : vector<32xf32> to vector<32x1xf32>
    %47 = tpu.reciprocal %46 {approx = true} : vector<32x1xf32> -> vector<32x1xf32>
    %48 = vector.broadcast %47 : vector<32x1xf32> to vector<32x64xf32>
    %49 = arith.mulf %44, %48 : vector<32x64xf32>
    %50 = arith.truncf %49 : vector<32x64xf32> to vector<32x64xbf16>
    %cst_15 = arith.constant dense<0.000000e+00> : vector<32x8xf32>
    %51 = tpu.matmul %50, %38, %cst_15 {dimension_numbers = #tpu.dot_dimension_numbers<[1], [0], [0], [1], [0, 0, 1, 1], [], []>} : vector<32x64xbf16>, vector<64x8xbf16>, vector<32x8xf32> -> vector<32x8xf32>
    %52 = vector.extract_strided_slice %1 {offsets = [0, 24], sizes = [32, 8], strides = [1, 1]} : vector<32x32xbf16> to vector<32x8xbf16>
    %53 = vector.extract_strided_slice %3 {offsets = [0, 24], sizes = [64, 8], strides = [1, 1]} : vector<64x64xbf16> to vector<64x8xbf16>
    %54 = vector.extract_strided_slice %3 {offsets = [0, 56], sizes = [64, 8], strides = [1, 1]} : vector<64x64xbf16> to vector<64x8xbf16>
    %cst_16 = arith.constant dense<0.000000e+00> : vector<32x64xf32>
    %55 = tpu.matmul %52, %53, %cst_16 {dimension_numbers = #tpu.dot_dimension_numbers<[1], [1], [0], [0], [0, 0, 1, 0], [], []>} : vector<32x8xbf16>, vector<64x8xbf16>, vector<32x64xf32> -> vector<32x64xf32>
    %cst_17 = arith.constant dense<0xFF800000> : vector<32xf32>
    %56 = vector.multi_reduction <maximumf>, %55, %cst_17 [1] : vector<32x64xf32> to vector<32xf32>
    %57 = vector.shape_cast %56 : vector<32xf32> to vector<32x1xf32>
    %58 = vector.broadcast %57 : vector<32x1xf32> to vector<32x64xf32>
    %59 = arith.subf %55, %58 : vector<32x64xf32>
    %60 = math.exp %59 : vector<32x64xf32>
    %cst_18 = arith.constant dense<0.000000e+00> : vector<32xf32>
    %61 = vector.multi_reduction <add>, %60, %cst_18 [1] : vector<32x64xf32> to vector<32xf32>
    %62 = vector.shape_cast %61 : vector<32xf32> to vector<32x1xf32>
    %63 = tpu.reciprocal %62 {approx = true} : vector<32x1xf32> -> vector<32x1xf32>
    %64 = vector.broadcast %63 : vector<32x1xf32> to vector<32x64xf32>
    %65 = arith.mulf %60, %64 : vector<32x64xf32>
    %66 = arith.truncf %65 : vector<32x64xf32> to vector<32x64xbf16>
    %cst_19 = arith.constant dense<0.000000e+00> : vector<32x8xf32>
    %67 = tpu.matmul %66, %54, %cst_19 {dimension_numbers = #tpu.dot_dimension_numbers<[1], [0], [0], [1], [0, 0, 1, 1], [], []>} : vector<32x64xbf16>, vector<64x8xbf16>, vector<32x8xf32> -> vector<32x8xf32>
    %68 = tpu.concatenate %19, %35, %51, %67 in 1 : vector<32x8xf32>, vector<32x8xf32>, vector<32x8xf32>, vector<32x8xf32> -> vector<32x32xf32>
    %69 = arith.truncf %68 : vector<32x32xf32> to vector<32x32xbf16>
    %c0_20 = arith.constant 0 : index
    %c0_21 = arith.constant 0 : index
    %c0_22 = arith.constant 0 : index
    %70 = vector.load %arg4[%c0_20, %c0_21, %c0_22] : memref<1x32x32xbf16, #tpu.memory_space<vmem>>, vector<1x32x32xbf16>
    %71 = vector.shape_cast %70 : vector<1x32x32xbf16> to vector<32x32xbf16>
    %72 = vector.shape_cast %69 : vector<32x32xbf16> to vector<1x32x32xbf16>
    tpu.vector_store %arg4[%c0_20, %c0_21, %c0_22], %72 {strides = array<i32>} : memref<1x32x32xbf16, #tpu.memory_space<vmem>>, vector<1x32x32xbf16>,
    return
  }
  func.func @transform_0(%arg0: i32, %arg1: i32) -> (i32, i32, i32) {
    %c0_i32 = arith.constant 0 : i32
    %c0_i32_0 = arith.constant 0 : i32
    return %arg0, %arg1, %c0_i32 : i32, i32, i32
  }
  func.func @transform_1(%arg0: i32, %arg1: i32) -> (i32, i32, i32) {
    %c0_i32 = arith.constant 0 : i32
    %c0_i32_0 = arith.constant 0 : i32
    %c0_i32_1 = arith.constant 0 : i32
    return %arg0, %c0_i32, %c0_i32_0 : i32, i32, i32
  }
  func.func @transform_2(%arg0: i32, %arg1: i32) -> (i32, i32, i32) {
    %c0_i32 = arith.constant 0 : i32
    %c0_i32_0 = arith.constant 0 : i32
    return %arg0, %arg1, %c0_i32 : i32, i32, i32
  }
}

module attributes {stable_mosaic.version = 11 : i64} {
  func.func @_qkv_enc_kernel(%arg0: i32, %arg1: memref<64x32xbf16, #tpu.memory_space<vmem>>, %arg2: memref<32x32xbf16, #tpu.memory_space<vmem>>, %arg3: memref<1x32xf32, #tpu.memory_space<vmem>>, %arg4: memref<32x64xbf16, #tpu.memory_space<vmem>>, %arg5: memref<1x64xf32, #tpu.memory_space<vmem>>, %arg6: memref<64x32xbf16, #tpu.memory_space<vmem>>, %arg7: memref<64x64xbf16, #tpu.memory_space<vmem>>) attributes {dimension_semantics = [#tpu.dimension_semantics<parallel>], iteration_bounds = array<i64: 2>, scalar_prefetch = 0 : i64, scratch_operands = 0 : i64, tpu.core_type = #tpu.core_type<tc>, window_params = [{transform_indices = @transform_0, window_bounds = array<i64: 64, 32>}, {pipeline_mode = #tpu.pipeline_mode<synchronous>, transform_indices = @transform_1, window_bounds = array<i64: 32, 32>}, {pipeline_mode = #tpu.pipeline_mode<synchronous>, transform_indices = @transform_2, window_bounds = array<i64: 1, 32>}, {pipeline_mode = #tpu.pipeline_mode<synchronous>, transform_indices = @transform_3, window_bounds = array<i64: 32, 64>}, {pipeline_mode = #tpu.pipeline_mode<synchronous>, transform_indices = @transform_4, window_bounds = array<i64: 1, 64>}, {transform_indices = @transform_5, window_bounds = array<i64: 64, 32>}, {transform_indices = @transform_6, window_bounds = array<i64: 64, 64>}]} {
    %c0 = arith.constant 0 : index
    %c0_0 = arith.constant 0 : index
    %0 = vector.load %arg1[%c0, %c0_0] : memref<64x32xbf16, #tpu.memory_space<vmem>>, vector<64x32xbf16>
    %c0_1 = arith.constant 0 : index
    %c0_2 = arith.constant 0 : index
    %1 = vector.load %arg2[%c0_1, %c0_2] : memref<32x32xbf16, #tpu.memory_space<vmem>>, vector<32x32xbf16>
    %cst = arith.constant dense<0.000000e+00> : vector<64x32xf32>
    %2 = tpu.matmul %0, %1, %cst {dimension_numbers = #tpu.dot_dimension_numbers<[1], [0], [0], [1], [0, 0, 1, 1], [], []>} : vector<64x32xbf16>, vector<32x32xbf16>, vector<64x32xf32> -> vector<64x32xf32>
    %c0_3 = arith.constant 0 : index
    %c0_4 = arith.constant 0 : index
    %3 = vector.load %arg3[%c0_3, %c0_4] : memref<1x32xf32, #tpu.memory_space<vmem>>, vector<1x32xf32>
    %4 = vector.broadcast %3 : vector<1x32xf32> to vector<64x32xf32>
    %5 = arith.addf %2, %4 : vector<64x32xf32>
    %c0_5 = arith.constant 0 : index
    %c0_6 = arith.constant 0 : index
    %6 = vector.load %arg4[%c0_5, %c0_6] : memref<32x64xbf16, #tpu.memory_space<vmem>>, vector<32x64xbf16>
    %cst_7 = arith.constant dense<0.000000e+00> : vector<64x64xf32>
    %7 = tpu.matmul %0, %6, %cst_7 {dimension_numbers = #tpu.dot_dimension_numbers<[1], [0], [0], [1], [0, 0, 1, 1], [], []>} : vector<64x32xbf16>, vector<32x64xbf16>, vector<64x64xf32> -> vector<64x64xf32>
    %c0_8 = arith.constant 0 : index
    %c0_9 = arith.constant 0 : index
    %8 = vector.load %arg5[%c0_8, %c0_9] : memref<1x64xf32, #tpu.memory_space<vmem>>, vector<1x64xf32>
    %9 = vector.broadcast %8 : vector<1x64xf32> to vector<64x64xf32>
    %10 = arith.addf %7, %9 : vector<64x64xf32>
    %11 = arith.truncf %5 : vector<64x32xf32> to vector<64x32xbf16>
    %c0_10 = arith.constant 0 : index
    %c0_11 = arith.constant 0 : index
    %12 = vector.load %arg6[%c0_10, %c0_11] : memref<64x32xbf16, #tpu.memory_space<vmem>>, vector<64x32xbf16>
    tpu.vector_store %arg6[%c0_10, %c0_11], %11 {strides = array<i32>} : memref<64x32xbf16, #tpu.memory_space<vmem>>, vector<64x32xbf16>,
    %13 = arith.truncf %10 : vector<64x64xf32> to vector<64x64xbf16>
    %c0_12 = arith.constant 0 : index
    %c0_13 = arith.constant 0 : index
    %14 = vector.load %arg7[%c0_12, %c0_13] : memref<64x64xbf16, #tpu.memory_space<vmem>>, vector<64x64xbf16>
    tpu.vector_store %arg7[%c0_12, %c0_13], %13 {strides = array<i32>} : memref<64x64xbf16, #tpu.memory_space<vmem>>, vector<64x64xbf16>,
    return
  }
  func.func @transform_0(%arg0: i32) -> (i32, i32) {
    %c0_i32 = arith.constant 0 : i32
    %c0_i32_0 = arith.constant 0 : i32
    return %arg0, %c0_i32 : i32, i32
  }
  func.func @transform_1(%arg0: i32) -> (i32, i32) {
    %c0_i32 = arith.constant 0 : i32
    %c0_i32_0 = arith.constant 0 : i32
    %c0_i32_1 = arith.constant 0 : i32
    return %c0_i32, %c0_i32_0 : i32, i32
  }
  func.func @transform_2(%arg0: i32) -> (i32, i32) {
    %c0_i32 = arith.constant 0 : i32
    %c0_i32_0 = arith.constant 0 : i32
    %c0_i32_1 = arith.constant 0 : i32
    return %c0_i32, %c0_i32_0 : i32, i32
  }
  func.func @transform_3(%arg0: i32) -> (i32, i32) {
    %c0_i32 = arith.constant 0 : i32
    %c0_i32_0 = arith.constant 0 : i32
    %c0_i32_1 = arith.constant 0 : i32
    return %c0_i32, %c0_i32_0 : i32, i32
  }
  func.func @transform_4(%arg0: i32) -> (i32, i32) {
    %c0_i32 = arith.constant 0 : i32
    %c0_i32_0 = arith.constant 0 : i32
    %c0_i32_1 = arith.constant 0 : i32
    return %c0_i32, %c0_i32_0 : i32, i32
  }
  func.func @transform_5(%arg0: i32) -> (i32, i32) {
    %c0_i32 = arith.constant 0 : i32
    %c0_i32_0 = arith.constant 0 : i32
    return %arg0, %c0_i32 : i32, i32
  }
  func.func @transform_6(%arg0: i32) -> (i32, i32) {
    %c0_i32 = arith.constant 0 : i32
    %c0_i32_0 = arith.constant 0 : i32
    return %arg0, %c0_i32 : i32, i32
  }
}

module attributes {stable_mosaic.version = 11 : i64} {
  func.func @_proj_res_ln_kernel(%arg0: i32, %arg1: memref<64x32xbf16, #tpu.memory_space<vmem>>, %arg2: memref<64x32xbf16, #tpu.memory_space<vmem>>, %arg3: memref<32x32xbf16, #tpu.memory_space<vmem>>, %arg4: memref<1x32xf32, #tpu.memory_space<vmem>>, %arg5: memref<1x32xf32, #tpu.memory_space<vmem>>, %arg6: memref<1x32xf32, #tpu.memory_space<vmem>>, %arg7: memref<64x32xbf16, #tpu.memory_space<vmem>>) attributes {dimension_semantics = [#tpu.dimension_semantics<parallel>], iteration_bounds = array<i64: 2>, scalar_prefetch = 0 : i64, scratch_operands = 0 : i64, tpu.core_type = #tpu.core_type<tc>, window_params = [{transform_indices = @transform_0, window_bounds = array<i64: 64, 32>}, {transform_indices = @transform_1, window_bounds = array<i64: 64, 32>}, {pipeline_mode = #tpu.pipeline_mode<synchronous>, transform_indices = @transform_2, window_bounds = array<i64: 32, 32>}, {pipeline_mode = #tpu.pipeline_mode<synchronous>, transform_indices = @transform_3, window_bounds = array<i64: 1, 32>}, {pipeline_mode = #tpu.pipeline_mode<synchronous>, transform_indices = @transform_4, window_bounds = array<i64: 1, 32>}, {pipeline_mode = #tpu.pipeline_mode<synchronous>, transform_indices = @transform_5, window_bounds = array<i64: 1, 32>}, {transform_indices = @transform_6, window_bounds = array<i64: 64, 32>}]} {
    %c0 = arith.constant 0 : index
    %c0_0 = arith.constant 0 : index
    %0 = vector.load %arg1[%c0, %c0_0] : memref<64x32xbf16, #tpu.memory_space<vmem>>, vector<64x32xbf16>
    %c0_1 = arith.constant 0 : index
    %c0_2 = arith.constant 0 : index
    %1 = vector.load %arg3[%c0_1, %c0_2] : memref<32x32xbf16, #tpu.memory_space<vmem>>, vector<32x32xbf16>
    %cst = arith.constant dense<0.000000e+00> : vector<64x32xf32>
    %2 = tpu.matmul %0, %1, %cst {dimension_numbers = #tpu.dot_dimension_numbers<[1], [0], [0], [1], [0, 0, 1, 1], [], []>} : vector<64x32xbf16>, vector<32x32xbf16>, vector<64x32xf32> -> vector<64x32xf32>
    %c0_3 = arith.constant 0 : index
    %c0_4 = arith.constant 0 : index
    %3 = vector.load %arg4[%c0_3, %c0_4] : memref<1x32xf32, #tpu.memory_space<vmem>>, vector<1x32xf32>
    %4 = vector.broadcast %3 : vector<1x32xf32> to vector<64x32xf32>
    %5 = arith.addf %2, %4 : vector<64x32xf32>
    %c0_5 = arith.constant 0 : index
    %c0_6 = arith.constant 0 : index
    %6 = vector.load %arg2[%c0_5, %c0_6] : memref<64x32xbf16, #tpu.memory_space<vmem>>, vector<64x32xbf16>
    %7 = arith.extf %6 : vector<64x32xbf16> to vector<64x32xf32>
    %8 = arith.addf %7, %5 : vector<64x32xf32>
    %c0_7 = arith.constant 0 : index
    %c0_8 = arith.constant 0 : index
    %9 = vector.load %arg5[%c0_7, %c0_8] : memref<1x32xf32, #tpu.memory_space<vmem>>, vector<1x32xf32>
    %c0_9 = arith.constant 0 : index
    %c0_10 = arith.constant 0 : index
    %10 = vector.load %arg6[%c0_9, %c0_10] : memref<1x32xf32, #tpu.memory_space<vmem>>, vector<1x32xf32>
    %cst_11 = arith.constant dense<0.000000e+00> : vector<64xf32>
    %11 = vector.multi_reduction <add>, %8, %cst_11 [1] : vector<64x32xf32> to vector<64xf32>
    %12 = vector.shape_cast %11 : vector<64xf32> to vector<64x1xf32>
    %cst_12 = arith.constant 3.200000e+01 : f32
    %13 = vector.broadcast %cst_12 : f32 to vector<64x1xf32>
    %14 = arith.divf %12, %13 : vector<64x1xf32>
    %15 = vector.broadcast %14 : vector<64x1xf32> to vector<64x32xf32>
    %16 = arith.subf %8, %15 : vector<64x32xf32>
    %17 = arith.mulf %16, %16 : vector<64x32xf32>
    %cst_13 = arith.constant dense<0.000000e+00> : vector<64xf32>
    %18 = vector.multi_reduction <add>, %17, %cst_13 [1] : vector<64x32xf32> to vector<64xf32>
    %19 = vector.shape_cast %18 : vector<64xf32> to vector<64x1xf32>
    %cst_14 = arith.constant 3.200000e+01 : f32
    %20 = vector.broadcast %cst_14 : f32 to vector<64x1xf32>
    %21 = arith.divf %19, %20 : vector<64x1xf32>
    %22 = vector.broadcast %14 : vector<64x1xf32> to vector<64x32xf32>
    %23 = arith.subf %8, %22 : vector<64x32xf32>
    %cst_15 = arith.constant 9.99999974E-6 : f32
    %24 = vector.broadcast %cst_15 : f32 to vector<64x1xf32>
    %25 = arith.addf %21, %24 : vector<64x1xf32>
    %26 = math.rsqrt %25 : vector<64x1xf32>
    %27 = vector.broadcast %26 : vector<64x1xf32> to vector<64x32xf32>
    %28 = arith.mulf %23, %27 : vector<64x32xf32>
    %29 = vector.broadcast %9 : vector<1x32xf32> to vector<64x32xf32>
    %30 = arith.mulf %28, %29 : vector<64x32xf32>
    %31 = vector.broadcast %10 : vector<1x32xf32> to vector<64x32xf32>
    %32 = arith.addf %30, %31 : vector<64x32xf32>
    %33 = arith.truncf %32 : vector<64x32xf32> to vector<64x32xbf16>
    %c0_16 = arith.constant 0 : index
    %c0_17 = arith.constant 0 : index
    %34 = vector.load %arg7[%c0_16, %c0_17] : memref<64x32xbf16, #tpu.memory_space<vmem>>, vector<64x32xbf16>
    tpu.vector_store %arg7[%c0_16, %c0_17], %33 {strides = array<i32>} : memref<64x32xbf16, #tpu.memory_space<vmem>>, vector<64x32xbf16>,
    return
  }
  func.func @transform_0(%arg0: i32) -> (i32, i32) {
    %c0_i32 = arith.constant 0 : i32
    %c0_i32_0 = arith.constant 0 : i32
    return %arg0, %c0_i32 : i32, i32
  }
  func.func @transform_1(%arg0: i32) -> (i32, i32) {
    %c0_i32 = arith.constant 0 : i32
    %c0_i32_0 = arith.constant 0 : i32
    return %arg0, %c0_i32 : i32, i32
  }
  func.func @transform_2(%arg0: i32) -> (i32, i32) {
    %c0_i32 = arith.constant 0 : i32
    %c0_i32_0 = arith.constant 0 : i32
    %c0_i32_1 = arith.constant 0 : i32
    return %c0_i32, %c0_i32_0 : i32, i32
  }
  func.func @transform_3(%arg0: i32) -> (i32, i32) {
    %c0_i32 = arith.constant 0 : i32
    %c0_i32_0 = arith.constant 0 : i32
    %c0_i32_1 = arith.constant 0 : i32
    return %c0_i32, %c0_i32_0 : i32, i32
  }
  func.func @transform_4(%arg0: i32) -> (i32, i32) {
    %c0_i32 = arith.constant 0 : i32
    %c0_i32_0 = arith.constant 0 : i32
    %c0_i32_1 = arith.constant 0 : i32
    return %c0_i32, %c0_i32_0 : i32, i32
  }
  func.func @transform_5(%arg0: i32) -> (i32, i32) {
    %c0_i32 = arith.constant 0 : i32
    %c0_i32_0 = arith.constant 0 : i32
    %c0_i32_1 = arith.constant 0 : i32
    return %c0_i32, %c0_i32_0 : i32, i32
  }
  func.func @transform_6(%arg0: i32) -> (i32, i32) {
    %c0_i32 = arith.constant 0 : i32
    %c0_i32_0 = arith.constant 0 : i32
    return %arg0, %c0_i32 : i32, i32
  }
}

module attributes {stable_mosaic.version = 11 : i64} {
  func.func @_ffn_res_ln_kernel(%arg0: i32, %arg1: memref<64x32xbf16, #tpu.memory_space<vmem>>, %arg2: memref<32x64xbf16, #tpu.memory_space<vmem>>, %arg3: memref<1x64xf32, #tpu.memory_space<vmem>>, %arg4: memref<64x32xbf16, #tpu.memory_space<vmem>>, %arg5: memref<1x32xf32, #tpu.memory_space<vmem>>, %arg6: memref<1x32xf32, #tpu.memory_space<vmem>>, %arg7: memref<1x32xf32, #tpu.memory_space<vmem>>, %arg8: memref<64x32xbf16, #tpu.memory_space<vmem>>) attributes {dimension_semantics = [#tpu.dimension_semantics<parallel>], iteration_bounds = array<i64: 2>, scalar_prefetch = 0 : i64, scratch_operands = 0 : i64, tpu.core_type = #tpu.core_type<tc>, window_params = [{transform_indices = @transform_0, window_bounds = array<i64: 64, 32>}, {pipeline_mode = #tpu.pipeline_mode<synchronous>, transform_indices = @transform_1, window_bounds = array<i64: 32, 64>}, {pipeline_mode = #tpu.pipeline_mode<synchronous>, transform_indices = @transform_2, window_bounds = array<i64: 1, 64>}, {pipeline_mode = #tpu.pipeline_mode<synchronous>, transform_indices = @transform_3, window_bounds = array<i64: 64, 32>}, {pipeline_mode = #tpu.pipeline_mode<synchronous>, transform_indices = @transform_4, window_bounds = array<i64: 1, 32>}, {pipeline_mode = #tpu.pipeline_mode<synchronous>, transform_indices = @transform_5, window_bounds = array<i64: 1, 32>}, {pipeline_mode = #tpu.pipeline_mode<synchronous>, transform_indices = @transform_6, window_bounds = array<i64: 1, 32>}, {transform_indices = @transform_7, window_bounds = array<i64: 64, 32>}]} {
    %c0 = arith.constant 0 : index
    %c0_0 = arith.constant 0 : index
    %0 = vector.load %arg1[%c0, %c0_0] : memref<64x32xbf16, #tpu.memory_space<vmem>>, vector<64x32xbf16>
    %c0_1 = arith.constant 0 : index
    %c0_2 = arith.constant 0 : index
    %1 = vector.load %arg2[%c0_1, %c0_2] : memref<32x64xbf16, #tpu.memory_space<vmem>>, vector<32x64xbf16>
    %cst = arith.constant dense<0.000000e+00> : vector<64x64xf32>
    %2 = tpu.matmul %0, %1, %cst {dimension_numbers = #tpu.dot_dimension_numbers<[1], [0], [0], [1], [0, 0, 1, 1], [], []>} : vector<64x32xbf16>, vector<32x64xbf16>, vector<64x64xf32> -> vector<64x64xf32>
    %c0_3 = arith.constant 0 : index
    %c0_4 = arith.constant 0 : index
    %3 = vector.load %arg3[%c0_3, %c0_4] : memref<1x64xf32, #tpu.memory_space<vmem>>, vector<1x64xf32>
    %4 = vector.broadcast %3 : vector<1x64xf32> to vector<64x64xf32>
    %5 = arith.addf %2, %4 : vector<64x64xf32>
    %cst_5 = arith.constant 0.000000e+00 : f32
    %6 = vector.broadcast %cst_5 : f32 to vector<64x64xf32>
    %7 = arith.maximumf %5, %6 : vector<64x64xf32>
    %8 = arith.truncf %7 : vector<64x64xf32> to vector<64x64xbf16>
    %c0_6 = arith.constant 0 : index
    %c0_7 = arith.constant 0 : index
    %9 = vector.load %arg4[%c0_6, %c0_7] : memref<64x32xbf16, #tpu.memory_space<vmem>>, vector<64x32xbf16>
    %cst_8 = arith.constant dense<0.000000e+00> : vector<64x32xf32>
    %10 = tpu.matmul %8, %9, %cst_8 {dimension_numbers = #tpu.dot_dimension_numbers<[1], [0], [0], [1], [0, 0, 1, 1], [], []>} : vector<64x64xbf16>, vector<64x32xbf16>, vector<64x32xf32> -> vector<64x32xf32>
    %c0_9 = arith.constant 0 : index
    %c0_10 = arith.constant 0 : index
    %11 = vector.load %arg5[%c0_9, %c0_10] : memref<1x32xf32, #tpu.memory_space<vmem>>, vector<1x32xf32>
    %12 = vector.broadcast %11 : vector<1x32xf32> to vector<64x32xf32>
    %13 = arith.addf %10, %12 : vector<64x32xf32>
    %14 = arith.extf %0 : vector<64x32xbf16> to vector<64x32xf32>
    %15 = arith.addf %14, %13 : vector<64x32xf32>
    %c0_11 = arith.constant 0 : index
    %c0_12 = arith.constant 0 : index
    %16 = vector.load %arg6[%c0_11, %c0_12] : memref<1x32xf32, #tpu.memory_space<vmem>>, vector<1x32xf32>
    %c0_13 = arith.constant 0 : index
    %c0_14 = arith.constant 0 : index
    %17 = vector.load %arg7[%c0_13, %c0_14] : memref<1x32xf32, #tpu.memory_space<vmem>>, vector<1x32xf32>
    %cst_15 = arith.constant dense<0.000000e+00> : vector<64xf32>
    %18 = vector.multi_reduction <add>, %15, %cst_15 [1] : vector<64x32xf32> to vector<64xf32>
    %19 = vector.shape_cast %18 : vector<64xf32> to vector<64x1xf32>
    %cst_16 = arith.constant 3.200000e+01 : f32
    %20 = vector.broadcast %cst_16 : f32 to vector<64x1xf32>
    %21 = arith.divf %19, %20 : vector<64x1xf32>
    %22 = vector.broadcast %21 : vector<64x1xf32> to vector<64x32xf32>
    %23 = arith.subf %15, %22 : vector<64x32xf32>
    %24 = arith.mulf %23, %23 : vector<64x32xf32>
    %cst_17 = arith.constant dense<0.000000e+00> : vector<64xf32>
    %25 = vector.multi_reduction <add>, %24, %cst_17 [1] : vector<64x32xf32> to vector<64xf32>
    %26 = vector.shape_cast %25 : vector<64xf32> to vector<64x1xf32>
    %cst_18 = arith.constant 3.200000e+01 : f32
    %27 = vector.broadcast %cst_18 : f32 to vector<64x1xf32>
    %28 = arith.divf %26, %27 : vector<64x1xf32>
    %29 = vector.broadcast %21 : vector<64x1xf32> to vector<64x32xf32>
    %30 = arith.subf %15, %29 : vector<64x32xf32>
    %cst_19 = arith.constant 9.99999974E-6 : f32
    %31 = vector.broadcast %cst_19 : f32 to vector<64x1xf32>
    %32 = arith.addf %28, %31 : vector<64x1xf32>
    %33 = math.rsqrt %32 : vector<64x1xf32>
    %34 = vector.broadcast %33 : vector<64x1xf32> to vector<64x32xf32>
    %35 = arith.mulf %30, %34 : vector<64x32xf32>
    %36 = vector.broadcast %16 : vector<1x32xf32> to vector<64x32xf32>
    %37 = arith.mulf %35, %36 : vector<64x32xf32>
    %38 = vector.broadcast %17 : vector<1x32xf32> to vector<64x32xf32>
    %39 = arith.addf %37, %38 : vector<64x32xf32>
    %40 = arith.truncf %39 : vector<64x32xf32> to vector<64x32xbf16>
    %c0_20 = arith.constant 0 : index
    %c0_21 = arith.constant 0 : index
    %41 = vector.load %arg8[%c0_20, %c0_21] : memref<64x32xbf16, #tpu.memory_space<vmem>>, vector<64x32xbf16>
    tpu.vector_store %arg8[%c0_20, %c0_21], %40 {strides = array<i32>} : memref<64x32xbf16, #tpu.memory_space<vmem>>, vector<64x32xbf16>,
    return
  }
  func.func @transform_0(%arg0: i32) -> (i32, i32) {
    %c0_i32 = arith.constant 0 : i32
    %c0_i32_0 = arith.constant 0 : i32
    return %arg0, %c0_i32 : i32, i32
  }
  func.func @transform_1(%arg0: i32) -> (i32, i32) {
    %c0_i32 = arith.constant 0 : i32
    %c0_i32_0 = arith.constant 0 : i32
    %c0_i32_1 = arith.constant 0 : i32
    return %c0_i32, %c0_i32_0 : i32, i32
  }
  func.func @transform_2(%arg0: i32) -> (i32, i32) {
    %c0_i32 = arith.constant 0 : i32
    %c0_i32_0 = arith.constant 0 : i32
    %c0_i32_1 = arith.constant 0 : i32
    return %c0_i32, %c0_i32_0 : i32, i32
  }
  func.func @transform_3(%arg0: i32) -> (i32, i32) {
    %c0_i32 = arith.constant 0 : i32
    %c0_i32_0 = arith.constant 0 : i32
    %c0_i32_1 = arith.constant 0 : i32
    return %c0_i32, %c0_i32_0 : i32, i32
  }
  func.func @transform_4(%arg0: i32) -> (i32, i32) {
    %c0_i32 = arith.constant 0 : i32
    %c0_i32_0 = arith.constant 0 : i32
    %c0_i32_1 = arith.constant 0 : i32
    return %c0_i32, %c0_i32_0 : i32, i32
  }
  func.func @transform_5(%arg0: i32) -> (i32, i32) {
    %c0_i32 = arith.constant 0 : i32
    %c0_i32_0 = arith.constant 0 : i32
    %c0_i32_1 = arith.constant 0 : i32
    return %c0_i32, %c0_i32_0 : i32, i32
  }
  func.func @transform_6(%arg0: i32) -> (i32, i32) {
    %c0_i32 = arith.constant 0 : i32
    %c0_i32_0 = arith.constant 0 : i32
    %c0_i32_1 = arith.constant 0 : i32
    return %c0_i32, %c0_i32_0 : i32, i32
  }
  func.func @transform_7(%arg0: i32) -> (i32, i32) {
    %c0_i32 = arith.constant 0 : i32
    %c0_i32_0 = arith.constant 0 : i32
    return %arg0, %c0_i32 : i32, i32
  }
}

module attributes {stable_mosaic.version = 11 : i64} {
  func.func @_linear_kernel(%arg0: i32, %arg1: memref<64x32xbf16, #tpu.memory_space<vmem>>, %arg2: memref<32x64xbf16, #tpu.memory_space<vmem>>, %arg3: memref<1x64xf32, #tpu.memory_space<vmem>>, %arg4: memref<64x64xbf16, #tpu.memory_space<vmem>>) attributes {dimension_semantics = [#tpu.dimension_semantics<parallel>], iteration_bounds = array<i64: 2>, scalar_prefetch = 0 : i64, scratch_operands = 0 : i64, tpu.core_type = #tpu.core_type<tc>, window_params = [{transform_indices = @transform_0, window_bounds = array<i64: 64, 32>}, {pipeline_mode = #tpu.pipeline_mode<synchronous>, transform_indices = @transform_1, window_bounds = array<i64: 32, 64>}, {pipeline_mode = #tpu.pipeline_mode<synchronous>, transform_indices = @transform_2, window_bounds = array<i64: 1, 64>}, {transform_indices = @transform_3, window_bounds = array<i64: 64, 64>}]} {
    %c0 = arith.constant 0 : index
    %c0_0 = arith.constant 0 : index
    %0 = vector.load %arg1[%c0, %c0_0] : memref<64x32xbf16, #tpu.memory_space<vmem>>, vector<64x32xbf16>
    %c0_1 = arith.constant 0 : index
    %c0_2 = arith.constant 0 : index
    %1 = vector.load %arg2[%c0_1, %c0_2] : memref<32x64xbf16, #tpu.memory_space<vmem>>, vector<32x64xbf16>
    %cst = arith.constant dense<0.000000e+00> : vector<64x64xf32>
    %2 = tpu.matmul %0, %1, %cst {dimension_numbers = #tpu.dot_dimension_numbers<[1], [0], [0], [1], [0, 0, 1, 1], [], []>} : vector<64x32xbf16>, vector<32x64xbf16>, vector<64x64xf32> -> vector<64x64xf32>
    %c0_3 = arith.constant 0 : index
    %c0_4 = arith.constant 0 : index
    %3 = vector.load %arg3[%c0_3, %c0_4] : memref<1x64xf32, #tpu.memory_space<vmem>>, vector<1x64xf32>
    %4 = vector.broadcast %3 : vector<1x64xf32> to vector<64x64xf32>
    %5 = arith.addf %2, %4 : vector<64x64xf32>
    %6 = arith.truncf %5 : vector<64x64xf32> to vector<64x64xbf16>
    %c0_5 = arith.constant 0 : index
    %c0_6 = arith.constant 0 : index
    %7 = vector.load %arg4[%c0_5, %c0_6] : memref<64x64xbf16, #tpu.memory_space<vmem>>, vector<64x64xbf16>
    tpu.vector_store %arg4[%c0_5, %c0_6], %6 {strides = array<i32>} : memref<64x64xbf16, #tpu.memory_space<vmem>>, vector<64x64xbf16>,
    return
  }
  func.func @transform_0(%arg0: i32) -> (i32, i32) {
    %c0_i32 = arith.constant 0 : i32
    %c0_i32_0 = arith.constant 0 : i32
    return %arg0, %c0_i32 : i32, i32
  }
  func.func @transform_1(%arg0: i32) -> (i32, i32) {
    %c0_i32 = arith.constant 0 : i32
    %c0_i32_0 = arith.constant 0 : i32
    %c0_i32_1 = arith.constant 0 : i32
    return %c0_i32, %c0_i32_0 : i32, i32
  }
  func.func @transform_2(%arg0: i32) -> (i32, i32) {
    %c0_i32 = arith.constant 0 : i32
    %c0_i32_0 = arith.constant 0 : i32
    %c0_i32_1 = arith.constant 0 : i32
    return %c0_i32, %c0_i32_0 : i32, i32
  }
  func.func @transform_3(%arg0: i32) -> (i32, i32) {
    %c0_i32 = arith.constant 0 : i32
    %c0_i32_0 = arith.constant 0 : i32
    return %arg0, %c0_i32 : i32, i32
  }
}

module attributes {stable_mosaic.version = 11 : i64} {
  func.func @_attn_kernel(%arg0: i32, %arg1: i32, %arg2: memref<1x8x32xbf16, #tpu.memory_space<vmem>>, %arg3: memref<1x8x64xbf16, #tpu.memory_space<vmem>>, %arg4: memref<1x8x32xbf16, #tpu.memory_space<vmem>>) attributes {dimension_semantics = [#tpu.dimension_semantics<parallel>, #tpu.dimension_semantics<parallel>], iteration_bounds = array<i64: 2, 1>, scalar_prefetch = 0 : i64, scratch_operands = 0 : i64, tpu.core_type = #tpu.core_type<tc>, window_params = [{transform_indices = @transform_0, window_bounds = array<i64: 1, 8, 32>}, {transform_indices = @transform_1, window_bounds = array<i64: 1, 8, 64>}, {transform_indices = @transform_2, window_bounds = array<i64: 1, 8, 32>}]} {
    %c0 = arith.constant 0 : index
    %c0_0 = arith.constant 0 : index
    %c0_1 = arith.constant 0 : index
    %0 = vector.load %arg2[%c0, %c0_0, %c0_1] : memref<1x8x32xbf16, #tpu.memory_space<vmem>>, vector<1x8x32xbf16>
    %1 = vector.shape_cast %0 : vector<1x8x32xbf16> to vector<8x32xbf16>
    %c0_2 = arith.constant 0 : index
    %c0_3 = arith.constant 0 : index
    %c0_4 = arith.constant 0 : index
    %2 = vector.load %arg3[%c0_2, %c0_3, %c0_4] : memref<1x8x64xbf16, #tpu.memory_space<vmem>>, vector<1x8x64xbf16>
    %3 = vector.shape_cast %2 : vector<1x8x64xbf16> to vector<8x64xbf16>
    %4 = vector.extract_strided_slice %1 {offsets = [0, 0], sizes = [8, 8], strides = [1, 1]} : vector<8x32xbf16> to vector<8x8xbf16>
    %5 = vector.extract_strided_slice %3 {offsets = [0, 0], sizes = [8, 8], strides = [1, 1]} : vector<8x64xbf16> to vector<8x8xbf16>
    %6 = vector.extract_strided_slice %3 {offsets = [0, 32], sizes = [8, 8], strides = [1, 1]} : vector<8x64xbf16> to vector<8x8xbf16>
    %cst = arith.constant dense<0.000000e+00> : vector<8x8xf32>
    %7 = tpu.matmul %4, %5, %cst {dimension_numbers = #tpu.dot_dimension_numbers<[1], [1], [0], [0], [0, 0, 1, 0], [], []>} : vector<8x8xbf16>, vector<8x8xbf16>, vector<8x8xf32> -> vector<8x8xf32>
    %cst_5 = arith.constant dense<0xFF800000> : vector<8xf32>
    %8 = vector.multi_reduction <maximumf>, %7, %cst_5 [1] : vector<8x8xf32> to vector<8xf32>
    %9 = vector.shape_cast %8 : vector<8xf32> to vector<8x1xf32>
    %10 = vector.broadcast %9 : vector<8x1xf32> to vector<8x8xf32>
    %11 = arith.subf %7, %10 : vector<8x8xf32>
    %12 = math.exp %11 : vector<8x8xf32>
    %cst_6 = arith.constant dense<0.000000e+00> : vector<8xf32>
    %13 = vector.multi_reduction <add>, %12, %cst_6 [1] : vector<8x8xf32> to vector<8xf32>
    %14 = vector.shape_cast %13 : vector<8xf32> to vector<8x1xf32>
    %15 = tpu.reciprocal %14 {approx = true} : vector<8x1xf32> -> vector<8x1xf32>
    %16 = vector.broadcast %15 : vector<8x1xf32> to vector<8x8xf32>
    %17 = arith.mulf %12, %16 : vector<8x8xf32>
    %18 = arith.truncf %17 : vector<8x8xf32> to vector<8x8xbf16>
    %cst_7 = arith.constant dense<0.000000e+00> : vector<8x8xf32>
    %19 = tpu.matmul %18, %6, %cst_7 {dimension_numbers = #tpu.dot_dimension_numbers<[1], [0], [0], [1], [0, 0, 1, 1], [], []>} : vector<8x8xbf16>, vector<8x8xbf16>, vector<8x8xf32> -> vector<8x8xf32>
    %20 = vector.extract_strided_slice %1 {offsets = [0, 8], sizes = [8, 8], strides = [1, 1]} : vector<8x32xbf16> to vector<8x8xbf16>
    %21 = vector.extract_strided_slice %3 {offsets = [0, 8], sizes = [8, 8], strides = [1, 1]} : vector<8x64xbf16> to vector<8x8xbf16>
    %22 = vector.extract_strided_slice %3 {offsets = [0, 40], sizes = [8, 8], strides = [1, 1]} : vector<8x64xbf16> to vector<8x8xbf16>
    %cst_8 = arith.constant dense<0.000000e+00> : vector<8x8xf32>
    %23 = tpu.matmul %20, %21, %cst_8 {dimension_numbers = #tpu.dot_dimension_numbers<[1], [1], [0], [0], [0, 0, 1, 0], [], []>} : vector<8x8xbf16>, vector<8x8xbf16>, vector<8x8xf32> -> vector<8x8xf32>
    %cst_9 = arith.constant dense<0xFF800000> : vector<8xf32>
    %24 = vector.multi_reduction <maximumf>, %23, %cst_9 [1] : vector<8x8xf32> to vector<8xf32>
    %25 = vector.shape_cast %24 : vector<8xf32> to vector<8x1xf32>
    %26 = vector.broadcast %25 : vector<8x1xf32> to vector<8x8xf32>
    %27 = arith.subf %23, %26 : vector<8x8xf32>
    %28 = math.exp %27 : vector<8x8xf32>
    %cst_10 = arith.constant dense<0.000000e+00> : vector<8xf32>
    %29 = vector.multi_reduction <add>, %28, %cst_10 [1] : vector<8x8xf32> to vector<8xf32>
    %30 = vector.shape_cast %29 : vector<8xf32> to vector<8x1xf32>
    %31 = tpu.reciprocal %30 {approx = true} : vector<8x1xf32> -> vector<8x1xf32>
    %32 = vector.broadcast %31 : vector<8x1xf32> to vector<8x8xf32>
    %33 = arith.mulf %28, %32 : vector<8x8xf32>
    %34 = arith.truncf %33 : vector<8x8xf32> to vector<8x8xbf16>
    %cst_11 = arith.constant dense<0.000000e+00> : vector<8x8xf32>
    %35 = tpu.matmul %34, %22, %cst_11 {dimension_numbers = #tpu.dot_dimension_numbers<[1], [0], [0], [1], [0, 0, 1, 1], [], []>} : vector<8x8xbf16>, vector<8x8xbf16>, vector<8x8xf32> -> vector<8x8xf32>
    %36 = vector.extract_strided_slice %1 {offsets = [0, 16], sizes = [8, 8], strides = [1, 1]} : vector<8x32xbf16> to vector<8x8xbf16>
    %37 = vector.extract_strided_slice %3 {offsets = [0, 16], sizes = [8, 8], strides = [1, 1]} : vector<8x64xbf16> to vector<8x8xbf16>
    %38 = vector.extract_strided_slice %3 {offsets = [0, 48], sizes = [8, 8], strides = [1, 1]} : vector<8x64xbf16> to vector<8x8xbf16>
    %cst_12 = arith.constant dense<0.000000e+00> : vector<8x8xf32>
    %39 = tpu.matmul %36, %37, %cst_12 {dimension_numbers = #tpu.dot_dimension_numbers<[1], [1], [0], [0], [0, 0, 1, 0], [], []>} : vector<8x8xbf16>, vector<8x8xbf16>, vector<8x8xf32> -> vector<8x8xf32>
    %cst_13 = arith.constant dense<0xFF800000> : vector<8xf32>
    %40 = vector.multi_reduction <maximumf>, %39, %cst_13 [1] : vector<8x8xf32> to vector<8xf32>
    %41 = vector.shape_cast %40 : vector<8xf32> to vector<8x1xf32>
    %42 = vector.broadcast %41 : vector<8x1xf32> to vector<8x8xf32>
    %43 = arith.subf %39, %42 : vector<8x8xf32>
    %44 = math.exp %43 : vector<8x8xf32>
    %cst_14 = arith.constant dense<0.000000e+00> : vector<8xf32>
    %45 = vector.multi_reduction <add>, %44, %cst_14 [1] : vector<8x8xf32> to vector<8xf32>
    %46 = vector.shape_cast %45 : vector<8xf32> to vector<8x1xf32>
    %47 = tpu.reciprocal %46 {approx = true} : vector<8x1xf32> -> vector<8x1xf32>
    %48 = vector.broadcast %47 : vector<8x1xf32> to vector<8x8xf32>
    %49 = arith.mulf %44, %48 : vector<8x8xf32>
    %50 = arith.truncf %49 : vector<8x8xf32> to vector<8x8xbf16>
    %cst_15 = arith.constant dense<0.000000e+00> : vector<8x8xf32>
    %51 = tpu.matmul %50, %38, %cst_15 {dimension_numbers = #tpu.dot_dimension_numbers<[1], [0], [0], [1], [0, 0, 1, 1], [], []>} : vector<8x8xbf16>, vector<8x8xbf16>, vector<8x8xf32> -> vector<8x8xf32>
    %52 = vector.extract_strided_slice %1 {offsets = [0, 24], sizes = [8, 8], strides = [1, 1]} : vector<8x32xbf16> to vector<8x8xbf16>
    %53 = vector.extract_strided_slice %3 {offsets = [0, 24], sizes = [8, 8], strides = [1, 1]} : vector<8x64xbf16> to vector<8x8xbf16>
    %54 = vector.extract_strided_slice %3 {offsets = [0, 56], sizes = [8, 8], strides = [1, 1]} : vector<8x64xbf16> to vector<8x8xbf16>
    %cst_16 = arith.constant dense<0.000000e+00> : vector<8x8xf32>
    %55 = tpu.matmul %52, %53, %cst_16 {dimension_numbers = #tpu.dot_dimension_numbers<[1], [1], [0], [0], [0, 0, 1, 0], [], []>} : vector<8x8xbf16>, vector<8x8xbf16>, vector<8x8xf32> -> vector<8x8xf32>
    %cst_17 = arith.constant dense<0xFF800000> : vector<8xf32>
    %56 = vector.multi_reduction <maximumf>, %55, %cst_17 [1] : vector<8x8xf32> to vector<8xf32>
    %57 = vector.shape_cast %56 : vector<8xf32> to vector<8x1xf32>
    %58 = vector.broadcast %57 : vector<8x1xf32> to vector<8x8xf32>
    %59 = arith.subf %55, %58 : vector<8x8xf32>
    %60 = math.exp %59 : vector<8x8xf32>
    %cst_18 = arith.constant dense<0.000000e+00> : vector<8xf32>
    %61 = vector.multi_reduction <add>, %60, %cst_18 [1] : vector<8x8xf32> to vector<8xf32>
    %62 = vector.shape_cast %61 : vector<8xf32> to vector<8x1xf32>
    %63 = tpu.reciprocal %62 {approx = true} : vector<8x1xf32> -> vector<8x1xf32>
    %64 = vector.broadcast %63 : vector<8x1xf32> to vector<8x8xf32>
    %65 = arith.mulf %60, %64 : vector<8x8xf32>
    %66 = arith.truncf %65 : vector<8x8xf32> to vector<8x8xbf16>
    %cst_19 = arith.constant dense<0.000000e+00> : vector<8x8xf32>
    %67 = tpu.matmul %66, %54, %cst_19 {dimension_numbers = #tpu.dot_dimension_numbers<[1], [0], [0], [1], [0, 0, 1, 1], [], []>} : vector<8x8xbf16>, vector<8x8xbf16>, vector<8x8xf32> -> vector<8x8xf32>
    %68 = tpu.concatenate %19, %35, %51, %67 in 1 : vector<8x8xf32>, vector<8x8xf32>, vector<8x8xf32>, vector<8x8xf32> -> vector<8x32xf32>
    %69 = arith.truncf %68 : vector<8x32xf32> to vector<8x32xbf16>
    %c0_20 = arith.constant 0 : index
    %c0_21 = arith.constant 0 : index
    %c0_22 = arith.constant 0 : index
    %70 = vector.load %arg4[%c0_20, %c0_21, %c0_22] : memref<1x8x32xbf16, #tpu.memory_space<vmem>>, vector<1x8x32xbf16>
    %71 = vector.shape_cast %70 : vector<1x8x32xbf16> to vector<8x32xbf16>
    %72 = vector.shape_cast %69 : vector<8x32xbf16> to vector<1x8x32xbf16>
    tpu.vector_store %arg4[%c0_20, %c0_21, %c0_22], %72 {strides = array<i32>} : memref<1x8x32xbf16, #tpu.memory_space<vmem>>, vector<1x8x32xbf16>,
    return
  }
  func.func @transform_0(%arg0: i32, %arg1: i32) -> (i32, i32, i32) {
    %c0_i32 = arith.constant 0 : i32
    %c0_i32_0 = arith.constant 0 : i32
    return %arg0, %arg1, %c0_i32 : i32, i32, i32
  }
  func.func @transform_1(%arg0: i32, %arg1: i32) -> (i32, i32, i32) {
    %c0_i32 = arith.constant 0 : i32
    %c0_i32_0 = arith.constant 0 : i32
    %c0_i32_1 = arith.constant 0 : i32
    return %arg0, %c0_i32, %c0_i32_0 : i32, i32, i32
  }
  func.func @transform_2(%arg0: i32, %arg1: i32) -> (i32, i32, i32) {
    %c0_i32 = arith.constant 0 : i32
    %c0_i32_0 = arith.constant 0 : i32
    return %arg0, %arg1, %c0_i32 : i32, i32, i32
  }
}

module attributes {stable_mosaic.version = 11 : i64} {
  func.func @_qkv_dec_kernel(%arg0: i32, %arg1: memref<8x32xbf16, #tpu.memory_space<vmem>>, %arg2: memref<8x32xbf16, #tpu.memory_space<vmem>>, %arg3: memref<32x32xbf16, #tpu.memory_space<vmem>>, %arg4: memref<1x32xf32, #tpu.memory_space<vmem>>, %arg5: memref<32x32xbf16, #tpu.memory_space<vmem>>, %arg6: memref<1x32xf32, #tpu.memory_space<vmem>>, %arg7: memref<32x32xbf16, #tpu.memory_space<vmem>>, %arg8: memref<1x32xf32, #tpu.memory_space<vmem>>, %arg9: memref<8x32xbf16, #tpu.memory_space<vmem>>, %arg10: memref<8x64xbf16, #tpu.memory_space<vmem>>) attributes {dimension_semantics = [#tpu.dimension_semantics<parallel>], iteration_bounds = array<i64: 2>, scalar_prefetch = 0 : i64, scratch_operands = 0 : i64, tpu.core_type = #tpu.core_type<tc>, window_params = [{transform_indices = @transform_0, window_bounds = array<i64: 8, 32>}, {transform_indices = @transform_1, window_bounds = array<i64: 8, 32>}, {pipeline_mode = #tpu.pipeline_mode<synchronous>, transform_indices = @transform_2, window_bounds = array<i64: 32, 32>}, {pipeline_mode = #tpu.pipeline_mode<synchronous>, transform_indices = @transform_3, window_bounds = array<i64: 1, 32>}, {pipeline_mode = #tpu.pipeline_mode<synchronous>, transform_indices = @transform_4, window_bounds = array<i64: 32, 32>}, {pipeline_mode = #tpu.pipeline_mode<synchronous>, transform_indices = @transform_5, window_bounds = array<i64: 1, 32>}, {pipeline_mode = #tpu.pipeline_mode<synchronous>, transform_indices = @transform_6, window_bounds = array<i64: 32, 32>}, {pipeline_mode = #tpu.pipeline_mode<synchronous>, transform_indices = @transform_7, window_bounds = array<i64: 1, 32>}, {transform_indices = @transform_8, window_bounds = array<i64: 8, 32>}, {transform_indices = @transform_9, window_bounds = array<i64: 8, 64>}]} {
    %c0 = arith.constant 0 : index
    %c0_0 = arith.constant 0 : index
    %0 = vector.load %arg1[%c0, %c0_0] : memref<8x32xbf16, #tpu.memory_space<vmem>>, vector<8x32xbf16>
    %c0_1 = arith.constant 0 : index
    %c0_2 = arith.constant 0 : index
    %1 = vector.load %arg2[%c0_1, %c0_2] : memref<8x32xbf16, #tpu.memory_space<vmem>>, vector<8x32xbf16>
    %2 = arith.addf %0, %1 : vector<8x32xbf16>
    %c0_3 = arith.constant 0 : index
    %c0_4 = arith.constant 0 : index
    %3 = vector.load %arg3[%c0_3, %c0_4] : memref<32x32xbf16, #tpu.memory_space<vmem>>, vector<32x32xbf16>
    %cst = arith.constant dense<0.000000e+00> : vector<8x32xf32>
    %4 = tpu.matmul %2, %3, %cst {dimension_numbers = #tpu.dot_dimension_numbers<[1], [0], [0], [1], [0, 0, 1, 1], [], []>} : vector<8x32xbf16>, vector<32x32xbf16>, vector<8x32xf32> -> vector<8x32xf32>
    %c0_5 = arith.constant 0 : index
    %c0_6 = arith.constant 0 : index
    %5 = vector.load %arg4[%c0_5, %c0_6] : memref<1x32xf32, #tpu.memory_space<vmem>>, vector<1x32xf32>
    %6 = vector.broadcast %5 : vector<1x32xf32> to vector<8x32xf32>
    %7 = arith.addf %4, %6 : vector<8x32xf32>
    %c0_7 = arith.constant 0 : index
    %c0_8 = arith.constant 0 : index
    %8 = vector.load %arg5[%c0_7, %c0_8] : memref<32x32xbf16, #tpu.memory_space<vmem>>, vector<32x32xbf16>
    %cst_9 = arith.constant dense<0.000000e+00> : vector<8x32xf32>
    %9 = tpu.matmul %2, %8, %cst_9 {dimension_numbers = #tpu.dot_dimension_numbers<[1], [0], [0], [1], [0, 0, 1, 1], [], []>} : vector<8x32xbf16>, vector<32x32xbf16>, vector<8x32xf32> -> vector<8x32xf32>
    %c0_10 = arith.constant 0 : index
    %c0_11 = arith.constant 0 : index
    %10 = vector.load %arg6[%c0_10, %c0_11] : memref<1x32xf32, #tpu.memory_space<vmem>>, vector<1x32xf32>
    %11 = vector.broadcast %10 : vector<1x32xf32> to vector<8x32xf32>
    %12 = arith.addf %9, %11 : vector<8x32xf32>
    %c0_12 = arith.constant 0 : index
    %c0_13 = arith.constant 0 : index
    %13 = vector.load %arg7[%c0_12, %c0_13] : memref<32x32xbf16, #tpu.memory_space<vmem>>, vector<32x32xbf16>
    %cst_14 = arith.constant dense<0.000000e+00> : vector<8x32xf32>
    %14 = tpu.matmul %0, %13, %cst_14 {dimension_numbers = #tpu.dot_dimension_numbers<[1], [0], [0], [1], [0, 0, 1, 1], [], []>} : vector<8x32xbf16>, vector<32x32xbf16>, vector<8x32xf32> -> vector<8x32xf32>
    %c0_15 = arith.constant 0 : index
    %c0_16 = arith.constant 0 : index
    %15 = vector.load %arg8[%c0_15, %c0_16] : memref<1x32xf32, #tpu.memory_space<vmem>>, vector<1x32xf32>
    %16 = vector.broadcast %15 : vector<1x32xf32> to vector<8x32xf32>
    %17 = arith.addf %14, %16 : vector<8x32xf32>
    %18 = arith.truncf %7 : vector<8x32xf32> to vector<8x32xbf16>
    %c0_17 = arith.constant 0 : index
    %c0_18 = arith.constant 0 : index
    %19 = vector.load %arg9[%c0_17, %c0_18] : memref<8x32xbf16, #tpu.memory_space<vmem>>, vector<8x32xbf16>
    tpu.vector_store %arg9[%c0_17, %c0_18], %18 {strides = array<i32>} : memref<8x32xbf16, #tpu.memory_space<vmem>>, vector<8x32xbf16>,
    %20 = arith.truncf %12 : vector<8x32xf32> to vector<8x32xbf16>
    %c0_19 = arith.constant 0 : index
    %c0_20 = arith.constant 0 : index
    %21 = vector.load %arg10[%c0_19, %c0_20] : memref<8x64xbf16, #tpu.memory_space<vmem>>, vector<8x32xbf16>
    tpu.vector_store %arg10[%c0_19, %c0_20], %20 {strides = array<i32>} : memref<8x64xbf16, #tpu.memory_space<vmem>>, vector<8x32xbf16>,
    %22 = arith.truncf %17 : vector<8x32xf32> to vector<8x32xbf16>
    %c0_21 = arith.constant 0 : index
    %c32 = arith.constant 32 : index
    %23 = vector.load %arg10[%c0_21, %c32] : memref<8x64xbf16, #tpu.memory_space<vmem>>, vector<8x32xbf16>
    tpu.vector_store %arg10[%c0_21, %c32], %22 {strides = array<i32>} : memref<8x64xbf16, #tpu.memory_space<vmem>>, vector<8x32xbf16>,
    return
  }
  func.func @transform_0(%arg0: i32) -> (i32, i32) {
    %c0_i32 = arith.constant 0 : i32
    %c0_i32_0 = arith.constant 0 : i32
    return %arg0, %c0_i32 : i32, i32
  }
  func.func @transform_1(%arg0: i32) -> (i32, i32) {
    %c0_i32 = arith.constant 0 : i32
    %c0_i32_0 = arith.constant 0 : i32
    return %arg0, %c0_i32 : i32, i32
  }
  func.func @transform_2(%arg0: i32) -> (i32, i32) {
    %c0_i32 = arith.constant 0 : i32
    %c0_i32_0 = arith.constant 0 : i32
    %c0_i32_1 = arith.constant 0 : i32
    return %c0_i32, %c0_i32_0 : i32, i32
  }
  func.func @transform_3(%arg0: i32) -> (i32, i32) {
    %c0_i32 = arith.constant 0 : i32
    %c0_i32_0 = arith.constant 0 : i32
    %c0_i32_1 = arith.constant 0 : i32
    return %c0_i32, %c0_i32_0 : i32, i32
  }
  func.func @transform_4(%arg0: i32) -> (i32, i32) {
    %c0_i32 = arith.constant 0 : i32
    %c0_i32_0 = arith.constant 0 : i32
    %c0_i32_1 = arith.constant 0 : i32
    return %c0_i32, %c0_i32_0 : i32, i32
  }
  func.func @transform_5(%arg0: i32) -> (i32, i32) {
    %c0_i32 = arith.constant 0 : i32
    %c0_i32_0 = arith.constant 0 : i32
    %c0_i32_1 = arith.constant 0 : i32
    return %c0_i32, %c0_i32_0 : i32, i32
  }
  func.func @transform_6(%arg0: i32) -> (i32, i32) {
    %c0_i32 = arith.constant 0 : i32
    %c0_i32_0 = arith.constant 0 : i32
    %c0_i32_1 = arith.constant 0 : i32
    return %c0_i32, %c0_i32_0 : i32, i32
  }
  func.func @transform_7(%arg0: i32) -> (i32, i32) {
    %c0_i32 = arith.constant 0 : i32
    %c0_i32_0 = arith.constant 0 : i32
    %c0_i32_1 = arith.constant 0 : i32
    return %c0_i32, %c0_i32_0 : i32, i32
  }
  func.func @transform_8(%arg0: i32) -> (i32, i32) {
    %c0_i32 = arith.constant 0 : i32
    %c0_i32_0 = arith.constant 0 : i32
    return %arg0, %c0_i32 : i32, i32
  }
  func.func @transform_9(%arg0: i32) -> (i32, i32) {
    %c0_i32 = arith.constant 0 : i32
    %c0_i32_0 = arith.constant 0 : i32
    return %arg0, %c0_i32 : i32, i32
  }
}

module attributes {stable_mosaic.version = 11 : i64} {
  func.func @_proj_res_ln_kernel(%arg0: i32, %arg1: memref<8x32xbf16, #tpu.memory_space<vmem>>, %arg2: memref<8x32xbf16, #tpu.memory_space<vmem>>, %arg3: memref<32x32xbf16, #tpu.memory_space<vmem>>, %arg4: memref<1x32xf32, #tpu.memory_space<vmem>>, %arg5: memref<1x32xf32, #tpu.memory_space<vmem>>, %arg6: memref<1x32xf32, #tpu.memory_space<vmem>>, %arg7: memref<8x32xbf16, #tpu.memory_space<vmem>>) attributes {dimension_semantics = [#tpu.dimension_semantics<parallel>], iteration_bounds = array<i64: 2>, scalar_prefetch = 0 : i64, scratch_operands = 0 : i64, tpu.core_type = #tpu.core_type<tc>, window_params = [{transform_indices = @transform_0, window_bounds = array<i64: 8, 32>}, {transform_indices = @transform_1, window_bounds = array<i64: 8, 32>}, {pipeline_mode = #tpu.pipeline_mode<synchronous>, transform_indices = @transform_2, window_bounds = array<i64: 32, 32>}, {pipeline_mode = #tpu.pipeline_mode<synchronous>, transform_indices = @transform_3, window_bounds = array<i64: 1, 32>}, {pipeline_mode = #tpu.pipeline_mode<synchronous>, transform_indices = @transform_4, window_bounds = array<i64: 1, 32>}, {pipeline_mode = #tpu.pipeline_mode<synchronous>, transform_indices = @transform_5, window_bounds = array<i64: 1, 32>}, {transform_indices = @transform_6, window_bounds = array<i64: 8, 32>}]} {
    %c0 = arith.constant 0 : index
    %c0_0 = arith.constant 0 : index
    %0 = vector.load %arg1[%c0, %c0_0] : memref<8x32xbf16, #tpu.memory_space<vmem>>, vector<8x32xbf16>
    %c0_1 = arith.constant 0 : index
    %c0_2 = arith.constant 0 : index
    %1 = vector.load %arg3[%c0_1, %c0_2] : memref<32x32xbf16, #tpu.memory_space<vmem>>, vector<32x32xbf16>
    %cst = arith.constant dense<0.000000e+00> : vector<8x32xf32>
    %2 = tpu.matmul %0, %1, %cst {dimension_numbers = #tpu.dot_dimension_numbers<[1], [0], [0], [1], [0, 0, 1, 1], [], []>} : vector<8x32xbf16>, vector<32x32xbf16>, vector<8x32xf32> -> vector<8x32xf32>
    %c0_3 = arith.constant 0 : index
    %c0_4 = arith.constant 0 : index
    %3 = vector.load %arg4[%c0_3, %c0_4] : memref<1x32xf32, #tpu.memory_space<vmem>>, vector<1x32xf32>
    %4 = vector.broadcast %3 : vector<1x32xf32> to vector<8x32xf32>
    %5 = arith.addf %2, %4 : vector<8x32xf32>
    %c0_5 = arith.constant 0 : index
    %c0_6 = arith.constant 0 : index
    %6 = vector.load %arg2[%c0_5, %c0_6] : memref<8x32xbf16, #tpu.memory_space<vmem>>, vector<8x32xbf16>
    %7 = arith.extf %6 : vector<8x32xbf16> to vector<8x32xf32>
    %8 = arith.addf %7, %5 : vector<8x32xf32>
    %c0_7 = arith.constant 0 : index
    %c0_8 = arith.constant 0 : index
    %9 = vector.load %arg5[%c0_7, %c0_8] : memref<1x32xf32, #tpu.memory_space<vmem>>, vector<1x32xf32>
    %c0_9 = arith.constant 0 : index
    %c0_10 = arith.constant 0 : index
    %10 = vector.load %arg6[%c0_9, %c0_10] : memref<1x32xf32, #tpu.memory_space<vmem>>, vector<1x32xf32>
    %cst_11 = arith.constant dense<0.000000e+00> : vector<8xf32>
    %11 = vector.multi_reduction <add>, %8, %cst_11 [1] : vector<8x32xf32> to vector<8xf32>
    %12 = vector.shape_cast %11 : vector<8xf32> to vector<8x1xf32>
    %cst_12 = arith.constant 3.200000e+01 : f32
    %13 = vector.broadcast %cst_12 : f32 to vector<8x1xf32>
    %14 = arith.divf %12, %13 : vector<8x1xf32>
    %15 = vector.broadcast %14 : vector<8x1xf32> to vector<8x32xf32>
    %16 = arith.subf %8, %15 : vector<8x32xf32>
    %17 = arith.mulf %16, %16 : vector<8x32xf32>
    %cst_13 = arith.constant dense<0.000000e+00> : vector<8xf32>
    %18 = vector.multi_reduction <add>, %17, %cst_13 [1] : vector<8x32xf32> to vector<8xf32>
    %19 = vector.shape_cast %18 : vector<8xf32> to vector<8x1xf32>
    %cst_14 = arith.constant 3.200000e+01 : f32
    %20 = vector.broadcast %cst_14 : f32 to vector<8x1xf32>
    %21 = arith.divf %19, %20 : vector<8x1xf32>
    %22 = vector.broadcast %14 : vector<8x1xf32> to vector<8x32xf32>
    %23 = arith.subf %8, %22 : vector<8x32xf32>
    %cst_15 = arith.constant 9.99999974E-6 : f32
    %24 = vector.broadcast %cst_15 : f32 to vector<8x1xf32>
    %25 = arith.addf %21, %24 : vector<8x1xf32>
    %26 = math.rsqrt %25 : vector<8x1xf32>
    %27 = vector.broadcast %26 : vector<8x1xf32> to vector<8x32xf32>
    %28 = arith.mulf %23, %27 : vector<8x32xf32>
    %29 = vector.broadcast %9 : vector<1x32xf32> to vector<8x32xf32>
    %30 = arith.mulf %28, %29 : vector<8x32xf32>
    %31 = vector.broadcast %10 : vector<1x32xf32> to vector<8x32xf32>
    %32 = arith.addf %30, %31 : vector<8x32xf32>
    %33 = arith.truncf %32 : vector<8x32xf32> to vector<8x32xbf16>
    %c0_16 = arith.constant 0 : index
    %c0_17 = arith.constant 0 : index
    %34 = vector.load %arg7[%c0_16, %c0_17] : memref<8x32xbf16, #tpu.memory_space<vmem>>, vector<8x32xbf16>
    tpu.vector_store %arg7[%c0_16, %c0_17], %33 {strides = array<i32>} : memref<8x32xbf16, #tpu.memory_space<vmem>>, vector<8x32xbf16>,
    return
  }
  func.func @transform_0(%arg0: i32) -> (i32, i32) {
    %c0_i32 = arith.constant 0 : i32
    %c0_i32_0 = arith.constant 0 : i32
    return %arg0, %c0_i32 : i32, i32
  }
  func.func @transform_1(%arg0: i32) -> (i32, i32) {
    %c0_i32 = arith.constant 0 : i32
    %c0_i32_0 = arith.constant 0 : i32
    return %arg0, %c0_i32 : i32, i32
  }
  func.func @transform_2(%arg0: i32) -> (i32, i32) {
    %c0_i32 = arith.constant 0 : i32
    %c0_i32_0 = arith.constant 0 : i32
    %c0_i32_1 = arith.constant 0 : i32
    return %c0_i32, %c0_i32_0 : i32, i32
  }
  func.func @transform_3(%arg0: i32) -> (i32, i32) {
    %c0_i32 = arith.constant 0 : i32
    %c0_i32_0 = arith.constant 0 : i32
    %c0_i32_1 = arith.constant 0 : i32
    return %c0_i32, %c0_i32_0 : i32, i32
  }
  func.func @transform_4(%arg0: i32) -> (i32, i32) {
    %c0_i32 = arith.constant 0 : i32
    %c0_i32_0 = arith.constant 0 : i32
    %c0_i32_1 = arith.constant 0 : i32
    return %c0_i32, %c0_i32_0 : i32, i32
  }
  func.func @transform_5(%arg0: i32) -> (i32, i32) {
    %c0_i32 = arith.constant 0 : i32
    %c0_i32_0 = arith.constant 0 : i32
    %c0_i32_1 = arith.constant 0 : i32
    return %c0_i32, %c0_i32_0 : i32, i32
  }
  func.func @transform_6(%arg0: i32) -> (i32, i32) {
    %c0_i32 = arith.constant 0 : i32
    %c0_i32_0 = arith.constant 0 : i32
    return %arg0, %c0_i32 : i32, i32
  }
}

module attributes {stable_mosaic.version = 11 : i64} {
  func.func @_linear_pos_kernel(%arg0: i32, %arg1: memref<8x32xbf16, #tpu.memory_space<vmem>>, %arg2: memref<8x32xbf16, #tpu.memory_space<vmem>>, %arg3: memref<32x32xbf16, #tpu.memory_space<vmem>>, %arg4: memref<1x32xf32, #tpu.memory_space<vmem>>, %arg5: memref<8x32xbf16, #tpu.memory_space<vmem>>) attributes {dimension_semantics = [#tpu.dimension_semantics<parallel>], iteration_bounds = array<i64: 2>, scalar_prefetch = 0 : i64, scratch_operands = 0 : i64, tpu.core_type = #tpu.core_type<tc>, window_params = [{transform_indices = @transform_0, window_bounds = array<i64: 8, 32>}, {transform_indices = @transform_1, window_bounds = array<i64: 8, 32>}, {pipeline_mode = #tpu.pipeline_mode<synchronous>, transform_indices = @transform_2, window_bounds = array<i64: 32, 32>}, {pipeline_mode = #tpu.pipeline_mode<synchronous>, transform_indices = @transform_3, window_bounds = array<i64: 1, 32>}, {transform_indices = @transform_4, window_bounds = array<i64: 8, 32>}]} {
    %c0 = arith.constant 0 : index
    %c0_0 = arith.constant 0 : index
    %0 = vector.load %arg1[%c0, %c0_0] : memref<8x32xbf16, #tpu.memory_space<vmem>>, vector<8x32xbf16>
    %c0_1 = arith.constant 0 : index
    %c0_2 = arith.constant 0 : index
    %1 = vector.load %arg2[%c0_1, %c0_2] : memref<8x32xbf16, #tpu.memory_space<vmem>>, vector<8x32xbf16>
    %2 = arith.addf %0, %1 : vector<8x32xbf16>
    %c0_3 = arith.constant 0 : index
    %c0_4 = arith.constant 0 : index
    %3 = vector.load %arg3[%c0_3, %c0_4] : memref<32x32xbf16, #tpu.memory_space<vmem>>, vector<32x32xbf16>
    %cst = arith.constant dense<0.000000e+00> : vector<8x32xf32>
    %4 = tpu.matmul %2, %3, %cst {dimension_numbers = #tpu.dot_dimension_numbers<[1], [0], [0], [1], [0, 0, 1, 1], [], []>} : vector<8x32xbf16>, vector<32x32xbf16>, vector<8x32xf32> -> vector<8x32xf32>
    %c0_5 = arith.constant 0 : index
    %c0_6 = arith.constant 0 : index
    %5 = vector.load %arg4[%c0_5, %c0_6] : memref<1x32xf32, #tpu.memory_space<vmem>>, vector<1x32xf32>
    %6 = vector.broadcast %5 : vector<1x32xf32> to vector<8x32xf32>
    %7 = arith.addf %4, %6 : vector<8x32xf32>
    %8 = arith.truncf %7 : vector<8x32xf32> to vector<8x32xbf16>
    %c0_7 = arith.constant 0 : index
    %c0_8 = arith.constant 0 : index
    %9 = vector.load %arg5[%c0_7, %c0_8] : memref<8x32xbf16, #tpu.memory_space<vmem>>, vector<8x32xbf16>
    tpu.vector_store %arg5[%c0_7, %c0_8], %8 {strides = array<i32>} : memref<8x32xbf16, #tpu.memory_space<vmem>>, vector<8x32xbf16>,
    return
  }
  func.func @transform_0(%arg0: i32) -> (i32, i32) {
    %c0_i32 = arith.constant 0 : i32
    %c0_i32_0 = arith.constant 0 : i32
    return %arg0, %c0_i32 : i32, i32
  }
  func.func @transform_1(%arg0: i32) -> (i32, i32) {
    %c0_i32 = arith.constant 0 : i32
    %c0_i32_0 = arith.constant 0 : i32
    return %arg0, %c0_i32 : i32, i32
  }
  func.func @transform_2(%arg0: i32) -> (i32, i32) {
    %c0_i32 = arith.constant 0 : i32
    %c0_i32_0 = arith.constant 0 : i32
    %c0_i32_1 = arith.constant 0 : i32
    return %c0_i32, %c0_i32_0 : i32, i32
  }
  func.func @transform_3(%arg0: i32) -> (i32, i32) {
    %c0_i32 = arith.constant 0 : i32
    %c0_i32_0 = arith.constant 0 : i32
    %c0_i32_1 = arith.constant 0 : i32
    return %c0_i32, %c0_i32_0 : i32, i32
  }
  func.func @transform_4(%arg0: i32) -> (i32, i32) {
    %c0_i32 = arith.constant 0 : i32
    %c0_i32_0 = arith.constant 0 : i32
    return %arg0, %c0_i32 : i32, i32
  }
}

module attributes {stable_mosaic.version = 11 : i64} {
  func.func @_attn_kernel(%arg0: i32, %arg1: i32, %arg2: memref<1x8x32xbf16, #tpu.memory_space<vmem>>, %arg3: memref<1x64x64xbf16, #tpu.memory_space<vmem>>, %arg4: memref<1x8x32xbf16, #tpu.memory_space<vmem>>) attributes {dimension_semantics = [#tpu.dimension_semantics<parallel>, #tpu.dimension_semantics<parallel>], iteration_bounds = array<i64: 2, 1>, scalar_prefetch = 0 : i64, scratch_operands = 0 : i64, tpu.core_type = #tpu.core_type<tc>, window_params = [{transform_indices = @transform_0, window_bounds = array<i64: 1, 8, 32>}, {transform_indices = @transform_1, window_bounds = array<i64: 1, 64, 64>}, {transform_indices = @transform_2, window_bounds = array<i64: 1, 8, 32>}]} {
    %c0 = arith.constant 0 : index
    %c0_0 = arith.constant 0 : index
    %c0_1 = arith.constant 0 : index
    %0 = vector.load %arg2[%c0, %c0_0, %c0_1] : memref<1x8x32xbf16, #tpu.memory_space<vmem>>, vector<1x8x32xbf16>
    %1 = vector.shape_cast %0 : vector<1x8x32xbf16> to vector<8x32xbf16>
    %c0_2 = arith.constant 0 : index
    %c0_3 = arith.constant 0 : index
    %c0_4 = arith.constant 0 : index
    %2 = vector.load %arg3[%c0_2, %c0_3, %c0_4] : memref<1x64x64xbf16, #tpu.memory_space<vmem>>, vector<1x64x64xbf16>
    %3 = vector.shape_cast %2 : vector<1x64x64xbf16> to vector<64x64xbf16>
    %4 = vector.extract_strided_slice %1 {offsets = [0, 0], sizes = [8, 8], strides = [1, 1]} : vector<8x32xbf16> to vector<8x8xbf16>
    %5 = vector.extract_strided_slice %3 {offsets = [0, 0], sizes = [64, 8], strides = [1, 1]} : vector<64x64xbf16> to vector<64x8xbf16>
    %6 = vector.extract_strided_slice %3 {offsets = [0, 32], sizes = [64, 8], strides = [1, 1]} : vector<64x64xbf16> to vector<64x8xbf16>
    %cst = arith.constant dense<0.000000e+00> : vector<8x64xf32>
    %7 = tpu.matmul %4, %5, %cst {dimension_numbers = #tpu.dot_dimension_numbers<[1], [1], [0], [0], [0, 0, 1, 0], [], []>} : vector<8x8xbf16>, vector<64x8xbf16>, vector<8x64xf32> -> vector<8x64xf32>
    %cst_5 = arith.constant dense<0xFF800000> : vector<8xf32>
    %8 = vector.multi_reduction <maximumf>, %7, %cst_5 [1] : vector<8x64xf32> to vector<8xf32>
    %9 = vector.shape_cast %8 : vector<8xf32> to vector<8x1xf32>
    %10 = vector.broadcast %9 : vector<8x1xf32> to vector<8x64xf32>
    %11 = arith.subf %7, %10 : vector<8x64xf32>
    %12 = math.exp %11 : vector<8x64xf32>
    %cst_6 = arith.constant dense<0.000000e+00> : vector<8xf32>
    %13 = vector.multi_reduction <add>, %12, %cst_6 [1] : vector<8x64xf32> to vector<8xf32>
    %14 = vector.shape_cast %13 : vector<8xf32> to vector<8x1xf32>
    %15 = tpu.reciprocal %14 {approx = true} : vector<8x1xf32> -> vector<8x1xf32>
    %16 = vector.broadcast %15 : vector<8x1xf32> to vector<8x64xf32>
    %17 = arith.mulf %12, %16 : vector<8x64xf32>
    %18 = arith.truncf %17 : vector<8x64xf32> to vector<8x64xbf16>
    %cst_7 = arith.constant dense<0.000000e+00> : vector<8x8xf32>
    %19 = tpu.matmul %18, %6, %cst_7 {dimension_numbers = #tpu.dot_dimension_numbers<[1], [0], [0], [1], [0, 0, 1, 1], [], []>} : vector<8x64xbf16>, vector<64x8xbf16>, vector<8x8xf32> -> vector<8x8xf32>
    %20 = vector.extract_strided_slice %1 {offsets = [0, 8], sizes = [8, 8], strides = [1, 1]} : vector<8x32xbf16> to vector<8x8xbf16>
    %21 = vector.extract_strided_slice %3 {offsets = [0, 8], sizes = [64, 8], strides = [1, 1]} : vector<64x64xbf16> to vector<64x8xbf16>
    %22 = vector.extract_strided_slice %3 {offsets = [0, 40], sizes = [64, 8], strides = [1, 1]} : vector<64x64xbf16> to vector<64x8xbf16>
    %cst_8 = arith.constant dense<0.000000e+00> : vector<8x64xf32>
    %23 = tpu.matmul %20, %21, %cst_8 {dimension_numbers = #tpu.dot_dimension_numbers<[1], [1], [0], [0], [0, 0, 1, 0], [], []>} : vector<8x8xbf16>, vector<64x8xbf16>, vector<8x64xf32> -> vector<8x64xf32>
    %cst_9 = arith.constant dense<0xFF800000> : vector<8xf32>
    %24 = vector.multi_reduction <maximumf>, %23, %cst_9 [1] : vector<8x64xf32> to vector<8xf32>
    %25 = vector.shape_cast %24 : vector<8xf32> to vector<8x1xf32>
    %26 = vector.broadcast %25 : vector<8x1xf32> to vector<8x64xf32>
    %27 = arith.subf %23, %26 : vector<8x64xf32>
    %28 = math.exp %27 : vector<8x64xf32>
    %cst_10 = arith.constant dense<0.000000e+00> : vector<8xf32>
    %29 = vector.multi_reduction <add>, %28, %cst_10 [1] : vector<8x64xf32> to vector<8xf32>
    %30 = vector.shape_cast %29 : vector<8xf32> to vector<8x1xf32>
    %31 = tpu.reciprocal %30 {approx = true} : vector<8x1xf32> -> vector<8x1xf32>
    %32 = vector.broadcast %31 : vector<8x1xf32> to vector<8x64xf32>
    %33 = arith.mulf %28, %32 : vector<8x64xf32>
    %34 = arith.truncf %33 : vector<8x64xf32> to vector<8x64xbf16>
    %cst_11 = arith.constant dense<0.000000e+00> : vector<8x8xf32>
    %35 = tpu.matmul %34, %22, %cst_11 {dimension_numbers = #tpu.dot_dimension_numbers<[1], [0], [0], [1], [0, 0, 1, 1], [], []>} : vector<8x64xbf16>, vector<64x8xbf16>, vector<8x8xf32> -> vector<8x8xf32>
    %36 = vector.extract_strided_slice %1 {offsets = [0, 16], sizes = [8, 8], strides = [1, 1]} : vector<8x32xbf16> to vector<8x8xbf16>
    %37 = vector.extract_strided_slice %3 {offsets = [0, 16], sizes = [64, 8], strides = [1, 1]} : vector<64x64xbf16> to vector<64x8xbf16>
    %38 = vector.extract_strided_slice %3 {offsets = [0, 48], sizes = [64, 8], strides = [1, 1]} : vector<64x64xbf16> to vector<64x8xbf16>
    %cst_12 = arith.constant dense<0.000000e+00> : vector<8x64xf32>
    %39 = tpu.matmul %36, %37, %cst_12 {dimension_numbers = #tpu.dot_dimension_numbers<[1], [1], [0], [0], [0, 0, 1, 0], [], []>} : vector<8x8xbf16>, vector<64x8xbf16>, vector<8x64xf32> -> vector<8x64xf32>
    %cst_13 = arith.constant dense<0xFF800000> : vector<8xf32>
    %40 = vector.multi_reduction <maximumf>, %39, %cst_13 [1] : vector<8x64xf32> to vector<8xf32>
    %41 = vector.shape_cast %40 : vector<8xf32> to vector<8x1xf32>
    %42 = vector.broadcast %41 : vector<8x1xf32> to vector<8x64xf32>
    %43 = arith.subf %39, %42 : vector<8x64xf32>
    %44 = math.exp %43 : vector<8x64xf32>
    %cst_14 = arith.constant dense<0.000000e+00> : vector<8xf32>
    %45 = vector.multi_reduction <add>, %44, %cst_14 [1] : vector<8x64xf32> to vector<8xf32>
    %46 = vector.shape_cast %45 : vector<8xf32> to vector<8x1xf32>
    %47 = tpu.reciprocal %46 {approx = true} : vector<8x1xf32> -> vector<8x1xf32>
    %48 = vector.broadcast %47 : vector<8x1xf32> to vector<8x64xf32>
    %49 = arith.mulf %44, %48 : vector<8x64xf32>
    %50 = arith.truncf %49 : vector<8x64xf32> to vector<8x64xbf16>
    %cst_15 = arith.constant dense<0.000000e+00> : vector<8x8xf32>
    %51 = tpu.matmul %50, %38, %cst_15 {dimension_numbers = #tpu.dot_dimension_numbers<[1], [0], [0], [1], [0, 0, 1, 1], [], []>} : vector<8x64xbf16>, vector<64x8xbf16>, vector<8x8xf32> -> vector<8x8xf32>
    %52 = vector.extract_strided_slice %1 {offsets = [0, 24], sizes = [8, 8], strides = [1, 1]} : vector<8x32xbf16> to vector<8x8xbf16>
    %53 = vector.extract_strided_slice %3 {offsets = [0, 24], sizes = [64, 8], strides = [1, 1]} : vector<64x64xbf16> to vector<64x8xbf16>
    %54 = vector.extract_strided_slice %3 {offsets = [0, 56], sizes = [64, 8], strides = [1, 1]} : vector<64x64xbf16> to vector<64x8xbf16>
    %cst_16 = arith.constant dense<0.000000e+00> : vector<8x64xf32>
    %55 = tpu.matmul %52, %53, %cst_16 {dimension_numbers = #tpu.dot_dimension_numbers<[1], [1], [0], [0], [0, 0, 1, 0], [], []>} : vector<8x8xbf16>, vector<64x8xbf16>, vector<8x64xf32> -> vector<8x64xf32>
    %cst_17 = arith.constant dense<0xFF800000> : vector<8xf32>
    %56 = vector.multi_reduction <maximumf>, %55, %cst_17 [1] : vector<8x64xf32> to vector<8xf32>
    %57 = vector.shape_cast %56 : vector<8xf32> to vector<8x1xf32>
    %58 = vector.broadcast %57 : vector<8x1xf32> to vector<8x64xf32>
    %59 = arith.subf %55, %58 : vector<8x64xf32>
    %60 = math.exp %59 : vector<8x64xf32>
    %cst_18 = arith.constant dense<0.000000e+00> : vector<8xf32>
    %61 = vector.multi_reduction <add>, %60, %cst_18 [1] : vector<8x64xf32> to vector<8xf32>
    %62 = vector.shape_cast %61 : vector<8xf32> to vector<8x1xf32>
    %63 = tpu.reciprocal %62 {approx = true} : vector<8x1xf32> -> vector<8x1xf32>
    %64 = vector.broadcast %63 : vector<8x1xf32> to vector<8x64xf32>
    %65 = arith.mulf %60, %64 : vector<8x64xf32>
    %66 = arith.truncf %65 : vector<8x64xf32> to vector<8x64xbf16>
    %cst_19 = arith.constant dense<0.000000e+00> : vector<8x8xf32>
    %67 = tpu.matmul %66, %54, %cst_19 {dimension_numbers = #tpu.dot_dimension_numbers<[1], [0], [0], [1], [0, 0, 1, 1], [], []>} : vector<8x64xbf16>, vector<64x8xbf16>, vector<8x8xf32> -> vector<8x8xf32>
    %68 = tpu.concatenate %19, %35, %51, %67 in 1 : vector<8x8xf32>, vector<8x8xf32>, vector<8x8xf32>, vector<8x8xf32> -> vector<8x32xf32>
    %69 = arith.truncf %68 : vector<8x32xf32> to vector<8x32xbf16>
    %c0_20 = arith.constant 0 : index
    %c0_21 = arith.constant 0 : index
    %c0_22 = arith.constant 0 : index
    %70 = vector.load %arg4[%c0_20, %c0_21, %c0_22] : memref<1x8x32xbf16, #tpu.memory_space<vmem>>, vector<1x8x32xbf16>
    %71 = vector.shape_cast %70 : vector<1x8x32xbf16> to vector<8x32xbf16>
    %72 = vector.shape_cast %69 : vector<8x32xbf16> to vector<1x8x32xbf16>
    tpu.vector_store %arg4[%c0_20, %c0_21, %c0_22], %72 {strides = array<i32>} : memref<1x8x32xbf16, #tpu.memory_space<vmem>>, vector<1x8x32xbf16>,
    return
  }
  func.func @transform_0(%arg0: i32, %arg1: i32) -> (i32, i32, i32) {
    %c0_i32 = arith.constant 0 : i32
    %c0_i32_0 = arith.constant 0 : i32
    return %arg0, %arg1, %c0_i32 : i32, i32, i32
  }
  func.func @transform_1(%arg0: i32, %arg1: i32) -> (i32, i32, i32) {
    %c0_i32 = arith.constant 0 : i32
    %c0_i32_0 = arith.constant 0 : i32
    %c0_i32_1 = arith.constant 0 : i32
    return %arg0, %c0_i32, %c0_i32_0 : i32, i32, i32
  }
  func.func @transform_2(%arg0: i32, %arg1: i32) -> (i32, i32, i32) {
    %c0_i32 = arith.constant 0 : i32
    %c0_i32_0 = arith.constant 0 : i32
    return %arg0, %arg1, %c0_i32 : i32, i32, i32
  }
}

module attributes {stable_mosaic.version = 11 : i64} {
  func.func @_ffn_res_ln_kernel(%arg0: i32, %arg1: memref<8x32xbf16, #tpu.memory_space<vmem>>, %arg2: memref<32x64xbf16, #tpu.memory_space<vmem>>, %arg3: memref<1x64xf32, #tpu.memory_space<vmem>>, %arg4: memref<64x32xbf16, #tpu.memory_space<vmem>>, %arg5: memref<1x32xf32, #tpu.memory_space<vmem>>, %arg6: memref<1x32xf32, #tpu.memory_space<vmem>>, %arg7: memref<1x32xf32, #tpu.memory_space<vmem>>, %arg8: memref<8x32xbf16, #tpu.memory_space<vmem>>) attributes {dimension_semantics = [#tpu.dimension_semantics<parallel>], iteration_bounds = array<i64: 2>, scalar_prefetch = 0 : i64, scratch_operands = 0 : i64, tpu.core_type = #tpu.core_type<tc>, window_params = [{transform_indices = @transform_0, window_bounds = array<i64: 8, 32>}, {pipeline_mode = #tpu.pipeline_mode<synchronous>, transform_indices = @transform_1, window_bounds = array<i64: 32, 64>}, {pipeline_mode = #tpu.pipeline_mode<synchronous>, transform_indices = @transform_2, window_bounds = array<i64: 1, 64>}, {pipeline_mode = #tpu.pipeline_mode<synchronous>, transform_indices = @transform_3, window_bounds = array<i64: 64, 32>}, {pipeline_mode = #tpu.pipeline_mode<synchronous>, transform_indices = @transform_4, window_bounds = array<i64: 1, 32>}, {pipeline_mode = #tpu.pipeline_mode<synchronous>, transform_indices = @transform_5, window_bounds = array<i64: 1, 32>}, {pipeline_mode = #tpu.pipeline_mode<synchronous>, transform_indices = @transform_6, window_bounds = array<i64: 1, 32>}, {transform_indices = @transform_7, window_bounds = array<i64: 8, 32>}]} {
    %c0 = arith.constant 0 : index
    %c0_0 = arith.constant 0 : index
    %0 = vector.load %arg1[%c0, %c0_0] : memref<8x32xbf16, #tpu.memory_space<vmem>>, vector<8x32xbf16>
    %c0_1 = arith.constant 0 : index
    %c0_2 = arith.constant 0 : index
    %1 = vector.load %arg2[%c0_1, %c0_2] : memref<32x64xbf16, #tpu.memory_space<vmem>>, vector<32x64xbf16>
    %cst = arith.constant dense<0.000000e+00> : vector<8x64xf32>
    %2 = tpu.matmul %0, %1, %cst {dimension_numbers = #tpu.dot_dimension_numbers<[1], [0], [0], [1], [0, 0, 1, 1], [], []>} : vector<8x32xbf16>, vector<32x64xbf16>, vector<8x64xf32> -> vector<8x64xf32>
    %c0_3 = arith.constant 0 : index
    %c0_4 = arith.constant 0 : index
    %3 = vector.load %arg3[%c0_3, %c0_4] : memref<1x64xf32, #tpu.memory_space<vmem>>, vector<1x64xf32>
    %4 = vector.broadcast %3 : vector<1x64xf32> to vector<8x64xf32>
    %5 = arith.addf %2, %4 : vector<8x64xf32>
    %cst_5 = arith.constant 0.000000e+00 : f32
    %6 = vector.broadcast %cst_5 : f32 to vector<8x64xf32>
    %7 = arith.maximumf %5, %6 : vector<8x64xf32>
    %8 = arith.truncf %7 : vector<8x64xf32> to vector<8x64xbf16>
    %c0_6 = arith.constant 0 : index
    %c0_7 = arith.constant 0 : index
    %9 = vector.load %arg4[%c0_6, %c0_7] : memref<64x32xbf16, #tpu.memory_space<vmem>>, vector<64x32xbf16>
    %cst_8 = arith.constant dense<0.000000e+00> : vector<8x32xf32>
    %10 = tpu.matmul %8, %9, %cst_8 {dimension_numbers = #tpu.dot_dimension_numbers<[1], [0], [0], [1], [0, 0, 1, 1], [], []>} : vector<8x64xbf16>, vector<64x32xbf16>, vector<8x32xf32> -> vector<8x32xf32>
    %c0_9 = arith.constant 0 : index
    %c0_10 = arith.constant 0 : index
    %11 = vector.load %arg5[%c0_9, %c0_10] : memref<1x32xf32, #tpu.memory_space<vmem>>, vector<1x32xf32>
    %12 = vector.broadcast %11 : vector<1x32xf32> to vector<8x32xf32>
    %13 = arith.addf %10, %12 : vector<8x32xf32>
    %14 = arith.extf %0 : vector<8x32xbf16> to vector<8x32xf32>
    %15 = arith.addf %14, %13 : vector<8x32xf32>
    %c0_11 = arith.constant 0 : index
    %c0_12 = arith.constant 0 : index
    %16 = vector.load %arg6[%c0_11, %c0_12] : memref<1x32xf32, #tpu.memory_space<vmem>>, vector<1x32xf32>
    %c0_13 = arith.constant 0 : index
    %c0_14 = arith.constant 0 : index
    %17 = vector.load %arg7[%c0_13, %c0_14] : memref<1x32xf32, #tpu.memory_space<vmem>>, vector<1x32xf32>
    %cst_15 = arith.constant dense<0.000000e+00> : vector<8xf32>
    %18 = vector.multi_reduction <add>, %15, %cst_15 [1] : vector<8x32xf32> to vector<8xf32>
    %19 = vector.shape_cast %18 : vector<8xf32> to vector<8x1xf32>
    %cst_16 = arith.constant 3.200000e+01 : f32
    %20 = vector.broadcast %cst_16 : f32 to vector<8x1xf32>
    %21 = arith.divf %19, %20 : vector<8x1xf32>
    %22 = vector.broadcast %21 : vector<8x1xf32> to vector<8x32xf32>
    %23 = arith.subf %15, %22 : vector<8x32xf32>
    %24 = arith.mulf %23, %23 : vector<8x32xf32>
    %cst_17 = arith.constant dense<0.000000e+00> : vector<8xf32>
    %25 = vector.multi_reduction <add>, %24, %cst_17 [1] : vector<8x32xf32> to vector<8xf32>
    %26 = vector.shape_cast %25 : vector<8xf32> to vector<8x1xf32>
    %cst_18 = arith.constant 3.200000e+01 : f32
    %27 = vector.broadcast %cst_18 : f32 to vector<8x1xf32>
    %28 = arith.divf %26, %27 : vector<8x1xf32>
    %29 = vector.broadcast %21 : vector<8x1xf32> to vector<8x32xf32>
    %30 = arith.subf %15, %29 : vector<8x32xf32>
    %cst_19 = arith.constant 9.99999974E-6 : f32
    %31 = vector.broadcast %cst_19 : f32 to vector<8x1xf32>
    %32 = arith.addf %28, %31 : vector<8x1xf32>
    %33 = math.rsqrt %32 : vector<8x1xf32>
    %34 = vector.broadcast %33 : vector<8x1xf32> to vector<8x32xf32>
    %35 = arith.mulf %30, %34 : vector<8x32xf32>
    %36 = vector.broadcast %16 : vector<1x32xf32> to vector<8x32xf32>
    %37 = arith.mulf %35, %36 : vector<8x32xf32>
    %38 = vector.broadcast %17 : vector<1x32xf32> to vector<8x32xf32>
    %39 = arith.addf %37, %38 : vector<8x32xf32>
    %40 = arith.truncf %39 : vector<8x32xf32> to vector<8x32xbf16>
    %c0_20 = arith.constant 0 : index
    %c0_21 = arith.constant 0 : index
    %41 = vector.load %arg8[%c0_20, %c0_21] : memref<8x32xbf16, #tpu.memory_space<vmem>>, vector<8x32xbf16>
    tpu.vector_store %arg8[%c0_20, %c0_21], %40 {strides = array<i32>} : memref<8x32xbf16, #tpu.memory_space<vmem>>, vector<8x32xbf16>,
    return
  }
  func.func @transform_0(%arg0: i32) -> (i32, i32) {
    %c0_i32 = arith.constant 0 : i32
    %c0_i32_0 = arith.constant 0 : i32
    return %arg0, %c0_i32 : i32, i32
  }
  func.func @transform_1(%arg0: i32) -> (i32, i32) {
    %c0_i32 = arith.constant 0 : i32
    %c0_i32_0 = arith.constant 0 : i32
    %c0_i32_1 = arith.constant 0 : i32
    return %c0_i32, %c0_i32_0 : i32, i32
  }
  func.func @transform_2(%arg0: i32) -> (i32, i32) {
    %c0_i32 = arith.constant 0 : i32
    %c0_i32_0 = arith.constant 0 : i32
    %c0_i32_1 = arith.constant 0 : i32
    return %c0_i32, %c0_i32_0 : i32, i32
  }
  func.func @transform_3(%arg0: i32) -> (i32, i32) {
    %c0_i32 = arith.constant 0 : i32
    %c0_i32_0 = arith.constant 0 : i32
    %c0_i32_1 = arith.constant 0 : i32
    return %c0_i32, %c0_i32_0 : i32, i32
  }
  func.func @transform_4(%arg0: i32) -> (i32, i32) {
    %c0_i32 = arith.constant 0 : i32
    %c0_i32_0 = arith.constant 0 : i32
    %c0_i32_1 = arith.constant 0 : i32
    return %c0_i32, %c0_i32_0 : i32, i32
  }
  func.func @transform_5(%arg0: i32) -> (i32, i32) {
    %c0_i32 = arith.constant 0 : i32
    %c0_i32_0 = arith.constant 0 : i32
    %c0_i32_1 = arith.constant 0 : i32
    return %c0_i32, %c0_i32_0 : i32, i32
  }
  func.func @transform_6(%arg0: i32) -> (i32, i32) {
    %c0_i32 = arith.constant 0 : i32
    %c0_i32_0 = arith.constant 0 : i32
    %c0_i32_1 = arith.constant 0 : i32
    return %c0_i32, %c0_i32_0 : i32, i32
  }
  func.func @transform_7(%arg0: i32) -> (i32, i32) {
    %c0_i32 = arith.constant 0 : i32
    %c0_i32_0 = arith.constant 0 : i32
    return %arg0, %c0_i32 : i32, i32
  }
}

module attributes {stable_mosaic.version = 11 : i64} {
  func.func @_ln_bbox_kernel(%arg0: i32, %arg1: memref<8x32xbf16, #tpu.memory_space<vmem>>, %arg2: memref<1x32xf32, #tpu.memory_space<vmem>>, %arg3: memref<1x32xf32, #tpu.memory_space<vmem>>, %arg4: memref<32x32xbf16, #tpu.memory_space<vmem>>, %arg5: memref<1x32xf32, #tpu.memory_space<vmem>>, %arg6: memref<32x32xbf16, #tpu.memory_space<vmem>>, %arg7: memref<1x32xf32, #tpu.memory_space<vmem>>, %arg8: memref<32x4xbf16, #tpu.memory_space<vmem>>, %arg9: memref<1x4xf32, #tpu.memory_space<vmem>>, %arg10: memref<8x4xf32, #tpu.memory_space<vmem>>) attributes {dimension_semantics = [#tpu.dimension_semantics<parallel>], iteration_bounds = array<i64: 2>, scalar_prefetch = 0 : i64, scratch_operands = 0 : i64, tpu.core_type = #tpu.core_type<tc>, window_params = [{transform_indices = @transform_0, window_bounds = array<i64: 8, 32>}, {pipeline_mode = #tpu.pipeline_mode<synchronous>, transform_indices = @transform_1, window_bounds = array<i64: 1, 32>}, {pipeline_mode = #tpu.pipeline_mode<synchronous>, transform_indices = @transform_2, window_bounds = array<i64: 1, 32>}, {pipeline_mode = #tpu.pipeline_mode<synchronous>, transform_indices = @transform_3, window_bounds = array<i64: 32, 32>}, {pipeline_mode = #tpu.pipeline_mode<synchronous>, transform_indices = @transform_4, window_bounds = array<i64: 1, 32>}, {pipeline_mode = #tpu.pipeline_mode<synchronous>, transform_indices = @transform_5, window_bounds = array<i64: 32, 32>}, {pipeline_mode = #tpu.pipeline_mode<synchronous>, transform_indices = @transform_6, window_bounds = array<i64: 1, 32>}, {pipeline_mode = #tpu.pipeline_mode<synchronous>, transform_indices = @transform_7, window_bounds = array<i64: 32, 4>}, {pipeline_mode = #tpu.pipeline_mode<synchronous>, transform_indices = @transform_8, window_bounds = array<i64: 1, 4>}, {transform_indices = @transform_9, window_bounds = array<i64: 8, 4>}]} {
    %c0 = arith.constant 0 : index
    %c0_0 = arith.constant 0 : index
    %0 = vector.load %arg1[%c0, %c0_0] : memref<8x32xbf16, #tpu.memory_space<vmem>>, vector<8x32xbf16>
    %c0_1 = arith.constant 0 : index
    %c0_2 = arith.constant 0 : index
    %1 = vector.load %arg2[%c0_1, %c0_2] : memref<1x32xf32, #tpu.memory_space<vmem>>, vector<1x32xf32>
    %c0_3 = arith.constant 0 : index
    %c0_4 = arith.constant 0 : index
    %2 = vector.load %arg3[%c0_3, %c0_4] : memref<1x32xf32, #tpu.memory_space<vmem>>, vector<1x32xf32>
    %3 = arith.extf %0 : vector<8x32xbf16> to vector<8x32xf32>
    %cst = arith.constant dense<0.000000e+00> : vector<8xf32>
    %4 = vector.multi_reduction <add>, %3, %cst [1] : vector<8x32xf32> to vector<8xf32>
    %5 = vector.shape_cast %4 : vector<8xf32> to vector<8x1xf32>
    %cst_5 = arith.constant 3.200000e+01 : f32
    %6 = vector.broadcast %cst_5 : f32 to vector<8x1xf32>
    %7 = arith.divf %5, %6 : vector<8x1xf32>
    %8 = vector.broadcast %7 : vector<8x1xf32> to vector<8x32xf32>
    %9 = arith.subf %3, %8 : vector<8x32xf32>
    %10 = arith.mulf %9, %9 : vector<8x32xf32>
    %cst_6 = arith.constant dense<0.000000e+00> : vector<8xf32>
    %11 = vector.multi_reduction <add>, %10, %cst_6 [1] : vector<8x32xf32> to vector<8xf32>
    %12 = vector.shape_cast %11 : vector<8xf32> to vector<8x1xf32>
    %cst_7 = arith.constant 3.200000e+01 : f32
    %13 = vector.broadcast %cst_7 : f32 to vector<8x1xf32>
    %14 = arith.divf %12, %13 : vector<8x1xf32>
    %15 = vector.broadcast %7 : vector<8x1xf32> to vector<8x32xf32>
    %16 = arith.subf %3, %15 : vector<8x32xf32>
    %cst_8 = arith.constant 9.99999974E-6 : f32
    %17 = vector.broadcast %cst_8 : f32 to vector<8x1xf32>
    %18 = arith.addf %14, %17 : vector<8x1xf32>
    %19 = math.rsqrt %18 : vector<8x1xf32>
    %20 = vector.broadcast %19 : vector<8x1xf32> to vector<8x32xf32>
    %21 = arith.mulf %16, %20 : vector<8x32xf32>
    %22 = vector.broadcast %1 : vector<1x32xf32> to vector<8x32xf32>
    %23 = arith.mulf %21, %22 : vector<8x32xf32>
    %24 = vector.broadcast %2 : vector<1x32xf32> to vector<8x32xf32>
    %25 = arith.addf %23, %24 : vector<8x32xf32>
    %26 = arith.truncf %25 : vector<8x32xf32> to vector<8x32xbf16>
    %c0_9 = arith.constant 0 : index
    %c0_10 = arith.constant 0 : index
    %27 = vector.load %arg4[%c0_9, %c0_10] : memref<32x32xbf16, #tpu.memory_space<vmem>>, vector<32x32xbf16>
    %cst_11 = arith.constant dense<0.000000e+00> : vector<8x32xf32>
    %28 = tpu.matmul %26, %27, %cst_11 {dimension_numbers = #tpu.dot_dimension_numbers<[1], [0], [0], [1], [0, 0, 1, 1], [], []>} : vector<8x32xbf16>, vector<32x32xbf16>, vector<8x32xf32> -> vector<8x32xf32>
    %c0_12 = arith.constant 0 : index
    %c0_13 = arith.constant 0 : index
    %29 = vector.load %arg5[%c0_12, %c0_13] : memref<1x32xf32, #tpu.memory_space<vmem>>, vector<1x32xf32>
    %30 = vector.broadcast %29 : vector<1x32xf32> to vector<8x32xf32>
    %31 = arith.addf %28, %30 : vector<8x32xf32>
    %cst_14 = arith.constant 0.000000e+00 : f32
    %32 = vector.broadcast %cst_14 : f32 to vector<8x32xf32>
    %33 = arith.maximumf %31, %32 : vector<8x32xf32>
    %34 = arith.truncf %33 : vector<8x32xf32> to vector<8x32xbf16>
    %c0_15 = arith.constant 0 : index
    %c0_16 = arith.constant 0 : index
    %35 = vector.load %arg6[%c0_15, %c0_16] : memref<32x32xbf16, #tpu.memory_space<vmem>>, vector<32x32xbf16>
    %cst_17 = arith.constant dense<0.000000e+00> : vector<8x32xf32>
    %36 = tpu.matmul %34, %35, %cst_17 {dimension_numbers = #tpu.dot_dimension_numbers<[1], [0], [0], [1], [0, 0, 1, 1], [], []>} : vector<8x32xbf16>, vector<32x32xbf16>, vector<8x32xf32> -> vector<8x32xf32>
    %c0_18 = arith.constant 0 : index
    %c0_19 = arith.constant 0 : index
    %37 = vector.load %arg7[%c0_18, %c0_19] : memref<1x32xf32, #tpu.memory_space<vmem>>, vector<1x32xf32>
    %38 = vector.broadcast %37 : vector<1x32xf32> to vector<8x32xf32>
    %39 = arith.addf %36, %38 : vector<8x32xf32>
    %cst_20 = arith.constant 0.000000e+00 : f32
    %40 = vector.broadcast %cst_20 : f32 to vector<8x32xf32>
    %41 = arith.maximumf %39, %40 : vector<8x32xf32>
    %42 = arith.truncf %41 : vector<8x32xf32> to vector<8x32xbf16>
    %c0_21 = arith.constant 0 : index
    %c0_22 = arith.constant 0 : index
    %43 = vector.load %arg8[%c0_21, %c0_22] : memref<32x4xbf16, #tpu.memory_space<vmem>>, vector<32x4xbf16>
    %cst_23 = arith.constant dense<0.000000e+00> : vector<8x4xf32>
    %44 = tpu.matmul %42, %43, %cst_23 {dimension_numbers = #tpu.dot_dimension_numbers<[1], [0], [0], [1], [0, 0, 1, 1], [], []>} : vector<8x32xbf16>, vector<32x4xbf16>, vector<8x4xf32> -> vector<8x4xf32>
    %c0_24 = arith.constant 0 : index
    %c0_25 = arith.constant 0 : index
    %45 = vector.load %arg9[%c0_24, %c0_25] : memref<1x4xf32, #tpu.memory_space<vmem>>, vector<1x4xf32>
    %46 = vector.broadcast %45 : vector<1x4xf32> to vector<8x4xf32>
    %47 = arith.addf %44, %46 : vector<8x4xf32>
    %48 = arith.negf %47 : vector<8x4xf32>
    %49 = math.exp %48 : vector<8x4xf32>
    %cst_26 = arith.constant 1.000000e+00 : f32
    %50 = vector.broadcast %cst_26 : f32 to vector<8x4xf32>
    %51 = arith.addf %50, %49 : vector<8x4xf32>
    %52 = arith.divf %50, %51 : vector<8x4xf32>
    %c0_27 = arith.constant 0 : index
    %c0_28 = arith.constant 0 : index
    %53 = vector.load %arg10[%c0_27, %c0_28] : memref<8x4xf32, #tpu.memory_space<vmem>>, vector<8x4xf32>
    tpu.vector_store %arg10[%c0_27, %c0_28], %52 {strides = array<i32>} : memref<8x4xf32, #tpu.memory_space<vmem>>, vector<8x4xf32>,
    return
  }
  func.func @transform_0(%arg0: i32) -> (i32, i32) {
    %c0_i32 = arith.constant 0 : i32
    %c0_i32_0 = arith.constant 0 : i32
    return %arg0, %c0_i32 : i32, i32
  }
  func.func @transform_1(%arg0: i32) -> (i32, i32) {
    %c0_i32 = arith.constant 0 : i32
    %c0_i32_0 = arith.constant 0 : i32
    %c0_i32_1 = arith.constant 0 : i32
    return %c0_i32, %c0_i32_0 : i32, i32
  }
  func.func @transform_2(%arg0: i32) -> (i32, i32) {
    %c0_i32 = arith.constant 0 : i32
    %c0_i32_0 = arith.constant 0 : i32
    %c0_i32_1 = arith.constant 0 : i32
    return %c0_i32, %c0_i32_0 : i32, i32
  }
  func.func @transform_3(%arg0: i32) -> (i32, i32) {
    %c0_i32 = arith.constant 0 : i32
    %c0_i32_0 = arith.constant 0 : i32
    %c0_i32_1 = arith.constant 0 : i32
    return %c0_i32, %c0_i32_0 : i32, i32
  }
  func.func @transform_4(%arg0: i32) -> (i32, i32) {
    %c0_i32 = arith.constant 0 : i32
    %c0_i32_0 = arith.constant 0 : i32
    %c0_i32_1 = arith.constant 0 : i32
    return %c0_i32, %c0_i32_0 : i32, i32
  }
  func.func @transform_5(%arg0: i32) -> (i32, i32) {
    %c0_i32 = arith.constant 0 : i32
    %c0_i32_0 = arith.constant 0 : i32
    %c0_i32_1 = arith.constant 0 : i32
    return %c0_i32, %c0_i32_0 : i32, i32
  }
  func.func @transform_6(%arg0: i32) -> (i32, i32) {
    %c0_i32 = arith.constant 0 : i32
    %c0_i32_0 = arith.constant 0 : i32
    %c0_i32_1 = arith.constant 0 : i32
    return %c0_i32, %c0_i32_0 : i32, i32
  }
  func.func @transform_7(%arg0: i32) -> (i32, i32) {
    %c0_i32 = arith.constant 0 : i32
    %c0_i32_0 = arith.constant 0 : i32
    %c0_i32_1 = arith.constant 0 : i32
    return %c0_i32, %c0_i32_0 : i32, i32
  }
  func.func @transform_8(%arg0: i32) -> (i32, i32) {
    %c0_i32 = arith.constant 0 : i32
    %c0_i32_0 = arith.constant 0 : i32
    %c0_i32_1 = arith.constant 0 : i32
    return %c0_i32, %c0_i32_0 : i32, i32
  }
  func.func @transform_9(%arg0: i32) -> (i32, i32) {
    %c0_i32 = arith.constant 0 : i32
    %c0_i32_0 = arith.constant 0 : i32
    return %arg0, %c0_i32 : i32, i32
  }
}

</mosaic_0001>

<llo_original>
// kernel: _lambda_.26
$region0: #{_lambda_.26}
  #allocation0 [shape = 'u32[]', space=smem, size = 0x4, offset = 0x4, fixed_abs, tag = 'smem constant byte address 0x4 - core index']
  #allocation1 [shape = 'u32[144,128]{1,0:T(1,128)}', space=vmem, size = 0x12000, scoped, tag = 'internal scratch']
  %s0 = inlined_call_operand.vmem [shape: bf16[128,32], index: 0, kind: input, shape index: {}]
  %s1 = inlined_call_operand.vmem [shape: bf16[32,32], index: 1, kind: input, shape index: {}]
  %s2 = inlined_call_operand.vmem [shape: f32[1,32], index: 2, kind: input, shape index: {}]
  %s3 = inlined_call_operand.vmem [shape: bf16[128,32], index: 3, kind: output, shape index: {}]
  %s4 = sld [smem:[#allocation0]]
  $region45: #{_lambda_.26} parent=0
    _
  %s6 = ssub.s32 1, %s4
  %s7 = scalar_select 0, %s6, %s4
  loop: start=0, step=1, limit=4
  $region2: #{_lambda_.26} parent=0 // loop_pre_header
    _
  $region3: #{_lambda_.26} parent=0 // loop_header
    %s9 = sphi 0, %s13
    %p10 = scmp.ge.s32.totalorder %s9, 4
    %s19 = sphi 0, %s21
    %s22 = sphi 0, %s19
    %s23 = sphi 0, %s22
    %s39 = sphi 0, %s23
    %s43 = sphi 0, %s43
    %s45 = sphi 0, %s43
    %s46 = sphi 0, %s45
    %s60 = sphi 0, %s46
    %s64 = sphi 0, %s64
    %s66 = sphi 0, %s64
    %s67 = sphi 0, %s66
    %s81 = sphi 0, %s67
    %s87 = sphi 0, %s89
    %s90 = sphi 0, %s87
    %s91 = sphi 0, %s90
    %s107 = sphi 0, %s91
  $region4: #{_lambda_.26} parent=0 // loop_header_branch
    %12 = sbr.rel (%p10) target = $region8
  $region5: #{_lambda_.26} parent=0 // loop_body
    %s14 = ssub.s32 %s9, 1
    %s15 = ssub.s32 %s9, 2
    %s16 = sadd.s32 %s9, 1
    %s17 = ssub.s32 %s9, %s16
    %p18 = scmp.eq.s32.totalorder %s17, 0
    %s20 = sadd.s32 %s19, 1
    %s21 = scalar_select %p18, %s19, %s20
    %p24 = pneg %p18
    %p25 = scmp.eq.s32.totalorder %s9, 1
    %p26 = por %p24, %p25
    %p27 = scmp.ne.s32.totalorder %s19, %s22
    %p28 = scmp.eq.s32.totalorder %s9, 0
    %p29 = por %p27, %p28
    %p30 = scmp.ne.s32.totalorder %s19, %s22
    %p31 = scmp.eq.s32.totalorder %s14, 1
    %p32 = por %p30, %p31
    %p33 = scmp.ne.s32.totalorder %s22, %s23
    %p34 = scmp.eq.s32.totalorder %s14, 0
    %p35 = por %p33, %p34
    %p36 = scmp.ne.s32.totalorder %s22, %s23
    %p37 = scmp.eq.s32.totalorder %s15, 1
    %p38 = por %p36, %p37
    %p40 = scmp.ne.s32.totalorder %s23, %s39
    %p41 = scmp.eq.s32.totalorder %s15, 0
    %p42 = por %p40, %p41
    %s44 = sadd.s32 %s43, 1
    %p47 = scmp.eq.s32.totalorder %s9, 1
    %p48 = scmp.ne.s32.totalorder %s43, %s45
    %p49 = scmp.eq.s32.totalorder %s9, 0
    %p50 = por %p48, %p49
    %p51 = scmp.ne.s32.totalorder %s43, %s45
    %p52 = scmp.eq.s32.totalorder %s14, 1
    %p53 = por %p51, %p52
    %p54 = scmp.ne.s32.totalorder %s45, %s46
    %p55 = scmp.eq.s32.totalorder %s14, 0
    %p56 = por %p54, %p55
    %p57 = scmp.ne.s32.totalorder %s45, %s46
    %p58 = scmp.eq.s32.totalorder %s15, 1
    %p59 = por %p57, %p58
    %p61 = scmp.ne.s32.totalorder %s46, %s60
    %p62 = scmp.eq.s32.totalorder %s15, 0
    %p63 = por %p61, %p62
    %s65 = sadd.s32 %s64, 1
    %p68 = scmp.eq.s32.totalorder %s9, 1
    %p69 = scmp.ne.s32.totalorder %s64, %s66
    %p70 = scmp.eq.s32.totalorder %s9, 0
    %p71 = por %p69, %p70
    %p72 = scmp.ne.s32.totalorder %s64, %s66
    %p73 = scmp.eq.s32.totalorder %s14, 1
    %p74 = por %p72, %p73
    %p75 = scmp.ne.s32.totalorder %s66, %s67
    %p76 = scmp.eq.s32.totalorder %s14, 0
    %p77 = por %p75, %p76
    %p78 = scmp.ne.s32.totalorder %s66, %s67
    %p79 = scmp.eq.s32.totalorder %s15, 1
    %p80 = por %p78, %p79
    %p82 = scmp.ne.s32.totalorder %s67, %s81
    %p83 = scmp.eq.s32.totalorder %s15, 0
    %p84 = por %p82, %p83
    %s85 = ssub.s32 %s9, %s16
    %p86 = scmp.eq.s32.totalorder %s85, 0
    %s88 = sadd.s32 %s87, 1
    %s89 = scalar_select %p86, %s87, %s88
    %p92 = pneg %p86
    %p93 = scmp.eq.s32.totalorder %s9, 1
    %p94 = por %p92, %p93
    %p95 = scmp.ne.s32.totalorder %s87, %s90
    %p96 = scmp.eq.s32.totalorder %s9, 0
    %p97 = por %p95, %p96
    %p98 = scmp.ne.s32.totalorder %s87, %s90
    %p99 = scmp.eq.s32.totalorder %s14, 1
    %p100 = por %p98, %p99
    %p101 = scmp.ne.s32.totalorder %s90, %s91
    %p102 = scmp.eq.s32.totalorder %s14, 0
    %p103 = por %p101, %p102
    %p104 = scmp.ne.s32.totalorder %s90, %s91
    %p105 = scmp.eq.s32.totalorder %s15, 1
    %p106 = por %p104, %p105
    %p108 = scmp.ne.s32.totalorder %s91, %s107
    %p109 = scmp.eq.s32.totalorder %s15, 0
    %p110 = por %p108, %p109
    %p111 = scmp.le.s32.totalorder 1, %s9
    %p112 = scmp.lt.s32.totalorder %s9, 3
    %p113 = pnand %p111, %p112
    %p114 = pneg %p113
    // Predicated region
    $region9: #{_lambda_.26} parent=5 // pred_check
      _
    $region10: #{_lambda_.26} parent=5 // pred_check_branch
      %116 = sbr.rel (%p113) target = $region12
    $region11: #{_lambda_.26} parent=5 // pred_region
      %s117 = ssub.s32 %s9, 1
      // Predicated region
      $region13: #{_lambda_.26} parent=11 // pred_check
        %p118 = pneg %p56
      $region14: #{_lambda_.26} parent=11 // pred_check_branch
        %120 = sbr.rel (%p118) target = $region16
      $region15: #{_lambda_.26} parent=11 // pred_region
        _
      $region16: #{_lambda_.26} parent=11 // pred_fallthru
        _
      // Predicated region
      $region17: #{_lambda_.26} parent=11 // pred_check
        %p121 = pneg %p77
      $region18: #{_lambda_.26} parent=11 // pred_check_branch
        %123 = sbr.rel (%p121) target = $region20
      $region19: #{_lambda_.26} parent=11 // pred_region
        _
      $region20: #{_lambda_.26} parent=11 // pred_fallthru
        _
    $region12: #{_lambda_.26} parent=5 // pred_fallthru
      _
    %p124 = scmp.lt.s32.totalorder %s9, 2
    // Predicated region
    $region21: #{_lambda_.26} parent=5 // pred_check
      %p125 = pneg %p124
    $region22: #{_lambda_.26} parent=5 // pred_check_branch
      %127 = sbr.rel (%p125) target = $region24
    $region23: #{_lambda_.26} parent=5 // pred_region
      // Predicated region
      $region25: #{_lambda_.26} parent=23 // pred_check
        %p128 = pneg %p29
      $region26: #{_lambda_.26} parent=23 // pred_check_branch
        %130 = sbr.rel (%p128) target = $region28
      $region27: #{_lambda_.26} parent=23 // pred_region
        %s131 = smul.u32 8, %s9
        %p132 = scmp.lt.s32.totalorder %s131, 15
        %s133 = scalar_select %p132, %s131, 15
        %s134 = smul.addr %s133, 4
        %s135 = scalar_lea.vmem %s0, %s134
        %s136 = smul.u32 8, %s9
      $region28: #{_lambda_.26} parent=23 // pred_fallthru
        _
    $region24: #{_lambda_.26} parent=5 // pred_fallthru
      _
    %p137 = scmp.le.s32.totalorder 1, %s9
    %p138 = scmp.lt.s32.totalorder %s9, 3
    %p139 = pnand %p137, %p138
    %p140 = pneg %p139
    // Predicated region
    $region29: #{_lambda_.26} parent=5 // pred_check
      _
    $region30: #{_lambda_.26} parent=5 // pred_check_branch
      %142 = sbr.rel (%p139) target = $region32
    $region31: #{_lambda_.26} parent=5 // pred_region
      %s143 = ssub.s32 %s9, 1
      %s144 = smul.u32 8, %s14
      %p145 = scmp.lt.s32.totalorder %s144, 15
      %s146 = scalar_select %p145, %s144, 15
      %s147 = smul.addr %s146, 4
      %s148 = scalar_lea.vmem %s0, %s147
      %p149 = pneg %p35
      %p150 = pneg %p32
      %p151 = pneg %p56
      %p152 = pneg %p53
      %p153 = pneg %p77
      %p154 = pneg %p74
      %p155 = pneg %p103
      %p156 = pneg %p100
      %s157 = smul.u32 8, %s14
      %p158 = scmp.lt.s32.totalorder %s157, 15
      %s159 = scalar_select %p158, %s157, 15
      %s160 = smul.addr %s159, 4
      %s161 = scalar_lea.vmem %s3, %s160
      %s162 = smul.u32 8, %s14
      %p163 = scmp.lt.s32.totalorder %s162, 15
      %s164 = scalar_select %p163, %s162, 15
      %s165 = smul.addr %s164, 4
      %s166 = scalar_lea.vmem %s0, %s165
      %s167 = smul.u32 8, %s14
      %s168 = smul.u32 8, %s14
      %p169 = scmp.lt.s32.totalorder %s168, 15
      %s170 = scalar_select %p169, %s168, 15
      %s171 = smul.addr %s170, 4
      %s172 = scalar_lea.vmem %s3, %s171
      %s173 = smul.u32 8, %s14
      %v175 = vld [vmem:[%s166] sm:$0xf]
      %v176 = vld [vmem:[%s166 + $0x4] sm:$0xf]
      %v177 = vld [vmem:[%s166 + $0x8] sm:$0xf]
      %v178 = vld [vmem:[%s166 + $0xc] sm:$0xf]
      %v179 = vld [vmem:[%s166 + $0x10] sm:$0xf]
      %v180 = vld [vmem:[%s166 + $0x14] sm:$0xf]
      %v181 = vld [vmem:[%s166 + $0x18] sm:$0xf]
      %v182 = vld [vmem:[%s166 + $0x1c] sm:$0xf]
      %v183 = vld [vmem:[%s1] sm:$0xf]
      %v184 = vld [vmem:[%s1 + $0x4] sm:$0xf]
      %v185 = vld [vmem:[%s1 + $0x8] sm:$0xf]
      %v186 = vld [vmem:[%s1 + $0xc] sm:$0xf]
      %v187 = vld [vmem:[%s2] sm:$0x1]
      %v189 = vlaneseq
      %v190 = vshrl.u32 %v189, 7
      %v191 = vsub.s32 0, %v190
      %v192 = vrot.slane %v187, %v191
      %v202 = vunpack.c.l.b16 %v175
      %v203 = vunpack.c.l.b16 %v176
      %v204 = vunpack.c.l.b16 %v177
      %v205 = vunpack.c.l.b16 %v178
      %v206 = vunpack.c.l.b16 %v179
      %v207 = vunpack.c.l.b16 %v180
      %v208 = vunpack.c.l.b16 %v181
      %v209 = vunpack.c.l.b16 %v182
      %v210 = vpack.c.b16 %v203, %v202
      %v211 = vpack.c.b16 %v205, %v204
      %v212 = vpack.c.b16 %v207, %v206
      %v213 = vpack.c.b16 %v209, %v208
      %v218 = vunpack.c.l.b16 %v183
      %v219 = vunpack.c.l.b16 %v184
      %v220 = vunpack.c.l.b16 %v185
      %v221 = vunpack.c.l.b16 %v186
      %v222 = vpack.c.b16 %v219, %v218
      %v223 = vpack.c.b16 %v221, %v220
      %vm226 = vcmask 261120
      %v228 = vsel %vm226, %v210, 0
      %v231 = vsel %vm226, %v211, 0
      %v234 = vsel %vm226, %v212, 0
      %v237 = vsel %vm226, %v213, 0
      %239 = vmatprep.subr.bf16.mxu0 0
      %240 = vmatpush1.bf16.msra.mxu0 %v222
      %241 = vmatprep.subr.bf16.mxu0 0
      %242 = vmatpush1.bf16.msra.mxu0 %v223
      %243 = vmatprep.subr.bf16.mxu0 0
      %244 = vmatpush1.bf16.msra.mxu0 0
      %245 = vmatprep.subr.bf16.mxu0 0
      %246 = vmatpush1.bf16.msra.mxu0 0
      %247 = vmatprep.subr.bf16.mxu0 0
      %248 = vmatpush1.bf16.msra.mxu0 0
      %249 = vmatprep.subr.bf16.mxu0 0
      %250 = vmatpush1.bf16.msra.mxu0 0
      %251 = vmatprep.subr.bf16.mxu0 0
      %252 = vmatpush1.bf16.msra.mxu0 0
      %253 = vmatprep.subr.bf16.mxu0 0
      %254 = vmatpush1.bf16.msra.mxu0 0
      %255 = vmatprep.subr.bf16.mxu0 0
      %256 = vmatpush1.bf16.msra.mxu0 0
      %257 = vmatprep.subr.bf16.mxu0 0
      %258 = vmatpush1.bf16.msra.mxu0 0
      %259 = vmatprep.subr.bf16.mxu0 0
      %260 = vmatpush1.bf16.msra.mxu0 0
      %261 = vmatprep.subr.bf16.mxu0 0
      %262 = vmatpush1.bf16.msra.mxu0 0
      %263 = vmatprep.subr.bf16.mxu0 0
      %264 = vmatpush1.bf16.msra.mxu0 0
      %265 = vmatprep.subr.bf16.mxu0 0
      %266 = vmatpush1.bf16.msra.mxu0 0
      %267 = vmatprep.subr.bf16.mxu0 0
      %268 = vmatpush1.bf16.msra.mxu0 0
      %269 = vmatprep.subr.bf16.mxu0 0
      %270 = vmatpush1.bf16.msra.mxu0 0
      %271 = vmatprep.mubr.bf16.mxu0 0
      %272 = vmatmul.mubr.bf16.gmra.mrb[0].mxu0 %v228
      %v273 = vpop.f32.mrb[0].mxu0
      %v274 = vadd.f32 %v192, %v273
      %v275 = vpop.f32.mrb[0].mxu0
      %v276 = vpop.f32.mrb[0].mxu0
      %v277 = vadd.f32 %v192, %v276
      %v278 = vpop.f32.mrb[0].mxu0
      %279 = vmatprep.mubr.bf16.mxu0 0
      %280 = vmatmul.mubr.bf16.gmra.mrb[0].mxu0 %v231
      %v281 = vpop.f32.mrb[0].mxu0
      %v282 = vadd.f32 %v192, %v281
      %v283 = vpop.f32.mrb[0].mxu0
      %v284 = vpop.f32.mrb[0].mxu0
      %v285 = vadd.f32 %v192, %v284
      %v286 = vpop.f32.mrb[0].mxu0
      %287 = vmatprep.mubr.bf16.mxu0 0
      %288 = vmatmul.mubr.bf16.gmra.mrb[0].mxu0 %v234
      %v289 = vpop.f32.mrb[0].mxu0
      %v290 = vadd.f32 %v192, %v289
      %v291 = vpop.f32.mrb[0].mxu0
      %v292 = vpop.f32.mrb[0].mxu0
      %v293 = vadd.f32 %v192, %v292
      %v294 = vpop.f32.mrb[0].mxu0
      %295 = vmatprep.mubr.bf16.mxu0 0
      %296 = vmatmul.mubr.bf16.gmra.mrb[0].mxu0 %v237
      %v297 = vpop.f32.mrb[0].mxu0
      %v298 = vadd.f32 %v192, %v297
      %v299 = vpop.f32.mrb[0].mxu0
      %v300 = vpop.f32.mrb[0].mxu0
      %v301 = vadd.f32 %v192, %v300
      %v302 = vpop.f32.mrb[0].mxu0
      %303 = vdwg.mxu0
      %v304 = vpack.c.bf16 %v277, %v274
      %v305 = vpack.c.bf16 %v285, %v282
      %v306 = vpack.c.bf16 %v293, %v290
      %v307 = vpack.c.bf16 %v301, %v298
      %v312 = vunpack.c.l.b16 %v304
      %v313 = vunpack.c.h.b16 %v304
      %v314 = vunpack.c.l.b16 %v305
      %v315 = vunpack.c.h.b16 %v305
      %v316 = vunpack.c.l.b16 %v306
      %v317 = vunpack.c.h.b16 %v306
      %v318 = vunpack.c.l.b16 %v307
      %v319 = vunpack.c.h.b16 %v307
      %v320 = vpack.c.b16 %v312, %v312
      %v321 = vpack.c.b16 %v313, %v313
      %v322 = vpack.c.b16 %v314, %v314
      %v323 = vpack.c.b16 %v315, %v315
      %v324 = vpack.c.b16 %v316, %v316
      %v325 = vpack.c.b16 %v317, %v317
      %v326 = vpack.c.b16 %v318, %v318
      %v327 = vpack.c.b16 %v319, %v319
      %vm336 = vcmask 257024
      %337 = vst.msk [vmem:[%s172] sm:$0xf] %vm336, %v320
      %338 = vst.msk [vmem:[%s172 + $0x4] sm:$0xf] %vm336, %v321
      %339 = vst.msk [vmem:[%s172 + $0x8] sm:$0xf] %vm336, %v322
      %340 = vst.msk [vmem:[%s172 + $0xc] sm:$0xf] %vm336, %v323
      %341 = vst.msk [vmem:[%s172 + $0x10] sm:$0xf] %vm336, %v324
      %342 = vst.msk [vmem:[%s172 + $0x14] sm:$0xf] %vm336, %v325
      %343 = vst.msk [vmem:[%s172 + $0x18] sm:$0xf] %vm336, %v326
      %344 = vst.msk [vmem:[%s172 + $0x1c] sm:$0xf] %vm336, %v327
      %s345 = smul.u32 8, %s14
      %p346 = scmp.lt.s32.totalorder %s345, 15
      %s347 = scalar_select %p346, %s345, 15
      %s348 = smul.addr %s347, 4
      %s349 = scalar_lea.vmem %s3, %s348
      // Predicated region
      $region33: #{_lambda_.26} parent=31 // pred_check
        %p350 = pneg %p100
      $region34: #{_lambda_.26} parent=31 // pred_check_branch
        %352 = sbr.rel (%p350) target = $region36
      $region35: #{_lambda_.26} parent=31 // pred_region
        %s353 = smul.u32 8, %s14
      $region36: #{_lambda_.26} parent=31 // pred_fallthru
        _
    $region32: #{_lambda_.26} parent=5 // pred_fallthru
      _
    %p354 = scmp.le.s32.totalorder 2, %s9
    // Predicated region
    $region37: #{_lambda_.26} parent=5 // pred_check
      %p355 = pneg %p354
    $region38: #{_lambda_.26} parent=5 // pred_check_branch
      %357 = sbr.rel (%p355) target = $region40
    $region39: #{_lambda_.26} parent=5 // pred_region
      %s358 = ssub.s32 %s9, 2
      // Predicated region
      $region41: #{_lambda_.26} parent=39 // pred_check
        %p359 = pneg %p106
      $region42: #{_lambda_.26} parent=39 // pred_check_branch
        %361 = sbr.rel (%p359) target = $region44
      $region43: #{_lambda_.26} parent=39 // pred_region
        %s362 = smul.u32 8, %s15
        %p363 = scmp.lt.s32.totalorder %s362, 15
        %s364 = scalar_select %p363, %s362, 15
        %s365 = smul.addr %s364, 4
        %s366 = scalar_lea.vmem %s3, %s365
      $region44: #{_lambda_.26} parent=39 // pred_fallthru
        _
    $region40: #{_lambda_.26} parent=5 // pred_fallthru
      _
  $region6: #{_lambda_.26} parent=0 // loop_footer
    %s13 = sadd.s32 1, %s9
  $region7: #{_lambda_.26} parent=0 // loop_footer_branch
    %8 = sbr.rel target = $region3
  $region8: #{_lambda_.26} parent=0 // loop_exit
    _

// kernel: _lambda_.27
$region0: #{_lambda_.27}
  #allocation0 [shape = 'u32[]', space=smem, size = 0x4, offset = 0x4, fixed_abs, tag = 'smem constant byte address 0x4 - core index']
  #allocation1 [shape = 'u32[144,128]{1,0:T(1,128)}', space=vmem, size = 0x12000, scoped, tag = 'internal scratch']
  %s0 = inlined_call_operand.vmem [shape: bf16[128,32], index: 0, kind: input, shape index: {}]
  %s1 = inlined_call_operand.vmem [shape: bf16[32,32], index: 1, kind: input, shape index: {}]
  %s2 = inlined_call_operand.vmem [shape: f32[1,32], index: 2, kind: input, shape index: {}]
  %s3 = inlined_call_operand.vmem [shape: bf16[32,64], index: 3, kind: input, shape index: {}]
  %s4 = inlined_call_operand.vmem [shape: f32[1,64], index: 4, kind: input, shape index: {}]
  %s5 = inlined_call_operand.vmem [shape: bf16[128,32], index: 5, kind: output, shape index: {0}]
  %s6 = inlined_call_operand.vmem [shape: bf16[128,64], index: 6, kind: output, shape index: {1}]
  %7 = xla_tuple %s5, %s6
  %s8 = sld [smem:[#allocation0]]
  $region61: #{_lambda_.27} parent=0
    _
  %s10 = ssub.s32 1, %s8
  %s11 = scalar_select 0, %s10, %s8
  loop: start=0, step=1, limit=4
  $region2: #{_lambda_.27} parent=0 // loop_pre_header
    _
  $region3: #{_lambda_.27} parent=0 // loop_header
    %s13 = sphi 0, %s17
    %p14 = scmp.ge.s32.totalorder %s13, 4
    %s23 = sphi 0, %s25
    %s26 = sphi 0, %s23
    %s27 = sphi 0, %s26
    %s43 = sphi 0, %s27
    %s47 = sphi 0, %s47
    %s49 = sphi 0, %s47
    %s50 = sphi 0, %s49
    %s64 = sphi 0, %s50
    %s68 = sphi 0, %s68
    %s70 = sphi 0, %s68
    %s71 = sphi 0, %s70
    %s85 = sphi 0, %s71
    %s89 = sphi 0, %s89
    %s91 = sphi 0, %s89
    %s92 = sphi 0, %s91
    %s106 = sphi 0, %s92
    %s110 = sphi 0, %s110
    %s112 = sphi 0, %s110
    %s113 = sphi 0, %s112
    %s127 = sphi 0, %s113
    %s133 = sphi 0, %s135
    %s136 = sphi 0, %s133
    %s137 = sphi 0, %s136
    %s153 = sphi 0, %s137
    %s159 = sphi 0, %s161
    %s162 = sphi 0, %s159
    %s163 = sphi 0, %s162
    %s179 = sphi 0, %s163
  $region4: #{_lambda_.27} parent=0 // loop_header_branch
    %16 = sbr.rel (%p14) target = $region8
  $region5: #{_lambda_.27} parent=0 // loop_body
    %s18 = ssub.s32 %s13, 1
    %s19 = ssub.s32 %s13, 2
    %s20 = sadd.s32 %s13, 1
    %s21 = ssub.s32 %s13, %s20
    %p22 = scmp.eq.s32.totalorder %s21, 0
    %s24 = sadd.s32 %s23, 1
    %s25 = scalar_select %p22, %s23, %s24
    %p28 = pneg %p22
    %p29 = scmp.eq.s32.totalorder %s13, 1
    %p30 = por %p28, %p29
    %p31 = scmp.ne.s32.totalorder %s23, %s26
    %p32 = scmp.eq.s32.totalorder %s13, 0
    %p33 = por %p31, %p32
    %p34 = scmp.ne.s32.totalorder %s23, %s26
    %p35 = scmp.eq.s32.totalorder %s18, 1
    %p36 = por %p34, %p35
    %p37 = scmp.ne.s32.totalorder %s26, %s27
    %p38 = scmp.eq.s32.totalorder %s18, 0
    %p39 = por %p37, %p38
    %p40 = scmp.ne.s32.totalorder %s26, %s27
    %p41 = scmp.eq.s32.totalorder %s19, 1
    %p42 = por %p40, %p41
    %p44 = scmp.ne.s32.totalorder %s27, %s43
    %p45 = scmp.eq.s32.totalorder %s19, 0
    %p46 = por %p44, %p45
    %s48 = sadd.s32 %s47, 1
    %p51 = scmp.eq.s32.totalorder %s13, 1
    %p52 = scmp.ne.s32.totalorder %s47, %s49
    %p53 = scmp.eq.s32.totalorder %s13, 0
    %p54 = por %p52, %p53
    %p55 = scmp.ne.s32.totalorder %s47, %s49
    %p56 = scmp.eq.s32.totalorder %s18, 1
    %p57 = por %p55, %p56
    %p58 = scmp.ne.s32.totalorder %s49, %s50
    %p59 = scmp.eq.s32.totalorder %s18, 0
    %p60 = por %p58, %p59
    %p61 = scmp.ne.s32.totalorder %s49, %s50
    %p62 = scmp.eq.s32.totalorder %s19, 1
    %p63 = por %p61, %p62
    %p65 = scmp.ne.s32.totalorder %s50, %s64
    %p66 = scmp.eq.s32.totalorder %s19, 0
    %p67 = por %p65, %p66
    %s69 = sadd.s32 %s68, 1
    %p72 = scmp.eq.s32.totalorder %s13, 1
    %p73 = scmp.ne.s32.totalorder %s68, %s70
    %p74 = scmp.eq.s32.totalorder %s13, 0
    %p75 = por %p73, %p74
    %p76 = scmp.ne.s32.totalorder %s68, %s70
    %p77 = scmp.eq.s32.totalorder %s18, 1
    %p78 = por %p76, %p77
    %p79 = scmp.ne.s32.totalorder %s70, %s71
    %p80 = scmp.eq.s32.totalorder %s18, 0
    %p81 = por %p79, %p80
    %p82 = scmp.ne.s32.totalorder %s70, %s71
    %p83 = scmp.eq.s32.totalorder %s19, 1
    %p84 = por %p82, %p83
    %p86 = scmp.ne.s32.totalorder %s71, %s85
    %p87 = scmp.eq.s32.totalorder %s19, 0
    %p88 = por %p86, %p87
    %s90 = sadd.s32 %s89, 1
    %p93 = scmp.eq.s32.totalorder %s13, 1
    %p94 = scmp.ne.s32.totalorder %s89, %s91
    %p95 = scmp.eq.s32.totalorder %s13, 0
    %p96 = por %p94, %p95
    %p97 = scmp.ne.s32.totalorder %s89, %s91
    %p98 = scmp.eq.s32.totalorder %s18, 1
    %p99 = por %p97, %p98
    %p100 = scmp.ne.s32.totalorder %s91, %s92
    %p101 = scmp.eq.s32.totalorder %s18, 0
    %p102 = por %p100, %p101
    %p103 = scmp.ne.s32.totalorder %s91, %s92
    %p104 = scmp.eq.s32.totalorder %s19, 1
    %p105 = por %p103, %p104
    %p107 = scmp.ne.s32.totalorder %s92, %s106
    %p108 = scmp.eq.s32.totalorder %s19, 0
    %p109 = por %p107, %p108
    %s111 = sadd.s32 %s110, 1
    %p114 = scmp.eq.s32.totalorder %s13, 1
    %p115 = scmp.ne.s32.totalorder %s110, %s112
    %p116 = scmp.eq.s32.totalorder %s13, 0
    %p117 = por %p115, %p116
    %p118 = scmp.ne.s32.totalorder %s110, %s112
    %p119 = scmp.eq.s32.totalorder %s18, 1
    %p120 = por %p118, %p119
    %p121 = scmp.ne.s32.totalorder %s112, %s113
    %p122 = scmp.eq.s32.totalorder %s18, 0
    %p123 = por %p121, %p122
    %p124 = scmp.ne.s32.totalorder %s112, %s113
    %p125 = scmp.eq.s32.totalorder %s19, 1
    %p126 = por %p124, %p125
    %p128 = scmp.ne.s32.totalorder %s113, %s127
    %p129 = scmp.eq.s32.totalorder %s19, 0
    %p130 = por %p128, %p129
    %s131 = ssub.s32 %s13, %s20
    %p132 = scmp.eq.s32.totalorder %s131, 0
    %s134 = sadd.s32 %s133, 1
    %s135 = scalar_select %p132, %s133, %s134
    %p138 = pneg %p132
    %p139 = scmp.eq.s32.totalorder %s13, 1
    %p140 = por %p138, %p139
    %p141 = scmp.ne.s32.totalorder %s133, %s136
    %p142 = scmp.eq.s32.totalorder %s13, 0
    %p143 = por %p141, %p142
    %p144 = scmp.ne.s32.totalorder %s133, %s136
    %p145 = scmp.eq.s32.totalorder %s18, 1
    %p146 = por %p144, %p145
    %p147 = scmp.ne.s32.totalorder %s136, %s137
    %p148 = scmp.eq.s32.totalorder %s18, 0
    %p149 = por %p147, %p148
    %p150 = scmp.ne.s32.totalorder %s136, %s137
    %p151 = scmp.eq.s32.totalorder %s19, 1
    %p152 = por %p150, %p151
    %p154 = scmp.ne.s32.totalorder %s137, %s153
    %p155 = scmp.eq.s32.totalorder %s19, 0
    %p156 = por %p154, %p155
    %s157 = ssub.s32 %s13, %s20
    %p158 = scmp.eq.s32.totalorder %s157, 0
    %s160 = sadd.s32 %s159, 1
    %s161 = scalar_select %p158, %s159, %s160
    %p164 = pneg %p158
    %p165 = scmp.eq.s32.totalorder %s13, 1
    %p166 = por %p164, %p165
    %p167 = scmp.ne.s32.totalorder %s159, %s162
    %p168 = scmp.eq.s32.totalorder %s13, 0
    %p169 = por %p167, %p168
    %p170 = scmp.ne.s32.totalorder %s159, %s162
    %p171 = scmp.eq.s32.totalorder %s18, 1
    %p172 = por %p170, %p171
    %p173 = scmp.ne.s32.totalorder %s162, %s163
    %p174 = scmp.eq.s32.totalorder %s18, 0
    %p175 = por %p173, %p174
    %p176 = scmp.ne.s32.totalorder %s162, %s163
    %p177 = scmp.eq.s32.totalorder %s19, 1
    %p178 = por %p176, %p177
    %p180 = scmp.ne.s32.totalorder %s163, %s179
    %p181 = scmp.eq.s32.totalorder %s19, 0
    %p182 = por %p180, %p181
    %p183 = scmp.le.s32.totalorder 1, %s13
    %p184 = scmp.lt.s32.totalorder %s13, 3
    %p185 = pnand %p183, %p184
    %p186 = pneg %p185
    // Predicated region
    $region9: #{_lambda_.27} parent=5 // pred_check
      _
    $region10: #{_lambda_.27} parent=5 // pred_check_branch
      %188 = sbr.rel (%p185) target = $region12
    $region11: #{_lambda_.27} parent=5 // pred_region
      %s189 = ssub.s32 %s13, 1
      // Predicated region
      $region13: #{_lambda_.27} parent=11 // pred_check
        %p190 = pneg %p60
      $region14: #{_lambda_.27} parent=11 // pred_check_branch
        %192 = sbr.rel (%p190) target = $region16
      $region15: #{_lambda_.27} parent=11 // pred_region
        _
      $region16: #{_lambda_.27} parent=11 // pred_fallthru
        _
      // Predicated region
      $region17: #{_lambda_.27} parent=11 // pred_check
        %p193 = pneg %p81
      $region18: #{_lambda_.27} parent=11 // pred_check_branch
        %195 = sbr.rel (%p193) target = $region20
      $region19: #{_lambda_.27} parent=11 // pred_region
        _
      $region20: #{_lambda_.27} parent=11 // pred_fallthru
        _
      // Predicated region
      $region21: #{_lambda_.27} parent=11 // pred_check
        %p196 = pneg %p102
      $region22: #{_lambda_.27} parent=11 // pred_check_branch
        %198 = sbr.rel (%p196) target = $region24
      $region23: #{_lambda_.27} parent=11 // pred_region
        _
      $region24: #{_lambda_.27} parent=11 // pred_fallthru
        _
      // Predicated region
      $region25: #{_lambda_.27} parent=11 // pred_check
        %p199 = pneg %p123
      $region26: #{_lambda_.27} parent=11 // pred_check_branch
        %201 = sbr.rel (%p199) target = $region28
      $region27: #{_lambda_.27} parent=11 // pred_region
        _
      $region28: #{_lambda_.27} parent=11 // pred_fallthru
        _
    $region12: #{_lambda_.27} parent=5 // pred_fallthru
      _
    %p202 = scmp.lt.s32.totalorder %s13, 2
    // Predicated region
    $region29: #{_lambda_.27} parent=5 // pred_check
      %p203 = pneg %p202
    $region30: #{_lambda_.27} parent=5 // pred_check_branch
      %205 = sbr.rel (%p203) target = $region32
    $region31: #{_lambda_.27} parent=5 // pred_region
      // Predicated region
      $region33: #{_lambda_.27} parent=31 // pred_check
        %p206 = pneg %p33
      $region34: #{_lambda_.27} parent=31 // pred_check_branch
        %208 = sbr.rel (%p206) target = $region36
      $region35: #{_lambda_.27} parent=31 // pred_region
        %s209 = smul.u32 8, %s13
        %p210 = scmp.lt.s32.totalorder %s209, 15
        %s211 = scalar_select %p210, %s209, 15
        %s212 = smul.addr %s211, 4
        %s213 = scalar_lea.vmem %s0, %s212
        %s214 = smul.u32 8, %s13
      $region36: #{_lambda_.27} parent=31 // pred_fallthru
        _
    $region32: #{_lambda_.27} parent=5 // pred_fallthru
      _
    %p215 = scmp.le.s32.totalorder 1, %s13
    %p216 = scmp.lt.s32.totalorder %s13, 3
    %p217 = pnand %p215, %p216
    %p218 = pneg %p217
    // Predicated region
    $region37: #{_lambda_.27} parent=5 // pred_check
      _
    $region38: #{_lambda_.27} parent=5 // pred_check_branch
      %220 = sbr.rel (%p217) target = $region40
    $region39: #{_lambda_.27} parent=5 // pred_region
      %s221 = ssub.s32 %s13, 1
      %s222 = smul.u32 8, %s18
      %p223 = scmp.lt.s32.totalorder %s222, 15
      %s224 = scalar_select %p223, %s222, 15
      %s225 = smul.addr %s224, 4
      %s226 = scalar_lea.vmem %s0, %s225
      %p227 = pneg %p39
      %p228 = pneg %p36
      %p229 = pneg %p60
      %p230 = pneg %p57
      %p231 = pneg %p81
      %p232 = pneg %p78
      %p233 = pneg %p102
      %p234 = pneg %p99
      %p235 = pneg %p123
      %p236 = pneg %p120
      %p237 = pneg %p149
      %p238 = pneg %p146
      %s239 = smul.u32 8, %s18
      %p240 = scmp.lt.s32.totalorder %s239, 15
      %s241 = scalar_select %p240, %s239, 15
      %s242 = smul.addr %s241, 4
      %s243 = scalar_lea.vmem %s5, %s242
      %p244 = pneg %p175
      %p245 = pneg %p172
      %s246 = smul.u32 8, %s18
      %p247 = scmp.lt.s32.totalorder %s246, 15
      %s248 = scalar_select %p247, %s246, 15
      %s249 = smul.addr %s248, 4
      %s250 = scalar_lea.vmem %s6, %s249
      %s251 = smul.u32 8, %s18
      %p252 = scmp.lt.s32.totalorder %s251, 15
      %s253 = scalar_select %p252, %s251, 15
      %s254 = smul.addr %s253, 4
      %s255 = scalar_lea.vmem %s0, %s254
      %s256 = smul.u32 8, %s18
      %s257 = smul.u32 8, %s18
      %p258 = scmp.lt.s32.totalorder %s257, 15
      %s259 = scalar_select %p258, %s257, 15
      %s260 = smul.addr %s259, 4
      %s261 = scalar_lea.vmem %s5, %s260
      %s262 = smul.u32 8, %s18
      %s263 = smul.u32 8, %s18
      %p264 = scmp.lt.s32.totalorder %s263, 15
      %s265 = scalar_select %p264, %s263, 15
      %s266 = smul.addr %s265, 4
      %s267 = scalar_lea.vmem %s6, %s266
      %s268 = smul.u32 8, %s18
      %v270 = vld [vmem:[%s255] sm:$0xf]
      %v271 = vld [vmem:[%s255 + $0x4] sm:$0xf]
      %v272 = vld [vmem:[%s255 + $0x8] sm:$0xf]
      %v273 = vld [vmem:[%s255 + $0xc] sm:$0xf]
      %v274 = vld [vmem:[%s255 + $0x10] sm:$0xf]
      %v275 = vld [vmem:[%s255 + $0x14] sm:$0xf]
      %v276 = vld [vmem:[%s255 + $0x18] sm:$0xf]
      %v277 = vld [vmem:[%s255 + $0x1c] sm:$0xf]
      %v278 = vld [vmem:[%s1] sm:$0xf]
      %v279 = vld [vmem:[%s1 + $0x4] sm:$0xf]
      %v280 = vld [vmem:[%s1 + $0x8] sm:$0xf]
      %v281 = vld [vmem:[%s1 + $0xc] sm:$0xf]
      %v282 = vld [vmem:[%s2] sm:$0x1]
      %v284 = vlaneseq
      %v285 = vshrl.u32 %v284, 7
      %v286 = vsub.s32 0, %v285
      %v287 = vrot.slane %v282, %v286
      %v297 = vunpack.c.l.b16 %v270
      %v298 = vunpack.c.l.b16 %v271
      %v299 = vunpack.c.l.b16 %v272
      %v300 = vunpack.c.l.b16 %v273
      %v301 = vunpack.c.l.b16 %v274
      %v302 = vunpack.c.l.b16 %v275
      %v303 = vunpack.c.l.b16 %v276
      %v304 = vunpack.c.l.b16 %v277
      %v305 = vpack.c.b16 %v298, %v297
      %v306 = vpack.c.b16 %v300, %v299
      %v307 = vpack.c.b16 %v302, %v301
      %v308 = vpack.c.b16 %v304, %v303
      %v313 = vunpack.c.l.b16 %v278
      %v314 = vunpack.c.l.b16 %v279
      %v315 = vunpack.c.l.b16 %v280
      %v316 = vunpack.c.l.b16 %v281
      %v317 = vpack.c.b16 %v314, %v313
      %v318 = vpack.c.b16 %v316, %v315
      %vm321 = vcmask 261120
      %v323 = vsel %vm321, %v305, 0
      %v326 = vsel %vm321, %v306, 0
      %v329 = vsel %vm321, %v307, 0
      %v332 = vsel %vm321, %v308, 0
      %334 = vmatprep.subr.bf16.mxu0 0
      %335 = vmatpush1.bf16.msra.mxu0 %v317
      %336 = vmatprep.subr.bf16.mxu0 0
      %337 = vmatpush1.bf16.msra.mxu0 %v318
      %338 = vmatprep.subr.bf16.mxu0 0
      %339 = vmatpush1.bf16.msra.mxu0 0
      %340 = vmatprep.subr.bf16.mxu0 0
      %341 = vmatpush1.bf16.msra.mxu0 0
      %342 = vmatprep.subr.bf16.mxu0 0
      %343 = vmatpush1.bf16.msra.mxu0 0
      %344 = vmatprep.subr.bf16.mxu0 0
      %345 = vmatpush1.bf16.msra.mxu0 0
      %346 = vmatprep.subr.bf16.mxu0 0
      %347 = vmatpush1.bf16.msra.mxu0 0
      %348 = vmatprep.subr.bf16.mxu0 0
      %349 = vmatpush1.bf16.msra.mxu0 0
      %350 = vmatprep.subr.bf16.mxu0 0
      %351 = vmatpush1.bf16.msra.mxu0 0
      %352 = vmatprep.subr.bf16.mxu0 0
      %353 = vmatpush1.bf16.msra.mxu0 0
      %354 = vmatprep.subr.bf16.mxu0 0
      %355 = vmatpush1.bf16.msra.mxu0 0
      %356 = vmatprep.subr.bf16.mxu0 0
      %357 = vmatpush1.bf16.msra.mxu0 0
      %358 = vmatprep.subr.bf16.mxu0 0
      %359 = vmatpush1.bf16.msra.mxu0 0
      %360 = vmatprep.subr.bf16.mxu0 0
      %361 = vmatpush1.bf16.msra.mxu0 0
      %362 = vmatprep.subr.bf16.mxu0 0
      %363 = vmatpush1.bf16.msra.mxu0 0
      %364 = vmatprep.subr.bf16.mxu0 0
      %365 = vmatpush1.bf16.msra.mxu0 0
      %366 = vmatprep.mubr.bf16.mxu0 0
      %367 = vmatmul.mubr.bf16.gmra.mrb[0].mxu0 %v323
      %v368 = vpop.f32.mrb[0].mxu0
      %v369 = vadd.f32 %v287, %v368
      %v370 = vpop.f32.mrb[0].mxu0
      %v371 = vpop.f32.mrb[0].mxu0
      %v372 = vadd.f32 %v287, %v371
      %v373 = vpop.f32.mrb[0].mxu0
      %374 = vmatprep.mubr.bf16.mxu0 0
      %375 = vmatmul.mubr.bf16.gmra.mrb[0].mxu0 %v326
      %v376 = vpop.f32.mrb[0].mxu0
      %v377 = vadd.f32 %v287, %v376
      %v378 = vpop.f32.mrb[0].mxu0
      %v379 = vpop.f32.mrb[0].mxu0
      %v380 = vadd.f32 %v287, %v379
      %v381 = vpop.f32.mrb[0].mxu0
      %382 = vmatprep.mubr.bf16.mxu0 0
      %383 = vmatmul.mubr.bf16.gmra.mrb[0].mxu0 %v329
      %v384 = vpop.f32.mrb[0].mxu0
      %v385 = vadd.f32 %v287, %v384
      %v386 = vpop.f32.mrb[0].mxu0
      %v387 = vpop.f32.mrb[0].mxu0
      %v388 = vadd.f32 %v287, %v387
      %v389 = vpop.f32.mrb[0].mxu0
      %390 = vmatprep.mubr.bf16.mxu0 0
      %391 = vmatmul.mubr.bf16.gmra.mrb[0].mxu0 %v332
      %v392 = vpop.f32.mrb[0].mxu0
      %v393 = vadd.f32 %v287, %v392
      %v394 = vpop.f32.mrb[0].mxu0
      %v395 = vpop.f32.mrb[0].mxu0
      %v396 = vadd.f32 %v287, %v395
      %v397 = vpop.f32.mrb[0].mxu0
      %398 = vdwg.mxu0
      %v399 = vld [vmem:[%s3] sm:$0xf]
      %v400 = vld [vmem:[%s3 + $0x4] sm:$0xf]
      %v401 = vld [vmem:[%s3 + $0x8] sm:$0xf]
      %v402 = vld [vmem:[%s3 + $0xc] sm:$0xf]
      %v403 = vld [vmem:[%s4] sm:$0x1]
      %v405 = vlaneseq
      %v406 = vshrl.u32 %v405, 7
      %v407 = vsub.s32 0, %v406
      %v408 = vrot.slane %v403, %v407
      %v414 = vunpack.c.l.b16 %v399
      %v415 = vunpack.c.l.b16 %v400
      %v416 = vunpack.c.l.b16 %v401
      %v417 = vunpack.c.l.b16 %v402
      %v418 = vpack.c.b16 %v415, %v414
      %v419 = vpack.c.b16 %v417, %v416
      %422 = vmatprep.subr.bf16.mxu0 0
      %423 = vmatpush1.bf16.msra.mxu0 %v418
      %424 = vmatprep.subr.bf16.mxu0 0
      %425 = vmatpush1.bf16.msra.mxu0 %v419
      %426 = vmatprep.subr.bf16.mxu0 0
      %427 = vmatpush1.bf16.msra.mxu0 0
      %428 = vmatprep.subr.bf16.mxu0 0
      %429 = vmatpush1.bf16.msra.mxu0 0
      %430 = vmatprep.subr.bf16.mxu0 0
      %431 = vmatpush1.bf16.msra.mxu0 0
      %432 = vmatprep.subr.bf16.mxu0 0
      %433 = vmatpush1.bf16.msra.mxu0 0
      %434 = vmatprep.subr.bf16.mxu0 0
      %435 = vmatpush1.bf16.msra.mxu0 0
      %436 = vmatprep.subr.bf16.mxu0 0
      %437 = vmatpush1.bf16.msra.mxu0 0
      %438 = vmatprep.subr.bf16.mxu0 0
      %439 = vmatpush1.bf16.msra.mxu0 0
      %440 = vmatprep.subr.bf16.mxu0 0
      %441 = vmatpush1.bf16.msra.mxu0 0
      %442 = vmatprep.subr.bf16.mxu0 0
      %443 = vmatpush1.bf16.msra.mxu0 0
      %444 = vmatprep.subr.bf16.mxu0 0
      %445 = vmatpush1.bf16.msra.mxu0 0
      %446 = vmatprep.subr.bf16.mxu0 0
      %447 = vmatpush1.bf16.msra.mxu0 0
      %448 = vmatprep.subr.bf16.mxu0 0
      %449 = vmatpush1.bf16.msra.mxu0 0
      %450 = vmatprep.subr.bf16.mxu0 0
      %451 = vmatpush1.bf16.msra.mxu0 0
      %452 = vmatprep.subr.bf16.mxu0 0
      %453 = vmatpush1.bf16.msra.mxu0 0
      %454 = vmatprep.mubr.bf16.mxu0 0
      %455 = vmatmul.mubr.bf16.gmra.mrb[0].mxu0 %v323
      %v456 = vpop.f32.mrb[0].mxu0
      %v457 = vadd.f32 %v408, %v456
      %v458 = vpop.f32.mrb[0].mxu0
      %v459 = vpop.f32.mrb[0].mxu0
      %v460 = vadd.f32 %v408, %v459
      %v461 = vpop.f32.mrb[0].mxu0
      %462 = vmatprep.mubr.bf16.mxu0 0
      %463 = vmatmul.mubr.bf16.gmra.mrb[0].mxu0 %v326
      %v464 = vpop.f32.mrb[0].mxu0
      %v465 = vadd.f32 %v408, %v464
      %v466 = vpop.f32.mrb[0].mxu0
      %v467 = vpop.f32.mrb[0].mxu0
      %v468 = vadd.f32 %v408, %v467
      %v469 = vpop.f32.mrb[0].mxu0
      %470 = vmatprep.mubr.bf16.mxu0 0
      %471 = vmatmul.mubr.bf16.gmra.mrb[0].mxu0 %v329
      %v472 = vpop.f32.mrb[0].mxu0
      %v473 = vadd.f32 %v408, %v472
      %v474 = vpop.f32.mrb[0].mxu0
      %v475 = vpop.f32.mrb[0].mxu0
      %v476 = vadd.f32 %v408, %v475
      %v477 = vpop.f32.mrb[0].mxu0
      %478 = vmatprep.mubr.bf16.mxu0 0
      %479 = vmatmul.mubr.bf16.gmra.mrb[0].mxu0 %v332
      %v480 = vpop.f32.mrb[0].mxu0
      %v481 = vadd.f32 %v408, %v480
      %v482 = vpop.f32.mrb[0].mxu0
      %v483 = vpop.f32.mrb[0].mxu0
      %v484 = vadd.f32 %v408, %v483
      %v485 = vpop.f32.mrb[0].mxu0
      %486 = vdwg.mxu0
      %v487 = vpack.c.bf16 %v372, %v369
      %v488 = vpack.c.bf16 %v380, %v377
      %v489 = vpack.c.bf16 %v388, %v385
      %v490 = vpack.c.bf16 %v396, %v393
      %v495 = vunpack.c.l.b16 %v487
      %v496 = vunpack.c.h.b16 %v487
      %v497 = vunpack.c.l.b16 %v488
      %v498 = vunpack.c.h.b16 %v488
      %v499 = vunpack.c.l.b16 %v489
      %v500 = vunpack.c.h.b16 %v489
      %v501 = vunpack.c.l.b16 %v490
      %v502 = vunpack.c.h.b16 %v490
      %v503 = vpack.c.b16 %v495, %v495
      %v504 = vpack.c.b16 %v496, %v496
      %v505 = vpack.c.b16 %v497, %v497
      %v506 = vpack.c.b16 %v498, %v498
      %v507 = vpack.c.b16 %v499, %v499
      %v508 = vpack.c.b16 %v500, %v500
      %v509 = vpack.c.b16 %v501, %v501
      %v510 = vpack.c.b16 %v502, %v502
      %vm519 = vcmask 257024
      %520 = vst.msk [vmem:[%s261] sm:$0xf] %vm519, %v503
      %521 = vst.msk [vmem:[%s261 + $0x4] sm:$0xf] %vm519, %v504
      %522 = vst.msk [vmem:[%s261 + $0x8] sm:$0xf] %vm519, %v505
      %523 = vst.msk [vmem:[%s261 + $0xc] sm:$0xf] %vm519, %v506
      %524 = vst.msk [vmem:[%s261 + $0x10] sm:$0xf] %vm519, %v507
      %525 = vst.msk [vmem:[%s261 + $0x14] sm:$0xf] %vm519, %v508
      %526 = vst.msk [vmem:[%s261 + $0x18] sm:$0xf] %vm519, %v509
      %527 = vst.msk [vmem:[%s261 + $0x1c] sm:$0xf] %vm519, %v510
      %v528 = vpack.c.bf16 %v460, %v457
      %v529 = vpack.c.bf16 %v468, %v465
      %v530 = vpack.c.bf16 %v476, %v473
      %v531 = vpack.c.bf16 %v484, %v481
      %v536 = vunpack.c.l.b16 %v528
      %v537 = vunpack.c.h.b16 %v528
      %v538 = vunpack.c.l.b16 %v529
      %v539 = vunpack.c.h.b16 %v529
      %v540 = vunpack.c.l.b16 %v530
      %v541 = vunpack.c.h.b16 %v530
      %v542 = vunpack.c.l.b16 %v531
      %v543 = vunpack.c.h.b16 %v531
      %v544 = vpack.c.b16 %v536, %v536
      %v545 = vpack.c.b16 %v537, %v537
      %v546 = vpack.c.b16 %v538, %v538
      %v547 = vpack.c.b16 %v539, %v539
      %v548 = vpack.c.b16 %v540, %v540
      %v549 = vpack.c.b16 %v541, %v541
      %v550 = vpack.c.b16 %v542, %v542
      %v551 = vpack.c.b16 %v543, %v543
      %vm560 = vcmask 519168
      %561 = vst.msk [vmem:[%s267] sm:$0xf] %vm560, %v544
      %562 = vst.msk [vmem:[%s267 + $0x4] sm:$0xf] %vm560, %v545
      %563 = vst.msk [vmem:[%s267 + $0x8] sm:$0xf] %vm560, %v546
      %564 = vst.msk [vmem:[%s267 + $0xc] sm:$0xf] %vm560, %v547
      %565 = vst.msk [vmem:[%s267 + $0x10] sm:$0xf] %vm560, %v548
      %566 = vst.msk [vmem:[%s267 + $0x14] sm:$0xf] %vm560, %v549
      %567 = vst.msk [vmem:[%s267 + $0x18] sm:$0xf] %vm560, %v550
      %568 = vst.msk [vmem:[%s267 + $0x1c] sm:$0xf] %vm560, %v551
      %s569 = smul.u32 8, %s18
      %p570 = scmp.lt.s32.totalorder %s569, 15
      %s571 = scalar_select %p570, %s569, 15
      %s572 = smul.addr %s571, 4
      %s573 = scalar_lea.vmem %s5, %s572
      %s574 = smul.u32 8, %s18
      %p575 = scmp.lt.s32.totalorder %s574, 15
      %s576 = scalar_select %p575, %s574, 15
      %s577 = smul.addr %s576, 4
      %s578 = scalar_lea.vmem %s6, %s577
      // Predicated region
      $region41: #{_lambda_.27} parent=39 // pred_check
        %p579 = pneg %p146
      $region42: #{_lambda_.27} parent=39 // pred_check_branch
        %581 = sbr.rel (%p579) target = $region44
      $region43: #{_lambda_.27} parent=39 // pred_region
        %s582 = smul.u32 8, %s18
      $region44: #{_lambda_.27} parent=39 // pred_fallthru
        _
      // Predicated region
      $region45: #{_lambda_.27} parent=39 // pred_check
        %p583 = pneg %p172
      $region46: #{_lambda_.27} parent=39 // pred_check_branch
        %585 = sbr.rel (%p583) target = $region48
      $region47: #{_lambda_.27} parent=39 // pred_region
        %s586 = smul.u32 8, %s18
      $region48: #{_lambda_.27} parent=39 // pred_fallthru
        _
    $region40: #{_lambda_.27} parent=5 // pred_fallthru
      _
    %p587 = scmp.le.s32.totalorder 2, %s13
    // Predicated region
    $region49: #{_lambda_.27} parent=5 // pred_check
      %p588 = pneg %p587
    $region50: #{_lambda_.27} parent=5 // pred_check_branch
      %590 = sbr.rel (%p588) target = $region52
    $region51: #{_lambda_.27} parent=5 // pred_region
      %s591 = ssub.s32 %s13, 2
      // Predicated region
      $region53: #{_lambda_.27} parent=51 // pred_check
        %p592 = pneg %p152
      $region54: #{_lambda_.27} parent=51 // pred_check_branch
        %594 = sbr.rel (%p592) target = $region56
      $region55: #{_lambda_.27} parent=51 // pred_region
        %s595 = smul.u32 8, %s19
        %p596 = scmp.lt.s32.totalorder %s595, 15
        %s597 = scalar_select %p596, %s595, 15
        %s598 = smul.addr %s597, 4
        %s599 = scalar_lea.vmem %s5, %s598
      $region56: #{_lambda_.27} parent=51 // pred_fallthru
        _
      // Predicated region
      $region57: #{_lambda_.27} parent=51 // pred_check
        %p600 = pneg %p178
      $region58: #{_lambda_.27} parent=51 // pred_check_branch
        %602 = sbr.rel (%p600) target = $region60
      $region59: #{_lambda_.27} parent=51 // pred_region
        %s603 = smul.u32 8, %s19
        %p604 = scmp.lt.s32.totalorder %s603, 15
        %s605 = scalar_select %p604, %s603, 15
        %s606 = smul.addr %s605, 4
        %s607 = scalar_lea.vmem %s6, %s606
      $region60: #{_lambda_.27} parent=51 // pred_fallthru
        _
    $region52: #{_lambda_.27} parent=5 // pred_fallthru
      _
  $region6: #{_lambda_.27} parent=0 // loop_footer
    %s17 = sadd.s32 1, %s13
  $region7: #{_lambda_.27} parent=0 // loop_footer_branch
    %12 = sbr.rel target = $region3
  $region8: #{_lambda_.27} parent=0 // loop_exit
    _

// kernel: _lambda_.28
$region0: #{_lambda_.28}
  #allocation0 [shape = 'u32[]', space=smem, size = 0x4, offset = 0x4, fixed_abs, tag = 'smem constant byte address 0x4 - core index']
  #allocation1 [shape = 'u32[144,128]{1,0:T(1,128)}', space=vmem, size = 0x12000, scoped, tag = 'internal scratch']
  %s0 = inlined_call_operand.vmem [shape: bf16[2,64,32], index: 0, kind: input, shape index: {}]
  %s1 = inlined_call_operand.vmem [shape: bf16[2,64,64], index: 1, kind: input, shape index: {}]
  %s2 = inlined_call_operand.vmem [shape: bf16[2,64,32], index: 2, kind: output, shape index: {}]
  %s3 = sld [smem:[#allocation0]]
  $region41: #{_lambda_.28} parent=0
    _
  %s5 = ssub.s32 1, %s3
  %s6 = scalar_select 0, %s5, %s3
  loop: start=0, step=1, limit=6
  $region2: #{_lambda_.28} parent=0 // loop_pre_header
    _
  $region3: #{_lambda_.28} parent=0 // loop_header
    %s8 = sphi 0, %s12
    %p9 = scmp.ge.s32.totalorder %s8, 6
    %s15 = sphi 0, %s27
    %s16 = sphi 0, %s23
    %s17 = sphi 0, %s15
    %s18 = sphi 0, %s16
    %s19 = sphi 0, %s17
    %s20 = sphi 0, %s18
    %s32 = sphi 0, %s34
    %s35 = sphi 0, %s32
    %s36 = sphi 0, %s35
    %s52 = sphi 0, %s36
    %s58 = sphi 0, %s60
    %s61 = sphi 0, %s58
    %s62 = sphi 0, %s61
    %s78 = sphi 0, %s62
    %s86 = sphi 0, %s88
    %s89 = sphi 0, %s86
    %s90 = sphi 0, %s89
    %s106 = sphi 0, %s90
  $region4: #{_lambda_.28} parent=0 // loop_header_branch
    %11 = sbr.rel (%p9) target = $region8
  $region5: #{_lambda_.28} parent=0 // loop_body
    %s13 = ssub.s32 %s8, 1
    %s14 = ssub.s32 %s8, 2
    %s21 = sadd.s32 1, %s16
    %p22 = scmp.ge.s32.totalorder %s21, 2
    %s23 = scalar_select %p22, 0, %s21
    %s24 = sadd.s32 1, %s15
    %s25 = scalar_select %p22, %s24, %s15
    %p26 = scmp.ge.s32.totalorder %s25, 2
    %s27 = scalar_select %p26, 0, %s25
    %s28 = ssub.s32 %s15, %s27
    %s29 = ssub.s32 %s16, %s23
    %s30 = sor.u32 %s28, %s29
    %p31 = scmp.eq.s32.totalorder %s30, 0
    %s33 = sadd.s32 %s32, 1
    %s34 = scalar_select %p31, %s32, %s33
    %p37 = pneg %p31
    %p38 = scmp.eq.s32.totalorder %s8, 3
    %p39 = por %p37, %p38
    %p40 = scmp.ne.s32.totalorder %s32, %s35
    %p41 = scmp.eq.s32.totalorder %s8, 0
    %p42 = por %p40, %p41
    %p43 = scmp.ne.s32.totalorder %s32, %s35
    %p44 = scmp.eq.s32.totalorder %s13, 3
    %p45 = por %p43, %p44
    %p46 = scmp.ne.s32.totalorder %s35, %s36
    %p47 = scmp.eq.s32.totalorder %s13, 0
    %p48 = por %p46, %p47
    %p49 = scmp.ne.s32.totalorder %s35, %s36
    %p50 = scmp.eq.s32.totalorder %s14, 3
    %p51 = por %p49, %p50
    %p53 = scmp.ne.s32.totalorder %s36, %s52
    %p54 = scmp.eq.s32.totalorder %s14, 0
    %p55 = por %p53, %p54
    %s56 = ssub.s32 %s15, %s27
    %p57 = scmp.eq.s32.totalorder %s56, 0
    %s59 = sadd.s32 %s58, 1
    %s60 = scalar_select %p57, %s58, %s59
    %p63 = pneg %p57
    %p64 = scmp.eq.s32.totalorder %s8, 3
    %p65 = por %p63, %p64
    %p66 = scmp.ne.s32.totalorder %s58, %s61
    %p67 = scmp.eq.s32.totalorder %s8, 0
    %p68 = por %p66, %p67
    %p69 = scmp.ne.s32.totalorder %s58, %s61
    %p70 = scmp.eq.s32.totalorder %s13, 3
    %p71 = por %p69, %p70
    %p72 = scmp.ne.s32.totalorder %s61, %s62
    %p73 = scmp.eq.s32.totalorder %s13, 0
    %p74 = por %p72, %p73
    %p75 = scmp.ne.s32.totalorder %s61, %s62
    %p76 = scmp.eq.s32.totalorder %s14, 3
    %p77 = por %p75, %p76
    %p79 = scmp.ne.s32.totalorder %s62, %s78
    %p80 = scmp.eq.s32.totalorder %s14, 0
    %p81 = por %p79, %p80
    %s82 = ssub.s32 %s15, %s27
    %s83 = ssub.s32 %s16, %s23
    %s84 = sor.u32 %s82, %s83
    %p85 = scmp.eq.s32.totalorder %s84, 0
    %s87 = sadd.s32 %s86, 1
    %s88 = scalar_select %p85, %s86, %s87
    %p91 = pneg %p85
    %p92 = scmp.eq.s32.totalorder %s8, 3
    %p93 = por %p91, %p92
    %p94 = scmp.ne.s32.totalorder %s86, %s89
    %p95 = scmp.eq.s32.totalorder %s8, 0
    %p96 = por %p94, %p95
    %p97 = scmp.ne.s32.totalorder %s86, %s89
    %p98 = scmp.eq.s32.totalorder %s13, 3
    %p99 = por %p97, %p98
    %p100 = scmp.ne.s32.totalorder %s89, %s90
    %p101 = scmp.eq.s32.totalorder %s13, 0
    %p102 = por %p100, %p101
    %p103 = scmp.ne.s32.totalorder %s89, %s90
    %p104 = scmp.eq.s32.totalorder %s14, 3
    %p105 = por %p103, %p104
    %p107 = scmp.ne.s32.totalorder %s90, %s106
    %p108 = scmp.eq.s32.totalorder %s14, 0
    %p109 = por %p107, %p108
    %p110 = scmp.le.s32.totalorder 1, %s8
    %p111 = scmp.lt.s32.totalorder %s8, 5
    %p112 = pnand %p110, %p111
    %p113 = pneg %p112
    // Predicated region
    $region9: #{_lambda_.28} parent=5 // pred_check
      _
    $region10: #{_lambda_.28} parent=5 // pred_check_branch
      %115 = sbr.rel (%p112) target = $region12
    $region11: #{_lambda_.28} parent=5 // pred_region
      %s116 = ssub.s32 %s8, 1
    $region12: #{_lambda_.28} parent=5 // pred_fallthru
      _
    %p117 = scmp.lt.s32.totalorder %s8, 4
    // Predicated region
    $region13: #{_lambda_.28} parent=5 // pred_check
      %p118 = pneg %p117
    $region14: #{_lambda_.28} parent=5 // pred_check_branch
      %120 = sbr.rel (%p118) target = $region16
    $region15: #{_lambda_.28} parent=5 // pred_region
      // Predicated region
      $region17: #{_lambda_.28} parent=15 // pred_check
        %p121 = pneg %p42
      $region18: #{_lambda_.28} parent=15 // pred_check_branch
        %123 = sbr.rel (%p121) target = $region20
      $region19: #{_lambda_.28} parent=15 // pred_region
        %s124 = smul.u32 4, %s16
        %p125 = scmp.lt.s32.totalorder %s15, 1
        %s126 = scalar_select %p125, %s15, 1
        %p127 = scmp.lt.s32.totalorder %s124, 7
        %s128 = scalar_select %p127, %s124, 7
        %s129 = smul.addr %s126, 8
        %s130 = sadd.s32 %s128, %s129
        %s131 = smul.addr %s130, 4
        %s132 = scalar_lea.vmem %s0, %s131
        %s133 = smul.u32 4, %s16
      $region20: #{_lambda_.28} parent=15 // pred_fallthru
        _
      // Predicated region
      $region21: #{_lambda_.28} parent=15 // pred_check
        %p134 = pneg %p68
      $region22: #{_lambda_.28} parent=15 // pred_check_branch
        %136 = sbr.rel (%p134) target = $region24
      $region23: #{_lambda_.28} parent=15 // pred_region
        %p137 = scmp.lt.s32.totalorder %s15, 1
        %s138 = scalar_select %p137, %s15, 1
        %s139 = smul.addr %s138, 8
        %s140 = smul.addr %s139, 4
        %s141 = scalar_lea.vmem %s1, %s140
      $region24: #{_lambda_.28} parent=15 // pred_fallthru
        _
    $region16: #{_lambda_.28} parent=5 // pred_fallthru
      _
    %p142 = scmp.le.s32.totalorder 1, %s8
    %p143 = scmp.lt.s32.totalorder %s8, 5
    %p144 = pnand %p142, %p143
    %p145 = pneg %p144
    // Predicated region
    $region25: #{_lambda_.28} parent=5 // pred_check
      _
    $region26: #{_lambda_.28} parent=5 // pred_check_branch
      %147 = sbr.rel (%p144) target = $region28
    $region27: #{_lambda_.28} parent=5 // pred_region
      %s148 = ssub.s32 %s8, 1
      %s149 = smul.u32 4, %s18
      %p150 = scmp.lt.s32.totalorder %s17, 1
      %s151 = scalar_select %p150, %s17, 1
      %p152 = scmp.lt.s32.totalorder %s149, 7
      %s153 = scalar_select %p152, %s149, 7
      %s154 = smul.addr %s151, 8
      %s155 = sadd.s32 %s153, %s154
      %s156 = smul.addr %s155, 4
      %s157 = scalar_lea.vmem %s0, %s156
      %p158 = pneg %p48
      %p159 = pneg %p45
      %p160 = scmp.lt.s32.totalorder %s17, 1
      %s161 = scalar_select %p160, %s17, 1
      %s162 = smul.addr %s161, 8
      %s163 = smul.addr %s162, 4
      %s164 = scalar_lea.vmem %s1, %s163
      %p165 = pneg %p74
      %p166 = pneg %p71
      %p167 = pneg %p102
      %p168 = pneg %p99
      %s169 = smul.u32 4, %s18
      %p170 = scmp.lt.s32.totalorder %s17, 1
      %s171 = scalar_select %p170, %s17, 1
      %p172 = scmp.lt.s32.totalorder %s169, 7
      %s173 = scalar_select %p172, %s169, 7
      %s174 = smul.addr %s171, 8
      %s175 = sadd.s32 %s173, %s174
      %s176 = smul.addr %s175, 4
      %s177 = scalar_lea.vmem %s2, %s176
      %s178 = smul.u32 4, %s18
      %p179 = scmp.lt.s32.totalorder %s17, 1
      %s180 = scalar_select %p179, %s17, 1
      %p181 = scmp.lt.s32.totalorder %s178, 7
      %s182 = scalar_select %p181, %s178, 7
      %s183 = smul.addr %s180, 8
      %s184 = sadd.s32 %s182, %s183
      %s185 = smul.addr %s184, 4
      %s186 = scalar_lea.vmem %s0, %s185
      %s187 = smul.u32 4, %s18
      %p188 = scmp.lt.s32.totalorder %s17, 1
      %s189 = scalar_select %p188, %s17, 1
      %s190 = smul.addr %s189, 8
      %s191 = smul.addr %s190, 4
      %s192 = scalar_lea.vmem %s1, %s191
      %s193 = smul.u32 4, %s18
      %p194 = scmp.lt.s32.totalorder %s17, 1
      %s195 = scalar_select %p194, %s17, 1
      %p196 = scmp.lt.s32.totalorder %s193, 7
      %s197 = scalar_select %p196, %s193, 7
      %s198 = smul.addr %s195, 8
      %s199 = sadd.s32 %s197, %s198
      %s200 = smul.addr %s199, 4
      %s201 = scalar_lea.vmem %s2, %s200
      %s202 = smul.u32 4, %s18
      %v204 = vld [vmem:[%s186] sm:$0xf]
      %v205 = vld [vmem:[%s186 + $0x4] sm:$0xf]
      %v206 = vld [vmem:[%s186 + $0x8] sm:$0xf]
      %v207 = vld [vmem:[%s186 + $0xc] sm:$0xf]
      %v208 = vld [vmem:[%s192] sm:$0xf]
      %v209 = vld [vmem:[%s192 + $0x4] sm:$0xf]
      %v210 = vld [vmem:[%s192 + $0x8] sm:$0xf]
      %v211 = vld [vmem:[%s192 + $0xc] sm:$0xf]
      %v212 = vld [vmem:[%s192 + $0x10] sm:$0xf]
      %v213 = vld [vmem:[%s192 + $0x14] sm:$0xf]
      %v214 = vld [vmem:[%s192 + $0x18] sm:$0xf]
      %v215 = vld [vmem:[%s192 + $0x1c] sm:$0xf]
      %v220 = vunpack.c.l.b16 %v204
      %v221 = vunpack.c.l.b16 %v205
      %v222 = vunpack.c.l.b16 %v206
      %v223 = vunpack.c.l.b16 %v207
      %v224 = vpack.c.b16 %v221, %v220
      %v225 = vpack.c.b16 %v223, %v222
      %v234 = vunpack.c.l.b16 %v208
      %v235 = vunpack.c.l.b16 %v209
      %v236 = vunpack.c.l.b16 %v210
      %v237 = vunpack.c.l.b16 %v211
      %v238 = vunpack.c.l.b16 %v212
      %v239 = vunpack.c.l.b16 %v213
      %v240 = vunpack.c.l.b16 %v214
      %v241 = vunpack.c.l.b16 %v215
      %v242 = vpack.c.b16 %v235, %v234
      %v243 = vpack.c.b16 %v237, %v236
      %v244 = vpack.c.b16 %v239, %v238
      %v245 = vpack.c.b16 %v241, %v240
      %vm246 = vcmask 64512
      %v248 = vsel %vm246, %v224, 0
      %v251 = vsel %vm246, %v225, 0
      %v254 = vsel %vm246, %v242, 0
      %v257 = vsel %vm246, %v243, 0
      %v260 = vsel %vm246, %v244, 0
      %v263 = vsel %vm246, %v245, 0
      %265 = vmatprep.subr.bf16.mxu0 0
      %266 = vmatpush1.bf16.xpose.msra.mxu0 %v254
      %267 = vmatprep.subr.bf16.mxu0 0
      %268 = vmatpush1.bf16.xpose.msra.mxu0 %v257
      %269 = vmatprep.subr.bf16.mxu0 0
      %270 = vmatpush1.bf16.xpose.msra.mxu0 %v260
      %271 = vmatprep.subr.bf16.mxu0 0
      %272 = vmatpush1.bf16.xpose.msra.mxu0 %v263
      %273 = vmatprep.subr.bf16.mxu0 0
      %274 = vmatpush1.bf16.xpose.msra.mxu0 0
      %275 = vmatprep.subr.bf16.mxu0 0
      %276 = vmatpush1.bf16.xpose.msra.mxu0 0
      %277 = vmatprep.subr.bf16.mxu0 0
      %278 = vmatpush1.bf16.xpose.msra.mxu0 0
      %279 = vmatprep.subr.bf16.mxu0 0
      %280 = vmatpush1.bf16.xpose.msra.mxu0 0
      %281 = vmatprep.subr.bf16.mxu0 0
      %282 = vmatpush1.bf16.xpose.msra.mxu0 0
      %283 = vmatprep.subr.bf16.mxu0 0
      %284 = vmatpush1.bf16.xpose.msra.mxu0 0
      %285 = vmatprep.subr.bf16.mxu0 0
      %286 = vmatpush1.bf16.xpose.msra.mxu0 0
      %287 = vmatprep.subr.bf16.mxu0 0
      %288 = vmatpush1.bf16.xpose.msra.mxu0 0
      %289 = vmatprep.subr.bf16.mxu0 0
      %290 = vmatpush1.bf16.xpose.msra.mxu0 0
      %291 = vmatprep.subr.bf16.mxu0 0
      %292 = vmatpush1.bf16.xpose.msra.mxu0 0
      %293 = vmatprep.subr.bf16.mxu0 0
      %294 = vmatpush1.bf16.xpose.msra.mxu0 0
      %295 = vmatprep.subr.bf16.mxu0 0
      %296 = vmatpush1.bf16.xpose.msra.mxu0 0
      %297 = vmatprep.mubr.bf16.mxu0 0
      %298 = vmatmul.mubr.bf16.gmra.mrb[0].mxu0 %v248
      %v299 = vpop.f32.mrb[0].mxu0
      %v300 = vadd.f32 0.0, %v299
      %v301 = vpop.f32.mrb[0].mxu0
      %v302 = vpop.f32.mrb[0].mxu0
      %v303 = vadd.f32 0.0, %v302
      %v304 = vpop.f32.mrb[0].mxu0
      %305 = vmatprep.mubr.bf16.mxu0 0
      %306 = vmatmul.mubr.bf16.gmra.mrb[0].mxu0 %v251
      %v307 = vpop.f32.mrb[0].mxu0
      %v308 = vadd.f32 0.0, %v307
      %v309 = vpop.f32.mrb[0].mxu0
      %v310 = vpop.f32.mrb[0].mxu0
      %v311 = vadd.f32 0.0, %v310
      %v312 = vpop.f32.mrb[0].mxu0
      %313 = vdwg.mxu0
      %vm314 = vcmask 523264
      %v315 = vsel %vm314, %v300, -inf
      %316 = vmax.xlane.f32.xlu0 %v315
      %v317 = vpop.xlane.xlu0 %316
      %v318 = vsel %vm314, %v303, -inf
      %319 = vmax.xlane.f32.xlu0 %v318
      %v320 = vpop.xlane.xlu0 %319
      %v321 = vsel %vm314, %v308, -inf
      %322 = vmax.xlane.f32.xlu0 %v321
      %v323 = vpop.xlane.xlu0 %322
      %v324 = vsel %vm314, %v311, -inf
      %325 = vmax.xlane.f32.xlu0 %v324
      %v326 = vpop.xlane.xlu0 %325
      %v327 = vsub.f32 %v300, %v317
      %v328 = vsub.f32 %v303, %v320
      %v329 = vsub.f32 %v308, %v323
      %v330 = vsub.f32 %v311, %v326
      %v331 = vmul.f32 %v327, 1.442695
      %v332 = vpow.pop %v331
      %v333 = vmul.f32 %v328, 1.442695
      %v334 = vpow.pop %v333
      %v335 = vmul.f32 %v329, 1.442695
      %v336 = vpow.pop %v335
      %v337 = vmul.f32 %v330, 1.442695
      %v338 = vpow.pop %v337
      %v339 = vsel %vm314, %v332, 0.0
      %340 = vadd.xlane.f32.xlu0 %v339
      %v341 = vpop.xlane.xlu0 %340
      %v342 = vsel %vm314, %v334, 0.0
      %343 = vadd.xlane.f32.xlu0 %v342
      %v344 = vpop.xlane.xlu0 %343
      %v345 = vsel %vm314, %v336, 0.0
      %346 = vadd.xlane.f32.xlu0 %v345
      %v347 = vpop.xlane.xlu0 %346
      %v348 = vsel %vm314, %v338, 0.0
      %349 = vadd.xlane.f32.xlu0 %v348
      %v350 = vpop.xlane.xlu0 %349
      %v351 = vrcp.pop %v341
      %v352 = vrcp.pop %v344
      %v353 = vrcp.pop %v347
      %v354 = vrcp.pop %v350
      %v355 = vmul.f32 %v332, %v351
      %v356 = vmul.f32 %v334, %v352
      %v357 = vmul.f32 %v336, %v353
      %v358 = vmul.f32 %v338, %v354
      %v359 = vpack.c.bf16 %v356, %v355
      %v360 = vpack.c.bf16 %v358, %v357
      %361 = vrot.lane.b32.xlu0 %v242, 96
      %v362 = vpop.permute.xlu0 %361
      %363 = vrot.lane.b32.xlu0 %v243, 96
      %v364 = vpop.permute.xlu0 %363
      %365 = vrot.lane.b32.xlu0 %v244, 96
      %v366 = vpop.permute.xlu0 %365
      %367 = vrot.lane.b32.xlu0 %v245, 96
      %v368 = vpop.permute.xlu0 %367
      %v374 = vsel %vm314, %v359, 0
      %v377 = vsel %vm314, %v360, 0
      %379 = vmatprep.subr.bf16.mxu0 0
      %380 = vmatpush1.bf16.msra.mxu0 %v362
      %381 = vmatprep.subr.bf16.mxu0 0
      %382 = vmatpush1.bf16.msra.mxu0 %v364
      %383 = vmatprep.subr.bf16.mxu0 0
      %384 = vmatpush1.bf16.msra.mxu0 %v366
      %385 = vmatprep.subr.bf16.mxu0 0
      %386 = vmatpush1.bf16.msra.mxu0 %v368
      %387 = vmatprep.subr.bf16.mxu0 0
      %388 = vmatpush1.bf16.msra.mxu0 0
      %389 = vmatprep.subr.bf16.mxu0 0
      %390 = vmatpush1.bf16.msra.mxu0 0
      %391 = vmatprep.subr.bf16.mxu0 0
      %392 = vmatpush1.bf16.msra.mxu0 0
      %393 = vmatprep.subr.bf16.mxu0 0
      %394 = vmatpush1.bf16.msra.mxu0 0
      %395 = vmatprep.subr.bf16.mxu0 0
      %396 = vmatpush1.bf16.msra.mxu0 0
      %397 = vmatprep.subr.bf16.mxu0 0
      %398 = vmatpush1.bf16.msra.mxu0 0
      %399 = vmatprep.subr.bf16.mxu0 0
      %400 = vmatpush1.bf16.msra.mxu0 0
      %401 = vmatprep.subr.bf16.mxu0 0
      %402 = vmatpush1.bf16.msra.mxu0 0
      %403 = vmatprep.subr.bf16.mxu0 0
      %404 = vmatpush1.bf16.msra.mxu0 0
      %405 = vmatprep.subr.bf16.mxu0 0
      %406 = vmatpush1.bf16.msra.mxu0 0
      %407 = vmatprep.subr.bf16.mxu0 0
      %408 = vmatpush1.bf16.msra.mxu0 0
      %409 = vmatprep.subr.bf16.mxu0 0
      %410 = vmatpush1.bf16.msra.mxu0 0
      %411 = vmatprep.mubr.bf16.mxu0 0
      %412 = vmatmul.mubr.bf16.gmra.mrb[0].mxu0 %v374
      %v413 = vpop.f32.mrb[0].mxu0
      %v414 = vadd.f32 0.0, %v413
      %v415 = vpop.f32.mrb[0].mxu0
      %v416 = vpop.f32.mrb[0].mxu0
      %v417 = vadd.f32 0.0, %v416
      %v418 = vpop.f32.mrb[0].mxu0
      %419 = vmatprep.mubr.bf16.mxu0 0
      %420 = vmatmul.mubr.bf16.gmra.mrb[0].mxu0 %v377
      %v421 = vpop.f32.mrb[0].mxu0
      %v422 = vadd.f32 0.0, %v421
      %v423 = vpop.f32.mrb[0].mxu0
      %v424 = vpop.f32.mrb[0].mxu0
      %v425 = vadd.f32 0.0, %v424
      %v426 = vpop.f32.mrb[0].mxu0
      %427 = vdwg.mxu0
      %428 = vrot.lane.b32.xlu0 %v224, 120
      %v429 = vpop.permute.xlu0 %428
      %430 = vrot.lane.b32.xlu0 %v225, 120
      %v431 = vpop.permute.xlu0 %430
      %432 = vrot.lane.b32.xlu0 %v242, 120
      %v433 = vpop.permute.xlu0 %432
      %434 = vrot.lane.b32.xlu0 %v243, 120
      %v435 = vpop.permute.xlu0 %434
      %436 = vrot.lane.b32.xlu0 %v244, 120
      %v437 = vpop.permute.xlu0 %436
      %438 = vrot.lane.b32.xlu0 %v245, 120
      %v439 = vpop.permute.xlu0 %438
      %v441 = vsel %vm246, %v429, 0
      %v444 = vsel %vm246, %v431, 0
      %v447 = vsel %vm246, %v433, 0
      %v450 = vsel %vm246, %v435, 0
      %v453 = vsel %vm246, %v437, 0
      %v456 = vsel %vm246, %v439, 0
      %458 = vmatprep.subr.bf16.mxu0 0
      %459 = vmatpush1.bf16.xpose.msra.mxu0 %v447
      %460 = vmatprep.subr.bf16.mxu0 0
      %461 = vmatpush1.bf16.xpose.msra.mxu0 %v450
      %462 = vmatprep.subr.bf16.mxu0 0
      %463 = vmatpush1.bf16.xpose.msra.mxu0 %v453
      %464 = vmatprep.subr.bf16.mxu0 0
      %465 = vmatpush1.bf16.xpose.msra.mxu0 %v456
      %466 = vmatprep.subr.bf16.mxu0 0
      %467 = vmatpush1.bf16.xpose.msra.mxu0 0
      %468 = vmatprep.subr.bf16.mxu0 0
      %469 = vmatpush1.bf16.xpose.msra.mxu0 0
      %470 = vmatprep.subr.bf16.mxu0 0
      %471 = vmatpush1.bf16.xpose.msra.mxu0 0
      %472 = vmatprep.subr.bf16.mxu0 0
      %473 = vmatpush1.bf16.xpose.msra.mxu0 0
      %474 = vmatprep.subr.bf16.mxu0 0
      %475 = vmatpush1.bf16.xpose.msra.mxu0 0
      %476 = vmatprep.subr.bf16.mxu0 0
      %477 = vmatpush1.bf16.xpose.msra.mxu0 0
      %478 = vmatprep.subr.bf16.mxu0 0
      %479 = vmatpush1.bf16.xpose.msra.mxu0 0
      %480 = vmatprep.subr.bf16.mxu0 0
      %481 = vmatpush1.bf16.xpose.msra.mxu0 0
      %482 = vmatprep.subr.bf16.mxu0 0
      %483 = vmatpush1.bf16.xpose.msra.mxu0 0
      %484 = vmatprep.subr.bf16.mxu0 0
      %485 = vmatpush1.bf16.xpose.msra.mxu0 0
      %486 = vmatprep.subr.bf16.mxu0 0
      %487 = vmatpush1.bf16.xpose.msra.mxu0 0
      %488 = vmatprep.subr.bf16.mxu0 0
      %489 = vmatpush1.bf16.xpose.msra.mxu0 0
      %490 = vmatprep.mubr.bf16.mxu0 0
      %491 = vmatmul.mubr.bf16.gmra.mrb[0].mxu0 %v441
      %v492 = vpop.f32.mrb[0].mxu0
      %v493 = vadd.f32 0.0, %v492
      %v494 = vpop.f32.mrb[0].mxu0
      %v495 = vpop.f32.mrb[0].mxu0
      %v496 = vadd.f32 0.0, %v495
      %v497 = vpop.f32.mrb[0].mxu0
      %498 = vmatprep.mubr.bf16.mxu0 0
      %499 = vmatmul.mubr.bf16.gmra.mrb[0].mxu0 %v444
      %v500 = vpop.f32.mrb[0].mxu0
      %v501 = vadd.f32 0.0, %v500
      %v502 = vpop.f32.mrb[0].mxu0
      %v503 = vpop.f32.mrb[0].mxu0
      %v504 = vadd.f32 0.0, %v503
      %v505 = vpop.f32.mrb[0].mxu0
      %506 = vdwg.mxu0
      %v507 = vsel %vm314, %v493, -inf
      %508 = vmax.xlane.f32.xlu0 %v507
      %v509 = vpop.xlane.xlu0 %508
      %v510 = vsel %vm314, %v496, -inf
      %511 = vmax.xlane.f32.xlu0 %v510
      %v512 = vpop.xlane.xlu0 %511
      %v513 = vsel %vm314, %v501, -inf
      %514 = vmax.xlane.f32.xlu0 %v513
      %v515 = vpop.xlane.xlu0 %514
      %v516 = vsel %vm314, %v504, -inf
      %517 = vmax.xlane.f32.xlu0 %v516
      %v518 = vpop.xlane.xlu0 %517
      %v519 = vsub.f32 %v493, %v509
      %v520 = vsub.f32 %v496, %v512
      %v521 = vsub.f32 %v501, %v515
      %v522 = vsub.f32 %v504, %v518
      %v523 = vmul.f32 %v519, 1.442695
      %v524 = vpow.pop %v523
      %v525 = vmul.f32 %v520, 1.442695
      %v526 = vpow.pop %v525
      %v527 = vmul.f32 %v521, 1.442695
      %v528 = vpow.pop %v527
      %v529 = vmul.f32 %v522, 1.442695
      %v530 = vpow.pop %v529
      %v531 = vsel %vm314, %v524, 0.0
      %532 = vadd.xlane.f32.xlu0 %v531
      %v533 = vpop.xlane.xlu0 %532
      %v534 = vsel %vm314, %v526, 0.0
      %535 = vadd.xlane.f32.xlu0 %v534
      %v536 = vpop.xlane.xlu0 %535
      %v537 = vsel %vm314, %v528, 0.0
      %538 = vadd.xlane.f32.xlu0 %v537
      %v539 = vpop.xlane.xlu0 %538
      %v540 = vsel %vm314, %v530, 0.0
      %541 = vadd.xlane.f32.xlu0 %v540
      %v542 = vpop.xlane.xlu0 %541
      %v543 = vrcp.pop %v533
      %v544 = vrcp.pop %v536
      %v545 = vrcp.pop %v539
      %v546 = vrcp.pop %v542
      %v547 = vmul.f32 %v524, %v543
      %v548 = vmul.f32 %v526, %v544
      %v549 = vmul.f32 %v528, %v545
      %v550 = vmul.f32 %v530, %v546
      %v551 = vpack.c.bf16 %v548, %v547
      %v552 = vpack.c.bf16 %v550, %v549
      %553 = vrot.lane.b32.xlu0 %v242, 88
      %v554 = vpop.permute.xlu0 %553
      %555 = vrot.lane.b32.xlu0 %v243, 88
      %v556 = vpop.permute.xlu0 %555
      %557 = vrot.lane.b32.xlu0 %v244, 88
      %v558 = vpop.permute.xlu0 %557
      %559 = vrot.lane.b32.xlu0 %v245, 88
      %v560 = vpop.permute.xlu0 %559
      %v566 = vsel %vm314, %v551, 0
      %v569 = vsel %vm314, %v552, 0
      %571 = vmatprep.subr.bf16.mxu0 0
      %572 = vmatpush1.bf16.msra.mxu0 %v554
      %573 = vmatprep.subr.bf16.mxu0 0
      %574 = vmatpush1.bf16.msra.mxu0 %v556
      %575 = vmatprep.subr.bf16.mxu0 0
      %576 = vmatpush1.bf16.msra.mxu0 %v558
      %577 = vmatprep.subr.bf16.mxu0 0
      %578 = vmatpush1.bf16.msra.mxu0 %v560
      %579 = vmatprep.subr.bf16.mxu0 0
      %580 = vmatpush1.bf16.msra.mxu0 0
      %581 = vmatprep.subr.bf16.mxu0 0
      %582 = vmatpush1.bf16.msra.mxu0 0
      %583 = vmatprep.subr.bf16.mxu0 0
      %584 = vmatpush1.bf16.msra.mxu0 0
      %585 = vmatprep.subr.bf16.mxu0 0
      %586 = vmatpush1.bf16.msra.mxu0 0
      %587 = vmatprep.subr.bf16.mxu0 0
      %588 = vmatpush1.bf16.msra.mxu0 0
      %589 = vmatprep.subr.bf16.mxu0 0
      %590 = vmatpush1.bf16.msra.mxu0 0
      %591 = vmatprep.subr.bf16.mxu0 0
      %592 = vmatpush1.bf16.msra.mxu0 0
      %593 = vmatprep.subr.bf16.mxu0 0
      %594 = vmatpush1.bf16.msra.mxu0 0
      %595 = vmatprep.subr.bf16.mxu0 0
      %596 = vmatpush1.bf16.msra.mxu0 0
      %597 = vmatprep.subr.bf16.mxu0 0
      %598 = vmatpush1.bf16.msra.mxu0 0
      %599 = vmatprep.subr.bf16.mxu0 0
      %600 = vmatpush1.bf16.msra.mxu0 0
      %601 = vmatprep.subr.bf16.mxu0 0
      %602 = vmatpush1.bf16.msra.mxu0 0
      %603 = vmatprep.mubr.bf16.mxu0 0
      %604 = vmatmul.mubr.bf16.gmra.mrb[0].mxu0 %v566
      %v605 = vpop.f32.mrb[0].mxu0
      %v606 = vadd.f32 0.0, %v605
      %v607 = vpop.f32.mrb[0].mxu0
      %v608 = vpop.f32.mrb[0].mxu0
      %v609 = vadd.f32 0.0, %v608
      %v610 = vpop.f32.mrb[0].mxu0
      %611 = vmatprep.mubr.bf16.mxu0 0
      %612 = vmatmul.mubr.bf16.gmra.mrb[0].mxu0 %v569
      %v613 = vpop.f32.mrb[0].mxu0
      %v614 = vadd.f32 0.0, %v613
      %v615 = vpop.f32.mrb[0].mxu0
      %v616 = vpop.f32.mrb[0].mxu0
      %v617 = vadd.f32 0.0, %v616
      %v618 = vpop.f32.mrb[0].mxu0
      %619 = vdwg.mxu0
      %620 = vrot.lane.b32.xlu0 %v224, 112
      %v621 = vpop.permute.xlu0 %620
      %622 = vrot.lane.b32.xlu0 %v225, 112
      %v623 = vpop.permute.xlu0 %622
      %624 = vrot.lane.b32.xlu0 %v242, 112
      %v625 = vpop.permute.xlu0 %624
      %626 = vrot.lane.b32.xlu0 %v243, 112
      %v627 = vpop.permute.xlu0 %626
      %628 = vrot.lane.b32.xlu0 %v244, 112
      %v629 = vpop.permute.xlu0 %628
      %630 = vrot.lane.b32.xlu0 %v245, 112
      %v631 = vpop.permute.xlu0 %630
      %v633 = vsel %vm246, %v621, 0
      %v636 = vsel %vm246, %v623, 0
      %v639 = vsel %vm246, %v625, 0
      %v642 = vsel %vm246, %v627, 0
      %v645 = vsel %vm246, %v629, 0
      %v648 = vsel %vm246, %v631, 0
      %650 = vmatprep.subr.bf16.mxu0 0
      %651 = vmatpush1.bf16.xpose.msra.mxu0 %v639
      %652 = vmatprep.subr.bf16.mxu0 0
      %653 = vmatpush1.bf16.xpose.msra.mxu0 %v642
      %654 = vmatprep.subr.bf16.mxu0 0
      %655 = vmatpush1.bf16.xpose.msra.mxu0 %v645
      %656 = vmatprep.subr.bf16.mxu0 0
      %657 = vmatpush1.bf16.xpose.msra.mxu0 %v648
      %658 = vmatprep.subr.bf16.mxu0 0
      %659 = vmatpush1.bf16.xpose.msra.mxu0 0
      %660 = vmatprep.subr.bf16.mxu0 0
      %661 = vmatpush1.bf16.xpose.msra.mxu0 0
      %662 = vmatprep.subr.bf16.mxu0 0
      %663 = vmatpush1.bf16.xpose.msra.mxu0 0
      %664 = vmatprep.subr.bf16.mxu0 0
      %665 = vmatpush1.bf16.xpose.msra.mxu0 0
      %666 = vmatprep.subr.bf16.mxu0 0
      %667 = vmatpush1.bf16.xpose.msra.mxu0 0
      %668 = vmatprep.subr.bf16.mxu0 0
      %669 = vmatpush1.bf16.xpose.msra.mxu0 0
      %670 = vmatprep.subr.bf16.mxu0 0
      %671 = vmatpush1.bf16.xpose.msra.mxu0 0
      %672 = vmatprep.subr.bf16.mxu0 0
      %673 = vmatpush1.bf16.xpose.msra.mxu0 0
      %674 = vmatprep.subr.bf16.mxu0 0
      %675 = vmatpush1.bf16.xpose.msra.mxu0 0
      %676 = vmatprep.subr.bf16.mxu0 0
      %677 = vmatpush1.bf16.xpose.msra.mxu0 0
      %678 = vmatprep.subr.bf16.mxu0 0
      %679 = vmatpush1.bf16.xpose.msra.mxu0 0
      %680 = vmatprep.subr.bf16.mxu0 0
      %681 = vmatpush1.bf16.xpose.msra.mxu0 0
      %682 = vmatprep.mubr.bf16.mxu0 0
      %683 = vmatmul.mubr.bf16.gmra.mrb[0].mxu0 %v633
      %v684 = vpop.f32.mrb[0].mxu0
      %v685 = vadd.f32 0.0, %v684
      %v686 = vpop.f32.mrb[0].mxu0
      %v687 = vpop.f32.mrb[0].mxu0
      %v688 = vadd.f32 0.0, %v687
      %v689 = vpop.f32.mrb[0].mxu0
      %690 = vmatprep.mubr.bf16.mxu0 0
      %691 = vmatmul.mubr.bf16.gmra.mrb[0].mxu0 %v636
      %v692 = vpop.f32.mrb[0].mxu0
      %v693 = vadd.f32 0.0, %v692
      %v694 = vpop.f32.mrb[0].mxu0
      %v695 = vpop.f32.mrb[0].mxu0
      %v696 = vadd.f32 0.0, %v695
      %v697 = vpop.f32.mrb[0].mxu0
      %698 = vdwg.mxu0
      %v699 = vsel %vm314, %v685, -inf
      %700 = vmax.xlane.f32.xlu0 %v699
      %v701 = vpop.xlane.xlu0 %700
      %v702 = vsel %vm314, %v688, -inf
      %703 = vmax.xlane.f32.xlu0 %v702
      %v704 = vpop.xlane.xlu0 %703
      %v705 = vsel %vm314, %v693, -inf
      %706 = vmax.xlane.f32.xlu0 %v705
      %v707 = vpop.xlane.xlu0 %706
      %v708 = vsel %vm314, %v696, -inf
      %709 = vmax.xlane.f32.xlu0 %v708
      %v710 = vpop.xlane.xlu0 %709
      %v711 = vsub.f32 %v685, %v701
      %v712 = vsub.f32 %v688, %v704
      %v713 = vsub.f32 %v693, %v707
      %v714 = vsub.f32 %v696, %v710
      %v715 = vmul.f32 %v711, 1.442695
      %v716 = vpow.pop %v715
      %v717 = vmul.f32 %v712, 1.442695
      %v718 = vpow.pop %v717
      %v719 = vmul.f32 %v713, 1.442695
      %v720 = vpow.pop %v719
      %v721 = vmul.f32 %v714, 1.442695
      %v722 = vpow.pop %v721
      %v723 = vsel %vm314, %v716, 0.0
      %724 = vadd.xlane.f32.xlu0 %v723
      %v725 = vpop.xlane.xlu0 %724
      %v726 = vsel %vm314, %v718, 0.0
      %727 = vadd.xlane.f32.xlu0 %v726
      %v728 = vpop.xlane.xlu0 %727
      %v729 = vsel %vm314, %v720, 0.0
      %730 = vadd.xlane.f32.xlu0 %v729
      %v731 = vpop.xlane.xlu0 %730
      %v732 = vsel %vm314, %v722, 0.0
      %733 = vadd.xlane.f32.xlu0 %v732
      %v734 = vpop.xlane.xlu0 %733
      %v735 = vrcp.pop %v725
      %v736 = vrcp.pop %v728
      %v737 = vrcp.pop %v731
      %v738 = vrcp.pop %v734
      %v739 = vmul.f32 %v716, %v735
      %v740 = vmul.f32 %v718, %v736
      %v741 = vmul.f32 %v720, %v737
      %v742 = vmul.f32 %v722, %v738
      %v743 = vpack.c.bf16 %v740, %v739
      %v744 = vpack.c.bf16 %v742, %v741
      %745 = vrot.lane.b32.xlu0 %v242, 80
      %v746 = vpop.permute.xlu0 %745
      %747 = vrot.lane.b32.xlu0 %v243, 80
      %v748 = vpop.permute.xlu0 %747
      %749 = vrot.lane.b32.xlu0 %v244, 80
      %v750 = vpop.permute.xlu0 %749
      %751 = vrot.lane.b32.xlu0 %v245, 80
      %v752 = vpop.permute.xlu0 %751
      %v758 = vsel %vm314, %v743, 0
      %v761 = vsel %vm314, %v744, 0
      %763 = vmatprep.subr.bf16.mxu0 0
      %764 = vmatpush1.bf16.msra.mxu0 %v746
      %765 = vmatprep.subr.bf16.mxu0 0
      %766 = vmatpush1.bf16.msra.mxu0 %v748
      %767 = vmatprep.subr.bf16.mxu0 0
      %768 = vmatpush1.bf16.msra.mxu0 %v750
      %769 = vmatprep.subr.bf16.mxu0 0
      %770 = vmatpush1.bf16.msra.mxu0 %v752
      %771 = vmatprep.subr.bf16.mxu0 0
      %772 = vmatpush1.bf16.msra.mxu0 0
      %773 = vmatprep.subr.bf16.mxu0 0
      %774 = vmatpush1.bf16.msra.mxu0 0
      %775 = vmatprep.subr.bf16.mxu0 0
      %776 = vmatpush1.bf16.msra.mxu0 0
      %777 = vmatprep.subr.bf16.mxu0 0
      %778 = vmatpush1.bf16.msra.mxu0 0
      %779 = vmatprep.subr.bf16.mxu0 0
      %780 = vmatpush1.bf16.msra.mxu0 0
      %781 = vmatprep.subr.bf16.mxu0 0
      %782 = vmatpush1.bf16.msra.mxu0 0
      %783 = vmatprep.subr.bf16.mxu0 0
      %784 = vmatpush1.bf16.msra.mxu0 0
      %785 = vmatprep.subr.bf16.mxu0 0
      %786 = vmatpush1.bf16.msra.mxu0 0
      %787 = vmatprep.subr.bf16.mxu0 0
      %788 = vmatpush1.bf16.msra.mxu0 0
      %789 = vmatprep.subr.bf16.mxu0 0
      %790 = vmatpush1.bf16.msra.mxu0 0
      %791 = vmatprep.subr.bf16.mxu0 0
      %792 = vmatpush1.bf16.msra.mxu0 0
      %793 = vmatprep.subr.bf16.mxu0 0
      %794 = vmatpush1.bf16.msra.mxu0 0
      %795 = vmatprep.mubr.bf16.mxu0 0
      %796 = vmatmul.mubr.bf16.gmra.mrb[0].mxu0 %v758
      %v797 = vpop.f32.mrb[0].mxu0
      %v798 = vadd.f32 0.0, %v797
      %v799 = vpop.f32.mrb[0].mxu0
      %v800 = vpop.f32.mrb[0].mxu0
      %v801 = vadd.f32 0.0, %v800
      %v802 = vpop.f32.mrb[0].mxu0
      %803 = vmatprep.mubr.bf16.mxu0 0
      %804 = vmatmul.mubr.bf16.gmra.mrb[0].mxu0 %v761
      %v805 = vpop.f32.mrb[0].mxu0
      %v806 = vadd.f32 0.0, %v805
      %v807 = vpop.f32.mrb[0].mxu0
      %v808 = vpop.f32.mrb[0].mxu0
      %v809 = vadd.f32 0.0, %v808
      %v810 = vpop.f32.mrb[0].mxu0
      %811 = vdwg.mxu0
      %812 = vrot.lane.b32.xlu0 %v224, 104
      %v813 = vpop.permute.xlu0 %812
      %814 = vrot.lane.b32.xlu0 %v225, 104
      %v815 = vpop.permute.xlu0 %814
      %816 = vrot.lane.b32.xlu0 %v242, 104
      %v817 = vpop.permute.xlu0 %816
      %818 = vrot.lane.b32.xlu0 %v243, 104
      %v819 = vpop.permute.xlu0 %818
      %820 = vrot.lane.b32.xlu0 %v244, 104
      %v821 = vpop.permute.xlu0 %820
      %822 = vrot.lane.b32.xlu0 %v245, 104
      %v823 = vpop.permute.xlu0 %822
      %v825 = vsel %vm246, %v813, 0
      %v828 = vsel %vm246, %v815, 0
      %v831 = vsel %vm246, %v817, 0
      %v834 = vsel %vm246, %v819, 0
      %v837 = vsel %vm246, %v821, 0
      %v840 = vsel %vm246, %v823, 0
      %842 = vmatprep.subr.bf16.mxu0 0
      %843 = vmatpush1.bf16.xpose.msra.mxu0 %v831
      %844 = vmatprep.subr.bf16.mxu0 0
      %845 = vmatpush1.bf16.xpose.msra.mxu0 %v834
      %846 = vmatprep.subr.bf16.mxu0 0
      %847 = vmatpush1.bf16.xpose.msra.mxu0 %v837
      %848 = vmatprep.subr.bf16.mxu0 0
      %849 = vmatpush1.bf16.xpose.msra.mxu0 %v840
      %850 = vmatprep.subr.bf16.mxu0 0
      %851 = vmatpush1.bf16.xpose.msra.mxu0 0
      %852 = vmatprep.subr.bf16.mxu0 0
      %853 = vmatpush1.bf16.xpose.msra.mxu0 0
      %854 = vmatprep.subr.bf16.mxu0 0
      %855 = vmatpush1.bf16.xpose.msra.mxu0 0
      %856 = vmatprep.subr.bf16.mxu0 0
      %857 = vmatpush1.bf16.xpose.msra.mxu0 0
      %858 = vmatprep.subr.bf16.mxu0 0
      %859 = vmatpush1.bf16.xpose.msra.mxu0 0
      %860 = vmatprep.subr.bf16.mxu0 0
      %861 = vmatpush1.bf16.xpose.msra.mxu0 0
      %862 = vmatprep.subr.bf16.mxu0 0
      %863 = vmatpush1.bf16.xpose.msra.mxu0 0
      %864 = vmatprep.subr.bf16.mxu0 0
      %865 = vmatpush1.bf16.xpose.msra.mxu0 0
      %866 = vmatprep.subr.bf16.mxu0 0
      %867 = vmatpush1.bf16.xpose.msra.mxu0 0
      %868 = vmatprep.subr.bf16.mxu0 0
      %869 = vmatpush1.bf16.xpose.msra.mxu0 0
      %870 = vmatprep.subr.bf16.mxu0 0
      %871 = vmatpush1.bf16.xpose.msra.mxu0 0
      %872 = vmatprep.subr.bf16.mxu0 0
      %873 = vmatpush1.bf16.xpose.msra.mxu0 0
      %874 = vmatprep.mubr.bf16.mxu0 0
      %875 = vmatmul.mubr.bf16.gmra.mrb[0].mxu0 %v825
      %v876 = vpop.f32.mrb[0].mxu0
      %v877 = vadd.f32 0.0, %v876
      %v878 = vpop.f32.mrb[0].mxu0
      %v879 = vpop.f32.mrb[0].mxu0
      %v880 = vadd.f32 0.0, %v879
      %v881 = vpop.f32.mrb[0].mxu0
      %882 = vmatprep.mubr.bf16.mxu0 0
      %883 = vmatmul.mubr.bf16.gmra.mrb[0].mxu0 %v828
      %v884 = vpop.f32.mrb[0].mxu0
      %v885 = vadd.f32 0.0, %v884
      %v886 = vpop.f32.mrb[0].mxu0
      %v887 = vpop.f32.mrb[0].mxu0
      %v888 = vadd.f32 0.0, %v887
      %v889 = vpop.f32.mrb[0].mxu0
      %890 = vdwg.mxu0
      %v891 = vsel %vm314, %v877, -inf
      %892 = vmax.xlane.f32.xlu0 %v891
      %v893 = vpop.xlane.xlu0 %892
      %v894 = vsel %vm314, %v880, -inf
      %895 = vmax.xlane.f32.xlu0 %v894
      %v896 = vpop.xlane.xlu0 %895
      %v897 = vsel %vm314, %v885, -inf
      %898 = vmax.xlane.f32.xlu0 %v897
      %v899 = vpop.xlane.xlu0 %898
      %v900 = vsel %vm314, %v888, -inf
      %901 = vmax.xlane.f32.xlu0 %v900
      %v902 = vpop.xlane.xlu0 %901
      %v903 = vsub.f32 %v877, %v893
      %v904 = vsub.f32 %v880, %v896
      %v905 = vsub.f32 %v885, %v899
      %v906 = vsub.f32 %v888, %v902
      %v907 = vmul.f32 %v903, 1.442695
      %v908 = vpow.pop %v907
      %v909 = vmul.f32 %v904, 1.442695
      %v910 = vpow.pop %v909
      %v911 = vmul.f32 %v905, 1.442695
      %v912 = vpow.pop %v911
      %v913 = vmul.f32 %v906, 1.442695
      %v914 = vpow.pop %v913
      %v915 = vsel %vm314, %v908, 0.0
      %916 = vadd.xlane.f32.xlu0 %v915
      %v917 = vpop.xlane.xlu0 %916
      %v918 = vsel %vm314, %v910, 0.0
      %919 = vadd.xlane.f32.xlu0 %v918
      %v920 = vpop.xlane.xlu0 %919
      %v921 = vsel %vm314, %v912, 0.0
      %922 = vadd.xlane.f32.xlu0 %v921
      %v923 = vpop.xlane.xlu0 %922
      %v924 = vsel %vm314, %v914, 0.0
      %925 = vadd.xlane.f32.xlu0 %v924
      %v926 = vpop.xlane.xlu0 %925
      %v927 = vrcp.pop %v917
      %v928 = vrcp.pop %v920
      %v929 = vrcp.pop %v923
      %v930 = vrcp.pop %v926
      %v931 = vmul.f32 %v908, %v927
      %v932 = vmul.f32 %v910, %v928
      %v933 = vmul.f32 %v912, %v929
      %v934 = vmul.f32 %v914, %v930
      %v935 = vpack.c.bf16 %v932, %v931
      %v936 = vpack.c.bf16 %v934, %v933
      %937 = vrot.lane.b32.xlu0 %v242, 72
      %v938 = vpop.permute.xlu0 %937
      %939 = vrot.lane.b32.xlu0 %v243, 72
      %v940 = vpop.permute.xlu0 %939
      %941 = vrot.lane.b32.xlu0 %v244, 72
      %v942 = vpop.permute.xlu0 %941
      %943 = vrot.lane.b32.xlu0 %v245, 72
      %v944 = vpop.permute.xlu0 %943
      %v950 = vsel %vm314, %v935, 0
      %v953 = vsel %vm314, %v936, 0
      %955 = vmatprep.subr.bf16.mxu0 0
      %956 = vmatpush1.bf16.msra.mxu0 %v938
      %957 = vmatprep.subr.bf16.mxu0 0
      %958 = vmatpush1.bf16.msra.mxu0 %v940
      %959 = vmatprep.subr.bf16.mxu0 0
      %960 = vmatpush1.bf16.msra.mxu0 %v942
      %961 = vmatprep.subr.bf16.mxu0 0
      %962 = vmatpush1.bf16.msra.mxu0 %v944
      %963 = vmatprep.subr.bf16.mxu0 0
      %964 = vmatpush1.bf16.msra.mxu0 0
      %965 = vmatprep.subr.bf16.mxu0 0
      %966 = vmatpush1.bf16.msra.mxu0 0
      %967 = vmatprep.subr.bf16.mxu0 0
      %968 = vmatpush1.bf16.msra.mxu0 0
      %969 = vmatprep.subr.bf16.mxu0 0
      %970 = vmatpush1.bf16.msra.mxu0 0
      %971 = vmatprep.subr.bf16.mxu0 0
      %972 = vmatpush1.bf16.msra.mxu0 0
      %973 = vmatprep.subr.bf16.mxu0 0
      %974 = vmatpush1.bf16.msra.mxu0 0
      %975 = vmatprep.subr.bf16.mxu0 0
      %976 = vmatpush1.bf16.msra.mxu0 0
      %977 = vmatprep.subr.bf16.mxu0 0
      %978 = vmatpush1.bf16.msra.mxu0 0
      %979 = vmatprep.subr.bf16.mxu0 0
      %980 = vmatpush1.bf16.msra.mxu0 0
      %981 = vmatprep.subr.bf16.mxu0 0
      %982 = vmatpush1.bf16.msra.mxu0 0
      %983 = vmatprep.subr.bf16.mxu0 0
      %984 = vmatpush1.bf16.msra.mxu0 0
      %985 = vmatprep.subr.bf16.mxu0 0
      %986 = vmatpush1.bf16.msra.mxu0 0
      %987 = vmatprep.mubr.bf16.mxu0 0
      %988 = vmatmul.mubr.bf16.gmra.mrb[0].mxu0 %v950
      %v989 = vpop.f32.mrb[0].mxu0
      %v990 = vadd.f32 0.0, %v989
      %v991 = vpop.f32.mrb[0].mxu0
      %v992 = vpop.f32.mrb[0].mxu0
      %v993 = vadd.f32 0.0, %v992
      %v994 = vpop.f32.mrb[0].mxu0
      %995 = vmatprep.mubr.bf16.mxu0 0
      %996 = vmatmul.mubr.bf16.gmra.mrb[0].mxu0 %v953
      %v997 = vpop.f32.mrb[0].mxu0
      %v998 = vadd.f32 0.0, %v997
      %v999 = vpop.f32.mrb[0].mxu0
      %v1000 = vpop.f32.mrb[0].mxu0
      %v1001 = vadd.f32 0.0, %v1000
      %v1002 = vpop.f32.mrb[0].mxu0
      %1003 = vdwg.mxu0
      %1008 = vrot.lane.b32.xlu0 %v606, 8
      %v1009 = vpop.permute.xlu0 %1008
      %1010 = vrot.lane.b32.xlu0 %v609, 8
      %v1011 = vpop.permute.xlu0 %1010
      %1012 = vrot.lane.b32.xlu0 %v614, 8
      %v1013 = vpop.permute.xlu0 %1012
      %1014 = vrot.lane.b32.xlu0 %v617, 8
      %v1015 = vpop.permute.xlu0 %1014
      %1024 = vrot.lane.b32.xlu0 %v798, 16
      %v1025 = vpop.permute.xlu0 %1024
      %1026 = vrot.lane.b32.xlu0 %v801, 16
      %v1027 = vpop.permute.xlu0 %1026
      %1028 = vrot.lane.b32.xlu0 %v806, 16
      %v1029 = vpop.permute.xlu0 %1028
      %1030 = vrot.lane.b32.xlu0 %v809, 16
      %v1031 = vpop.permute.xlu0 %1030
      %1040 = vrot.lane.b32.xlu0 %v990, 24
      %v1041 = vpop.permute.xlu0 %1040
      %1042 = vrot.lane.b32.xlu0 %v993, 24
      %v1043 = vpop.permute.xlu0 %1042
      %1044 = vrot.lane.b32.xlu0 %v998, 24
      %v1045 = vpop.permute.xlu0 %1044
      %1046 = vrot.lane.b32.xlu0 %v1001, 24
      %v1047 = vpop.permute.xlu0 %1046
      %v1052 = vsel %vm246, %v414, %v1009
      %v1053 = vsel %vm246, %v417, %v1011
      %v1054 = vsel %vm246, %v422, %v1013
      %v1055 = vsel %vm246, %v425, %v1015
      %vm1056 = vcmask 130048
      %v1057 = vsel %vm1056, %v1052, %v1025
      %v1058 = vsel %vm1056, %v1053, %v1027
      %v1059 = vsel %vm1056, %v1054, %v1029
      %v1060 = vsel %vm1056, %v1055, %v1031
      %vm1061 = vcmask 195584
      %v1062 = vsel %vm1061, %v1057, %v1041
      %v1063 = vsel %vm1061, %v1058, %v1043
      %v1064 = vsel %vm1061, %v1059, %v1045
      %v1065 = vsel %vm1061, %v1060, %v1047
      %v1066 = vpack.c.bf16 %v1063, %v1062
      %v1067 = vpack.c.bf16 %v1065, %v1064
      %v1070 = vunpack.c.l.b16 %v1066
      %v1071 = vunpack.c.h.b16 %v1066
      %v1072 = vunpack.c.l.b16 %v1067
      %v1073 = vunpack.c.h.b16 %v1067
      %v1074 = vpack.c.b16 %v1070, %v1070
      %v1075 = vpack.c.b16 %v1071, %v1071
      %v1076 = vpack.c.b16 %v1072, %v1072
      %v1077 = vpack.c.b16 %v1073, %v1073
      %vm1082 = vcmask 257024
      %1083 = vst.msk [vmem:[%s201] sm:$0xf] %vm1082, %v1074
      %1084 = vst.msk [vmem:[%s201 + $0x4] sm:$0xf] %vm1082, %v1075
      %1085 = vst.msk [vmem:[%s201 + $0x8] sm:$0xf] %vm1082, %v1076
      %1086 = vst.msk [vmem:[%s201 + $0xc] sm:$0xf] %vm1082, %v1077
      %s1087 = smul.u32 4, %s18
      %p1088 = scmp.lt.s32.totalorder %s17, 1
      %s1089 = scalar_select %p1088, %s17, 1
      %p1090 = scmp.lt.s32.totalorder %s1087, 7
      %s1091 = scalar_select %p1090, %s1087, 7
      %s1092 = smul.addr %s1089, 8
      %s1093 = sadd.s32 %s1091, %s1092
      %s1094 = smul.addr %s1093, 4
      %s1095 = scalar_lea.vmem %s2, %s1094
      // Predicated region
      $region29: #{_lambda_.28} parent=27 // pred_check
        %p1096 = pneg %p99
      $region30: #{_lambda_.28} parent=27 // pred_check_branch
        %1098 = sbr.rel (%p1096) target = $region32
      $region31: #{_lambda_.28} parent=27 // pred_region
        %s1099 = smul.u32 4, %s18
      $region32: #{_lambda_.28} parent=27 // pred_fallthru
        _
    $region28: #{_lambda_.28} parent=5 // pred_fallthru
      _
    %p1100 = scmp.le.s32.totalorder 2, %s8
    // Predicated region
    $region33: #{_lambda_.28} parent=5 // pred_check
      %p1101 = pneg %p1100
    $region34: #{_lambda_.28} parent=5 // pred_check_branch
      %1103 = sbr.rel (%p1101) target = $region36
    $region35: #{_lambda_.28} parent=5 // pred_region
      %s1104 = ssub.s32 %s8, 2
      // Predicated region
      $region37: #{_lambda_.28} parent=35 // pred_check
        %p1105 = pneg %p105
      $region38: #{_lambda_.28} parent=35 // pred_check_branch
        %1107 = sbr.rel (%p1105) target = $region40
      $region39: #{_lambda_.28} parent=35 // pred_region
        %s1108 = smul.u32 4, %s20
        %p1109 = scmp.lt.s32.totalorder %s19, 1
        %s1110 = scalar_select %p1109, %s19, 1
        %p1111 = scmp.lt.s32.totalorder %s1108, 7
        %s1112 = scalar_select %p1111, %s1108, 7
        %s1113 = smul.addr %s1110, 8
        %s1114 = sadd.s32 %s1112, %s1113
        %s1115 = smul.addr %s1114, 4
        %s1116 = scalar_lea.vmem %s2, %s1115
      $region40: #{_lambda_.28} parent=35 // pred_fallthru
        _
    $region36: #{_lambda_.28} parent=5 // pred_fallthru
      _
  $region6: #{_lambda_.28} parent=0 // loop_footer
    %s12 = sadd.s32 1, %s8
  $region7: #{_lambda_.28} parent=0 // loop_footer_branch
    %7 = sbr.rel target = $region3
  $region8: #{_lambda_.28} parent=0 // loop_exit
    _

// kernel: _lambda_.29
$region0: #{_lambda_.29}
  #allocation0 [shape = 'u32[]', space=smem, size = 0x4, offset = 0x4, fixed_abs, tag = 'smem constant byte address 0x4 - core index']
  #allocation1 [shape = 'u32[144,128]{1,0:T(1,128)}', space=vmem, size = 0x12000, scoped, tag = 'internal scratch']
  %s0 = inlined_call_operand.vmem [shape: bf16[128,32], index: 0, kind: input, shape index: {}]
  %s1 = inlined_call_operand.vmem [shape: bf16[128,32], index: 1, kind: input, shape index: {}]
  %s2 = inlined_call_operand.vmem [shape: bf16[32,32], index: 2, kind: input, shape index: {}]
  %s3 = inlined_call_operand.vmem [shape: f32[1,32], index: 3, kind: input, shape index: {}]
  %s4 = inlined_call_operand.vmem [shape: f32[1,32], index: 4, kind: input, shape index: {}]
  %s5 = inlined_call_operand.vmem [shape: f32[1,32], index: 5, kind: input, shape index: {}]
  %s6 = inlined_call_operand.vmem [shape: bf16[128,32], index: 6, kind: output, shape index: {}]
  %s7 = sld [smem:[#allocation0]]
  $region57: #{_lambda_.29} parent=0
    _
  %s9 = ssub.s32 1, %s7
  %s10 = scalar_select 0, %s9, %s7
  loop: start=0, step=1, limit=4
  $region2: #{_lambda_.29} parent=0 // loop_pre_header
    _
  $region3: #{_lambda_.29} parent=0 // loop_header
    %s12 = sphi 0, %s16
    %p13 = scmp.ge.s32.totalorder %s12, 4
    %s22 = sphi 0, %s24
    %s25 = sphi 0, %s22
    %s26 = sphi 0, %s25
    %s42 = sphi 0, %s26
    %s48 = sphi 0, %s50
    %s51 = sphi 0, %s48
    %s52 = sphi 0, %s51
    %s68 = sphi 0, %s52
    %s72 = sphi 0, %s72
    %s74 = sphi 0, %s72
    %s75 = sphi 0, %s74
    %s89 = sphi 0, %s75
    %s93 = sphi 0, %s93
    %s95 = sphi 0, %s93
    %s96 = sphi 0, %s95
    %s110 = sphi 0, %s96
    %s114 = sphi 0, %s114
    %s116 = sphi 0, %s114
    %s117 = sphi 0, %s116
    %s131 = sphi 0, %s117
    %s135 = sphi 0, %s135
    %s137 = sphi 0, %s135
    %s138 = sphi 0, %s137
    %s152 = sphi 0, %s138
    %s158 = sphi 0, %s160
    %s161 = sphi 0, %s158
    %s162 = sphi 0, %s161
    %s178 = sphi 0, %s162
  $region4: #{_lambda_.29} parent=0 // loop_header_branch
    %15 = sbr.rel (%p13) target = $region8
  $region5: #{_lambda_.29} parent=0 // loop_body
    %s17 = ssub.s32 %s12, 1
    %s18 = ssub.s32 %s12, 2
    %s19 = sadd.s32 %s12, 1
    %s20 = ssub.s32 %s12, %s19
    %p21 = scmp.eq.s32.totalorder %s20, 0
    %s23 = sadd.s32 %s22, 1
    %s24 = scalar_select %p21, %s22, %s23
    %p27 = pneg %p21
    %p28 = scmp.eq.s32.totalorder %s12, 1
    %p29 = por %p27, %p28
    %p30 = scmp.ne.s32.totalorder %s22, %s25
    %p31 = scmp.eq.s32.totalorder %s12, 0
    %p32 = por %p30, %p31
    %p33 = scmp.ne.s32.totalorder %s22, %s25
    %p34 = scmp.eq.s32.totalorder %s17, 1
    %p35 = por %p33, %p34
    %p36 = scmp.ne.s32.totalorder %s25, %s26
    %p37 = scmp.eq.s32.totalorder %s17, 0
    %p38 = por %p36, %p37
    %p39 = scmp.ne.s32.totalorder %s25, %s26
    %p40 = scmp.eq.s32.totalorder %s18, 1
    %p41 = por %p39, %p40
    %p43 = scmp.ne.s32.totalorder %s26, %s42
    %p44 = scmp.eq.s32.totalorder %s18, 0
    %p45 = por %p43, %p44
    %s46 = ssub.s32 %s12, %s19
    %p47 = scmp.eq.s32.totalorder %s46, 0
    %s49 = sadd.s32 %s48, 1
    %s50 = scalar_select %p47, %s48, %s49
    %p53 = pneg %p47
    %p54 = scmp.eq.s32.totalorder %s12, 1
    %p55 = por %p53, %p54
    %p56 = scmp.ne.s32.totalorder %s48, %s51
    %p57 = scmp.eq.s32.totalorder %s12, 0
    %p58 = por %p56, %p57
    %p59 = scmp.ne.s32.totalorder %s48, %s51
    %p60 = scmp.eq.s32.totalorder %s17, 1
    %p61 = por %p59, %p60
    %p62 = scmp.ne.s32.totalorder %s51, %s52
    %p63 = scmp.eq.s32.totalorder %s17, 0
    %p64 = por %p62, %p63
    %p65 = scmp.ne.s32.totalorder %s51, %s52
    %p66 = scmp.eq.s32.totalorder %s18, 1
    %p67 = por %p65, %p66
    %p69 = scmp.ne.s32.totalorder %s52, %s68
    %p70 = scmp.eq.s32.totalorder %s18, 0
    %p71 = por %p69, %p70
    %s73 = sadd.s32 %s72, 1
    %p76 = scmp.eq.s32.totalorder %s12, 1
    %p77 = scmp.ne.s32.totalorder %s72, %s74
    %p78 = scmp.eq.s32.totalorder %s12, 0
    %p79 = por %p77, %p78
    %p80 = scmp.ne.s32.totalorder %s72, %s74
    %p81 = scmp.eq.s32.totalorder %s17, 1
    %p82 = por %p80, %p81
    %p83 = scmp.ne.s32.totalorder %s74, %s75
    %p84 = scmp.eq.s32.totalorder %s17, 0
    %p85 = por %p83, %p84
    %p86 = scmp.ne.s32.totalorder %s74, %s75
    %p87 = scmp.eq.s32.totalorder %s18, 1
    %p88 = por %p86, %p87
    %p90 = scmp.ne.s32.totalorder %s75, %s89
    %p91 = scmp.eq.s32.totalorder %s18, 0
    %p92 = por %p90, %p91
    %s94 = sadd.s32 %s93, 1
    %p97 = scmp.eq.s32.totalorder %s12, 1
    %p98 = scmp.ne.s32.totalorder %s93, %s95
    %p99 = scmp.eq.s32.totalorder %s12, 0
    %p100 = por %p98, %p99
    %p101 = scmp.ne.s32.totalorder %s93, %s95
    %p102 = scmp.eq.s32.totalorder %s17, 1
    %p103 = por %p101, %p102
    %p104 = scmp.ne.s32.totalorder %s95, %s96
    %p105 = scmp.eq.s32.totalorder %s17, 0
    %p106 = por %p104, %p105
    %p107 = scmp.ne.s32.totalorder %s95, %s96
    %p108 = scmp.eq.s32.totalorder %s18, 1
    %p109 = por %p107, %p108
    %p111 = scmp.ne.s32.totalorder %s96, %s110
    %p112 = scmp.eq.s32.totalorder %s18, 0
    %p113 = por %p111, %p112
    %s115 = sadd.s32 %s114, 1
    %p118 = scmp.eq.s32.totalorder %s12, 1
    %p119 = scmp.ne.s32.totalorder %s114, %s116
    %p120 = scmp.eq.s32.totalorder %s12, 0
    %p121 = por %p119, %p120
    %p122 = scmp.ne.s32.totalorder %s114, %s116
    %p123 = scmp.eq.s32.totalorder %s17, 1
    %p124 = por %p122, %p123
    %p125 = scmp.ne.s32.totalorder %s116, %s117
    %p126 = scmp.eq.s32.totalorder %s17, 0
    %p127 = por %p125, %p126
    %p128 = scmp.ne.s32.totalorder %s116, %s117
    %p129 = scmp.eq.s32.totalorder %s18, 1
    %p130 = por %p128, %p129
    %p132 = scmp.ne.s32.totalorder %s117, %s131
    %p133 = scmp.eq.s32.totalorder %s18, 0
    %p134 = por %p132, %p133
    %s136 = sadd.s32 %s135, 1
    %p139 = scmp.eq.s32.totalorder %s12, 1
    %p140 = scmp.ne.s32.totalorder %s135, %s137
    %p141 = scmp.eq.s32.totalorder %s12, 0
    %p142 = por %p140, %p141
    %p143 = scmp.ne.s32.totalorder %s135, %s137
    %p144 = scmp.eq.s32.totalorder %s17, 1
    %p145 = por %p143, %p144
    %p146 = scmp.ne.s32.totalorder %s137, %s138
    %p147 = scmp.eq.s32.totalorder %s17, 0
    %p148 = por %p146, %p147
    %p149 = scmp.ne.s32.totalorder %s137, %s138
    %p150 = scmp.eq.s32.totalorder %s18, 1
    %p151 = por %p149, %p150
    %p153 = scmp.ne.s32.totalorder %s138, %s152
    %p154 = scmp.eq.s32.totalorder %s18, 0
    %p155 = por %p153, %p154
    %s156 = ssub.s32 %s12, %s19
    %p157 = scmp.eq.s32.totalorder %s156, 0
    %s159 = sadd.s32 %s158, 1
    %s160 = scalar_select %p157, %s158, %s159
    %p163 = pneg %p157
    %p164 = scmp.eq.s32.totalorder %s12, 1
    %p165 = por %p163, %p164
    %p166 = scmp.ne.s32.totalorder %s158, %s161
    %p167 = scmp.eq.s32.totalorder %s12, 0
    %p168 = por %p166, %p167
    %p169 = scmp.ne.s32.totalorder %s158, %s161
    %p170 = scmp.eq.s32.totalorder %s17, 1
    %p171 = por %p169, %p170
    %p172 = scmp.ne.s32.totalorder %s161, %s162
    %p173 = scmp.eq.s32.totalorder %s17, 0
    %p174 = por %p172, %p173
    %p175 = scmp.ne.s32.totalorder %s161, %s162
    %p176 = scmp.eq.s32.totalorder %s18, 1
    %p177 = por %p175, %p176
    %p179 = scmp.ne.s32.totalorder %s162, %s178
    %p180 = scmp.eq.s32.totalorder %s18, 0
    %p181 = por %p179, %p180
    %p182 = scmp.le.s32.totalorder 1, %s12
    %p183 = scmp.lt.s32.totalorder %s12, 3
    %p184 = pnand %p182, %p183
    %p185 = pneg %p184
    // Predicated region
    $region9: #{_lambda_.29} parent=5 // pred_check
      _
    $region10: #{_lambda_.29} parent=5 // pred_check_branch
      %187 = sbr.rel (%p184) target = $region12
    $region11: #{_lambda_.29} parent=5 // pred_region
      %s188 = ssub.s32 %s12, 1
      // Predicated region
      $region13: #{_lambda_.29} parent=11 // pred_check
        %p189 = pneg %p85
      $region14: #{_lambda_.29} parent=11 // pred_check_branch
        %191 = sbr.rel (%p189) target = $region16
      $region15: #{_lambda_.29} parent=11 // pred_region
        _
      $region16: #{_lambda_.29} parent=11 // pred_fallthru
        _
      // Predicated region
      $region17: #{_lambda_.29} parent=11 // pred_check
        %p192 = pneg %p106
      $region18: #{_lambda_.29} parent=11 // pred_check_branch
        %194 = sbr.rel (%p192) target = $region20
      $region19: #{_lambda_.29} parent=11 // pred_region
        _
      $region20: #{_lambda_.29} parent=11 // pred_fallthru
        _
      // Predicated region
      $region21: #{_lambda_.29} parent=11 // pred_check
        %p195 = pneg %p127
      $region22: #{_lambda_.29} parent=11 // pred_check_branch
        %197 = sbr.rel (%p195) target = $region24
      $region23: #{_lambda_.29} parent=11 // pred_region
        _
      $region24: #{_lambda_.29} parent=11 // pred_fallthru
        _
      // Predicated region
      $region25: #{_lambda_.29} parent=11 // pred_check
        %p198 = pneg %p148
      $region26: #{_lambda_.29} parent=11 // pred_check_branch
        %200 = sbr.rel (%p198) target = $region28
      $region27: #{_lambda_.29} parent=11 // pred_region
        _
      $region28: #{_lambda_.29} parent=11 // pred_fallthru
        _
    $region12: #{_lambda_.29} parent=5 // pred_fallthru
      _
    %p201 = scmp.lt.s32.totalorder %s12, 2
    // Predicated region
    $region29: #{_lambda_.29} parent=5 // pred_check
      %p202 = pneg %p201
    $region30: #{_lambda_.29} parent=5 // pred_check_branch
      %204 = sbr.rel (%p202) target = $region32
    $region31: #{_lambda_.29} parent=5 // pred_region
      // Predicated region
      $region33: #{_lambda_.29} parent=31 // pred_check
        %p205 = pneg %p32
      $region34: #{_lambda_.29} parent=31 // pred_check_branch
        %207 = sbr.rel (%p205) target = $region36
      $region35: #{_lambda_.29} parent=31 // pred_region
        %s208 = smul.u32 8, %s12
        %p209 = scmp.lt.s32.totalorder %s208, 15
        %s210 = scalar_select %p209, %s208, 15
        %s211 = smul.addr %s210, 4
        %s212 = scalar_lea.vmem %s0, %s211
        %s213 = smul.u32 8, %s12
      $region36: #{_lambda_.29} parent=31 // pred_fallthru
        _
      // Predicated region
      $region37: #{_lambda_.29} parent=31 // pred_check
        %p214 = pneg %p58
      $region38: #{_lambda_.29} parent=31 // pred_check_branch
        %216 = sbr.rel (%p214) target = $region40
      $region39: #{_lambda_.29} parent=31 // pred_region
        %s217 = smul.u32 8, %s12
        %p218 = scmp.lt.s32.totalorder %s217, 15
        %s219 = scalar_select %p218, %s217, 15
        %s220 = smul.addr %s219, 4
        %s221 = scalar_lea.vmem %s1, %s220
        %s222 = smul.u32 8, %s12
      $region40: #{_lambda_.29} parent=31 // pred_fallthru
        _
    $region32: #{_lambda_.29} parent=5 // pred_fallthru
      _
    %p223 = scmp.le.s32.totalorder 1, %s12
    %p224 = scmp.lt.s32.totalorder %s12, 3
    %p225 = pnand %p223, %p224
    %p226 = pneg %p225
    // Predicated region
    $region41: #{_lambda_.29} parent=5 // pred_check
      _
    $region42: #{_lambda_.29} parent=5 // pred_check_branch
      %228 = sbr.rel (%p225) target = $region44
    $region43: #{_lambda_.29} parent=5 // pred_region
      %s229 = ssub.s32 %s12, 1
      %s230 = smul.u32 8, %s17
      %p231 = scmp.lt.s32.totalorder %s230, 15
      %s232 = scalar_select %p231, %s230, 15
      %s233 = smul.addr %s232, 4
      %s234 = scalar_lea.vmem %s0, %s233
      %p235 = pneg %p38
      %p236 = pneg %p35
      %s237 = smul.u32 8, %s17
      %p238 = scmp.lt.s32.totalorder %s237, 15
      %s239 = scalar_select %p238, %s237, 15
      %s240 = smul.addr %s239, 4
      %s241 = scalar_lea.vmem %s1, %s240
      %p242 = pneg %p64
      %p243 = pneg %p61
      %p244 = pneg %p85
      %p245 = pneg %p82
      %p246 = pneg %p106
      %p247 = pneg %p103
      %p248 = pneg %p127
      %p249 = pneg %p124
      %p250 = pneg %p148
      %p251 = pneg %p145
      %p252 = pneg %p174
      %p253 = pneg %p171
      %s254 = smul.u32 8, %s17
      %p255 = scmp.lt.s32.totalorder %s254, 15
      %s256 = scalar_select %p255, %s254, 15
      %s257 = smul.addr %s256, 4
      %s258 = scalar_lea.vmem %s6, %s257
      %s259 = smul.u32 8, %s17
      %p260 = scmp.lt.s32.totalorder %s259, 15
      %s261 = scalar_select %p260, %s259, 15
      %s262 = smul.addr %s261, 4
      %s263 = scalar_lea.vmem %s0, %s262
      %s264 = smul.u32 8, %s17
      %s265 = smul.u32 8, %s17
      %p266 = scmp.lt.s32.totalorder %s265, 15
      %s267 = scalar_select %p266, %s265, 15
      %s268 = smul.addr %s267, 4
      %s269 = scalar_lea.vmem %s1, %s268
      %s270 = smul.u32 8, %s17
      %s271 = smul.u32 8, %s17
      %p272 = scmp.lt.s32.totalorder %s271, 15
      %s273 = scalar_select %p272, %s271, 15
      %s274 = smul.addr %s273, 4
      %s275 = scalar_lea.vmem %s6, %s274
      %s276 = smul.u32 8, %s17
      %v278 = vld [vmem:[%s263] sm:$0xf]
      %v279 = vld [vmem:[%s263 + $0x4] sm:$0xf]
      %v280 = vld [vmem:[%s263 + $0x8] sm:$0xf]
      %v281 = vld [vmem:[%s263 + $0xc] sm:$0xf]
      %v282 = vld [vmem:[%s263 + $0x10] sm:$0xf]
      %v283 = vld [vmem:[%s263 + $0x14] sm:$0xf]
      %v284 = vld [vmem:[%s263 + $0x18] sm:$0xf]
      %v285 = vld [vmem:[%s263 + $0x1c] sm:$0xf]
      %v286 = vld [vmem:[%s2] sm:$0xf]
      %v287 = vld [vmem:[%s2 + $0x4] sm:$0xf]
      %v288 = vld [vmem:[%s2 + $0x8] sm:$0xf]
      %v289 = vld [vmem:[%s2 + $0xc] sm:$0xf]
      %v290 = vld [vmem:[%s3] sm:$0x1]
      %v292 = vlaneseq
      %v293 = vshrl.u32 %v292, 7
      %v294 = vsub.s32 0, %v293
      %v295 = vrot.slane %v290, %v294
      %v305 = vunpack.c.l.b16 %v278
      %v306 = vunpack.c.l.b16 %v279
      %v307 = vunpack.c.l.b16 %v280
      %v308 = vunpack.c.l.b16 %v281
      %v309 = vunpack.c.l.b16 %v282
      %v310 = vunpack.c.l.b16 %v283
      %v311 = vunpack.c.l.b16 %v284
      %v312 = vunpack.c.l.b16 %v285
      %v313 = vpack.c.b16 %v306, %v305
      %v314 = vpack.c.b16 %v308, %v307
      %v315 = vpack.c.b16 %v310, %v309
      %v316 = vpack.c.b16 %v312, %v311
      %v321 = vunpack.c.l.b16 %v286
      %v322 = vunpack.c.l.b16 %v287
      %v323 = vunpack.c.l.b16 %v288
      %v324 = vunpack.c.l.b16 %v289
      %v325 = vpack.c.b16 %v322, %v321
      %v326 = vpack.c.b16 %v324, %v323
      %vm329 = vcmask 261120
      %v331 = vsel %vm329, %v313, 0
      %v334 = vsel %vm329, %v314, 0
      %v337 = vsel %vm329, %v315, 0
      %v340 = vsel %vm329, %v316, 0
      %342 = vmatprep.subr.bf16.mxu0 0
      %343 = vmatpush1.bf16.msra.mxu0 %v325
      %344 = vmatprep.subr.bf16.mxu0 0
      %345 = vmatpush1.bf16.msra.mxu0 %v326
      %346 = vmatprep.subr.bf16.mxu0 0
      %347 = vmatpush1.bf16.msra.mxu0 0
      %348 = vmatprep.subr.bf16.mxu0 0
      %349 = vmatpush1.bf16.msra.mxu0 0
      %350 = vmatprep.subr.bf16.mxu0 0
      %351 = vmatpush1.bf16.msra.mxu0 0
      %352 = vmatprep.subr.bf16.mxu0 0
      %353 = vmatpush1.bf16.msra.mxu0 0
      %354 = vmatprep.subr.bf16.mxu0 0
      %355 = vmatpush1.bf16.msra.mxu0 0
      %356 = vmatprep.subr.bf16.mxu0 0
      %357 = vmatpush1.bf16.msra.mxu0 0
      %358 = vmatprep.subr.bf16.mxu0 0
      %359 = vmatpush1.bf16.msra.mxu0 0
      %360 = vmatprep.subr.bf16.mxu0 0
      %361 = vmatpush1.bf16.msra.mxu0 0
      %362 = vmatprep.subr.bf16.mxu0 0
      %363 = vmatpush1.bf16.msra.mxu0 0
      %364 = vmatprep.subr.bf16.mxu0 0
      %365 = vmatpush1.bf16.msra.mxu0 0
      %366 = vmatprep.subr.bf16.mxu0 0
      %367 = vmatpush1.bf16.msra.mxu0 0
      %368 = vmatprep.subr.bf16.mxu0 0
      %369 = vmatpush1.bf16.msra.mxu0 0
      %370 = vmatprep.subr.bf16.mxu0 0
      %371 = vmatpush1.bf16.msra.mxu0 0
      %372 = vmatprep.subr.bf16.mxu0 0
      %373 = vmatpush1.bf16.msra.mxu0 0
      %374 = vmatprep.mubr.bf16.mxu0 0
      %375 = vmatmul.mubr.bf16.gmra.mrb[0].mxu0 %v331
      %v376 = vpop.f32.mrb[0].mxu0
      %v377 = vadd.f32 %v295, %v376
      %v378 = vpop.f32.mrb[0].mxu0
      %v379 = vpop.f32.mrb[0].mxu0
      %v380 = vadd.f32 %v295, %v379
      %v381 = vpop.f32.mrb[0].mxu0
      %382 = vmatprep.mubr.bf16.mxu0 0
      %383 = vmatmul.mubr.bf16.gmra.mrb[0].mxu0 %v334
      %v384 = vpop.f32.mrb[0].mxu0
      %v385 = vadd.f32 %v295, %v384
      %v386 = vpop.f32.mrb[0].mxu0
      %v387 = vpop.f32.mrb[0].mxu0
      %v388 = vadd.f32 %v295, %v387
      %v389 = vpop.f32.mrb[0].mxu0
      %390 = vmatprep.mubr.bf16.mxu0 0
      %391 = vmatmul.mubr.bf16.gmra.mrb[0].mxu0 %v337
      %v392 = vpop.f32.mrb[0].mxu0
      %v393 = vadd.f32 %v295, %v392
      %v394 = vpop.f32.mrb[0].mxu0
      %v395 = vpop.f32.mrb[0].mxu0
      %v396 = vadd.f32 %v295, %v395
      %v397 = vpop.f32.mrb[0].mxu0
      %398 = vmatprep.mubr.bf16.mxu0 0
      %399 = vmatmul.mubr.bf16.gmra.mrb[0].mxu0 %v340
      %v400 = vpop.f32.mrb[0].mxu0
      %v401 = vadd.f32 %v295, %v400
      %v402 = vpop.f32.mrb[0].mxu0
      %v403 = vpop.f32.mrb[0].mxu0
      %v404 = vadd.f32 %v295, %v403
      %v405 = vpop.f32.mrb[0].mxu0
      %406 = vdwg.mxu0
      %v407 = vld [vmem:[%s269] sm:$0xf]
      %v408 = vld [vmem:[%s269 + $0x4] sm:$0xf]
      %v409 = vld [vmem:[%s269 + $0x8] sm:$0xf]
      %v410 = vld [vmem:[%s269 + $0xc] sm:$0xf]
      %v411 = vld [vmem:[%s269 + $0x10] sm:$0xf]
      %v412 = vld [vmem:[%s269 + $0x14] sm:$0xf]
      %v413 = vld [vmem:[%s269 + $0x18] sm:$0xf]
      %v414 = vld [vmem:[%s269 + $0x1c] sm:$0xf]
      %v415 = vunpack.c.l.bf16 %v407
      %v416 = vunpack.c.l.bf16 %v408
      %v417 = vunpack.c.l.bf16 %v409
      %v418 = vunpack.c.l.bf16 %v410
      %v419 = vunpack.c.l.bf16 %v411
      %v420 = vunpack.c.l.bf16 %v412
      %v421 = vunpack.c.l.bf16 %v413
      %v422 = vunpack.c.l.bf16 %v414
      %v423 = vadd.f32 %v415, %v377
      %v424 = vadd.f32 %v416, %v380
      %v425 = vadd.f32 %v417, %v385
      %v426 = vadd.f32 %v418, %v388
      %v427 = vadd.f32 %v419, %v393
      %v428 = vadd.f32 %v420, %v396
      %v429 = vadd.f32 %v421, %v401
      %v430 = vadd.f32 %v422, %v404
      %v431 = vld [vmem:[%s4] sm:$0x1]
      %v432 = vld [vmem:[%s5] sm:$0x1]
      %v433 = vsel %vm329, %v423, 0.0
      %434 = vadd.xlane.f32.xlu0 %v433
      %v435 = vpop.xlane.xlu0 %434
      %v436 = vsel %vm329, %v424, 0.0
      %437 = vadd.xlane.f32.xlu0 %v436
      %v438 = vpop.xlane.xlu0 %437
      %v439 = vsel %vm329, %v425, 0.0
      %440 = vadd.xlane.f32.xlu0 %v439
      %v441 = vpop.xlane.xlu0 %440
      %v442 = vsel %vm329, %v426, 0.0
      %443 = vadd.xlane.f32.xlu0 %v442
      %v444 = vpop.xlane.xlu0 %443
      %v445 = vsel %vm329, %v427, 0.0
      %446 = vadd.xlane.f32.xlu0 %v445
      %v447 = vpop.xlane.xlu0 %446
      %v448 = vsel %vm329, %v428, 0.0
      %449 = vadd.xlane.f32.xlu0 %v448
      %v450 = vpop.xlane.xlu0 %449
      %v451 = vsel %vm329, %v429, 0.0
      %452 = vadd.xlane.f32.xlu0 %v451
      %v453 = vpop.xlane.xlu0 %452
      %v454 = vsel %vm329, %v430, 0.0
      %455 = vadd.xlane.f32.xlu0 %v454
      %v456 = vpop.xlane.xlu0 %455
      %v457 = vrcp.pop 32.0
      %v458 = vmul.f32 %v435, %v457
      %v459 = vmul.f32 %v438, %v457
      %v460 = vmul.f32 %v441, %v457
      %v461 = vmul.f32 %v444, %v457
      %v462 = vmul.f32 %v447, %v457
      %v463 = vmul.f32 %v450, %v457
      %v464 = vmul.f32 %v453, %v457
      %v465 = vmul.f32 %v456, %v457
      %v466 = vsub.f32 %v423, %v458
      %v467 = vsub.f32 %v424, %v459
      %v468 = vsub.f32 %v425, %v460
      %v469 = vsub.f32 %v426, %v461
      %v470 = vsub.f32 %v427, %v462
      %v471 = vsub.f32 %v428, %v463
      %v472 = vsub.f32 %v429, %v464
      %v473 = vsub.f32 %v430, %v465
      %v474 = vmul.f32 %v466, %v466
      %v475 = vmul.f32 %v467, %v467
      %v476 = vmul.f32 %v468, %v468
      %v477 = vmul.f32 %v469, %v469
      %v478 = vmul.f32 %v470, %v470
      %v479 = vmul.f32 %v471, %v471
      %v480 = vmul.f32 %v472, %v472
      %v481 = vmul.f32 %v473, %v473
      %v482 = vsel %vm329, %v474, 0.0
      %483 = vadd.xlane.f32.xlu0 %v482
      %v484 = vpop.xlane.xlu0 %483
      %v485 = vsel %vm329, %v475, 0.0
      %486 = vadd.xlane.f32.xlu0 %v485
      %v487 = vpop.xlane.xlu0 %486
      %v488 = vsel %vm329, %v476, 0.0
      %489 = vadd.xlane.f32.xlu0 %v488
      %v490 = vpop.xlane.xlu0 %489
      %v491 = vsel %vm329, %v477, 0.0
      %492 = vadd.xlane.f32.xlu0 %v491
      %v493 = vpop.xlane.xlu0 %492
      %v494 = vsel %vm329, %v478, 0.0
      %495 = vadd.xlane.f32.xlu0 %v494
      %v496 = vpop.xlane.xlu0 %495
      %v497 = vsel %vm329, %v479, 0.0
      %498 = vadd.xlane.f32.xlu0 %v497
      %v499 = vpop.xlane.xlu0 %498
      %v500 = vsel %vm329, %v480, 0.0
      %501 = vadd.xlane.f32.xlu0 %v500
      %v502 = vpop.xlane.xlu0 %501
      %v503 = vsel %vm329, %v481, 0.0
      %504 = vadd.xlane.f32.xlu0 %v503
      %v505 = vpop.xlane.xlu0 %504
      %v506 = vmul.f32 %v484, %v457
      %v507 = vmul.f32 %v487, %v457
      %v508 = vmul.f32 %v490, %v457
      %v509 = vmul.f32 %v493, %v457
      %v510 = vmul.f32 %v496, %v457
      %v511 = vmul.f32 %v499, %v457
      %v512 = vmul.f32 %v502, %v457
      %v513 = vmul.f32 %v505, %v457
      %v514 = vadd.f32 %v506, 1e-05
      %v515 = vadd.f32 %v507, 1e-05
      %v516 = vadd.f32 %v508, 1e-05
      %v517 = vadd.f32 %v509, 1e-05
      %v518 = vadd.f32 %v510, 1e-05
      %v519 = vadd.f32 %v511, 1e-05
      %v520 = vadd.f32 %v512, 1e-05
      %v521 = vadd.f32 %v513, 1e-05
      %v522 = vrsqrt.pop %v514
      %v523 = vrsqrt.pop %v515
      %v524 = vrsqrt.pop %v516
      %v525 = vrsqrt.pop %v517
      %v526 = vrsqrt.pop %v518
      %v527 = vrsqrt.pop %v519
      %v528 = vrsqrt.pop %v520
      %v529 = vrsqrt.pop %v521
      %v530 = vmul.f32 %v466, %v522
      %v531 = vmul.f32 %v467, %v523
      %v532 = vmul.f32 %v468, %v524
      %v533 = vmul.f32 %v469, %v525
      %v534 = vmul.f32 %v470, %v526
      %v535 = vmul.f32 %v471, %v527
      %v536 = vmul.f32 %v472, %v528
      %v537 = vmul.f32 %v473, %v529
      %v539 = vlaneseq
      %v540 = vshrl.u32 %v539, 7
      %v541 = vsub.s32 0, %v540
      %v542 = vrot.slane %v431, %v541
      %v544 = vmul.f32 %v530, %v542
      %v545 = vmul.f32 %v531, %v542
      %v546 = vmul.f32 %v532, %v542
      %v547 = vmul.f32 %v533, %v542
      %v548 = vmul.f32 %v534, %v542
      %v549 = vmul.f32 %v535, %v542
      %v550 = vmul.f32 %v536, %v542
      %v551 = vmul.f32 %v537, %v542
      %v553 = vlaneseq
      %v554 = vshrl.u32 %v553, 7
      %v555 = vsub.s32 0, %v554
      %v556 = vrot.slane %v432, %v555
      %v558 = vadd.f32 %v544, %v556
      %v559 = vadd.f32 %v545, %v556
      %v560 = vadd.f32 %v546, %v556
      %v561 = vadd.f32 %v547, %v556
      %v562 = vadd.f32 %v548, %v556
      %v563 = vadd.f32 %v549, %v556
      %v564 = vadd.f32 %v550, %v556
      %v565 = vadd.f32 %v551, %v556
      %v566 = vpack.c.bf16 %v559, %v558
      %v567 = vpack.c.bf16 %v561, %v560
      %v568 = vpack.c.bf16 %v563, %v562
      %v569 = vpack.c.bf16 %v565, %v564
      %v574 = vunpack.c.l.b16 %v566
      %v575 = vunpack.c.h.b16 %v566
      %v576 = vunpack.c.l.b16 %v567
      %v577 = vunpack.c.h.b16 %v567
      %v578 = vunpack.c.l.b16 %v568
      %v579 = vunpack.c.h.b16 %v568
      %v580 = vunpack.c.l.b16 %v569
      %v581 = vunpack.c.h.b16 %v569
      %v582 = vpack.c.b16 %v574, %v574
      %v583 = vpack.c.b16 %v575, %v575
      %v584 = vpack.c.b16 %v576, %v576
      %v585 = vpack.c.b16 %v577, %v577
      %v586 = vpack.c.b16 %v578, %v578
      %v587 = vpack.c.b16 %v579, %v579
      %v588 = vpack.c.b16 %v580, %v580
      %v589 = vpack.c.b16 %v581, %v581
      %vm598 = vcmask 257024
      %599 = vst.msk [vmem:[%s275] sm:$0xf] %vm598, %v582
      %600 = vst.msk [vmem:[%s275 + $0x4] sm:$0xf] %vm598, %v583
      %601 = vst.msk [vmem:[%s275 + $0x8] sm:$0xf] %vm598, %v584
      %602 = vst.msk [vmem:[%s275 + $0xc] sm:$0xf] %vm598, %v585
      %603 = vst.msk [vmem:[%s275 + $0x10] sm:$0xf] %vm598, %v586
      %604 = vst.msk [vmem:[%s275 + $0x14] sm:$0xf] %vm598, %v587
      %605 = vst.msk [vmem:[%s275 + $0x18] sm:$0xf] %vm598, %v588
      %606 = vst.msk [vmem:[%s275 + $0x1c] sm:$0xf] %vm598, %v589
      %s607 = smul.u32 8, %s17
      %p608 = scmp.lt.s32.totalorder %s607, 15
      %s609 = scalar_select %p608, %s607, 15
      %s610 = smul.addr %s609, 4
      %s611 = scalar_lea.vmem %s6, %s610
      // Predicated region
      $region45: #{_lambda_.29} parent=43 // pred_check
        %p612 = pneg %p171
      $region46: #{_lambda_.29} parent=43 // pred_check_branch
        %614 = sbr.rel (%p612) target = $region48
      $region47: #{_lambda_.29} parent=43 // pred_region
        %s615 = smul.u32 8, %s17
      $region48: #{_lambda_.29} parent=43 // pred_fallthru
        _
    $region44: #{_lambda_.29} parent=5 // pred_fallthru
      _
    %p616 = scmp.le.s32.totalorder 2, %s12
    // Predicated region
    $region49: #{_lambda_.29} parent=5 // pred_check
      %p617 = pneg %p616
    $region50: #{_lambda_.29} parent=5 // pred_check_branch
      %619 = sbr.rel (%p617) target = $region52
    $region51: #{_lambda_.29} parent=5 // pred_region
      %s620 = ssub.s32 %s12, 2
      // Predicated region
      $region53: #{_lambda_.29} parent=51 // pred_check
        %p621 = pneg %p177
      $region54: #{_lambda_.29} parent=51 // pred_check_branch
        %623 = sbr.rel (%p621) target = $region56
      $region55: #{_lambda_.29} parent=51 // pred_region
        %s624 = smul.u32 8, %s18
        %p625 = scmp.lt.s32.totalorder %s624, 15
        %s626 = scalar_select %p625, %s624, 15
        %s627 = smul.addr %s626, 4
        %s628 = scalar_lea.vmem %s6, %s627
      $region56: #{_lambda_.29} parent=51 // pred_fallthru
        _
    $region52: #{_lambda_.29} parent=5 // pred_fallthru
      _
  $region6: #{_lambda_.29} parent=0 // loop_footer
    %s16 = sadd.s32 1, %s12
  $region7: #{_lambda_.29} parent=0 // loop_footer_branch
    %11 = sbr.rel target = $region3
  $region8: #{_lambda_.29} parent=0 // loop_exit
    _

// kernel: _lambda_.39
$region0: #{_lambda_.39}
  #allocation0 [shape = 'u32[]', space=smem, size = 0x4, offset = 0x4, fixed_abs, tag = 'smem constant byte address 0x4 - core index']
  #allocation1 [shape = 'u32[144,128]{1,0:T(1,128)}', space=vmem, size = 0x12000, scoped, tag = 'internal scratch']
  %s0 = inlined_call_operand.vmem [shape: bf16[128,32], index: 0, kind: input, shape index: {}]
  %s1 = inlined_call_operand.vmem [shape: bf16[32,64], index: 1, kind: input, shape index: {}]
  %s2 = inlined_call_operand.vmem [shape: f32[1,64], index: 2, kind: input, shape index: {}]
  %s3 = inlined_call_operand.vmem [shape: bf16[128,64], index: 3, kind: output, shape index: {}]
  %s4 = sld [smem:[#allocation0]]
  $region45: #{_lambda_.39} parent=0
    _
  %s6 = ssub.s32 1, %s4
  %s7 = scalar_select 0, %s6, %s4
  loop: start=0, step=1, limit=4
  $region2: #{_lambda_.39} parent=0 // loop_pre_header
    _
  $region3: #{_lambda_.39} parent=0 // loop_header
    %s9 = sphi 0, %s13
    %p10 = scmp.ge.s32.totalorder %s9, 4
    %s19 = sphi 0, %s21
    %s22 = sphi 0, %s19
    %s23 = sphi 0, %s22
    %s39 = sphi 0, %s23
    %s43 = sphi 0, %s43
    %s45 = sphi 0, %s43
    %s46 = sphi 0, %s45
    %s60 = sphi 0, %s46
    %s64 = sphi 0, %s64
    %s66 = sphi 0, %s64
    %s67 = sphi 0, %s66
    %s81 = sphi 0, %s67
    %s87 = sphi 0, %s89
    %s90 = sphi 0, %s87
    %s91 = sphi 0, %s90
    %s107 = sphi 0, %s91
  $region4: #{_lambda_.39} parent=0 // loop_header_branch
    %12 = sbr.rel (%p10) target = $region8
  $region5: #{_lambda_.39} parent=0 // loop_body
    %s14 = ssub.s32 %s9, 1
    %s15 = ssub.s32 %s9, 2
    %s16 = sadd.s32 %s9, 1
    %s17 = ssub.s32 %s9, %s16
    %p18 = scmp.eq.s32.totalorder %s17, 0
    %s20 = sadd.s32 %s19, 1
    %s21 = scalar_select %p18, %s19, %s20
    %p24 = pneg %p18
    %p25 = scmp.eq.s32.totalorder %s9, 1
    %p26 = por %p24, %p25
    %p27 = scmp.ne.s32.totalorder %s19, %s22
    %p28 = scmp.eq.s32.totalorder %s9, 0
    %p29 = por %p27, %p28
    %p30 = scmp.ne.s32.totalorder %s19, %s22
    %p31 = scmp.eq.s32.totalorder %s14, 1
    %p32 = por %p30, %p31
    %p33 = scmp.ne.s32.totalorder %s22, %s23
    %p34 = scmp.eq.s32.totalorder %s14, 0
    %p35 = por %p33, %p34
    %p36 = scmp.ne.s32.totalorder %s22, %s23
    %p37 = scmp.eq.s32.totalorder %s15, 1
    %p38 = por %p36, %p37
    %p40 = scmp.ne.s32.totalorder %s23, %s39
    %p41 = scmp.eq.s32.totalorder %s15, 0
    %p42 = por %p40, %p41
    %s44 = sadd.s32 %s43, 1
    %p47 = scmp.eq.s32.totalorder %s9, 1
    %p48 = scmp.ne.s32.totalorder %s43, %s45
    %p49 = scmp.eq.s32.totalorder %s9, 0
    %p50 = por %p48, %p49
    %p51 = scmp.ne.s32.totalorder %s43, %s45
    %p52 = scmp.eq.s32.totalorder %s14, 1
    %p53 = por %p51, %p52
    %p54 = scmp.ne.s32.totalorder %s45, %s46
    %p55 = scmp.eq.s32.totalorder %s14, 0
    %p56 = por %p54, %p55
    %p57 = scmp.ne.s32.totalorder %s45, %s46
    %p58 = scmp.eq.s32.totalorder %s15, 1
    %p59 = por %p57, %p58
    %p61 = scmp.ne.s32.totalorder %s46, %s60
    %p62 = scmp.eq.s32.totalorder %s15, 0
    %p63 = por %p61, %p62
    %s65 = sadd.s32 %s64, 1
    %p68 = scmp.eq.s32.totalorder %s9, 1
    %p69 = scmp.ne.s32.totalorder %s64, %s66
    %p70 = scmp.eq.s32.totalorder %s9, 0
    %p71 = por %p69, %p70
    %p72 = scmp.ne.s32.totalorder %s64, %s66
    %p73 = scmp.eq.s32.totalorder %s14, 1
    %p74 = por %p72, %p73
    %p75 = scmp.ne.s32.totalorder %s66, %s67
    %p76 = scmp.eq.s32.totalorder %s14, 0
    %p77 = por %p75, %p76
    %p78 = scmp.ne.s32.totalorder %s66, %s67
    %p79 = scmp.eq.s32.totalorder %s15, 1
    %p80 = por %p78, %p79
    %p82 = scmp.ne.s32.totalorder %s67, %s81
    %p83 = scmp.eq.s32.totalorder %s15, 0
    %p84 = por %p82, %p83
    %s85 = ssub.s32 %s9, %s16
    %p86 = scmp.eq.s32.totalorder %s85, 0
    %s88 = sadd.s32 %s87, 1
    %s89 = scalar_select %p86, %s87, %s88
    %p92 = pneg %p86
    %p93 = scmp.eq.s32.totalorder %s9, 1
    %p94 = por %p92, %p93
    %p95 = scmp.ne.s32.totalorder %s87, %s90
    %p96 = scmp.eq.s32.totalorder %s9, 0
    %p97 = por %p95, %p96
    %p98 = scmp.ne.s32.totalorder %s87, %s90
    %p99 = scmp.eq.s32.totalorder %s14, 1
    %p100 = por %p98, %p99
    %p101 = scmp.ne.s32.totalorder %s90, %s91
    %p102 = scmp.eq.s32.totalorder %s14, 0
    %p103 = por %p101, %p102
    %p104 = scmp.ne.s32.totalorder %s90, %s91
    %p105 = scmp.eq.s32.totalorder %s15, 1
    %p106 = por %p104, %p105
    %p108 = scmp.ne.s32.totalorder %s91, %s107
    %p109 = scmp.eq.s32.totalorder %s15, 0
    %p110 = por %p108, %p109
    %p111 = scmp.le.s32.totalorder 1, %s9
    %p112 = scmp.lt.s32.totalorder %s9, 3
    %p113 = pnand %p111, %p112
    %p114 = pneg %p113
    // Predicated region
    $region9: #{_lambda_.39} parent=5 // pred_check
      _
    $region10: #{_lambda_.39} parent=5 // pred_check_branch
      %116 = sbr.rel (%p113) target = $region12
    $region11: #{_lambda_.39} parent=5 // pred_region
      %s117 = ssub.s32 %s9, 1
      // Predicated region
      $region13: #{_lambda_.39} parent=11 // pred_check
        %p118 = pneg %p56
      $region14: #{_lambda_.39} parent=11 // pred_check_branch
        %120 = sbr.rel (%p118) target = $region16
      $region15: #{_lambda_.39} parent=11 // pred_region
        _
      $region16: #{_lambda_.39} parent=11 // pred_fallthru
        _
      // Predicated region
      $region17: #{_lambda_.39} parent=11 // pred_check
        %p121 = pneg %p77
      $region18: #{_lambda_.39} parent=11 // pred_check_branch
        %123 = sbr.rel (%p121) target = $region20
      $region19: #{_lambda_.39} parent=11 // pred_region
        _
      $region20: #{_lambda_.39} parent=11 // pred_fallthru
        _
    $region12: #{_lambda_.39} parent=5 // pred_fallthru
      _
    %p124 = scmp.lt.s32.totalorder %s9, 2
    // Predicated region
    $region21: #{_lambda_.39} parent=5 // pred_check
      %p125 = pneg %p124
    $region22: #{_lambda_.39} parent=5 // pred_check_branch
      %127 = sbr.rel (%p125) target = $region24
    $region23: #{_lambda_.39} parent=5 // pred_region
      // Predicated region
      $region25: #{_lambda_.39} parent=23 // pred_check
        %p128 = pneg %p29
      $region26: #{_lambda_.39} parent=23 // pred_check_branch
        %130 = sbr.rel (%p128) target = $region28
      $region27: #{_lambda_.39} parent=23 // pred_region
        %s131 = smul.u32 8, %s9
        %p132 = scmp.lt.s32.totalorder %s131, 15
        %s133 = scalar_select %p132, %s131, 15
        %s134 = smul.addr %s133, 4
        %s135 = scalar_lea.vmem %s0, %s134
        %s136 = smul.u32 8, %s9
      $region28: #{_lambda_.39} parent=23 // pred_fallthru
        _
    $region24: #{_lambda_.39} parent=5 // pred_fallthru
      _
    %p137 = scmp.le.s32.totalorder 1, %s9
    %p138 = scmp.lt.s32.totalorder %s9, 3
    %p139 = pnand %p137, %p138
    %p140 = pneg %p139
    // Predicated region
    $region29: #{_lambda_.39} parent=5 // pred_check
      _
    $region30: #{_lambda_.39} parent=5 // pred_check_branch
      %142 = sbr.rel (%p139) target = $region32
    $region31: #{_lambda_.39} parent=5 // pred_region
      %s143 = ssub.s32 %s9, 1
      %s144 = smul.u32 8, %s14
      %p145 = scmp.lt.s32.totalorder %s144, 15
      %s146 = scalar_select %p145, %s144, 15
      %s147 = smul.addr %s146, 4
      %s148 = scalar_lea.vmem %s0, %s147
      %p149 = pneg %p35
      %p150 = pneg %p32
      %p151 = pneg %p56
      %p152 = pneg %p53
      %p153 = pneg %p77
      %p154 = pneg %p74
      %p155 = pneg %p103
      %p156 = pneg %p100
      %s157 = smul.u32 8, %s14
      %p158 = scmp.lt.s32.totalorder %s157, 15
      %s159 = scalar_select %p158, %s157, 15
      %s160 = smul.addr %s159, 4
      %s161 = scalar_lea.vmem %s3, %s160
      %s162 = smul.u32 8, %s14
      %p163 = scmp.lt.s32.totalorder %s162, 15
      %s164 = scalar_select %p163, %s162, 15
      %s165 = smul.addr %s164, 4
      %s166 = scalar_lea.vmem %s0, %s165
      %s167 = smul.u32 8, %s14
      %s168 = smul.u32 8, %s14
      %p169 = scmp.lt.s32.totalorder %s168, 15
      %s170 = scalar_select %p169, %s168, 15
      %s171 = smul.addr %s170, 4
      %s172 = scalar_lea.vmem %s3, %s171
      %s173 = smul.u32 8, %s14
      %v175 = vld [vmem:[%s166] sm:$0xf]
      %v176 = vld [vmem:[%s166 + $0x4] sm:$0xf]
      %v177 = vld [vmem:[%s166 + $0x8] sm:$0xf]
      %v178 = vld [vmem:[%s166 + $0xc] sm:$0xf]
      %v179 = vld [vmem:[%s166 + $0x10] sm:$0xf]
      %v180 = vld [vmem:[%s166 + $0x14] sm:$0xf]
      %v181 = vld [vmem:[%s166 + $0x18] sm:$0xf]
      %v182 = vld [vmem:[%s166 + $0x1c] sm:$0xf]
      %v183 = vld [vmem:[%s1] sm:$0xf]
      %v184 = vld [vmem:[%s1 + $0x4] sm:$0xf]
      %v185 = vld [vmem:[%s1 + $0x8] sm:$0xf]
      %v186 = vld [vmem:[%s1 + $0xc] sm:$0xf]
      %v187 = vld [vmem:[%s2] sm:$0x1]
      %v189 = vlaneseq
      %v190 = vshrl.u32 %v189, 7
      %v191 = vsub.s32 0, %v190
      %v192 = vrot.slane %v187, %v191
      %v202 = vunpack.c.l.b16 %v175
      %v203 = vunpack.c.l.b16 %v176
      %v204 = vunpack.c.l.b16 %v177
      %v205 = vunpack.c.l.b16 %v178
      %v206 = vunpack.c.l.b16 %v179
      %v207 = vunpack.c.l.b16 %v180
      %v208 = vunpack.c.l.b16 %v181
      %v209 = vunpack.c.l.b16 %v182
      %v210 = vpack.c.b16 %v203, %v202
      %v211 = vpack.c.b16 %v205, %v204
      %v212 = vpack.c.b16 %v207, %v206
      %v213 = vpack.c.b16 %v209, %v208
      %v218 = vunpack.c.l.b16 %v183
      %v219 = vunpack.c.l.b16 %v184
      %v220 = vunpack.c.l.b16 %v185
      %v221 = vunpack.c.l.b16 %v186
      %v222 = vpack.c.b16 %v219, %v218
      %v223 = vpack.c.b16 %v221, %v220
      %vm226 = vcmask 261120
      %v228 = vsel %vm226, %v210, 0
      %v231 = vsel %vm226, %v211, 0
      %v234 = vsel %vm226, %v212, 0
      %v237 = vsel %vm226, %v213, 0
      %239 = vmatprep.subr.bf16.mxu0 0
      %240 = vmatpush1.bf16.msra.mxu0 %v222
      %241 = vmatprep.subr.bf16.mxu0 0
      %242 = vmatpush1.bf16.msra.mxu0 %v223
      %243 = vmatprep.subr.bf16.mxu0 0
      %244 = vmatpush1.bf16.msra.mxu0 0
      %245 = vmatprep.subr.bf16.mxu0 0
      %246 = vmatpush1.bf16.msra.mxu0 0
      %247 = vmatprep.subr.bf16.mxu0 0
      %248 = vmatpush1.bf16.msra.mxu0 0
      %249 = vmatprep.subr.bf16.mxu0 0
      %250 = vmatpush1.bf16.msra.mxu0 0
      %251 = vmatprep.subr.bf16.mxu0 0
      %252 = vmatpush1.bf16.msra.mxu0 0
      %253 = vmatprep.subr.bf16.mxu0 0
      %254 = vmatpush1.bf16.msra.mxu0 0
      %255 = vmatprep.subr.bf16.mxu0 0
      %256 = vmatpush1.bf16.msra.mxu0 0
      %257 = vmatprep.subr.bf16.mxu0 0
      %258 = vmatpush1.bf16.msra.mxu0 0
      %259 = vmatprep.subr.bf16.mxu0 0
      %260 = vmatpush1.bf16.msra.mxu0 0
      %261 = vmatprep.subr.bf16.mxu0 0
      %262 = vmatpush1.bf16.msra.mxu0 0
      %263 = vmatprep.subr.bf16.mxu0 0
      %264 = vmatpush1.bf16.msra.mxu0 0
      %265 = vmatprep.subr.bf16.mxu0 0
      %266 = vmatpush1.bf16.msra.mxu0 0
      %267 = vmatprep.subr.bf16.mxu0 0
      %268 = vmatpush1.bf16.msra.mxu0 0
      %269 = vmatprep.subr.bf16.mxu0 0
      %270 = vmatpush1.bf16.msra.mxu0 0
      %271 = vmatprep.mubr.bf16.mxu0 0
      %272 = vmatmul.mubr.bf16.gmra.mrb[0].mxu0 %v228
      %v273 = vpop.f32.mrb[0].mxu0
      %v274 = vadd.f32 %v192, %v273
      %v275 = vpop.f32.mrb[0].mxu0
      %v276 = vpop.f32.mrb[0].mxu0
      %v277 = vadd.f32 %v192, %v276
      %v278 = vpop.f32.mrb[0].mxu0
      %279 = vmatprep.mubr.bf16.mxu0 0
      %280 = vmatmul.mubr.bf16.gmra.mrb[0].mxu0 %v231
      %v281 = vpop.f32.mrb[0].mxu0
      %v282 = vadd.f32 %v192, %v281
      %v283 = vpop.f32.mrb[0].mxu0
      %v284 = vpop.f32.mrb[0].mxu0
      %v285 = vadd.f32 %v192, %v284
      %v286 = vpop.f32.mrb[0].mxu0
      %287 = vmatprep.mubr.bf16.mxu0 0
      %288 = vmatmul.mubr.bf16.gmra.mrb[0].mxu0 %v234
      %v289 = vpop.f32.mrb[0].mxu0
      %v290 = vadd.f32 %v192, %v289
      %v291 = vpop.f32.mrb[0].mxu0
      %v292 = vpop.f32.mrb[0].mxu0
      %v293 = vadd.f32 %v192, %v292
      %v294 = vpop.f32.mrb[0].mxu0
      %295 = vmatprep.mubr.bf16.mxu0 0
      %296 = vmatmul.mubr.bf16.gmra.mrb[0].mxu0 %v237
      %v297 = vpop.f32.mrb[0].mxu0
      %v298 = vadd.f32 %v192, %v297
      %v299 = vpop.f32.mrb[0].mxu0
      %v300 = vpop.f32.mrb[0].mxu0
      %v301 = vadd.f32 %v192, %v300
      %v302 = vpop.f32.mrb[0].mxu0
      %303 = vdwg.mxu0
      %v304 = vpack.c.bf16 %v277, %v274
      %v305 = vpack.c.bf16 %v285, %v282
      %v306 = vpack.c.bf16 %v293, %v290
      %v307 = vpack.c.bf16 %v301, %v298
      %v312 = vunpack.c.l.b16 %v304
      %v313 = vunpack.c.h.b16 %v304
      %v314 = vunpack.c.l.b16 %v305
      %v315 = vunpack.c.h.b16 %v305
      %v316 = vunpack.c.l.b16 %v306
      %v317 = vunpack.c.h.b16 %v306
      %v318 = vunpack.c.l.b16 %v307
      %v319 = vunpack.c.h.b16 %v307
      %v320 = vpack.c.b16 %v312, %v312
      %v321 = vpack.c.b16 %v313, %v313
      %v322 = vpack.c.b16 %v314, %v314
      %v323 = vpack.c.b16 %v315, %v315
      %v324 = vpack.c.b16 %v316, %v316
      %v325 = vpack.c.b16 %v317, %v317
      %v326 = vpack.c.b16 %v318, %v318
      %v327 = vpack.c.b16 %v319, %v319
      %vm336 = vcmask 519168
      %337 = vst.msk [vmem:[%s172] sm:$0xf] %vm336, %v320
      %338 = vst.msk [vmem:[%s172 + $0x4] sm:$0xf] %vm336, %v321
      %339 = vst.msk [vmem:[%s172 + $0x8] sm:$0xf] %vm336, %v322
      %340 = vst.msk [vmem:[%s172 + $0xc] sm:$0xf] %vm336, %v323
      %341 = vst.msk [vmem:[%s172 + $0x10] sm:$0xf] %vm336, %v324
      %342 = vst.msk [vmem:[%s172 + $0x14] sm:$0xf] %vm336, %v325
      %343 = vst.msk [vmem:[%s172 + $0x18] sm:$0xf] %vm336, %v326
      %344 = vst.msk [vmem:[%s172 + $0x1c] sm:$0xf] %vm336, %v327
      %s345 = smul.u32 8, %s14
      %p346 = scmp.lt.s32.totalorder %s345, 15
      %s347 = scalar_select %p346, %s345, 15
      %s348 = smul.addr %s347, 4
      %s349 = scalar_lea.vmem %s3, %s348
      // Predicated region
      $region33: #{_lambda_.39} parent=31 // pred_check
        %p350 = pneg %p100
      $region34: #{_lambda_.39} parent=31 // pred_check_branch
        %352 = sbr.rel (%p350) target = $region36
      $region35: #{_lambda_.39} parent=31 // pred_region
        %s353 = smul.u32 8, %s14
      $region36: #{_lambda_.39} parent=31 // pred_fallthru
        _
    $region32: #{_lambda_.39} parent=5 // pred_fallthru
      _
    %p354 = scmp.le.s32.totalorder 2, %s9
    // Predicated region
    $region37: #{_lambda_.39} parent=5 // pred_check
      %p355 = pneg %p354
    $region38: #{_lambda_.39} parent=5 // pred_check_branch
      %357 = sbr.rel (%p355) target = $region40
    $region39: #{_lambda_.39} parent=5 // pred_region
      %s358 = ssub.s32 %s9, 2
      // Predicated region
      $region41: #{_lambda_.39} parent=39 // pred_check
        %p359 = pneg %p106
      $region42: #{_lambda_.39} parent=39 // pred_check_branch
        %361 = sbr.rel (%p359) target = $region44
      $region43: #{_lambda_.39} parent=39 // pred_region
        %s362 = smul.u32 8, %s15
        %p363 = scmp.lt.s32.totalorder %s362, 15
        %s364 = scalar_select %p363, %s362, 15
        %s365 = smul.addr %s364, 4
        %s366 = scalar_lea.vmem %s3, %s365
      $region44: #{_lambda_.39} parent=39 // pred_fallthru
        _
    $region40: #{_lambda_.39} parent=5 // pred_fallthru
      _
  $region6: #{_lambda_.39} parent=0 // loop_footer
    %s13 = sadd.s32 1, %s9
  $region7: #{_lambda_.39} parent=0 // loop_footer_branch
    %8 = sbr.rel target = $region3
  $region8: #{_lambda_.39} parent=0 // loop_exit
    _

// kernel: _lambda_.30
$region0: #{_lambda_.30}
  #allocation0 [shape = 'u32[]', space=smem, size = 0x4, offset = 0x4, fixed_abs, tag = 'smem constant byte address 0x4 - core index']
  #allocation1 [shape = 'u32[144,128]{1,0:T(1,128)}', space=vmem, size = 0x12000, scoped, tag = 'internal scratch']
  %s0 = inlined_call_operand.vmem [shape: bf16[128,32], index: 0, kind: input, shape index: {}]
  %s1 = inlined_call_operand.vmem [shape: bf16[32,64], index: 1, kind: input, shape index: {}]
  %s2 = inlined_call_operand.vmem [shape: f32[1,64], index: 2, kind: input, shape index: {}]
  %s3 = inlined_call_operand.vmem [shape: bf16[64,32], index: 3, kind: input, shape index: {}]
  %s4 = inlined_call_operand.vmem [shape: f32[1,32], index: 4, kind: input, shape index: {}]
  %s5 = inlined_call_operand.vmem [shape: f32[1,32], index: 5, kind: input, shape index: {}]
  %s6 = inlined_call_operand.vmem [shape: f32[1,32], index: 6, kind: input, shape index: {}]
  %s7 = inlined_call_operand.vmem [shape: bf16[128,32], index: 7, kind: output, shape index: {}]
  %s8 = sld [smem:[#allocation0]]
  $region61: #{_lambda_.30} parent=0
    _
  %s10 = ssub.s32 1, %s8
  %s11 = scalar_select 0, %s10, %s8
  loop: start=0, step=1, limit=4
  $region2: #{_lambda_.30} parent=0 // loop_pre_header
    _
  $region3: #{_lambda_.30} parent=0 // loop_header
    %s13 = sphi 0, %s17
    %p14 = scmp.ge.s32.totalorder %s13, 4
    %s23 = sphi 0, %s25
    %s26 = sphi 0, %s23
    %s27 = sphi 0, %s26
    %s43 = sphi 0, %s27
    %s47 = sphi 0, %s47
    %s49 = sphi 0, %s47
    %s50 = sphi 0, %s49
    %s64 = sphi 0, %s50
    %s68 = sphi 0, %s68
    %s70 = sphi 0, %s68
    %s71 = sphi 0, %s70
    %s85 = sphi 0, %s71
    %s89 = sphi 0, %s89
    %s91 = sphi 0, %s89
    %s92 = sphi 0, %s91
    %s106 = sphi 0, %s92
    %s110 = sphi 0, %s110
    %s112 = sphi 0, %s110
    %s113 = sphi 0, %s112
    %s127 = sphi 0, %s113
    %s131 = sphi 0, %s131
    %s133 = sphi 0, %s131
    %s134 = sphi 0, %s133
    %s148 = sphi 0, %s134
    %s152 = sphi 0, %s152
    %s154 = sphi 0, %s152
    %s155 = sphi 0, %s154
    %s169 = sphi 0, %s155
    %s175 = sphi 0, %s177
    %s178 = sphi 0, %s175
    %s179 = sphi 0, %s178
    %s195 = sphi 0, %s179
  $region4: #{_lambda_.30} parent=0 // loop_header_branch
    %16 = sbr.rel (%p14) target = $region8
  $region5: #{_lambda_.30} parent=0 // loop_body
    %s18 = ssub.s32 %s13, 1
    %s19 = ssub.s32 %s13, 2
    %s20 = sadd.s32 %s13, 1
    %s21 = ssub.s32 %s13, %s20
    %p22 = scmp.eq.s32.totalorder %s21, 0
    %s24 = sadd.s32 %s23, 1
    %s25 = scalar_select %p22, %s23, %s24
    %p28 = pneg %p22
    %p29 = scmp.eq.s32.totalorder %s13, 1
    %p30 = por %p28, %p29
    %p31 = scmp.ne.s32.totalorder %s23, %s26
    %p32 = scmp.eq.s32.totalorder %s13, 0
    %p33 = por %p31, %p32
    %p34 = scmp.ne.s32.totalorder %s23, %s26
    %p35 = scmp.eq.s32.totalorder %s18, 1
    %p36 = por %p34, %p35
    %p37 = scmp.ne.s32.totalorder %s26, %s27
    %p38 = scmp.eq.s32.totalorder %s18, 0
    %p39 = por %p37, %p38
    %p40 = scmp.ne.s32.totalorder %s26, %s27
    %p41 = scmp.eq.s32.totalorder %s19, 1
    %p42 = por %p40, %p41
    %p44 = scmp.ne.s32.totalorder %s27, %s43
    %p45 = scmp.eq.s32.totalorder %s19, 0
    %p46 = por %p44, %p45
    %s48 = sadd.s32 %s47, 1
    %p51 = scmp.eq.s32.totalorder %s13, 1
    %p52 = scmp.ne.s32.totalorder %s47, %s49
    %p53 = scmp.eq.s32.totalorder %s13, 0
    %p54 = por %p52, %p53
    %p55 = scmp.ne.s32.totalorder %s47, %s49
    %p56 = scmp.eq.s32.totalorder %s18, 1
    %p57 = por %p55, %p56
    %p58 = scmp.ne.s32.totalorder %s49, %s50
    %p59 = scmp.eq.s32.totalorder %s18, 0
    %p60 = por %p58, %p59
    %p61 = scmp.ne.s32.totalorder %s49, %s50
    %p62 = scmp.eq.s32.totalorder %s19, 1
    %p63 = por %p61, %p62
    %p65 = scmp.ne.s32.totalorder %s50, %s64
    %p66 = scmp.eq.s32.totalorder %s19, 0
    %p67 = por %p65, %p66
    %s69 = sadd.s32 %s68, 1
    %p72 = scmp.eq.s32.totalorder %s13, 1
    %p73 = scmp.ne.s32.totalorder %s68, %s70
    %p74 = scmp.eq.s32.totalorder %s13, 0
    %p75 = por %p73, %p74
    %p76 = scmp.ne.s32.totalorder %s68, %s70
    %p77 = scmp.eq.s32.totalorder %s18, 1
    %p78 = por %p76, %p77
    %p79 = scmp.ne.s32.totalorder %s70, %s71
    %p80 = scmp.eq.s32.totalorder %s18, 0
    %p81 = por %p79, %p80
    %p82 = scmp.ne.s32.totalorder %s70, %s71
    %p83 = scmp.eq.s32.totalorder %s19, 1
    %p84 = por %p82, %p83
    %p86 = scmp.ne.s32.totalorder %s71, %s85
    %p87 = scmp.eq.s32.totalorder %s19, 0
    %p88 = por %p86, %p87
    %s90 = sadd.s32 %s89, 1
    %p93 = scmp.eq.s32.totalorder %s13, 1
    %p94 = scmp.ne.s32.totalorder %s89, %s91
    %p95 = scmp.eq.s32.totalorder %s13, 0
    %p96 = por %p94, %p95
    %p97 = scmp.ne.s32.totalorder %s89, %s91
    %p98 = scmp.eq.s32.totalorder %s18, 1
    %p99 = por %p97, %p98
    %p100 = scmp.ne.s32.totalorder %s91, %s92
    %p101 = scmp.eq.s32.totalorder %s18, 0
    %p102 = por %p100, %p101
    %p103 = scmp.ne.s32.totalorder %s91, %s92
    %p104 = scmp.eq.s32.totalorder %s19, 1
    %p105 = por %p103, %p104
    %p107 = scmp.ne.s32.totalorder %s92, %s106
    %p108 = scmp.eq.s32.totalorder %s19, 0
    %p109 = por %p107, %p108
    %s111 = sadd.s32 %s110, 1
    %p114 = scmp.eq.s32.totalorder %s13, 1
    %p115 = scmp.ne.s32.totalorder %s110, %s112
    %p116 = scmp.eq.s32.totalorder %s13, 0
    %p117 = por %p115, %p116
    %p118 = scmp.ne.s32.totalorder %s110, %s112
    %p119 = scmp.eq.s32.totalorder %s18, 1
    %p120 = por %p118, %p119
    %p121 = scmp.ne.s32.totalorder %s112, %s113
    %p122 = scmp.eq.s32.totalorder %s18, 0
    %p123 = por %p121, %p122
    %p124 = scmp.ne.s32.totalorder %s112, %s113
    %p125 = scmp.eq.s32.totalorder %s19, 1
    %p126 = por %p124, %p125
    %p128 = scmp.ne.s32.totalorder %s113, %s127
    %p129 = scmp.eq.s32.totalorder %s19, 0
    %p130 = por %p128, %p129
    %s132 = sadd.s32 %s131, 1
    %p135 = scmp.eq.s32.totalorder %s13, 1
    %p136 = scmp.ne.s32.totalorder %s131, %s133
    %p137 = scmp.eq.s32.totalorder %s13, 0
    %p138 = por %p136, %p137
    %p139 = scmp.ne.s32.totalorder %s131, %s133
    %p140 = scmp.eq.s32.totalorder %s18, 1
    %p141 = por %p139, %p140
    %p142 = scmp.ne.s32.totalorder %s133, %s134
    %p143 = scmp.eq.s32.totalorder %s18, 0
    %p144 = por %p142, %p143
    %p145 = scmp.ne.s32.totalorder %s133, %s134
    %p146 = scmp.eq.s32.totalorder %s19, 1
    %p147 = por %p145, %p146
    %p149 = scmp.ne.s32.totalorder %s134, %s148
    %p150 = scmp.eq.s32.totalorder %s19, 0
    %p151 = por %p149, %p150
    %s153 = sadd.s32 %s152, 1
    %p156 = scmp.eq.s32.totalorder %s13, 1
    %p157 = scmp.ne.s32.totalorder %s152, %s154
    %p158 = scmp.eq.s32.totalorder %s13, 0
    %p159 = por %p157, %p158
    %p160 = scmp.ne.s32.totalorder %s152, %s154
    %p161 = scmp.eq.s32.totalorder %s18, 1
    %p162 = por %p160, %p161
    %p163 = scmp.ne.s32.totalorder %s154, %s155
    %p164 = scmp.eq.s32.totalorder %s18, 0
    %p165 = por %p163, %p164
    %p166 = scmp.ne.s32.totalorder %s154, %s155
    %p167 = scmp.eq.s32.totalorder %s19, 1
    %p168 = por %p166, %p167
    %p170 = scmp.ne.s32.totalorder %s155, %s169
    %p171 = scmp.eq.s32.totalorder %s19, 0
    %p172 = por %p170, %p171
    %s173 = ssub.s32 %s13, %s20
    %p174 = scmp.eq.s32.totalorder %s173, 0
    %s176 = sadd.s32 %s175, 1
    %s177 = scalar_select %p174, %s175, %s176
    %p180 = pneg %p174
    %p181 = scmp.eq.s32.totalorder %s13, 1
    %p182 = por %p180, %p181
    %p183 = scmp.ne.s32.totalorder %s175, %s178
    %p184 = scmp.eq.s32.totalorder %s13, 0
    %p185 = por %p183, %p184
    %p186 = scmp.ne.s32.totalorder %s175, %s178
    %p187 = scmp.eq.s32.totalorder %s18, 1
    %p188 = por %p186, %p187
    %p189 = scmp.ne.s32.totalorder %s178, %s179
    %p190 = scmp.eq.s32.totalorder %s18, 0
    %p191 = por %p189, %p190
    %p192 = scmp.ne.s32.totalorder %s178, %s179
    %p193 = scmp.eq.s32.totalorder %s19, 1
    %p194 = por %p192, %p193
    %p196 = scmp.ne.s32.totalorder %s179, %s195
    %p197 = scmp.eq.s32.totalorder %s19, 0
    %p198 = por %p196, %p197
    %p199 = scmp.le.s32.totalorder 1, %s13
    %p200 = scmp.lt.s32.totalorder %s13, 3
    %p201 = pnand %p199, %p200
    %p202 = pneg %p201
    // Predicated region
    $region9: #{_lambda_.30} parent=5 // pred_check
      _
    $region10: #{_lambda_.30} parent=5 // pred_check_branch
      %204 = sbr.rel (%p201) target = $region12
    $region11: #{_lambda_.30} parent=5 // pred_region
      %s205 = ssub.s32 %s13, 1
      // Predicated region
      $region13: #{_lambda_.30} parent=11 // pred_check
        %p206 = pneg %p60
      $region14: #{_lambda_.30} parent=11 // pred_check_branch
        %208 = sbr.rel (%p206) target = $region16
      $region15: #{_lambda_.30} parent=11 // pred_region
        _
      $region16: #{_lambda_.30} parent=11 // pred_fallthru
        _
      // Predicated region
      $region17: #{_lambda_.30} parent=11 // pred_check
        %p209 = pneg %p81
      $region18: #{_lambda_.30} parent=11 // pred_check_branch
        %211 = sbr.rel (%p209) target = $region20
      $region19: #{_lambda_.30} parent=11 // pred_region
        _
      $region20: #{_lambda_.30} parent=11 // pred_fallthru
        _
      // Predicated region
      $region21: #{_lambda_.30} parent=11 // pred_check
        %p212 = pneg %p102
      $region22: #{_lambda_.30} parent=11 // pred_check_branch
        %214 = sbr.rel (%p212) target = $region24
      $region23: #{_lambda_.30} parent=11 // pred_region
        _
      $region24: #{_lambda_.30} parent=11 // pred_fallthru
        _
      // Predicated region
      $region25: #{_lambda_.30} parent=11 // pred_check
        %p215 = pneg %p123
      $region26: #{_lambda_.30} parent=11 // pred_check_branch
        %217 = sbr.rel (%p215) target = $region28
      $region27: #{_lambda_.30} parent=11 // pred_region
        _
      $region28: #{_lambda_.30} parent=11 // pred_fallthru
        _
      // Predicated region
      $region29: #{_lambda_.30} parent=11 // pred_check
        %p218 = pneg %p144
      $region30: #{_lambda_.30} parent=11 // pred_check_branch
        %220 = sbr.rel (%p218) target = $region32
      $region31: #{_lambda_.30} parent=11 // pred_region
        _
      $region32: #{_lambda_.30} parent=11 // pred_fallthru
        _
      // Predicated region
      $region33: #{_lambda_.30} parent=11 // pred_check
        %p221 = pneg %p165
      $region34: #{_lambda_.30} parent=11 // pred_check_branch
        %223 = sbr.rel (%p221) target = $region36
      $region35: #{_lambda_.30} parent=11 // pred_region
        _
      $region36: #{_lambda_.30} parent=11 // pred_fallthru
        _
    $region12: #{_lambda_.30} parent=5 // pred_fallthru
      _
    %p224 = scmp.lt.s32.totalorder %s13, 2
    // Predicated region
    $region37: #{_lambda_.30} parent=5 // pred_check
      %p225 = pneg %p224
    $region38: #{_lambda_.30} parent=5 // pred_check_branch
      %227 = sbr.rel (%p225) target = $region40
    $region39: #{_lambda_.30} parent=5 // pred_region
      // Predicated region
      $region41: #{_lambda_.30} parent=39 // pred_check
        %p228 = pneg %p33
      $region42: #{_lambda_.30} parent=39 // pred_check_branch
        %230 = sbr.rel (%p228) target = $region44
      $region43: #{_lambda_.30} parent=39 // pred_region
        %s231 = smul.u32 8, %s13
        %p232 = scmp.lt.s32.totalorder %s231, 15
        %s233 = scalar_select %p232, %s231, 15
        %s234 = smul.addr %s233, 4
        %s235 = scalar_lea.vmem %s0, %s234
        %s236 = smul.u32 8, %s13
      $region44: #{_lambda_.30} parent=39 // pred_fallthru
        _
    $region40: #{_lambda_.30} parent=5 // pred_fallthru
      _
    %p237 = scmp.le.s32.totalorder 1, %s13
    %p238 = scmp.lt.s32.totalorder %s13, 3
    %p239 = pnand %p237, %p238
    %p240 = pneg %p239
    // Predicated region
    $region45: #{_lambda_.30} parent=5 // pred_check
      _
    $region46: #{_lambda_.30} parent=5 // pred_check_branch
      %242 = sbr.rel (%p239) target = $region48
    $region47: #{_lambda_.30} parent=5 // pred_region
      %s243 = ssub.s32 %s13, 1
      %s244 = smul.u32 8, %s18
      %p245 = scmp.lt.s32.totalorder %s244, 15
      %s246 = scalar_select %p245, %s244, 15
      %s247 = smul.addr %s246, 4
      %s248 = scalar_lea.vmem %s0, %s247
      %p249 = pneg %p39
      %p250 = pneg %p36
      %p251 = pneg %p60
      %p252 = pneg %p57
      %p253 = pneg %p81
      %p254 = pneg %p78
      %p255 = pneg %p102
      %p256 = pneg %p99
      %p257 = pneg %p123
      %p258 = pneg %p120
      %p259 = pneg %p144
      %p260 = pneg %p141
      %p261 = pneg %p165
      %p262 = pneg %p162
      %p263 = pneg %p191
      %p264 = pneg %p188
      %s265 = smul.u32 8, %s18
      %p266 = scmp.lt.s32.totalorder %s265, 15
      %s267 = scalar_select %p266, %s265, 15
      %s268 = smul.addr %s267, 4
      %s269 = scalar_lea.vmem %s7, %s268
      %s270 = smul.u32 8, %s18
      %p271 = scmp.lt.s32.totalorder %s270, 15
      %s272 = scalar_select %p271, %s270, 15
      %s273 = smul.addr %s272, 4
      %s274 = scalar_lea.vmem %s0, %s273
      %s275 = smul.u32 8, %s18
      %s276 = smul.u32 8, %s18
      %p277 = scmp.lt.s32.totalorder %s276, 15
      %s278 = scalar_select %p277, %s276, 15
      %s279 = smul.addr %s278, 4
      %s280 = scalar_lea.vmem %s7, %s279
      %s281 = smul.u32 8, %s18
      %v283 = vld [vmem:[%s274] sm:$0xf]
      %v284 = vld [vmem:[%s274 + $0x4] sm:$0xf]
      %v285 = vld [vmem:[%s274 + $0x8] sm:$0xf]
      %v286 = vld [vmem:[%s274 + $0xc] sm:$0xf]
      %v287 = vld [vmem:[%s274 + $0x10] sm:$0xf]
      %v288 = vld [vmem:[%s274 + $0x14] sm:$0xf]
      %v289 = vld [vmem:[%s274 + $0x18] sm:$0xf]
      %v290 = vld [vmem:[%s274 + $0x1c] sm:$0xf]
      %v291 = vld [vmem:[%s1] sm:$0xf]
      %v292 = vld [vmem:[%s1 + $0x4] sm:$0xf]
      %v293 = vld [vmem:[%s1 + $0x8] sm:$0xf]
      %v294 = vld [vmem:[%s1 + $0xc] sm:$0xf]
      %v295 = vld [vmem:[%s2] sm:$0x1]
      %v297 = vlaneseq
      %v298 = vshrl.u32 %v297, 7
      %v299 = vsub.s32 0, %v298
      %v300 = vrot.slane %v295, %v299
      %v310 = vunpack.c.l.b16 %v283
      %v311 = vunpack.c.l.b16 %v284
      %v312 = vunpack.c.l.b16 %v285
      %v313 = vunpack.c.l.b16 %v286
      %v314 = vunpack.c.l.b16 %v287
      %v315 = vunpack.c.l.b16 %v288
      %v316 = vunpack.c.l.b16 %v289
      %v317 = vunpack.c.l.b16 %v290
      %v318 = vpack.c.b16 %v311, %v310
      %v319 = vpack.c.b16 %v313, %v312
      %v320 = vpack.c.b16 %v315, %v314
      %v321 = vpack.c.b16 %v317, %v316
      %v326 = vunpack.c.l.b16 %v291
      %v327 = vunpack.c.l.b16 %v292
      %v328 = vunpack.c.l.b16 %v293
      %v329 = vunpack.c.l.b16 %v294
      %v330 = vpack.c.b16 %v327, %v326
      %v331 = vpack.c.b16 %v329, %v328
      %vm334 = vcmask 261120
      %v336 = vsel %vm334, %v318, 0
      %v339 = vsel %vm334, %v319, 0
      %v342 = vsel %vm334, %v320, 0
      %v345 = vsel %vm334, %v321, 0
      %347 = vmatprep.subr.bf16.mxu0 0
      %348 = vmatpush1.bf16.msra.mxu0 %v330
      %349 = vmatprep.subr.bf16.mxu0 0
      %350 = vmatpush1.bf16.msra.mxu0 %v331
      %351 = vmatprep.subr.bf16.mxu0 0
      %352 = vmatpush1.bf16.msra.mxu0 0
      %353 = vmatprep.subr.bf16.mxu0 0
      %354 = vmatpush1.bf16.msra.mxu0 0
      %355 = vmatprep.subr.bf16.mxu0 0
      %356 = vmatpush1.bf16.msra.mxu0 0
      %357 = vmatprep.subr.bf16.mxu0 0
      %358 = vmatpush1.bf16.msra.mxu0 0
      %359 = vmatprep.subr.bf16.mxu0 0
      %360 = vmatpush1.bf16.msra.mxu0 0
      %361 = vmatprep.subr.bf16.mxu0 0
      %362 = vmatpush1.bf16.msra.mxu0 0
      %363 = vmatprep.subr.bf16.mxu0 0
      %364 = vmatpush1.bf16.msra.mxu0 0
      %365 = vmatprep.subr.bf16.mxu0 0
      %366 = vmatpush1.bf16.msra.mxu0 0
      %367 = vmatprep.subr.bf16.mxu0 0
      %368 = vmatpush1.bf16.msra.mxu0 0
      %369 = vmatprep.subr.bf16.mxu0 0
      %370 = vmatpush1.bf16.msra.mxu0 0
      %371 = vmatprep.subr.bf16.mxu0 0
      %372 = vmatpush1.bf16.msra.mxu0 0
      %373 = vmatprep.subr.bf16.mxu0 0
      %374 = vmatpush1.bf16.msra.mxu0 0
      %375 = vmatprep.subr.bf16.mxu0 0
      %376 = vmatpush1.bf16.msra.mxu0 0
      %377 = vmatprep.subr.bf16.mxu0 0
      %378 = vmatpush1.bf16.msra.mxu0 0
      %379 = vmatprep.mubr.bf16.mxu0 0
      %380 = vmatmul.mubr.bf16.gmra.mrb[0].mxu0 %v336
      %v381 = vpop.f32.mrb[0].mxu0
      %v382 = vadd.f32 %v300, %v381
      %v383 = vpop.f32.mrb[0].mxu0
      %v384 = vpop.f32.mrb[0].mxu0
      %v385 = vadd.f32 %v300, %v384
      %v386 = vpop.f32.mrb[0].mxu0
      %387 = vmatprep.mubr.bf16.mxu0 0
      %388 = vmatmul.mubr.bf16.gmra.mrb[0].mxu0 %v339
      %v389 = vpop.f32.mrb[0].mxu0
      %v390 = vadd.f32 %v300, %v389
      %v391 = vpop.f32.mrb[0].mxu0
      %v392 = vpop.f32.mrb[0].mxu0
      %v393 = vadd.f32 %v300, %v392
      %v394 = vpop.f32.mrb[0].mxu0
      %395 = vmatprep.mubr.bf16.mxu0 0
      %396 = vmatmul.mubr.bf16.gmra.mrb[0].mxu0 %v342
      %v397 = vpop.f32.mrb[0].mxu0
      %v398 = vadd.f32 %v300, %v397
      %v399 = vpop.f32.mrb[0].mxu0
      %v400 = vpop.f32.mrb[0].mxu0
      %v401 = vadd.f32 %v300, %v400
      %v402 = vpop.f32.mrb[0].mxu0
      %403 = vmatprep.mubr.bf16.mxu0 0
      %404 = vmatmul.mubr.bf16.gmra.mrb[0].mxu0 %v345
      %v405 = vpop.f32.mrb[0].mxu0
      %v406 = vadd.f32 %v300, %v405
      %v407 = vpop.f32.mrb[0].mxu0
      %v408 = vpop.f32.mrb[0].mxu0
      %v409 = vadd.f32 %v300, %v408
      %v410 = vpop.f32.mrb[0].mxu0
      %411 = vdwg.mxu0
      %v412 = vmax.f32 %v382, 0.0
      %v413 = vmax.f32 %v385, 0.0
      %v414 = vmax.f32 %v390, 0.0
      %v415 = vmax.f32 %v393, 0.0
      %v416 = vmax.f32 %v398, 0.0
      %v417 = vmax.f32 %v401, 0.0
      %v418 = vmax.f32 %v406, 0.0
      %v419 = vmax.f32 %v409, 0.0
      %v420 = vpack.c.bf16 %v413, %v412
      %v421 = vpack.c.bf16 %v415, %v414
      %v422 = vpack.c.bf16 %v417, %v416
      %v423 = vpack.c.bf16 %v419, %v418
      %v424 = vld [vmem:[%s3] sm:$0xf]
      %v425 = vld [vmem:[%s3 + $0x4] sm:$0xf]
      %v426 = vld [vmem:[%s3 + $0x8] sm:$0xf]
      %v427 = vld [vmem:[%s3 + $0xc] sm:$0xf]
      %v428 = vld [vmem:[%s3 + $0x10] sm:$0xf]
      %v429 = vld [vmem:[%s3 + $0x14] sm:$0xf]
      %v430 = vld [vmem:[%s3 + $0x18] sm:$0xf]
      %v431 = vld [vmem:[%s3 + $0x1c] sm:$0xf]
      %v432 = vld [vmem:[%s4] sm:$0x1]
      %v434 = vlaneseq
      %v435 = vshrl.u32 %v434, 7
      %v436 = vsub.s32 0, %v435
      %v437 = vrot.slane %v432, %v436
      %v447 = vunpack.c.l.b16 %v424
      %v448 = vunpack.c.l.b16 %v425
      %v449 = vunpack.c.l.b16 %v426
      %v450 = vunpack.c.l.b16 %v427
      %v451 = vunpack.c.l.b16 %v428
      %v452 = vunpack.c.l.b16 %v429
      %v453 = vunpack.c.l.b16 %v430
      %v454 = vunpack.c.l.b16 %v431
      %v455 = vpack.c.b16 %v448, %v447
      %v456 = vpack.c.b16 %v450, %v449
      %v457 = vpack.c.b16 %v452, %v451
      %v458 = vpack.c.b16 %v454, %v453
      %vm463 = vcmask 523264
      %v465 = vsel %vm463, %v420, 0
      %v468 = vsel %vm463, %v421, 0
      %v471 = vsel %vm463, %v422, 0
      %v474 = vsel %vm463, %v423, 0
      %476 = vmatprep.subr.bf16.mxu0 0
      %477 = vmatpush1.bf16.msra.mxu0 %v455
      %478 = vmatprep.subr.bf16.mxu0 0
      %479 = vmatpush1.bf16.msra.mxu0 %v456
      %480 = vmatprep.subr.bf16.mxu0 0
      %481 = vmatpush1.bf16.msra.mxu0 %v457
      %482 = vmatprep.subr.bf16.mxu0 0
      %483 = vmatpush1.bf16.msra.mxu0 %v458
      %484 = vmatprep.subr.bf16.mxu0 0
      %485 = vmatpush1.bf16.msra.mxu0 0
      %486 = vmatprep.subr.bf16.mxu0 0
      %487 = vmatpush1.bf16.msra.mxu0 0
      %488 = vmatprep.subr.bf16.mxu0 0
      %489 = vmatpush1.bf16.msra.mxu0 0
      %490 = vmatprep.subr.bf16.mxu0 0
      %491 = vmatpush1.bf16.msra.mxu0 0
      %492 = vmatprep.subr.bf16.mxu0 0
      %493 = vmatpush1.bf16.msra.mxu0 0
      %494 = vmatprep.subr.bf16.mxu0 0
      %495 = vmatpush1.bf16.msra.mxu0 0
      %496 = vmatprep.subr.bf16.mxu0 0
      %497 = vmatpush1.bf16.msra.mxu0 0
      %498 = vmatprep.subr.bf16.mxu0 0
      %499 = vmatpush1.bf16.msra.mxu0 0
      %500 = vmatprep.subr.bf16.mxu0 0
      %501 = vmatpush1.bf16.msra.mxu0 0
      %502 = vmatprep.subr.bf16.mxu0 0
      %503 = vmatpush1.bf16.msra.mxu0 0
      %504 = vmatprep.subr.bf16.mxu0 0
      %505 = vmatpush1.bf16.msra.mxu0 0
      %506 = vmatprep.subr.bf16.mxu0 0
      %507 = vmatpush1.bf16.msra.mxu0 0
      %508 = vmatprep.mubr.bf16.mxu0 0
      %509 = vmatmul.mubr.bf16.gmra.mrb[0].mxu0 %v465
      %v510 = vpop.f32.mrb[0].mxu0
      %v511 = vadd.f32 %v437, %v510
      %v512 = vpop.f32.mrb[0].mxu0
      %v513 = vpop.f32.mrb[0].mxu0
      %v514 = vadd.f32 %v437, %v513
      %v515 = vpop.f32.mrb[0].mxu0
      %516 = vmatprep.mubr.bf16.mxu0 0
      %517 = vmatmul.mubr.bf16.gmra.mrb[0].mxu0 %v468
      %v518 = vpop.f32.mrb[0].mxu0
      %v519 = vadd.f32 %v437, %v518
      %v520 = vpop.f32.mrb[0].mxu0
      %v521 = vpop.f32.mrb[0].mxu0
      %v522 = vadd.f32 %v437, %v521
      %v523 = vpop.f32.mrb[0].mxu0
      %524 = vmatprep.mubr.bf16.mxu0 0
      %525 = vmatmul.mubr.bf16.gmra.mrb[0].mxu0 %v471
      %v526 = vpop.f32.mrb[0].mxu0
      %v527 = vadd.f32 %v437, %v526
      %v528 = vpop.f32.mrb[0].mxu0
      %v529 = vpop.f32.mrb[0].mxu0
      %v530 = vadd.f32 %v437, %v529
      %v531 = vpop.f32.mrb[0].mxu0
      %532 = vmatprep.mubr.bf16.mxu0 0
      %533 = vmatmul.mubr.bf16.gmra.mrb[0].mxu0 %v474
      %v534 = vpop.f32.mrb[0].mxu0
      %v535 = vadd.f32 %v437, %v534
      %v536 = vpop.f32.mrb[0].mxu0
      %v537 = vpop.f32.mrb[0].mxu0
      %v538 = vadd.f32 %v437, %v537
      %v539 = vpop.f32.mrb[0].mxu0
      %540 = vdwg.mxu0
      %v541 = vunpack.c.l.bf16 %v283
      %v542 = vunpack.c.l.bf16 %v284
      %v543 = vunpack.c.l.bf16 %v285
      %v544 = vunpack.c.l.bf16 %v286
      %v545 = vunpack.c.l.bf16 %v287
      %v546 = vunpack.c.l.bf16 %v288
      %v547 = vunpack.c.l.bf16 %v289
      %v548 = vunpack.c.l.bf16 %v290
      %v549 = vadd.f32 %v541, %v511
      %v550 = vadd.f32 %v542, %v514
      %v551 = vadd.f32 %v543, %v519
      %v552 = vadd.f32 %v544, %v522
      %v553 = vadd.f32 %v545, %v527
      %v554 = vadd.f32 %v546, %v530
      %v555 = vadd.f32 %v547, %v535
      %v556 = vadd.f32 %v548, %v538
      %v557 = vld [vmem:[%s5] sm:$0x1]
      %v558 = vld [vmem:[%s6] sm:$0x1]
      %v559 = vsel %vm334, %v549, 0.0
      %560 = vadd.xlane.f32.xlu0 %v559
      %v561 = vpop.xlane.xlu0 %560
      %v562 = vsel %vm334, %v550, 0.0
      %563 = vadd.xlane.f32.xlu0 %v562
      %v564 = vpop.xlane.xlu0 %563
      %v565 = vsel %vm334, %v551, 0.0
      %566 = vadd.xlane.f32.xlu0 %v565
      %v567 = vpop.xlane.xlu0 %566
      %v568 = vsel %vm334, %v552, 0.0
      %569 = vadd.xlane.f32.xlu0 %v568
      %v570 = vpop.xlane.xlu0 %569
      %v571 = vsel %vm334, %v553, 0.0
      %572 = vadd.xlane.f32.xlu0 %v571
      %v573 = vpop.xlane.xlu0 %572
      %v574 = vsel %vm334, %v554, 0.0
      %575 = vadd.xlane.f32.xlu0 %v574
      %v576 = vpop.xlane.xlu0 %575
      %v577 = vsel %vm334, %v555, 0.0
      %578 = vadd.xlane.f32.xlu0 %v577
      %v579 = vpop.xlane.xlu0 %578
      %v580 = vsel %vm334, %v556, 0.0
      %581 = vadd.xlane.f32.xlu0 %v580
      %v582 = vpop.xlane.xlu0 %581
      %v583 = vrcp.pop 32.0
      %v584 = vmul.f32 %v561, %v583
      %v585 = vmul.f32 %v564, %v583
      %v586 = vmul.f32 %v567, %v583
      %v587 = vmul.f32 %v570, %v583
      %v588 = vmul.f32 %v573, %v583
      %v589 = vmul.f32 %v576, %v583
      %v590 = vmul.f32 %v579, %v583
      %v591 = vmul.f32 %v582, %v583
      %v592 = vsub.f32 %v549, %v584
      %v593 = vsub.f32 %v550, %v585
      %v594 = vsub.f32 %v551, %v586
      %v595 = vsub.f32 %v552, %v587
      %v596 = vsub.f32 %v553, %v588
      %v597 = vsub.f32 %v554, %v589
      %v598 = vsub.f32 %v555, %v590
      %v599 = vsub.f32 %v556, %v591
      %v600 = vmul.f32 %v592, %v592
      %v601 = vmul.f32 %v593, %v593
      %v602 = vmul.f32 %v594, %v594
      %v603 = vmul.f32 %v595, %v595
      %v604 = vmul.f32 %v596, %v596
      %v605 = vmul.f32 %v597, %v597
      %v606 = vmul.f32 %v598, %v598
      %v607 = vmul.f32 %v599, %v599
      %v608 = vsel %vm334, %v600, 0.0
      %609 = vadd.xlane.f32.xlu0 %v608
      %v610 = vpop.xlane.xlu0 %609
      %v611 = vsel %vm334, %v601, 0.0
      %612 = vadd.xlane.f32.xlu0 %v611
      %v613 = vpop.xlane.xlu0 %612
      %v614 = vsel %vm334, %v602, 0.0
      %615 = vadd.xlane.f32.xlu0 %v614
      %v616 = vpop.xlane.xlu0 %615
      %v617 = vsel %vm334, %v603, 0.0
      %618 = vadd.xlane.f32.xlu0 %v617
      %v619 = vpop.xlane.xlu0 %618
      %v620 = vsel %vm334, %v604, 0.0
      %621 = vadd.xlane.f32.xlu0 %v620
      %v622 = vpop.xlane.xlu0 %621
      %v623 = vsel %vm334, %v605, 0.0
      %624 = vadd.xlane.f32.xlu0 %v623
      %v625 = vpop.xlane.xlu0 %624
      %v626 = vsel %vm334, %v606, 0.0
      %627 = vadd.xlane.f32.xlu0 %v626
      %v628 = vpop.xlane.xlu0 %627
      %v629 = vsel %vm334, %v607, 0.0
      %630 = vadd.xlane.f32.xlu0 %v629
      %v631 = vpop.xlane.xlu0 %630
      %v632 = vmul.f32 %v610, %v583
      %v633 = vmul.f32 %v613, %v583
      %v634 = vmul.f32 %v616, %v583
      %v635 = vmul.f32 %v619, %v583
      %v636 = vmul.f32 %v622, %v583
      %v637 = vmul.f32 %v625, %v583
      %v638 = vmul.f32 %v628, %v583
      %v639 = vmul.f32 %v631, %v583
      %v640 = vadd.f32 %v632, 1e-05
      %v641 = vadd.f32 %v633, 1e-05
      %v642 = vadd.f32 %v634, 1e-05
      %v643 = vadd.f32 %v635, 1e-05
      %v644 = vadd.f32 %v636, 1e-05
      %v645 = vadd.f32 %v637, 1e-05
      %v646 = vadd.f32 %v638, 1e-05
      %v647 = vadd.f32 %v639, 1e-05
      %v648 = vrsqrt.pop %v640
      %v649 = vrsqrt.pop %v641
      %v650 = vrsqrt.pop %v642
      %v651 = vrsqrt.pop %v643
      %v652 = vrsqrt.pop %v644
      %v653 = vrsqrt.pop %v645
      %v654 = vrsqrt.pop %v646
      %v655 = vrsqrt.pop %v647
      %v656 = vmul.f32 %v592, %v648
      %v657 = vmul.f32 %v593, %v649
      %v658 = vmul.f32 %v594, %v650
      %v659 = vmul.f32 %v595, %v651
      %v660 = vmul.f32 %v596, %v652
      %v661 = vmul.f32 %v597, %v653
      %v662 = vmul.f32 %v598, %v654
      %v663 = vmul.f32 %v599, %v655
      %v665 = vlaneseq
      %v666 = vshrl.u32 %v665, 7
      %v667 = vsub.s32 0, %v666
      %v668 = vrot.slane %v557, %v667
      %v670 = vmul.f32 %v656, %v668
      %v671 = vmul.f32 %v657, %v668
      %v672 = vmul.f32 %v658, %v668
      %v673 = vmul.f32 %v659, %v668
      %v674 = vmul.f32 %v660, %v668
      %v675 = vmul.f32 %v661, %v668
      %v676 = vmul.f32 %v662, %v668
      %v677 = vmul.f32 %v663, %v668
      %v679 = vlaneseq
      %v680 = vshrl.u32 %v679, 7
      %v681 = vsub.s32 0, %v680
      %v682 = vrot.slane %v558, %v681
      %v684 = vadd.f32 %v670, %v682
      %v685 = vadd.f32 %v671, %v682
      %v686 = vadd.f32 %v672, %v682
      %v687 = vadd.f32 %v673, %v682
      %v688 = vadd.f32 %v674, %v682
      %v689 = vadd.f32 %v675, %v682
      %v690 = vadd.f32 %v676, %v682
      %v691 = vadd.f32 %v677, %v682
      %v692 = vpack.c.bf16 %v685, %v684
      %v693 = vpack.c.bf16 %v687, %v686
      %v694 = vpack.c.bf16 %v689, %v688
      %v695 = vpack.c.bf16 %v691, %v690
      %v700 = vunpack.c.l.b16 %v692
      %v701 = vunpack.c.h.b16 %v692
      %v702 = vunpack.c.l.b16 %v693
      %v703 = vunpack.c.h.b16 %v693
      %v704 = vunpack.c.l.b16 %v694
      %v705 = vunpack.c.h.b16 %v694
      %v706 = vunpack.c.l.b16 %v695
      %v707 = vunpack.c.h.b16 %v695
      %v708 = vpack.c.b16 %v700, %v700
      %v709 = vpack.c.b16 %v701, %v701
      %v710 = vpack.c.b16 %v702, %v702
      %v711 = vpack.c.b16 %v703, %v703
      %v712 = vpack.c.b16 %v704, %v704
      %v713 = vpack.c.b16 %v705, %v705
      %v714 = vpack.c.b16 %v706, %v706
      %v715 = vpack.c.b16 %v707, %v707
      %vm724 = vcmask 257024
      %725 = vst.msk [vmem:[%s280] sm:$0xf] %vm724, %v708
      %726 = vst.msk [vmem:[%s280 + $0x4] sm:$0xf] %vm724, %v709
      %727 = vst.msk [vmem:[%s280 + $0x8] sm:$0xf] %vm724, %v710
      %728 = vst.msk [vmem:[%s280 + $0xc] sm:$0xf] %vm724, %v711
      %729 = vst.msk [vmem:[%s280 + $0x10] sm:$0xf] %vm724, %v712
      %730 = vst.msk [vmem:[%s280 + $0x14] sm:$0xf] %vm724, %v713
      %731 = vst.msk [vmem:[%s280 + $0x18] sm:$0xf] %vm724, %v714
      %732 = vst.msk [vmem:[%s280 + $0x1c] sm:$0xf] %vm724, %v715
      %s733 = smul.u32 8, %s18
      %p734 = scmp.lt.s32.totalorder %s733, 15
      %s735 = scalar_select %p734, %s733, 15
      %s736 = smul.addr %s735, 4
      %s737 = scalar_lea.vmem %s7, %s736
      // Predicated region
      $region49: #{_lambda_.30} parent=47 // pred_check
        %p738 = pneg %p188
      $region50: #{_lambda_.30} parent=47 // pred_check_branch
        %740 = sbr.rel (%p738) target = $region52
      $region51: #{_lambda_.30} parent=47 // pred_region
        %s741 = smul.u32 8, %s18
      $region52: #{_lambda_.30} parent=47 // pred_fallthru
        _
    $region48: #{_lambda_.30} parent=5 // pred_fallthru
      _
    %p742 = scmp.le.s32.totalorder 2, %s13
    // Predicated region
    $region53: #{_lambda_.30} parent=5 // pred_check
      %p743 = pneg %p742
    $region54: #{_lambda_.30} parent=5 // pred_check_branch
      %745 = sbr.rel (%p743) target = $region56
    $region55: #{_lambda_.30} parent=5 // pred_region
      %s746 = ssub.s32 %s13, 2
      // Predicated region
      $region57: #{_lambda_.30} parent=55 // pred_check
        %p747 = pneg %p194
      $region58: #{_lambda_.30} parent=55 // pred_check_branch
        %749 = sbr.rel (%p747) target = $region60
      $region59: #{_lambda_.30} parent=55 // pred_region
        %s750 = smul.u32 8, %s19
        %p751 = scmp.lt.s32.totalorder %s750, 15
        %s752 = scalar_select %p751, %s750, 15
        %s753 = smul.addr %s752, 4
        %s754 = scalar_lea.vmem %s7, %s753
      $region60: #{_lambda_.30} parent=55 // pred_fallthru
        _
    $region56: #{_lambda_.30} parent=5 // pred_fallthru
      _
  $region6: #{_lambda_.30} parent=0 // loop_footer
    %s17 = sadd.s32 1, %s13
  $region7: #{_lambda_.30} parent=0 // loop_footer_branch
    %12 = sbr.rel target = $region3
  $region8: #{_lambda_.30} parent=0 // loop_exit
    _

// kernel: _lambda_.35
$region0: #{_lambda_.35}
  #allocation0 [shape = 'u32[]', space=smem, size = 0x4, offset = 0x4, fixed_abs, tag = 'smem constant byte address 0x4 - core index']
  #allocation1 [shape = 'u32[144,128]{1,0:T(1,128)}', space=vmem, size = 0x12000, scoped, tag = 'internal scratch']
  %s0 = inlined_call_operand.vmem [shape: bf16[16,32], index: 0, kind: input, shape index: {}]
  %s1 = inlined_call_operand.vmem [shape: bf16[16,32], index: 1, kind: input, shape index: {}]
  %s2 = inlined_call_operand.vmem [shape: bf16[32,32], index: 2, kind: input, shape index: {}]
  %s3 = inlined_call_operand.vmem [shape: f32[1,32], index: 3, kind: input, shape index: {}]
  %s4 = inlined_call_operand.vmem [shape: bf16[32,32], index: 4, kind: input, shape index: {}]
  %s5 = inlined_call_operand.vmem [shape: f32[1,32], index: 5, kind: input, shape index: {}]
  %s6 = inlined_call_operand.vmem [shape: bf16[32,32], index: 6, kind: input, shape index: {}]
  %s7 = inlined_call_operand.vmem [shape: f32[1,32], index: 7, kind: input, shape index: {}]
  %s8 = inlined_call_operand.vmem [shape: bf16[16,32], index: 8, kind: output, shape index: {0}]
  %s9 = inlined_call_operand.vmem [shape: bf16[16,64], index: 9, kind: output, shape index: {1}]
  %10 = xla_tuple %s8, %s9
  %s11 = sld [smem:[#allocation0]]
  $region73: #{_lambda_.35} parent=0
    _
  %s13 = ssub.s32 1, %s11
  %s14 = scalar_select 0, %s13, %s11
  loop: start=0, step=1, limit=4
  $region2: #{_lambda_.35} parent=0 // loop_pre_header
    _
  $region3: #{_lambda_.35} parent=0 // loop_header
    %s16 = sphi 0, %s20
    %p17 = scmp.ge.s32.totalorder %s16, 4
    %s26 = sphi 0, %s28
    %s29 = sphi 0, %s26
    %s30 = sphi 0, %s29
    %s46 = sphi 0, %s30
    %s52 = sphi 0, %s54
    %s55 = sphi 0, %s52
    %s56 = sphi 0, %s55
    %s72 = sphi 0, %s56
    %s76 = sphi 0, %s76
    %s78 = sphi 0, %s76
    %s79 = sphi 0, %s78
    %s93 = sphi 0, %s79
    %s97 = sphi 0, %s97
    %s99 = sphi 0, %s97
    %s100 = sphi 0, %s99
    %s114 = sphi 0, %s100
    %s118 = sphi 0, %s118
    %s120 = sphi 0, %s118
    %s121 = sphi 0, %s120
    %s135 = sphi 0, %s121
    %s139 = sphi 0, %s139
    %s141 = sphi 0, %s139
    %s142 = sphi 0, %s141
    %s156 = sphi 0, %s142
    %s160 = sphi 0, %s160
    %s162 = sphi 0, %s160
    %s163 = sphi 0, %s162
    %s177 = sphi 0, %s163
    %s181 = sphi 0, %s181
    %s183 = sphi 0, %s181
    %s184 = sphi 0, %s183
    %s198 = sphi 0, %s184
    %s204 = sphi 0, %s206
    %s207 = sphi 0, %s204
    %s208 = sphi 0, %s207
    %s224 = sphi 0, %s208
    %s230 = sphi 0, %s232
    %s233 = sphi 0, %s230
    %s234 = sphi 0, %s233
    %s250 = sphi 0, %s234
  $region4: #{_lambda_.35} parent=0 // loop_header_branch
    %19 = sbr.rel (%p17) target = $region8
  $region5: #{_lambda_.35} parent=0 // loop_body
    %s21 = ssub.s32 %s16, 1
    %s22 = ssub.s32 %s16, 2
    %s23 = sadd.s32 %s16, 1
    %s24 = ssub.s32 %s16, %s23
    %p25 = scmp.eq.s32.totalorder %s24, 0
    %s27 = sadd.s32 %s26, 1
    %s28 = scalar_select %p25, %s26, %s27
    %p31 = pneg %p25
    %p32 = scmp.eq.s32.totalorder %s16, 1
    %p33 = por %p31, %p32
    %p34 = scmp.ne.s32.totalorder %s26, %s29
    %p35 = scmp.eq.s32.totalorder %s16, 0
    %p36 = por %p34, %p35
    %p37 = scmp.ne.s32.totalorder %s26, %s29
    %p38 = scmp.eq.s32.totalorder %s21, 1
    %p39 = por %p37, %p38
    %p40 = scmp.ne.s32.totalorder %s29, %s30
    %p41 = scmp.eq.s32.totalorder %s21, 0
    %p42 = por %p40, %p41
    %p43 = scmp.ne.s32.totalorder %s29, %s30
    %p44 = scmp.eq.s32.totalorder %s22, 1
    %p45 = por %p43, %p44
    %p47 = scmp.ne.s32.totalorder %s30, %s46
    %p48 = scmp.eq.s32.totalorder %s22, 0
    %p49 = por %p47, %p48
    %s50 = ssub.s32 %s16, %s23
    %p51 = scmp.eq.s32.totalorder %s50, 0
    %s53 = sadd.s32 %s52, 1
    %s54 = scalar_select %p51, %s52, %s53
    %p57 = pneg %p51
    %p58 = scmp.eq.s32.totalorder %s16, 1
    %p59 = por %p57, %p58
    %p60 = scmp.ne.s32.totalorder %s52, %s55
    %p61 = scmp.eq.s32.totalorder %s16, 0
    %p62 = por %p60, %p61
    %p63 = scmp.ne.s32.totalorder %s52, %s55
    %p64 = scmp.eq.s32.totalorder %s21, 1
    %p65 = por %p63, %p64
    %p66 = scmp.ne.s32.totalorder %s55, %s56
    %p67 = scmp.eq.s32.totalorder %s21, 0
    %p68 = por %p66, %p67
    %p69 = scmp.ne.s32.totalorder %s55, %s56
    %p70 = scmp.eq.s32.totalorder %s22, 1
    %p71 = por %p69, %p70
    %p73 = scmp.ne.s32.totalorder %s56, %s72
    %p74 = scmp.eq.s32.totalorder %s22, 0
    %p75 = por %p73, %p74
    %s77 = sadd.s32 %s76, 1
    %p80 = scmp.eq.s32.totalorder %s16, 1
    %p81 = scmp.ne.s32.totalorder %s76, %s78
    %p82 = scmp.eq.s32.totalorder %s16, 0
    %p83 = por %p81, %p82
    %p84 = scmp.ne.s32.totalorder %s76, %s78
    %p85 = scmp.eq.s32.totalorder %s21, 1
    %p86 = por %p84, %p85
    %p87 = scmp.ne.s32.totalorder %s78, %s79
    %p88 = scmp.eq.s32.totalorder %s21, 0
    %p89 = por %p87, %p88
    %p90 = scmp.ne.s32.totalorder %s78, %s79
    %p91 = scmp.eq.s32.totalorder %s22, 1
    %p92 = por %p90, %p91
    %p94 = scmp.ne.s32.totalorder %s79, %s93
    %p95 = scmp.eq.s32.totalorder %s22, 0
    %p96 = por %p94, %p95
    %s98 = sadd.s32 %s97, 1
    %p101 = scmp.eq.s32.totalorder %s16, 1
    %p102 = scmp.ne.s32.totalorder %s97, %s99
    %p103 = scmp.eq.s32.totalorder %s16, 0
    %p104 = por %p102, %p103
    %p105 = scmp.ne.s32.totalorder %s97, %s99
    %p106 = scmp.eq.s32.totalorder %s21, 1
    %p107 = por %p105, %p106
    %p108 = scmp.ne.s32.totalorder %s99, %s100
    %p109 = scmp.eq.s32.totalorder %s21, 0
    %p110 = por %p108, %p109
    %p111 = scmp.ne.s32.totalorder %s99, %s100
    %p112 = scmp.eq.s32.totalorder %s22, 1
    %p113 = por %p111, %p112
    %p115 = scmp.ne.s32.totalorder %s100, %s114
    %p116 = scmp.eq.s32.totalorder %s22, 0
    %p117 = por %p115, %p116
    %s119 = sadd.s32 %s118, 1
    %p122 = scmp.eq.s32.totalorder %s16, 1
    %p123 = scmp.ne.s32.totalorder %s118, %s120
    %p124 = scmp.eq.s32.totalorder %s16, 0
    %p125 = por %p123, %p124
    %p126 = scmp.ne.s32.totalorder %s118, %s120
    %p127 = scmp.eq.s32.totalorder %s21, 1
    %p128 = por %p126, %p127
    %p129 = scmp.ne.s32.totalorder %s120, %s121
    %p130 = scmp.eq.s32.totalorder %s21, 0
    %p131 = por %p129, %p130
    %p132 = scmp.ne.s32.totalorder %s120, %s121
    %p133 = scmp.eq.s32.totalorder %s22, 1
    %p134 = por %p132, %p133
    %p136 = scmp.ne.s32.totalorder %s121, %s135
    %p137 = scmp.eq.s32.totalorder %s22, 0
    %p138 = por %p136, %p137
    %s140 = sadd.s32 %s139, 1
    %p143 = scmp.eq.s32.totalorder %s16, 1
    %p144 = scmp.ne.s32.totalorder %s139, %s141
    %p145 = scmp.eq.s32.totalorder %s16, 0
    %p146 = por %p144, %p145
    %p147 = scmp.ne.s32.totalorder %s139, %s141
    %p148 = scmp.eq.s32.totalorder %s21, 1
    %p149 = por %p147, %p148
    %p150 = scmp.ne.s32.totalorder %s141, %s142
    %p151 = scmp.eq.s32.totalorder %s21, 0
    %p152 = por %p150, %p151
    %p153 = scmp.ne.s32.totalorder %s141, %s142
    %p154 = scmp.eq.s32.totalorder %s22, 1
    %p155 = por %p153, %p154
    %p157 = scmp.ne.s32.totalorder %s142, %s156
    %p158 = scmp.eq.s32.totalorder %s22, 0
    %p159 = por %p157, %p158
    %s161 = sadd.s32 %s160, 1
    %p164 = scmp.eq.s32.totalorder %s16, 1
    %p165 = scmp.ne.s32.totalorder %s160, %s162
    %p166 = scmp.eq.s32.totalorder %s16, 0
    %p167 = por %p165, %p166
    %p168 = scmp.ne.s32.totalorder %s160, %s162
    %p169 = scmp.eq.s32.totalorder %s21, 1
    %p170 = por %p168, %p169
    %p171 = scmp.ne.s32.totalorder %s162, %s163
    %p172 = scmp.eq.s32.totalorder %s21, 0
    %p173 = por %p171, %p172
    %p174 = scmp.ne.s32.totalorder %s162, %s163
    %p175 = scmp.eq.s32.totalorder %s22, 1
    %p176 = por %p174, %p175
    %p178 = scmp.ne.s32.totalorder %s163, %s177
    %p179 = scmp.eq.s32.totalorder %s22, 0
    %p180 = por %p178, %p179
    %s182 = sadd.s32 %s181, 1
    %p185 = scmp.eq.s32.totalorder %s16, 1
    %p186 = scmp.ne.s32.totalorder %s181, %s183
    %p187 = scmp.eq.s32.totalorder %s16, 0
    %p188 = por %p186, %p187
    %p189 = scmp.ne.s32.totalorder %s181, %s183
    %p190 = scmp.eq.s32.totalorder %s21, 1
    %p191 = por %p189, %p190
    %p192 = scmp.ne.s32.totalorder %s183, %s184
    %p193 = scmp.eq.s32.totalorder %s21, 0
    %p194 = por %p192, %p193
    %p195 = scmp.ne.s32.totalorder %s183, %s184
    %p196 = scmp.eq.s32.totalorder %s22, 1
    %p197 = por %p195, %p196
    %p199 = scmp.ne.s32.totalorder %s184, %s198
    %p200 = scmp.eq.s32.totalorder %s22, 0
    %p201 = por %p199, %p200
    %s202 = ssub.s32 %s16, %s23
    %p203 = scmp.eq.s32.totalorder %s202, 0
    %s205 = sadd.s32 %s204, 1
    %s206 = scalar_select %p203, %s204, %s205
    %p209 = pneg %p203
    %p210 = scmp.eq.s32.totalorder %s16, 1
    %p211 = por %p209, %p210
    %p212 = scmp.ne.s32.totalorder %s204, %s207
    %p213 = scmp.eq.s32.totalorder %s16, 0
    %p214 = por %p212, %p213
    %p215 = scmp.ne.s32.totalorder %s204, %s207
    %p216 = scmp.eq.s32.totalorder %s21, 1
    %p217 = por %p215, %p216
    %p218 = scmp.ne.s32.totalorder %s207, %s208
    %p219 = scmp.eq.s32.totalorder %s21, 0
    %p220 = por %p218, %p219
    %p221 = scmp.ne.s32.totalorder %s207, %s208
    %p222 = scmp.eq.s32.totalorder %s22, 1
    %p223 = por %p221, %p222
    %p225 = scmp.ne.s32.totalorder %s208, %s224
    %p226 = scmp.eq.s32.totalorder %s22, 0
    %p227 = por %p225, %p226
    %s228 = ssub.s32 %s16, %s23
    %p229 = scmp.eq.s32.totalorder %s228, 0
    %s231 = sadd.s32 %s230, 1
    %s232 = scalar_select %p229, %s230, %s231
    %p235 = pneg %p229
    %p236 = scmp.eq.s32.totalorder %s16, 1
    %p237 = por %p235, %p236
    %p238 = scmp.ne.s32.totalorder %s230, %s233
    %p239 = scmp.eq.s32.totalorder %s16, 0
    %p240 = por %p238, %p239
    %p241 = scmp.ne.s32.totalorder %s230, %s233
    %p242 = scmp.eq.s32.totalorder %s21, 1
    %p243 = por %p241, %p242
    %p244 = scmp.ne.s32.totalorder %s233, %s234
    %p245 = scmp.eq.s32.totalorder %s21, 0
    %p246 = por %p244, %p245
    %p247 = scmp.ne.s32.totalorder %s233, %s234
    %p248 = scmp.eq.s32.totalorder %s22, 1
    %p249 = por %p247, %p248
    %p251 = scmp.ne.s32.totalorder %s234, %s250
    %p252 = scmp.eq.s32.totalorder %s22, 0
    %p253 = por %p251, %p252
    %p254 = scmp.le.s32.totalorder 1, %s16
    %p255 = scmp.lt.s32.totalorder %s16, 3
    %p256 = pnand %p254, %p255
    %p257 = pneg %p256
    // Predicated region
    $region9: #{_lambda_.35} parent=5 // pred_check
      _
    $region10: #{_lambda_.35} parent=5 // pred_check_branch
      %259 = sbr.rel (%p256) target = $region12
    $region11: #{_lambda_.35} parent=5 // pred_region
      %s260 = ssub.s32 %s16, 1
      // Predicated region
      $region13: #{_lambda_.35} parent=11 // pred_check
        %p261 = pneg %p89
      $region14: #{_lambda_.35} parent=11 // pred_check_branch
        %263 = sbr.rel (%p261) target = $region16
      $region15: #{_lambda_.35} parent=11 // pred_region
        _
      $region16: #{_lambda_.35} parent=11 // pred_fallthru
        _
      // Predicated region
      $region17: #{_lambda_.35} parent=11 // pred_check
        %p264 = pneg %p110
      $region18: #{_lambda_.35} parent=11 // pred_check_branch
        %266 = sbr.rel (%p264) target = $region20
      $region19: #{_lambda_.35} parent=11 // pred_region
        _
      $region20: #{_lambda_.35} parent=11 // pred_fallthru
        _
      // Predicated region
      $region21: #{_lambda_.35} parent=11 // pred_check
        %p267 = pneg %p131
      $region22: #{_lambda_.35} parent=11 // pred_check_branch
        %269 = sbr.rel (%p267) target = $region24
      $region23: #{_lambda_.35} parent=11 // pred_region
        _
      $region24: #{_lambda_.35} parent=11 // pred_fallthru
        _
      // Predicated region
      $region25: #{_lambda_.35} parent=11 // pred_check
        %p270 = pneg %p152
      $region26: #{_lambda_.35} parent=11 // pred_check_branch
        %272 = sbr.rel (%p270) target = $region28
      $region27: #{_lambda_.35} parent=11 // pred_region
        _
      $region28: #{_lambda_.35} parent=11 // pred_fallthru
        _
      // Predicated region
      $region29: #{_lambda_.35} parent=11 // pred_check
        %p273 = pneg %p173
      $region30: #{_lambda_.35} parent=11 // pred_check_branch
        %275 = sbr.rel (%p273) target = $region32
      $region31: #{_lambda_.35} parent=11 // pred_region
        _
      $region32: #{_lambda_.35} parent=11 // pred_fallthru
        _
      // Predicated region
      $region33: #{_lambda_.35} parent=11 // pred_check
        %p276 = pneg %p194
      $region34: #{_lambda_.35} parent=11 // pred_check_branch
        %278 = sbr.rel (%p276) target = $region36
      $region35: #{_lambda_.35} parent=11 // pred_region
        _
      $region36: #{_lambda_.35} parent=11 // pred_fallthru
        _
    $region12: #{_lambda_.35} parent=5 // pred_fallthru
      _
    %p279 = scmp.lt.s32.totalorder %s16, 2
    // Predicated region
    $region37: #{_lambda_.35} parent=5 // pred_check
      %p280 = pneg %p279
    $region38: #{_lambda_.35} parent=5 // pred_check_branch
      %282 = sbr.rel (%p280) target = $region40
    $region39: #{_lambda_.35} parent=5 // pred_region
      // Predicated region
      $region41: #{_lambda_.35} parent=39 // pred_check
        %p283 = pneg %p36
      $region42: #{_lambda_.35} parent=39 // pred_check_branch
        %285 = sbr.rel (%p283) target = $region44
      $region43: #{_lambda_.35} parent=39 // pred_region
        %p286 = scmp.lt.s32.totalorder %s16, 1
        %s287 = scalar_select %p286, %s16, 1
        %s288 = smul.addr %s287, 4
        %s289 = scalar_lea.vmem %s0, %s288
      $region44: #{_lambda_.35} parent=39 // pred_fallthru
        _
      // Predicated region
      $region45: #{_lambda_.35} parent=39 // pred_check
        %p290 = pneg %p62
      $region46: #{_lambda_.35} parent=39 // pred_check_branch
        %292 = sbr.rel (%p290) target = $region48
      $region47: #{_lambda_.35} parent=39 // pred_region
        %p293 = scmp.lt.s32.totalorder %s16, 1
        %s294 = scalar_select %p293, %s16, 1
        %s295 = smul.addr %s294, 4
        %s296 = scalar_lea.vmem %s1, %s295
      $region48: #{_lambda_.35} parent=39 // pred_fallthru
        _
    $region40: #{_lambda_.35} parent=5 // pred_fallthru
      _
    %p297 = scmp.le.s32.totalorder 1, %s16
    %p298 = scmp.lt.s32.totalorder %s16, 3
    %p299 = pnand %p297, %p298
    %p300 = pneg %p299
    // Predicated region
    $region49: #{_lambda_.35} parent=5 // pred_check
      _
    $region50: #{_lambda_.35} parent=5 // pred_check_branch
      %302 = sbr.rel (%p299) target = $region52
    $region51: #{_lambda_.35} parent=5 // pred_region
      %s303 = ssub.s32 %s16, 1
      %p304 = scmp.lt.s32.totalorder %s21, 1
      %s305 = scalar_select %p304, %s21, 1
      %s306 = smul.addr %s305, 4
      %s307 = scalar_lea.vmem %s0, %s306
      %p308 = pneg %p42
      %p309 = pneg %p39
      %p310 = scmp.lt.s32.totalorder %s21, 1
      %s311 = scalar_select %p310, %s21, 1
      %s312 = smul.addr %s311, 4
      %s313 = scalar_lea.vmem %s1, %s312
      %p314 = pneg %p68
      %p315 = pneg %p65
      %p316 = pneg %p89
      %p317 = pneg %p86
      %p318 = pneg %p110
      %p319 = pneg %p107
      %p320 = pneg %p131
      %p321 = pneg %p128
      %p322 = pneg %p152
      %p323 = pneg %p149
      %p324 = pneg %p173
      %p325 = pneg %p170
      %p326 = pneg %p194
      %p327 = pneg %p191
      %p328 = pneg %p220
      %p329 = pneg %p217
      %p330 = scmp.lt.s32.totalorder %s21, 1
      %s331 = scalar_select %p330, %s21, 1
      %s332 = smul.addr %s331, 4
      %s333 = scalar_lea.vmem %s8, %s332
      %p334 = pneg %p246
      %p335 = pneg %p243
      %p336 = scmp.lt.s32.totalorder %s21, 1
      %s337 = scalar_select %p336, %s21, 1
      %s338 = smul.addr %s337, 4
      %s339 = scalar_lea.vmem %s9, %s338
      %p340 = scmp.lt.s32.totalorder %s21, 1
      %s341 = scalar_select %p340, %s21, 1
      %s342 = smul.addr %s341, 4
      %s343 = scalar_lea.vmem %s0, %s342
      %p344 = scmp.lt.s32.totalorder %s21, 1
      %s345 = scalar_select %p344, %s21, 1
      %s346 = smul.addr %s345, 4
      %s347 = scalar_lea.vmem %s1, %s346
      %p348 = scmp.lt.s32.totalorder %s21, 1
      %s349 = scalar_select %p348, %s21, 1
      %s350 = smul.addr %s349, 4
      %s351 = scalar_lea.vmem %s8, %s350
      %p352 = scmp.lt.s32.totalorder %s21, 1
      %s353 = scalar_select %p352, %s21, 1
      %s354 = smul.addr %s353, 4
      %s355 = scalar_lea.vmem %s9, %s354
      %v357 = vld [vmem:[%s343] sm:$0xf]
      %v358 = vld [vmem:[%s347] sm:$0xf]
      %v359 = vadd.bf16 %v357, %v358
      %v360 = vld [vmem:[%s2] sm:$0xf]
      %v361 = vld [vmem:[%s2 + $0x4] sm:$0xf]
      %v362 = vld [vmem:[%s2 + $0x8] sm:$0xf]
      %v363 = vld [vmem:[%s2 + $0xc] sm:$0xf]
      %v364 = vld [vmem:[%s3] sm:$0x1]
      %v366 = vlaneseq
      %v367 = vshrl.u32 %v366, 7
      %v368 = vsub.s32 0, %v367
      %v369 = vrot.slane %v364, %v368
      %v375 = vunpack.c.l.b16 %v360
      %v376 = vunpack.c.l.b16 %v361
      %v377 = vunpack.c.l.b16 %v362
      %v378 = vunpack.c.l.b16 %v363
      %v379 = vpack.c.b16 %v376, %v375
      %v380 = vpack.c.b16 %v378, %v377
      %vm383 = vcmask 261120
      %v385 = vsel %vm383, %v359, 0
      %387 = vmatprep.subr.bf16.mxu0 0
      %388 = vmatpush1.bf16.msra.mxu0 %v379
      %389 = vmatprep.subr.bf16.mxu0 0
      %390 = vmatpush1.bf16.msra.mxu0 %v380
      %391 = vmatprep.subr.bf16.mxu0 0
      %392 = vmatpush1.bf16.msra.mxu0 0
      %393 = vmatprep.subr.bf16.mxu0 0
      %394 = vmatpush1.bf16.msra.mxu0 0
      %395 = vmatprep.subr.bf16.mxu0 0
      %396 = vmatpush1.bf16.msra.mxu0 0
      %397 = vmatprep.subr.bf16.mxu0 0
      %398 = vmatpush1.bf16.msra.mxu0 0
      %399 = vmatprep.subr.bf16.mxu0 0
      %400 = vmatpush1.bf16.msra.mxu0 0
      %401 = vmatprep.subr.bf16.mxu0 0
      %402 = vmatpush1.bf16.msra.mxu0 0
      %403 = vmatprep.subr.bf16.mxu0 0
      %404 = vmatpush1.bf16.msra.mxu0 0
      %405 = vmatprep.subr.bf16.mxu0 0
      %406 = vmatpush1.bf16.msra.mxu0 0
      %407 = vmatprep.subr.bf16.mxu0 0
      %408 = vmatpush1.bf16.msra.mxu0 0
      %409 = vmatprep.subr.bf16.mxu0 0
      %410 = vmatpush1.bf16.msra.mxu0 0
      %411 = vmatprep.subr.bf16.mxu0 0
      %412 = vmatpush1.bf16.msra.mxu0 0
      %413 = vmatprep.subr.bf16.mxu0 0
      %414 = vmatpush1.bf16.msra.mxu0 0
      %415 = vmatprep.subr.bf16.mxu0 0
      %416 = vmatpush1.bf16.msra.mxu0 0
      %417 = vmatprep.subr.bf16.mxu0 0
      %418 = vmatpush1.bf16.msra.mxu0 0
      %419 = vmatprep.mubr.bf16.mxu0 0
      %420 = vmatmul.mubr.bf16.gmra.mrb[0].mxu0 %v385
      %v421 = vpop.f32.mrb[0].mxu0
      %v422 = vadd.f32 %v369, %v421
      %v423 = vpop.f32.mrb[0].mxu0
      %v424 = vpop.f32.mrb[0].mxu0
      %v425 = vpop.f32.mrb[0].mxu0
      %426 = vdwg.mxu0
      %v427 = vld [vmem:[%s4] sm:$0xf]
      %v428 = vld [vmem:[%s4 + $0x4] sm:$0xf]
      %v429 = vld [vmem:[%s4 + $0x8] sm:$0xf]
      %v430 = vld [vmem:[%s4 + $0xc] sm:$0xf]
      %v431 = vld [vmem:[%s5] sm:$0x1]
      %v433 = vlaneseq
      %v434 = vshrl.u32 %v433, 7
      %v435 = vsub.s32 0, %v434
      %v436 = vrot.slane %v431, %v435
      %v442 = vunpack.c.l.b16 %v427
      %v443 = vunpack.c.l.b16 %v428
      %v444 = vunpack.c.l.b16 %v429
      %v445 = vunpack.c.l.b16 %v430
      %v446 = vpack.c.b16 %v443, %v442
      %v447 = vpack.c.b16 %v445, %v444
      %450 = vmatprep.subr.bf16.mxu0 0
      %451 = vmatpush1.bf16.msra.mxu0 %v446
      %452 = vmatprep.subr.bf16.mxu0 0
      %453 = vmatpush1.bf16.msra.mxu0 %v447
      %454 = vmatprep.subr.bf16.mxu0 0
      %455 = vmatpush1.bf16.msra.mxu0 0
      %456 = vmatprep.subr.bf16.mxu0 0
      %457 = vmatpush1.bf16.msra.mxu0 0
      %458 = vmatprep.subr.bf16.mxu0 0
      %459 = vmatpush1.bf16.msra.mxu0 0
      %460 = vmatprep.subr.bf16.mxu0 0
      %461 = vmatpush1.bf16.msra.mxu0 0
      %462 = vmatprep.subr.bf16.mxu0 0
      %463 = vmatpush1.bf16.msra.mxu0 0
      %464 = vmatprep.subr.bf16.mxu0 0
      %465 = vmatpush1.bf16.msra.mxu0 0
      %466 = vmatprep.subr.bf16.mxu0 0
      %467 = vmatpush1.bf16.msra.mxu0 0
      %468 = vmatprep.subr.bf16.mxu0 0
      %469 = vmatpush1.bf16.msra.mxu0 0
      %470 = vmatprep.subr.bf16.mxu0 0
      %471 = vmatpush1.bf16.msra.mxu0 0
      %472 = vmatprep.subr.bf16.mxu0 0
      %473 = vmatpush1.bf16.msra.mxu0 0
      %474 = vmatprep.subr.bf16.mxu0 0
      %475 = vmatpush1.bf16.msra.mxu0 0
      %476 = vmatprep.subr.bf16.mxu0 0
      %477 = vmatpush1.bf16.msra.mxu0 0
      %478 = vmatprep.subr.bf16.mxu0 0
      %479 = vmatpush1.bf16.msra.mxu0 0
      %480 = vmatprep.subr.bf16.mxu0 0
      %481 = vmatpush1.bf16.msra.mxu0 0
      %482 = vmatprep.mubr.bf16.mxu0 0
      %483 = vmatmul.mubr.bf16.gmra.mrb[0].mxu0 %v385
      %v484 = vpop.f32.mrb[0].mxu0
      %v485 = vadd.f32 %v436, %v484
      %v486 = vpop.f32.mrb[0].mxu0
      %v487 = vpop.f32.mrb[0].mxu0
      %v488 = vpop.f32.mrb[0].mxu0
      %489 = vdwg.mxu0
      %v490 = vld [vmem:[%s6] sm:$0xf]
      %v491 = vld [vmem:[%s6 + $0x4] sm:$0xf]
      %v492 = vld [vmem:[%s6 + $0x8] sm:$0xf]
      %v493 = vld [vmem:[%s6 + $0xc] sm:$0xf]
      %v494 = vld [vmem:[%s7] sm:$0x1]
      %v496 = vlaneseq
      %v497 = vshrl.u32 %v496, 7
      %v498 = vsub.s32 0, %v497
      %v499 = vrot.slane %v494, %v498
      %v505 = vunpack.c.l.b16 %v490
      %v506 = vunpack.c.l.b16 %v491
      %v507 = vunpack.c.l.b16 %v492
      %v508 = vunpack.c.l.b16 %v493
      %v509 = vpack.c.b16 %v506, %v505
      %v510 = vpack.c.b16 %v508, %v507
      %v514 = vsel %vm383, %v357, 0
      %516 = vmatprep.subr.bf16.mxu0 0
      %517 = vmatpush1.bf16.msra.mxu0 %v509
      %518 = vmatprep.subr.bf16.mxu0 0
      %519 = vmatpush1.bf16.msra.mxu0 %v510
      %520 = vmatprep.subr.bf16.mxu0 0
      %521 = vmatpush1.bf16.msra.mxu0 0
      %522 = vmatprep.subr.bf16.mxu0 0
      %523 = vmatpush1.bf16.msra.mxu0 0
      %524 = vmatprep.subr.bf16.mxu0 0
      %525 = vmatpush1.bf16.msra.mxu0 0
      %526 = vmatprep.subr.bf16.mxu0 0
      %527 = vmatpush1.bf16.msra.mxu0 0
      %528 = vmatprep.subr.bf16.mxu0 0
      %529 = vmatpush1.bf16.msra.mxu0 0
      %530 = vmatprep.subr.bf16.mxu0 0
      %531 = vmatpush1.bf16.msra.mxu0 0
      %532 = vmatprep.subr.bf16.mxu0 0
      %533 = vmatpush1.bf16.msra.mxu0 0
      %534 = vmatprep.subr.bf16.mxu0 0
      %535 = vmatpush1.bf16.msra.mxu0 0
      %536 = vmatprep.subr.bf16.mxu0 0
      %537 = vmatpush1.bf16.msra.mxu0 0
      %538 = vmatprep.subr.bf16.mxu0 0
      %539 = vmatpush1.bf16.msra.mxu0 0
      %540 = vmatprep.subr.bf16.mxu0 0
      %541 = vmatpush1.bf16.msra.mxu0 0
      %542 = vmatprep.subr.bf16.mxu0 0
      %543 = vmatpush1.bf16.msra.mxu0 0
      %544 = vmatprep.subr.bf16.mxu0 0
      %545 = vmatpush1.bf16.msra.mxu0 0
      %546 = vmatprep.subr.bf16.mxu0 0
      %547 = vmatpush1.bf16.msra.mxu0 0
      %548 = vmatprep.mubr.bf16.mxu0 0
      %549 = vmatmul.mubr.bf16.gmra.mrb[0].mxu0 %v514
      %v550 = vpop.f32.mrb[0].mxu0
      %v551 = vadd.f32 %v499, %v550
      %v552 = vpop.f32.mrb[0].mxu0
      %v553 = vpop.f32.mrb[0].mxu0
      %v554 = vpop.f32.mrb[0].mxu0
      %555 = vdwg.mxu0
      %v556 = vpack.c.bf16 %v422, %v422
      %vm557 = vcmask 257024
      %558 = vst.msk [vmem:[%s351] sm:$0xf] %vm557, %v556
      %v559 = vpack.c.bf16 %v485, %v485
      %560 = vst.msk [vmem:[%s355] sm:$0xf] %vm557, %v559
      %v561 = vpack.c.bf16 %v551, %v551
      %v563 = vunpack.c.l.b16 %v561
      %v564 = vpack.c.b16 %v563, %v563
      %565 = vrot.lane.b32.xlu0 %v564, 32
      %v566 = vpop.permute.xlu0 %565
      %vm568 = vcmask 519424
      %569 = vst.msk [vmem:[%s355] sm:$0xf] %vm568, %v566
      %p570 = scmp.lt.s32.totalorder %s21, 1
      %s571 = scalar_select %p570, %s21, 1
      %s572 = smul.addr %s571, 4
      %s573 = scalar_lea.vmem %s8, %s572
      %p574 = scmp.lt.s32.totalorder %s21, 1
      %s575 = scalar_select %p574, %s21, 1
      %s576 = smul.addr %s575, 4
      %s577 = scalar_lea.vmem %s9, %s576
      // Predicated region
      $region53: #{_lambda_.35} parent=51 // pred_check
        %p578 = pneg %p217
      $region54: #{_lambda_.35} parent=51 // pred_check_branch
        %580 = sbr.rel (%p578) target = $region56
      $region55: #{_lambda_.35} parent=51 // pred_region
        _
      $region56: #{_lambda_.35} parent=51 // pred_fallthru
        _
      // Predicated region
      $region57: #{_lambda_.35} parent=51 // pred_check
        %p581 = pneg %p243
      $region58: #{_lambda_.35} parent=51 // pred_check_branch
        %583 = sbr.rel (%p581) target = $region60
      $region59: #{_lambda_.35} parent=51 // pred_region
        _
      $region60: #{_lambda_.35} parent=51 // pred_fallthru
        _
    $region52: #{_lambda_.35} parent=5 // pred_fallthru
      _
    %p584 = scmp.le.s32.totalorder 2, %s16
    // Predicated region
    $region61: #{_lambda_.35} parent=5 // pred_check
      %p585 = pneg %p584
    $region62: #{_lambda_.35} parent=5 // pred_check_branch
      %587 = sbr.rel (%p585) target = $region64
    $region63: #{_lambda_.35} parent=5 // pred_region
      %s588 = ssub.s32 %s16, 2
      // Predicated region
      $region65: #{_lambda_.35} parent=63 // pred_check
        %p589 = pneg %p223
      $region66: #{_lambda_.35} parent=63 // pred_check_branch
        %591 = sbr.rel (%p589) target = $region68
      $region67: #{_lambda_.35} parent=63 // pred_region
        %p592 = scmp.lt.s32.totalorder %s22, 1
        %s593 = scalar_select %p592, %s22, 1
        %s594 = smul.addr %s593, 4
        %s595 = scalar_lea.vmem %s8, %s594
      $region68: #{_lambda_.35} parent=63 // pred_fallthru
        _
      // Predicated region
      $region69: #{_lambda_.35} parent=63 // pred_check
        %p596 = pneg %p249
      $region70: #{_lambda_.35} parent=63 // pred_check_branch
        %598 = sbr.rel (%p596) target = $region72
      $region71: #{_lambda_.35} parent=63 // pred_region
        %p599 = scmp.lt.s32.totalorder %s22, 1
        %s600 = scalar_select %p599, %s22, 1
        %s601 = smul.addr %s600, 4
        %s602 = scalar_lea.vmem %s9, %s601
      $region72: #{_lambda_.35} parent=63 // pred_fallthru
        _
    $region64: #{_lambda_.35} parent=5 // pred_fallthru
      _
  $region6: #{_lambda_.35} parent=0 // loop_footer
    %s20 = sadd.s32 1, %s16
  $region7: #{_lambda_.35} parent=0 // loop_footer_branch
    %15 = sbr.rel target = $region3
  $region8: #{_lambda_.35} parent=0 // loop_exit
    _

// kernel: _lambda_.36
$region0: #{_lambda_.36}
  #allocation0 [shape = 'u32[]', space=smem, size = 0x4, offset = 0x4, fixed_abs, tag = 'smem constant byte address 0x4 - core index']
  #allocation1 [shape = 'u32[144,128]{1,0:T(1,128)}', space=vmem, size = 0x12000, scoped, tag = 'internal scratch']
  %s0 = inlined_call_operand.vmem [shape: bf16[2,8,32], index: 0, kind: input, shape index: {}]
  %s1 = inlined_call_operand.vmem [shape: bf16[2,8,64], index: 1, kind: input, shape index: {}]
  %s2 = inlined_call_operand.vmem [shape: bf16[2,8,32], index: 2, kind: output, shape index: {}]
  %s3 = sld [smem:[#allocation0]]
  $region41: #{_lambda_.36} parent=0
    _
  %s5 = ssub.s32 1, %s3
  %s6 = scalar_select 0, %s5, %s3
  loop: start=0, step=1, limit=4
  $region2: #{_lambda_.36} parent=0 // loop_pre_header
    _
  $region3: #{_lambda_.36} parent=0 // loop_header
    %s8 = sphi 0, %s12
    %p9 = scmp.ge.s32.totalorder %s8, 4
    %s15 = sphi 0, %s27
    %s16 = sphi 0, %s23
    %s17 = sphi 0, %s15
    %s18 = sphi 0, %s16
    %s19 = sphi 0, %s17
    %s20 = sphi 0, %s18
    %s32 = sphi 0, %s34
    %s35 = sphi 0, %s32
    %s36 = sphi 0, %s35
    %s52 = sphi 0, %s36
    %s58 = sphi 0, %s60
    %s61 = sphi 0, %s58
    %s62 = sphi 0, %s61
    %s78 = sphi 0, %s62
    %s86 = sphi 0, %s88
    %s89 = sphi 0, %s86
    %s90 = sphi 0, %s89
    %s106 = sphi 0, %s90
  $region4: #{_lambda_.36} parent=0 // loop_header_branch
    %11 = sbr.rel (%p9) target = $region8
  $region5: #{_lambda_.36} parent=0 // loop_body
    %s13 = ssub.s32 %s8, 1
    %s14 = ssub.s32 %s8, 2
    %s21 = sadd.s32 1, %s16
    %p22 = scmp.ge.s32.totalorder %s21, 1
    %s23 = scalar_select %p22, 0, %s21
    %s24 = sadd.s32 1, %s15
    %s25 = scalar_select %p22, %s24, %s15
    %p26 = scmp.ge.s32.totalorder %s25, 2
    %s27 = scalar_select %p26, 0, %s25
    %s28 = ssub.s32 %s15, %s27
    %s29 = ssub.s32 %s16, %s23
    %s30 = sor.u32 %s28, %s29
    %p31 = scmp.eq.s32.totalorder %s30, 0
    %s33 = sadd.s32 %s32, 1
    %s34 = scalar_select %p31, %s32, %s33
    %p37 = pneg %p31
    %p38 = scmp.eq.s32.totalorder %s8, 1
    %p39 = por %p37, %p38
    %p40 = scmp.ne.s32.totalorder %s32, %s35
    %p41 = scmp.eq.s32.totalorder %s8, 0
    %p42 = por %p40, %p41
    %p43 = scmp.ne.s32.totalorder %s32, %s35
    %p44 = scmp.eq.s32.totalorder %s13, 1
    %p45 = por %p43, %p44
    %p46 = scmp.ne.s32.totalorder %s35, %s36
    %p47 = scmp.eq.s32.totalorder %s13, 0
    %p48 = por %p46, %p47
    %p49 = scmp.ne.s32.totalorder %s35, %s36
    %p50 = scmp.eq.s32.totalorder %s14, 1
    %p51 = por %p49, %p50
    %p53 = scmp.ne.s32.totalorder %s36, %s52
    %p54 = scmp.eq.s32.totalorder %s14, 0
    %p55 = por %p53, %p54
    %s56 = ssub.s32 %s15, %s27
    %p57 = scmp.eq.s32.totalorder %s56, 0
    %s59 = sadd.s32 %s58, 1
    %s60 = scalar_select %p57, %s58, %s59
    %p63 = pneg %p57
    %p64 = scmp.eq.s32.totalorder %s8, 1
    %p65 = por %p63, %p64
    %p66 = scmp.ne.s32.totalorder %s58, %s61
    %p67 = scmp.eq.s32.totalorder %s8, 0
    %p68 = por %p66, %p67
    %p69 = scmp.ne.s32.totalorder %s58, %s61
    %p70 = scmp.eq.s32.totalorder %s13, 1
    %p71 = por %p69, %p70
    %p72 = scmp.ne.s32.totalorder %s61, %s62
    %p73 = scmp.eq.s32.totalorder %s13, 0
    %p74 = por %p72, %p73
    %p75 = scmp.ne.s32.totalorder %s61, %s62
    %p76 = scmp.eq.s32.totalorder %s14, 1
    %p77 = por %p75, %p76
    %p79 = scmp.ne.s32.totalorder %s62, %s78
    %p80 = scmp.eq.s32.totalorder %s14, 0
    %p81 = por %p79, %p80
    %s82 = ssub.s32 %s15, %s27
    %s83 = ssub.s32 %s16, %s23
    %s84 = sor.u32 %s82, %s83
    %p85 = scmp.eq.s32.totalorder %s84, 0
    %s87 = sadd.s32 %s86, 1
    %s88 = scalar_select %p85, %s86, %s87
    %p91 = pneg %p85
    %p92 = scmp.eq.s32.totalorder %s8, 1
    %p93 = por %p91, %p92
    %p94 = scmp.ne.s32.totalorder %s86, %s89
    %p95 = scmp.eq.s32.totalorder %s8, 0
    %p96 = por %p94, %p95
    %p97 = scmp.ne.s32.totalorder %s86, %s89
    %p98 = scmp.eq.s32.totalorder %s13, 1
    %p99 = por %p97, %p98
    %p100 = scmp.ne.s32.totalorder %s89, %s90
    %p101 = scmp.eq.s32.totalorder %s13, 0
    %p102 = por %p100, %p101
    %p103 = scmp.ne.s32.totalorder %s89, %s90
    %p104 = scmp.eq.s32.totalorder %s14, 1
    %p105 = por %p103, %p104
    %p107 = scmp.ne.s32.totalorder %s90, %s106
    %p108 = scmp.eq.s32.totalorder %s14, 0
    %p109 = por %p107, %p108
    %p110 = scmp.le.s32.totalorder 1, %s8
    %p111 = scmp.lt.s32.totalorder %s8, 3
    %p112 = pnand %p110, %p111
    %p113 = pneg %p112
    // Predicated region
    $region9: #{_lambda_.36} parent=5 // pred_check
      _
    $region10: #{_lambda_.36} parent=5 // pred_check_branch
      %115 = sbr.rel (%p112) target = $region12
    $region11: #{_lambda_.36} parent=5 // pred_region
      %s116 = ssub.s32 %s8, 1
    $region12: #{_lambda_.36} parent=5 // pred_fallthru
      _
    %p117 = scmp.lt.s32.totalorder %s8, 2
    // Predicated region
    $region13: #{_lambda_.36} parent=5 // pred_check
      %p118 = pneg %p117
    $region14: #{_lambda_.36} parent=5 // pred_check_branch
      %120 = sbr.rel (%p118) target = $region16
    $region15: #{_lambda_.36} parent=5 // pred_region
      // Predicated region
      $region17: #{_lambda_.36} parent=15 // pred_check
        %p121 = pneg %p42
      $region18: #{_lambda_.36} parent=15 // pred_check_branch
        %123 = sbr.rel (%p121) target = $region20
      $region19: #{_lambda_.36} parent=15 // pred_region
        %p124 = scmp.lt.s32.totalorder %s15, 1
        %s125 = scalar_select %p124, %s15, 1
        %p126 = scmp.lt.s32.totalorder %s16, 0
        %s127 = scalar_select %p126, %s16, 0
        %s128 = sadd.s32 %s127, %s125
        %s129 = smul.addr %s128, 4
        %s130 = scalar_lea.vmem %s0, %s129
      $region20: #{_lambda_.36} parent=15 // pred_fallthru
        _
      // Predicated region
      $region21: #{_lambda_.36} parent=15 // pred_check
        %p131 = pneg %p68
      $region22: #{_lambda_.36} parent=15 // pred_check_branch
        %133 = sbr.rel (%p131) target = $region24
      $region23: #{_lambda_.36} parent=15 // pred_region
        %p134 = scmp.lt.s32.totalorder %s15, 1
        %s135 = scalar_select %p134, %s15, 1
        %s136 = smul.addr %s135, 4
        %s137 = scalar_lea.vmem %s1, %s136
      $region24: #{_lambda_.36} parent=15 // pred_fallthru
        _
    $region16: #{_lambda_.36} parent=5 // pred_fallthru
      _
    %p138 = scmp.le.s32.totalorder 1, %s8
    %p139 = scmp.lt.s32.totalorder %s8, 3
    %p140 = pnand %p138, %p139
    %p141 = pneg %p140
    // Predicated region
    $region25: #{_lambda_.36} parent=5 // pred_check
      _
    $region26: #{_lambda_.36} parent=5 // pred_check_branch
      %143 = sbr.rel (%p140) target = $region28
    $region27: #{_lambda_.36} parent=5 // pred_region
      %s144 = ssub.s32 %s8, 1
      %p145 = scmp.lt.s32.totalorder %s17, 1
      %s146 = scalar_select %p145, %s17, 1
      %p147 = scmp.lt.s32.totalorder %s18, 0
      %s148 = scalar_select %p147, %s18, 0
      %s149 = sadd.s32 %s148, %s146
      %s150 = smul.addr %s149, 4
      %s151 = scalar_lea.vmem %s0, %s150
      %p152 = pneg %p48
      %p153 = pneg %p45
      %p154 = scmp.lt.s32.totalorder %s17, 1
      %s155 = scalar_select %p154, %s17, 1
      %s156 = smul.addr %s155, 4
      %s157 = scalar_lea.vmem %s1, %s156
      %p158 = pneg %p74
      %p159 = pneg %p71
      %p160 = pneg %p102
      %p161 = pneg %p99
      %p162 = scmp.lt.s32.totalorder %s17, 1
      %s163 = scalar_select %p162, %s17, 1
      %p164 = scmp.lt.s32.totalorder %s18, 0
      %s165 = scalar_select %p164, %s18, 0
      %s166 = sadd.s32 %s165, %s163
      %s167 = smul.addr %s166, 4
      %s168 = scalar_lea.vmem %s2, %s167
      %p169 = scmp.lt.s32.totalorder %s17, 1
      %s170 = scalar_select %p169, %s17, 1
      %p171 = scmp.lt.s32.totalorder %s18, 0
      %s172 = scalar_select %p171, %s18, 0
      %s173 = sadd.s32 %s172, %s170
      %s174 = smul.addr %s173, 4
      %s175 = scalar_lea.vmem %s0, %s174
      %p176 = scmp.lt.s32.totalorder %s17, 1
      %s177 = scalar_select %p176, %s17, 1
      %s178 = smul.addr %s177, 4
      %s179 = scalar_lea.vmem %s1, %s178
      %p180 = scmp.lt.s32.totalorder %s17, 1
      %s181 = scalar_select %p180, %s17, 1
      %p182 = scmp.lt.s32.totalorder %s18, 0
      %s183 = scalar_select %p182, %s18, 0
      %s184 = sadd.s32 %s183, %s181
      %s185 = smul.addr %s184, 4
      %s186 = scalar_lea.vmem %s2, %s185
      %v188 = vld [vmem:[%s175] sm:$0xf]
      %v189 = vld [vmem:[%s179] sm:$0xf]
      %vm190 = vcmask 64512
      %v192 = vsel %vm190, %v188, 0
      %v195 = vsel %vm190, %v189, 0
      %197 = vmatprep.subr.bf16.mxu0 0
      %198 = vmatpush1.bf16.xpose.msra.mxu0 %v195
      %199 = vmatprep.subr.bf16.mxu0 0
      %200 = vmatpush1.bf16.xpose.msra.mxu0 0
      %201 = vmatprep.subr.bf16.mxu0 0
      %202 = vmatpush1.bf16.xpose.msra.mxu0 0
      %203 = vmatprep.subr.bf16.mxu0 0
      %204 = vmatpush1.bf16.xpose.msra.mxu0 0
      %205 = vmatprep.subr.bf16.mxu0 0
      %206 = vmatpush1.bf16.xpose.msra.mxu0 0
      %207 = vmatprep.subr.bf16.mxu0 0
      %208 = vmatpush1.bf16.xpose.msra.mxu0 0
      %209 = vmatprep.subr.bf16.mxu0 0
      %210 = vmatpush1.bf16.xpose.msra.mxu0 0
      %211 = vmatprep.subr.bf16.mxu0 0
      %212 = vmatpush1.bf16.xpose.msra.mxu0 0
      %213 = vmatprep.subr.bf16.mxu0 0
      %214 = vmatpush1.bf16.xpose.msra.mxu0 0
      %215 = vmatprep.subr.bf16.mxu0 0
      %216 = vmatpush1.bf16.xpose.msra.mxu0 0
      %217 = vmatprep.subr.bf16.mxu0 0
      %218 = vmatpush1.bf16.xpose.msra.mxu0 0
      %219 = vmatprep.subr.bf16.mxu0 0
      %220 = vmatpush1.bf16.xpose.msra.mxu0 0
      %221 = vmatprep.subr.bf16.mxu0 0
      %222 = vmatpush1.bf16.xpose.msra.mxu0 0
      %223 = vmatprep.subr.bf16.mxu0 0
      %224 = vmatpush1.bf16.xpose.msra.mxu0 0
      %225 = vmatprep.subr.bf16.mxu0 0
      %226 = vmatpush1.bf16.xpose.msra.mxu0 0
      %227 = vmatprep.subr.bf16.mxu0 0
      %228 = vmatpush1.bf16.xpose.msra.mxu0 0
      %229 = vmatprep.mubr.bf16.mxu0 0
      %230 = vmatmul.mubr.bf16.gmra.mrb[0].mxu0 %v192
      %v231 = vpop.f32.mrb[0].mxu0
      %v232 = vadd.f32 0.0, %v231
      %v233 = vpop.f32.mrb[0].mxu0
      %v234 = vpop.f32.mrb[0].mxu0
      %v235 = vpop.f32.mrb[0].mxu0
      %236 = vdwg.mxu0
      %v237 = vsel %vm190, %v232, -inf
      %238 = vmax.xlane.f32.xlu0 %v237
      %v239 = vpop.xlane.xlu0 %238
      %v240 = vsub.f32 %v232, %v239
      %v241 = vmul.f32 %v240, 1.442695
      %v242 = vpow.pop %v241
      %v243 = vsel %vm190, %v242, 0.0
      %244 = vadd.xlane.f32.xlu0 %v243
      %v245 = vpop.xlane.xlu0 %244
      %v246 = vrcp.pop %v245
      %v247 = vmul.f32 %v242, %v246
      %v248 = vpack.c.bf16 %v247, %v247
      %v250 = vunpack.c.l.b16 %v189
      %v251 = vpack.c.b16 %v250, %v250
      %252 = vrot.lane.b32.xlu0 %v251, 96
      %v253 = vpop.permute.xlu0 %252
      %v255 = vsel %vm190, %v248, 0
      %vm257 = vcmask 1043456
      %v259 = vsel %vm257, %v253, 0
      %261 = vmatprep.subr.bf16.mxu0 0
      %262 = vmatpush1.bf16.msra.mxu0 %v259
      %263 = vmatprep.subr.bf16.mxu0 0
      %264 = vmatpush1.bf16.msra.mxu0 0
      %265 = vmatprep.subr.bf16.mxu0 0
      %266 = vmatpush1.bf16.msra.mxu0 0
      %267 = vmatprep.subr.bf16.mxu0 0
      %268 = vmatpush1.bf16.msra.mxu0 0
      %269 = vmatprep.subr.bf16.mxu0 0
      %270 = vmatpush1.bf16.msra.mxu0 0
      %271 = vmatprep.subr.bf16.mxu0 0
      %272 = vmatpush1.bf16.msra.mxu0 0
      %273 = vmatprep.subr.bf16.mxu0 0
      %274 = vmatpush1.bf16.msra.mxu0 0
      %275 = vmatprep.subr.bf16.mxu0 0
      %276 = vmatpush1.bf16.msra.mxu0 0
      %277 = vmatprep.subr.bf16.mxu0 0
      %278 = vmatpush1.bf16.msra.mxu0 0
      %279 = vmatprep.subr.bf16.mxu0 0
      %280 = vmatpush1.bf16.msra.mxu0 0
      %281 = vmatprep.subr.bf16.mxu0 0
      %282 = vmatpush1.bf16.msra.mxu0 0
      %283 = vmatprep.subr.bf16.mxu0 0
      %284 = vmatpush1.bf16.msra.mxu0 0
      %285 = vmatprep.subr.bf16.mxu0 0
      %286 = vmatpush1.bf16.msra.mxu0 0
      %287 = vmatprep.subr.bf16.mxu0 0
      %288 = vmatpush1.bf16.msra.mxu0 0
      %289 = vmatprep.subr.bf16.mxu0 0
      %290 = vmatpush1.bf16.msra.mxu0 0
      %291 = vmatprep.subr.bf16.mxu0 0
      %292 = vmatpush1.bf16.msra.mxu0 0
      %293 = vmatprep.mubr.bf16.mxu0 0
      %294 = vmatmul.mubr.bf16.gmra.mrb[0].mxu0 %v255
      %v295 = vpop.f32.mrb[0].mxu0
      %v296 = vadd.f32 0.0, %v295
      %v297 = vpop.f32.mrb[0].mxu0
      %v298 = vpop.f32.mrb[0].mxu0
      %v299 = vpop.f32.mrb[0].mxu0
      %300 = vdwg.mxu0
      %v302 = vunpack.c.l.b16 %v188
      %v303 = vpack.c.b16 %v302, %v302
      %304 = vrot.lane.b32.xlu0 %v303, 120
      %v305 = vpop.permute.xlu0 %304
      %306 = vrot.lane.b32.xlu0 %v251, 120
      %v307 = vpop.permute.xlu0 %306
      %v309 = vsel %vm190, %v305, 0
      %v312 = vsel %vm190, %v307, 0
      %314 = vmatprep.subr.bf16.mxu0 0
      %315 = vmatpush1.bf16.xpose.msra.mxu0 %v312
      %316 = vmatprep.subr.bf16.mxu0 0
      %317 = vmatpush1.bf16.xpose.msra.mxu0 0
      %318 = vmatprep.subr.bf16.mxu0 0
      %319 = vmatpush1.bf16.xpose.msra.mxu0 0
      %320 = vmatprep.subr.bf16.mxu0 0
      %321 = vmatpush1.bf16.xpose.msra.mxu0 0
      %322 = vmatprep.subr.bf16.mxu0 0
      %323 = vmatpush1.bf16.xpose.msra.mxu0 0
      %324 = vmatprep.subr.bf16.mxu0 0
      %325 = vmatpush1.bf16.xpose.msra.mxu0 0
      %326 = vmatprep.subr.bf16.mxu0 0
      %327 = vmatpush1.bf16.xpose.msra.mxu0 0
      %328 = vmatprep.subr.bf16.mxu0 0
      %329 = vmatpush1.bf16.xpose.msra.mxu0 0
      %330 = vmatprep.subr.bf16.mxu0 0
      %331 = vmatpush1.bf16.xpose.msra.mxu0 0
      %332 = vmatprep.subr.bf16.mxu0 0
      %333 = vmatpush1.bf16.xpose.msra.mxu0 0
      %334 = vmatprep.subr.bf16.mxu0 0
      %335 = vmatpush1.bf16.xpose.msra.mxu0 0
      %336 = vmatprep.subr.bf16.mxu0 0
      %337 = vmatpush1.bf16.xpose.msra.mxu0 0
      %338 = vmatprep.subr.bf16.mxu0 0
      %339 = vmatpush1.bf16.xpose.msra.mxu0 0
      %340 = vmatprep.subr.bf16.mxu0 0
      %341 = vmatpush1.bf16.xpose.msra.mxu0 0
      %342 = vmatprep.subr.bf16.mxu0 0
      %343 = vmatpush1.bf16.xpose.msra.mxu0 0
      %344 = vmatprep.subr.bf16.mxu0 0
      %345 = vmatpush1.bf16.xpose.msra.mxu0 0
      %346 = vmatprep.mubr.bf16.mxu0 0
      %347 = vmatmul.mubr.bf16.gmra.mrb[0].mxu0 %v309
      %v348 = vpop.f32.mrb[0].mxu0
      %v349 = vadd.f32 0.0, %v348
      %v350 = vpop.f32.mrb[0].mxu0
      %v351 = vpop.f32.mrb[0].mxu0
      %v352 = vpop.f32.mrb[0].mxu0
      %353 = vdwg.mxu0
      %v354 = vsel %vm190, %v349, -inf
      %355 = vmax.xlane.f32.xlu0 %v354
      %v356 = vpop.xlane.xlu0 %355
      %v357 = vsub.f32 %v349, %v356
      %v358 = vmul.f32 %v357, 1.442695
      %v359 = vpow.pop %v358
      %v360 = vsel %vm190, %v359, 0.0
      %361 = vadd.xlane.f32.xlu0 %v360
      %v362 = vpop.xlane.xlu0 %361
      %v363 = vrcp.pop %v362
      %v364 = vmul.f32 %v359, %v363
      %v365 = vpack.c.bf16 %v364, %v364
      %366 = vrot.lane.b32.xlu0 %v251, 88
      %v367 = vpop.permute.xlu0 %366
      %v369 = vsel %vm190, %v365, 0
      %v372 = vsel %vm257, %v367, 0
      %374 = vmatprep.subr.bf16.mxu0 0
      %375 = vmatpush1.bf16.msra.mxu0 %v372
      %376 = vmatprep.subr.bf16.mxu0 0
      %377 = vmatpush1.bf16.msra.mxu0 0
      %378 = vmatprep.subr.bf16.mxu0 0
      %379 = vmatpush1.bf16.msra.mxu0 0
      %380 = vmatprep.subr.bf16.mxu0 0
      %381 = vmatpush1.bf16.msra.mxu0 0
      %382 = vmatprep.subr.bf16.mxu0 0
      %383 = vmatpush1.bf16.msra.mxu0 0
      %384 = vmatprep.subr.bf16.mxu0 0
      %385 = vmatpush1.bf16.msra.mxu0 0
      %386 = vmatprep.subr.bf16.mxu0 0
      %387 = vmatpush1.bf16.msra.mxu0 0
      %388 = vmatprep.subr.bf16.mxu0 0
      %389 = vmatpush1.bf16.msra.mxu0 0
      %390 = vmatprep.subr.bf16.mxu0 0
      %391 = vmatpush1.bf16.msra.mxu0 0
      %392 = vmatprep.subr.bf16.mxu0 0
      %393 = vmatpush1.bf16.msra.mxu0 0
      %394 = vmatprep.subr.bf16.mxu0 0
      %395 = vmatpush1.bf16.msra.mxu0 0
      %396 = vmatprep.subr.bf16.mxu0 0
      %397 = vmatpush1.bf16.msra.mxu0 0
      %398 = vmatprep.subr.bf16.mxu0 0
      %399 = vmatpush1.bf16.msra.mxu0 0
      %400 = vmatprep.subr.bf16.mxu0 0
      %401 = vmatpush1.bf16.msra.mxu0 0
      %402 = vmatprep.subr.bf16.mxu0 0
      %403 = vmatpush1.bf16.msra.mxu0 0
      %404 = vmatprep.subr.bf16.mxu0 0
      %405 = vmatpush1.bf16.msra.mxu0 0
      %406 = vmatprep.mubr.bf16.mxu0 0
      %407 = vmatmul.mubr.bf16.gmra.mrb[0].mxu0 %v369
      %v408 = vpop.f32.mrb[0].mxu0
      %v409 = vadd.f32 0.0, %v408
      %v410 = vpop.f32.mrb[0].mxu0
      %v411 = vpop.f32.mrb[0].mxu0
      %v412 = vpop.f32.mrb[0].mxu0
      %413 = vdwg.mxu0
      %414 = vrot.lane.b32.xlu0 %v303, 112
      %v415 = vpop.permute.xlu0 %414
      %416 = vrot.lane.b32.xlu0 %v251, 112
      %v417 = vpop.permute.xlu0 %416
      %v419 = vsel %vm190, %v415, 0
      %v422 = vsel %vm190, %v417, 0
      %424 = vmatprep.subr.bf16.mxu0 0
      %425 = vmatpush1.bf16.xpose.msra.mxu0 %v422
      %426 = vmatprep.subr.bf16.mxu0 0
      %427 = vmatpush1.bf16.xpose.msra.mxu0 0
      %428 = vmatprep.subr.bf16.mxu0 0
      %429 = vmatpush1.bf16.xpose.msra.mxu0 0
      %430 = vmatprep.subr.bf16.mxu0 0
      %431 = vmatpush1.bf16.xpose.msra.mxu0 0
      %432 = vmatprep.subr.bf16.mxu0 0
      %433 = vmatpush1.bf16.xpose.msra.mxu0 0
      %434 = vmatprep.subr.bf16.mxu0 0
      %435 = vmatpush1.bf16.xpose.msra.mxu0 0
      %436 = vmatprep.subr.bf16.mxu0 0
      %437 = vmatpush1.bf16.xpose.msra.mxu0 0
      %438 = vmatprep.subr.bf16.mxu0 0
      %439 = vmatpush1.bf16.xpose.msra.mxu0 0
      %440 = vmatprep.subr.bf16.mxu0 0
      %441 = vmatpush1.bf16.xpose.msra.mxu0 0
      %442 = vmatprep.subr.bf16.mxu0 0
      %443 = vmatpush1.bf16.xpose.msra.mxu0 0
      %444 = vmatprep.subr.bf16.mxu0 0
      %445 = vmatpush1.bf16.xpose.msra.mxu0 0
      %446 = vmatprep.subr.bf16.mxu0 0
      %447 = vmatpush1.bf16.xpose.msra.mxu0 0
      %448 = vmatprep.subr.bf16.mxu0 0
      %449 = vmatpush1.bf16.xpose.msra.mxu0 0
      %450 = vmatprep.subr.bf16.mxu0 0
      %451 = vmatpush1.bf16.xpose.msra.mxu0 0
      %452 = vmatprep.subr.bf16.mxu0 0
      %453 = vmatpush1.bf16.xpose.msra.mxu0 0
      %454 = vmatprep.subr.bf16.mxu0 0
      %455 = vmatpush1.bf16.xpose.msra.mxu0 0
      %456 = vmatprep.mubr.bf16.mxu0 0
      %457 = vmatmul.mubr.bf16.gmra.mrb[0].mxu0 %v419
      %v458 = vpop.f32.mrb[0].mxu0
      %v459 = vadd.f32 0.0, %v458
      %v460 = vpop.f32.mrb[0].mxu0
      %v461 = vpop.f32.mrb[0].mxu0
      %v462 = vpop.f32.mrb[0].mxu0
      %463 = vdwg.mxu0
      %v464 = vsel %vm190, %v459, -inf
      %465 = vmax.xlane.f32.xlu0 %v464
      %v466 = vpop.xlane.xlu0 %465
      %v467 = vsub.f32 %v459, %v466
      %v468 = vmul.f32 %v467, 1.442695
      %v469 = vpow.pop %v468
      %v470 = vsel %vm190, %v469, 0.0
      %471 = vadd.xlane.f32.xlu0 %v470
      %v472 = vpop.xlane.xlu0 %471
      %v473 = vrcp.pop %v472
      %v474 = vmul.f32 %v469, %v473
      %v475 = vpack.c.bf16 %v474, %v474
      %476 = vrot.lane.b32.xlu0 %v251, 80
      %v477 = vpop.permute.xlu0 %476
      %v479 = vsel %vm190, %v475, 0
      %v482 = vsel %vm257, %v477, 0
      %484 = vmatprep.subr.bf16.mxu0 0
      %485 = vmatpush1.bf16.msra.mxu0 %v482
      %486 = vmatprep.subr.bf16.mxu0 0
      %487 = vmatpush1.bf16.msra.mxu0 0
      %488 = vmatprep.subr.bf16.mxu0 0
      %489 = vmatpush1.bf16.msra.mxu0 0
      %490 = vmatprep.subr.bf16.mxu0 0
      %491 = vmatpush1.bf16.msra.mxu0 0
      %492 = vmatprep.subr.bf16.mxu0 0
      %493 = vmatpush1.bf16.msra.mxu0 0
      %494 = vmatprep.subr.bf16.mxu0 0
      %495 = vmatpush1.bf16.msra.mxu0 0
      %496 = vmatprep.subr.bf16.mxu0 0
      %497 = vmatpush1.bf16.msra.mxu0 0
      %498 = vmatprep.subr.bf16.mxu0 0
      %499 = vmatpush1.bf16.msra.mxu0 0
      %500 = vmatprep.subr.bf16.mxu0 0
      %501 = vmatpush1.bf16.msra.mxu0 0
      %502 = vmatprep.subr.bf16.mxu0 0
      %503 = vmatpush1.bf16.msra.mxu0 0
      %504 = vmatprep.subr.bf16.mxu0 0
      %505 = vmatpush1.bf16.msra.mxu0 0
      %506 = vmatprep.subr.bf16.mxu0 0
      %507 = vmatpush1.bf16.msra.mxu0 0
      %508 = vmatprep.subr.bf16.mxu0 0
      %509 = vmatpush1.bf16.msra.mxu0 0
      %510 = vmatprep.subr.bf16.mxu0 0
      %511 = vmatpush1.bf16.msra.mxu0 0
      %512 = vmatprep.subr.bf16.mxu0 0
      %513 = vmatpush1.bf16.msra.mxu0 0
      %514 = vmatprep.subr.bf16.mxu0 0
      %515 = vmatpush1.bf16.msra.mxu0 0
      %516 = vmatprep.mubr.bf16.mxu0 0
      %517 = vmatmul.mubr.bf16.gmra.mrb[0].mxu0 %v479
      %v518 = vpop.f32.mrb[0].mxu0
      %v519 = vadd.f32 0.0, %v518
      %v520 = vpop.f32.mrb[0].mxu0
      %v521 = vpop.f32.mrb[0].mxu0
      %v522 = vpop.f32.mrb[0].mxu0
      %523 = vdwg.mxu0
      %524 = vrot.lane.b32.xlu0 %v303, 104
      %v525 = vpop.permute.xlu0 %524
      %526 = vrot.lane.b32.xlu0 %v251, 104
      %v527 = vpop.permute.xlu0 %526
      %v529 = vsel %vm190, %v525, 0
      %v532 = vsel %vm190, %v527, 0
      %534 = vmatprep.subr.bf16.mxu0 0
      %535 = vmatpush1.bf16.xpose.msra.mxu0 %v532
      %536 = vmatprep.subr.bf16.mxu0 0
      %537 = vmatpush1.bf16.xpose.msra.mxu0 0
      %538 = vmatprep.subr.bf16.mxu0 0
      %539 = vmatpush1.bf16.xpose.msra.mxu0 0
      %540 = vmatprep.subr.bf16.mxu0 0
      %541 = vmatpush1.bf16.xpose.msra.mxu0 0
      %542 = vmatprep.subr.bf16.mxu0 0
      %543 = vmatpush1.bf16.xpose.msra.mxu0 0
      %544 = vmatprep.subr.bf16.mxu0 0
      %545 = vmatpush1.bf16.xpose.msra.mxu0 0
      %546 = vmatprep.subr.bf16.mxu0 0
      %547 = vmatpush1.bf16.xpose.msra.mxu0 0
      %548 = vmatprep.subr.bf16.mxu0 0
      %549 = vmatpush1.bf16.xpose.msra.mxu0 0
      %550 = vmatprep.subr.bf16.mxu0 0
      %551 = vmatpush1.bf16.xpose.msra.mxu0 0
      %552 = vmatprep.subr.bf16.mxu0 0
      %553 = vmatpush1.bf16.xpose.msra.mxu0 0
      %554 = vmatprep.subr.bf16.mxu0 0
      %555 = vmatpush1.bf16.xpose.msra.mxu0 0
      %556 = vmatprep.subr.bf16.mxu0 0
      %557 = vmatpush1.bf16.xpose.msra.mxu0 0
      %558 = vmatprep.subr.bf16.mxu0 0
      %559 = vmatpush1.bf16.xpose.msra.mxu0 0
      %560 = vmatprep.subr.bf16.mxu0 0
      %561 = vmatpush1.bf16.xpose.msra.mxu0 0
      %562 = vmatprep.subr.bf16.mxu0 0
      %563 = vmatpush1.bf16.xpose.msra.mxu0 0
      %564 = vmatprep.subr.bf16.mxu0 0
      %565 = vmatpush1.bf16.xpose.msra.mxu0 0
      %566 = vmatprep.mubr.bf16.mxu0 0
      %567 = vmatmul.mubr.bf16.gmra.mrb[0].mxu0 %v529
      %v568 = vpop.f32.mrb[0].mxu0
      %v569 = vadd.f32 0.0, %v568
      %v570 = vpop.f32.mrb[0].mxu0
      %v571 = vpop.f32.mrb[0].mxu0
      %v572 = vpop.f32.mrb[0].mxu0
      %573 = vdwg.mxu0
      %v574 = vsel %vm190, %v569, -inf
      %575 = vmax.xlane.f32.xlu0 %v574
      %v576 = vpop.xlane.xlu0 %575
      %v577 = vsub.f32 %v569, %v576
      %v578 = vmul.f32 %v577, 1.442695
      %v579 = vpow.pop %v578
      %v580 = vsel %vm190, %v579, 0.0
      %581 = vadd.xlane.f32.xlu0 %v580
      %v582 = vpop.xlane.xlu0 %581
      %v583 = vrcp.pop %v582
      %v584 = vmul.f32 %v579, %v583
      %v585 = vpack.c.bf16 %v584, %v584
      %586 = vrot.lane.b32.xlu0 %v251, 72
      %v587 = vpop.permute.xlu0 %586
      %v589 = vsel %vm190, %v585, 0
      %v592 = vsel %vm257, %v587, 0
      %594 = vmatprep.subr.bf16.mxu0 0
      %595 = vmatpush1.bf16.msra.mxu0 %v592
      %596 = vmatprep.subr.bf16.mxu0 0
      %597 = vmatpush1.bf16.msra.mxu0 0
      %598 = vmatprep.subr.bf16.mxu0 0
      %599 = vmatpush1.bf16.msra.mxu0 0
      %600 = vmatprep.subr.bf16.mxu0 0
      %601 = vmatpush1.bf16.msra.mxu0 0
      %602 = vmatprep.subr.bf16.mxu0 0
      %603 = vmatpush1.bf16.msra.mxu0 0
      %604 = vmatprep.subr.bf16.mxu0 0
      %605 = vmatpush1.bf16.msra.mxu0 0
      %606 = vmatprep.subr.bf16.mxu0 0
      %607 = vmatpush1.bf16.msra.mxu0 0
      %608 = vmatprep.subr.bf16.mxu0 0
      %609 = vmatpush1.bf16.msra.mxu0 0
      %610 = vmatprep.subr.bf16.mxu0 0
      %611 = vmatpush1.bf16.msra.mxu0 0
      %612 = vmatprep.subr.bf16.mxu0 0
      %613 = vmatpush1.bf16.msra.mxu0 0
      %614 = vmatprep.subr.bf16.mxu0 0
      %615 = vmatpush1.bf16.msra.mxu0 0
      %616 = vmatprep.subr.bf16.mxu0 0
      %617 = vmatpush1.bf16.msra.mxu0 0
      %618 = vmatprep.subr.bf16.mxu0 0
      %619 = vmatpush1.bf16.msra.mxu0 0
      %620 = vmatprep.subr.bf16.mxu0 0
      %621 = vmatpush1.bf16.msra.mxu0 0
      %622 = vmatprep.subr.bf16.mxu0 0
      %623 = vmatpush1.bf16.msra.mxu0 0
      %624 = vmatprep.subr.bf16.mxu0 0
      %625 = vmatpush1.bf16.msra.mxu0 0
      %626 = vmatprep.mubr.bf16.mxu0 0
      %627 = vmatmul.mubr.bf16.gmra.mrb[0].mxu0 %v589
      %v628 = vpop.f32.mrb[0].mxu0
      %v629 = vadd.f32 0.0, %v628
      %v630 = vpop.f32.mrb[0].mxu0
      %v631 = vpop.f32.mrb[0].mxu0
      %v632 = vpop.f32.mrb[0].mxu0
      %633 = vdwg.mxu0
      %635 = vrot.lane.b32.xlu0 %v409, 8
      %v636 = vpop.permute.xlu0 %635
      %639 = vrot.lane.b32.xlu0 %v519, 16
      %v640 = vpop.permute.xlu0 %639
      %643 = vrot.lane.b32.xlu0 %v629, 24
      %v644 = vpop.permute.xlu0 %643
      %v646 = vsel %vm190, %v296, %v636
      %vm647 = vcmask 130048
      %v648 = vsel %vm647, %v646, %v640
      %vm649 = vcmask 195584
      %v650 = vsel %vm649, %v648, %v644
      %v651 = vpack.c.bf16 %v650, %v650
      %vm652 = vcmask 257024
      %653 = vst.msk [vmem:[%s186] sm:$0xf] %vm652, %v651
      %p654 = scmp.lt.s32.totalorder %s17, 1
      %s655 = scalar_select %p654, %s17, 1
      %p656 = scmp.lt.s32.totalorder %s18, 0
      %s657 = scalar_select %p656, %s18, 0
      %s658 = sadd.s32 %s657, %s655
      %s659 = smul.addr %s658, 4
      %s660 = scalar_lea.vmem %s2, %s659
      // Predicated region
      $region29: #{_lambda_.36} parent=27 // pred_check
        %p661 = pneg %p99
      $region30: #{_lambda_.36} parent=27 // pred_check_branch
        %663 = sbr.rel (%p661) target = $region32
      $region31: #{_lambda_.36} parent=27 // pred_region
        _
      $region32: #{_lambda_.36} parent=27 // pred_fallthru
        _
    $region28: #{_lambda_.36} parent=5 // pred_fallthru
      _
    %p664 = scmp.le.s32.totalorder 2, %s8
    // Predicated region
    $region33: #{_lambda_.36} parent=5 // pred_check
      %p665 = pneg %p664
    $region34: #{_lambda_.36} parent=5 // pred_check_branch
      %667 = sbr.rel (%p665) target = $region36
    $region35: #{_lambda_.36} parent=5 // pred_region
      %s668 = ssub.s32 %s8, 2
      // Predicated region
      $region37: #{_lambda_.36} parent=35 // pred_check
        %p669 = pneg %p105
      $region38: #{_lambda_.36} parent=35 // pred_check_branch
        %671 = sbr.rel (%p669) target = $region40
      $region39: #{_lambda_.36} parent=35 // pred_region
        %p672 = scmp.lt.s32.totalorder %s19, 1
        %s673 = scalar_select %p672, %s19, 1
        %p674 = scmp.lt.s32.totalorder %s20, 0
        %s675 = scalar_select %p674, %s20, 0
        %s676 = sadd.s32 %s675, %s673
        %s677 = smul.addr %s676, 4
        %s678 = scalar_lea.vmem %s2, %s677
      $region40: #{_lambda_.36} parent=35 // pred_fallthru
        _
    $region36: #{_lambda_.36} parent=5 // pred_fallthru
      _
  $region6: #{_lambda_.36} parent=0 // loop_footer
    %s12 = sadd.s32 1, %s8
  $region7: #{_lambda_.36} parent=0 // loop_footer_branch
    %7 = sbr.rel target = $region3
  $region8: #{_lambda_.36} parent=0 // loop_exit
    _

// kernel: _lambda_.37
$region0: #{_lambda_.37}
  #allocation0 [shape = 'u32[]', space=smem, size = 0x4, offset = 0x4, fixed_abs, tag = 'smem constant byte address 0x4 - core index']
  #allocation1 [shape = 'u32[144,128]{1,0:T(1,128)}', space=vmem, size = 0x12000, scoped, tag = 'internal scratch']
  %s0 = inlined_call_operand.vmem [shape: bf16[16,32], index: 0, kind: input, shape index: {}]
  %s1 = inlined_call_operand.vmem [shape: bf16[16,32], index: 1, kind: input, shape index: {}]
  %s2 = inlined_call_operand.vmem [shape: bf16[32,32], index: 2, kind: input, shape index: {}]
  %s3 = inlined_call_operand.vmem [shape: f32[1,32], index: 3, kind: input, shape index: {}]
  %s4 = inlined_call_operand.vmem [shape: f32[1,32], index: 4, kind: input, shape index: {}]
  %s5 = inlined_call_operand.vmem [shape: f32[1,32], index: 5, kind: input, shape index: {}]
  %s6 = inlined_call_operand.vmem [shape: bf16[16,32], index: 6, kind: output, shape index: {}]
  %s7 = sld [smem:[#allocation0]]
  $region57: #{_lambda_.37} parent=0
    _
  %s9 = ssub.s32 1, %s7
  %s10 = scalar_select 0, %s9, %s7
  loop: start=0, step=1, limit=4
  $region2: #{_lambda_.37} parent=0 // loop_pre_header
    _
  $region3: #{_lambda_.37} parent=0 // loop_header
    %s12 = sphi 0, %s16
    %p13 = scmp.ge.s32.totalorder %s12, 4
    %s22 = sphi 0, %s24
    %s25 = sphi 0, %s22
    %s26 = sphi 0, %s25
    %s42 = sphi 0, %s26
    %s48 = sphi 0, %s50
    %s51 = sphi 0, %s48
    %s52 = sphi 0, %s51
    %s68 = sphi 0, %s52
    %s72 = sphi 0, %s72
    %s74 = sphi 0, %s72
    %s75 = sphi 0, %s74
    %s89 = sphi 0, %s75
    %s93 = sphi 0, %s93
    %s95 = sphi 0, %s93
    %s96 = sphi 0, %s95
    %s110 = sphi 0, %s96
    %s114 = sphi 0, %s114
    %s116 = sphi 0, %s114
    %s117 = sphi 0, %s116
    %s131 = sphi 0, %s117
    %s135 = sphi 0, %s135
    %s137 = sphi 0, %s135
    %s138 = sphi 0, %s137
    %s152 = sphi 0, %s138
    %s158 = sphi 0, %s160
    %s161 = sphi 0, %s158
    %s162 = sphi 0, %s161
    %s178 = sphi 0, %s162
  $region4: #{_lambda_.37} parent=0 // loop_header_branch
    %15 = sbr.rel (%p13) target = $region8
  $region5: #{_lambda_.37} parent=0 // loop_body
    %s17 = ssub.s32 %s12, 1
    %s18 = ssub.s32 %s12, 2
    %s19 = sadd.s32 %s12, 1
    %s20 = ssub.s32 %s12, %s19
    %p21 = scmp.eq.s32.totalorder %s20, 0
    %s23 = sadd.s32 %s22, 1
    %s24 = scalar_select %p21, %s22, %s23
    %p27 = pneg %p21
    %p28 = scmp.eq.s32.totalorder %s12, 1
    %p29 = por %p27, %p28
    %p30 = scmp.ne.s32.totalorder %s22, %s25
    %p31 = scmp.eq.s32.totalorder %s12, 0
    %p32 = por %p30, %p31
    %p33 = scmp.ne.s32.totalorder %s22, %s25
    %p34 = scmp.eq.s32.totalorder %s17, 1
    %p35 = por %p33, %p34
    %p36 = scmp.ne.s32.totalorder %s25, %s26
    %p37 = scmp.eq.s32.totalorder %s17, 0
    %p38 = por %p36, %p37
    %p39 = scmp.ne.s32.totalorder %s25, %s26
    %p40 = scmp.eq.s32.totalorder %s18, 1
    %p41 = por %p39, %p40
    %p43 = scmp.ne.s32.totalorder %s26, %s42
    %p44 = scmp.eq.s32.totalorder %s18, 0
    %p45 = por %p43, %p44
    %s46 = ssub.s32 %s12, %s19
    %p47 = scmp.eq.s32.totalorder %s46, 0
    %s49 = sadd.s32 %s48, 1
    %s50 = scalar_select %p47, %s48, %s49
    %p53 = pneg %p47
    %p54 = scmp.eq.s32.totalorder %s12, 1
    %p55 = por %p53, %p54
    %p56 = scmp.ne.s32.totalorder %s48, %s51
    %p57 = scmp.eq.s32.totalorder %s12, 0
    %p58 = por %p56, %p57
    %p59 = scmp.ne.s32.totalorder %s48, %s51
    %p60 = scmp.eq.s32.totalorder %s17, 1
    %p61 = por %p59, %p60
    %p62 = scmp.ne.s32.totalorder %s51, %s52
    %p63 = scmp.eq.s32.totalorder %s17, 0
    %p64 = por %p62, %p63
    %p65 = scmp.ne.s32.totalorder %s51, %s52
    %p66 = scmp.eq.s32.totalorder %s18, 1
    %p67 = por %p65, %p66
    %p69 = scmp.ne.s32.totalorder %s52, %s68
    %p70 = scmp.eq.s32.totalorder %s18, 0
    %p71 = por %p69, %p70
    %s73 = sadd.s32 %s72, 1
    %p76 = scmp.eq.s32.totalorder %s12, 1
    %p77 = scmp.ne.s32.totalorder %s72, %s74
    %p78 = scmp.eq.s32.totalorder %s12, 0
    %p79 = por %p77, %p78
    %p80 = scmp.ne.s32.totalorder %s72, %s74
    %p81 = scmp.eq.s32.totalorder %s17, 1
    %p82 = por %p80, %p81
    %p83 = scmp.ne.s32.totalorder %s74, %s75
    %p84 = scmp.eq.s32.totalorder %s17, 0
    %p85 = por %p83, %p84
    %p86 = scmp.ne.s32.totalorder %s74, %s75
    %p87 = scmp.eq.s32.totalorder %s18, 1
    %p88 = por %p86, %p87
    %p90 = scmp.ne.s32.totalorder %s75, %s89
    %p91 = scmp.eq.s32.totalorder %s18, 0
    %p92 = por %p90, %p91
    %s94 = sadd.s32 %s93, 1
    %p97 = scmp.eq.s32.totalorder %s12, 1
    %p98 = scmp.ne.s32.totalorder %s93, %s95
    %p99 = scmp.eq.s32.totalorder %s12, 0
    %p100 = por %p98, %p99
    %p101 = scmp.ne.s32.totalorder %s93, %s95
    %p102 = scmp.eq.s32.totalorder %s17, 1
    %p103 = por %p101, %p102
    %p104 = scmp.ne.s32.totalorder %s95, %s96
    %p105 = scmp.eq.s32.totalorder %s17, 0
    %p106 = por %p104, %p105
    %p107 = scmp.ne.s32.totalorder %s95, %s96
    %p108 = scmp.eq.s32.totalorder %s18, 1
    %p109 = por %p107, %p108
    %p111 = scmp.ne.s32.totalorder %s96, %s110
    %p112 = scmp.eq.s32.totalorder %s18, 0
    %p113 = por %p111, %p112
    %s115 = sadd.s32 %s114, 1
    %p118 = scmp.eq.s32.totalorder %s12, 1
    %p119 = scmp.ne.s32.totalorder %s114, %s116
    %p120 = scmp.eq.s32.totalorder %s12, 0
    %p121 = por %p119, %p120
    %p122 = scmp.ne.s32.totalorder %s114, %s116
    %p123 = scmp.eq.s32.totalorder %s17, 1
    %p124 = por %p122, %p123
    %p125 = scmp.ne.s32.totalorder %s116, %s117
    %p126 = scmp.eq.s32.totalorder %s17, 0
    %p127 = por %p125, %p126
    %p128 = scmp.ne.s32.totalorder %s116, %s117
    %p129 = scmp.eq.s32.totalorder %s18, 1
    %p130 = por %p128, %p129
    %p132 = scmp.ne.s32.totalorder %s117, %s131
    %p133 = scmp.eq.s32.totalorder %s18, 0
    %p134 = por %p132, %p133
    %s136 = sadd.s32 %s135, 1
    %p139 = scmp.eq.s32.totalorder %s12, 1
    %p140 = scmp.ne.s32.totalorder %s135, %s137
    %p141 = scmp.eq.s32.totalorder %s12, 0
    %p142 = por %p140, %p141
    %p143 = scmp.ne.s32.totalorder %s135, %s137
    %p144 = scmp.eq.s32.totalorder %s17, 1
    %p145 = por %p143, %p144
    %p146 = scmp.ne.s32.totalorder %s137, %s138
    %p147 = scmp.eq.s32.totalorder %s17, 0
    %p148 = por %p146, %p147
    %p149 = scmp.ne.s32.totalorder %s137, %s138
    %p150 = scmp.eq.s32.totalorder %s18, 1
    %p151 = por %p149, %p150
    %p153 = scmp.ne.s32.totalorder %s138, %s152
    %p154 = scmp.eq.s32.totalorder %s18, 0
    %p155 = por %p153, %p154
    %s156 = ssub.s32 %s12, %s19
    %p157 = scmp.eq.s32.totalorder %s156, 0
    %s159 = sadd.s32 %s158, 1
    %s160 = scalar_select %p157, %s158, %s159
    %p163 = pneg %p157
    %p164 = scmp.eq.s32.totalorder %s12, 1
    %p165 = por %p163, %p164
    %p166 = scmp.ne.s32.totalorder %s158, %s161
    %p167 = scmp.eq.s32.totalorder %s12, 0
    %p168 = por %p166, %p167
    %p169 = scmp.ne.s32.totalorder %s158, %s161
    %p170 = scmp.eq.s32.totalorder %s17, 1
    %p171 = por %p169, %p170
    %p172 = scmp.ne.s32.totalorder %s161, %s162
    %p173 = scmp.eq.s32.totalorder %s17, 0
    %p174 = por %p172, %p173
    %p175 = scmp.ne.s32.totalorder %s161, %s162
    %p176 = scmp.eq.s32.totalorder %s18, 1
    %p177 = por %p175, %p176
    %p179 = scmp.ne.s32.totalorder %s162, %s178
    %p180 = scmp.eq.s32.totalorder %s18, 0
    %p181 = por %p179, %p180
    %p182 = scmp.le.s32.totalorder 1, %s12
    %p183 = scmp.lt.s32.totalorder %s12, 3
    %p184 = pnand %p182, %p183
    %p185 = pneg %p184
    // Predicated region
    $region9: #{_lambda_.37} parent=5 // pred_check
      _
    $region10: #{_lambda_.37} parent=5 // pred_check_branch
      %187 = sbr.rel (%p184) target = $region12
    $region11: #{_lambda_.37} parent=5 // pred_region
      %s188 = ssub.s32 %s12, 1
      // Predicated region
      $region13: #{_lambda_.37} parent=11 // pred_check
        %p189 = pneg %p85
      $region14: #{_lambda_.37} parent=11 // pred_check_branch
        %191 = sbr.rel (%p189) target = $region16
      $region15: #{_lambda_.37} parent=11 // pred_region
        _
      $region16: #{_lambda_.37} parent=11 // pred_fallthru
        _
      // Predicated region
      $region17: #{_lambda_.37} parent=11 // pred_check
        %p192 = pneg %p106
      $region18: #{_lambda_.37} parent=11 // pred_check_branch
        %194 = sbr.rel (%p192) target = $region20
      $region19: #{_lambda_.37} parent=11 // pred_region
        _
      $region20: #{_lambda_.37} parent=11 // pred_fallthru
        _
      // Predicated region
      $region21: #{_lambda_.37} parent=11 // pred_check
        %p195 = pneg %p127
      $region22: #{_lambda_.37} parent=11 // pred_check_branch
        %197 = sbr.rel (%p195) target = $region24
      $region23: #{_lambda_.37} parent=11 // pred_region
        _
      $region24: #{_lambda_.37} parent=11 // pred_fallthru
        _
      // Predicated region
      $region25: #{_lambda_.37} parent=11 // pred_check
        %p198 = pneg %p148
      $region26: #{_lambda_.37} parent=11 // pred_check_branch
        %200 = sbr.rel (%p198) target = $region28
      $region27: #{_lambda_.37} parent=11 // pred_region
        _
      $region28: #{_lambda_.37} parent=11 // pred_fallthru
        _
    $region12: #{_lambda_.37} parent=5 // pred_fallthru
      _
    %p201 = scmp.lt.s32.totalorder %s12, 2
    // Predicated region
    $region29: #{_lambda_.37} parent=5 // pred_check
      %p202 = pneg %p201
    $region30: #{_lambda_.37} parent=5 // pred_check_branch
      %204 = sbr.rel (%p202) target = $region32
    $region31: #{_lambda_.37} parent=5 // pred_region
      // Predicated region
      $region33: #{_lambda_.37} parent=31 // pred_check
        %p205 = pneg %p32
      $region34: #{_lambda_.37} parent=31 // pred_check_branch
        %207 = sbr.rel (%p205) target = $region36
      $region35: #{_lambda_.37} parent=31 // pred_region
        %p208 = scmp.lt.s32.totalorder %s12, 1
        %s209 = scalar_select %p208, %s12, 1
        %s210 = smul.addr %s209, 4
        %s211 = scalar_lea.vmem %s0, %s210
      $region36: #{_lambda_.37} parent=31 // pred_fallthru
        _
      // Predicated region
      $region37: #{_lambda_.37} parent=31 // pred_check
        %p212 = pneg %p58
      $region38: #{_lambda_.37} parent=31 // pred_check_branch
        %214 = sbr.rel (%p212) target = $region40
      $region39: #{_lambda_.37} parent=31 // pred_region
        %p215 = scmp.lt.s32.totalorder %s12, 1
        %s216 = scalar_select %p215, %s12, 1
        %s217 = smul.addr %s216, 4
        %s218 = scalar_lea.vmem %s1, %s217
      $region40: #{_lambda_.37} parent=31 // pred_fallthru
        _
    $region32: #{_lambda_.37} parent=5 // pred_fallthru
      _
    %p219 = scmp.le.s32.totalorder 1, %s12
    %p220 = scmp.lt.s32.totalorder %s12, 3
    %p221 = pnand %p219, %p220
    %p222 = pneg %p221
    // Predicated region
    $region41: #{_lambda_.37} parent=5 // pred_check
      _
    $region42: #{_lambda_.37} parent=5 // pred_check_branch
      %224 = sbr.rel (%p221) target = $region44
    $region43: #{_lambda_.37} parent=5 // pred_region
      %s225 = ssub.s32 %s12, 1
      %p226 = scmp.lt.s32.totalorder %s17, 1
      %s227 = scalar_select %p226, %s17, 1
      %s228 = smul.addr %s227, 4
      %s229 = scalar_lea.vmem %s0, %s228
      %p230 = pneg %p38
      %p231 = pneg %p35
      %p232 = scmp.lt.s32.totalorder %s17, 1
      %s233 = scalar_select %p232, %s17, 1
      %s234 = smul.addr %s233, 4
      %s235 = scalar_lea.vmem %s1, %s234
      %p236 = pneg %p64
      %p237 = pneg %p61
      %p238 = pneg %p85
      %p239 = pneg %p82
      %p240 = pneg %p106
      %p241 = pneg %p103
      %p242 = pneg %p127
      %p243 = pneg %p124
      %p244 = pneg %p148
      %p245 = pneg %p145
      %p246 = pneg %p174
      %p247 = pneg %p171
      %p248 = scmp.lt.s32.totalorder %s17, 1
      %s249 = scalar_select %p248, %s17, 1
      %s250 = smul.addr %s249, 4
      %s251 = scalar_lea.vmem %s6, %s250
      %p252 = scmp.lt.s32.totalorder %s17, 1
      %s253 = scalar_select %p252, %s17, 1
      %s254 = smul.addr %s253, 4
      %s255 = scalar_lea.vmem %s0, %s254
      %p256 = scmp.lt.s32.totalorder %s17, 1
      %s257 = scalar_select %p256, %s17, 1
      %s258 = smul.addr %s257, 4
      %s259 = scalar_lea.vmem %s1, %s258
      %p260 = scmp.lt.s32.totalorder %s17, 1
      %s261 = scalar_select %p260, %s17, 1
      %s262 = smul.addr %s261, 4
      %s263 = scalar_lea.vmem %s6, %s262
      %v265 = vld [vmem:[%s255] sm:$0xf]
      %v266 = vld [vmem:[%s2] sm:$0xf]
      %v267 = vld [vmem:[%s2 + $0x4] sm:$0xf]
      %v268 = vld [vmem:[%s2 + $0x8] sm:$0xf]
      %v269 = vld [vmem:[%s2 + $0xc] sm:$0xf]
      %v270 = vld [vmem:[%s3] sm:$0x1]
      %v272 = vlaneseq
      %v273 = vshrl.u32 %v272, 7
      %v274 = vsub.s32 0, %v273
      %v275 = vrot.slane %v270, %v274
      %v281 = vunpack.c.l.b16 %v266
      %v282 = vunpack.c.l.b16 %v267
      %v283 = vunpack.c.l.b16 %v268
      %v284 = vunpack.c.l.b16 %v269
      %v285 = vpack.c.b16 %v282, %v281
      %v286 = vpack.c.b16 %v284, %v283
      %vm289 = vcmask 261120
      %v291 = vsel %vm289, %v265, 0
      %293 = vmatprep.subr.bf16.mxu0 0
      %294 = vmatpush1.bf16.msra.mxu0 %v285
      %295 = vmatprep.subr.bf16.mxu0 0
      %296 = vmatpush1.bf16.msra.mxu0 %v286
      %297 = vmatprep.subr.bf16.mxu0 0
      %298 = vmatpush1.bf16.msra.mxu0 0
      %299 = vmatprep.subr.bf16.mxu0 0
      %300 = vmatpush1.bf16.msra.mxu0 0
      %301 = vmatprep.subr.bf16.mxu0 0
      %302 = vmatpush1.bf16.msra.mxu0 0
      %303 = vmatprep.subr.bf16.mxu0 0
      %304 = vmatpush1.bf16.msra.mxu0 0
      %305 = vmatprep.subr.bf16.mxu0 0
      %306 = vmatpush1.bf16.msra.mxu0 0
      %307 = vmatprep.subr.bf16.mxu0 0
      %308 = vmatpush1.bf16.msra.mxu0 0
      %309 = vmatprep.subr.bf16.mxu0 0
      %310 = vmatpush1.bf16.msra.mxu0 0
      %311 = vmatprep.subr.bf16.mxu0 0
      %312 = vmatpush1.bf16.msra.mxu0 0
      %313 = vmatprep.subr.bf16.mxu0 0
      %314 = vmatpush1.bf16.msra.mxu0 0
      %315 = vmatprep.subr.bf16.mxu0 0
      %316 = vmatpush1.bf16.msra.mxu0 0
      %317 = vmatprep.subr.bf16.mxu0 0
      %318 = vmatpush1.bf16.msra.mxu0 0
      %319 = vmatprep.subr.bf16.mxu0 0
      %320 = vmatpush1.bf16.msra.mxu0 0
      %321 = vmatprep.subr.bf16.mxu0 0
      %322 = vmatpush1.bf16.msra.mxu0 0
      %323 = vmatprep.subr.bf16.mxu0 0
      %324 = vmatpush1.bf16.msra.mxu0 0
      %325 = vmatprep.mubr.bf16.mxu0 0
      %326 = vmatmul.mubr.bf16.gmra.mrb[0].mxu0 %v291
      %v327 = vpop.f32.mrb[0].mxu0
      %v328 = vadd.f32 %v275, %v327
      %v329 = vpop.f32.mrb[0].mxu0
      %v330 = vpop.f32.mrb[0].mxu0
      %v331 = vpop.f32.mrb[0].mxu0
      %332 = vdwg.mxu0
      %v333 = vld [vmem:[%s259] sm:$0xf]
      %v334 = vunpack.c.l.bf16 %v333
      %v335 = vadd.f32 %v334, %v328
      %v336 = vld [vmem:[%s4] sm:$0x1]
      %v337 = vld [vmem:[%s5] sm:$0x1]
      %v338 = vsel %vm289, %v335, 0.0
      %339 = vadd.xlane.f32.xlu0 %v338
      %v340 = vpop.xlane.xlu0 %339
      %v341 = vrcp.pop 32.0
      %v342 = vmul.f32 %v340, %v341
      %v343 = vsub.f32 %v335, %v342
      %v344 = vmul.f32 %v343, %v343
      %v345 = vsel %vm289, %v344, 0.0
      %346 = vadd.xlane.f32.xlu0 %v345
      %v347 = vpop.xlane.xlu0 %346
      %v348 = vmul.f32 %v347, %v341
      %v349 = vadd.f32 %v348, 1e-05
      %v350 = vrsqrt.pop %v349
      %v351 = vmul.f32 %v343, %v350
      %v353 = vlaneseq
      %v354 = vshrl.u32 %v353, 7
      %v355 = vsub.s32 0, %v354
      %v356 = vrot.slane %v336, %v355
      %v358 = vmul.f32 %v351, %v356
      %v360 = vlaneseq
      %v361 = vshrl.u32 %v360, 7
      %v362 = vsub.s32 0, %v361
      %v363 = vrot.slane %v337, %v362
      %v365 = vadd.f32 %v358, %v363
      %v366 = vpack.c.bf16 %v365, %v365
      %vm367 = vcmask 257024
      %368 = vst.msk [vmem:[%s263] sm:$0xf] %vm367, %v366
      %p369 = scmp.lt.s32.totalorder %s17, 1
      %s370 = scalar_select %p369, %s17, 1
      %s371 = smul.addr %s370, 4
      %s372 = scalar_lea.vmem %s6, %s371
      // Predicated region
      $region45: #{_lambda_.37} parent=43 // pred_check
        %p373 = pneg %p171
      $region46: #{_lambda_.37} parent=43 // pred_check_branch
        %375 = sbr.rel (%p373) target = $region48
      $region47: #{_lambda_.37} parent=43 // pred_region
        _
      $region48: #{_lambda_.37} parent=43 // pred_fallthru
        _
    $region44: #{_lambda_.37} parent=5 // pred_fallthru
      _
    %p376 = scmp.le.s32.totalorder 2, %s12
    // Predicated region
    $region49: #{_lambda_.37} parent=5 // pred_check
      %p377 = pneg %p376
    $region50: #{_lambda_.37} parent=5 // pred_check_branch
      %379 = sbr.rel (%p377) target = $region52
    $region51: #{_lambda_.37} parent=5 // pred_region
      %s380 = ssub.s32 %s12, 2
      // Predicated region
      $region53: #{_lambda_.37} parent=51 // pred_check
        %p381 = pneg %p177
      $region54: #{_lambda_.37} parent=51 // pred_check_branch
        %383 = sbr.rel (%p381) target = $region56
      $region55: #{_lambda_.37} parent=51 // pred_region
        %p384 = scmp.lt.s32.totalorder %s18, 1
        %s385 = scalar_select %p384, %s18, 1
        %s386 = smul.addr %s385, 4
        %s387 = scalar_lea.vmem %s6, %s386
      $region56: #{_lambda_.37} parent=51 // pred_fallthru
        _
    $region52: #{_lambda_.37} parent=5 // pred_fallthru
      _
  $region6: #{_lambda_.37} parent=0 // loop_footer
    %s16 = sadd.s32 1, %s12
  $region7: #{_lambda_.37} parent=0 // loop_footer_branch
    %11 = sbr.rel target = $region3
  $region8: #{_lambda_.37} parent=0 // loop_exit
    _

// kernel: _lambda_.38
$region0: #{_lambda_.38}
  #allocation0 [shape = 'u32[]', space=smem, size = 0x4, offset = 0x4, fixed_abs, tag = 'smem constant byte address 0x4 - core index']
  #allocation1 [shape = 'u32[144,128]{1,0:T(1,128)}', space=vmem, size = 0x12000, scoped, tag = 'internal scratch']
  %s0 = inlined_call_operand.vmem [shape: bf16[16,32], index: 0, kind: input, shape index: {}]
  %s1 = inlined_call_operand.vmem [shape: bf16[16,32], index: 1, kind: input, shape index: {}]
  %s2 = inlined_call_operand.vmem [shape: bf16[32,32], index: 2, kind: input, shape index: {}]
  %s3 = inlined_call_operand.vmem [shape: f32[1,32], index: 3, kind: input, shape index: {}]
  %s4 = inlined_call_operand.vmem [shape: bf16[16,32], index: 4, kind: output, shape index: {}]
  %s5 = sld [smem:[#allocation0]]
  $region49: #{_lambda_.38} parent=0
    _
  %s7 = ssub.s32 1, %s5
  %s8 = scalar_select 0, %s7, %s5
  loop: start=0, step=1, limit=4
  $region2: #{_lambda_.38} parent=0 // loop_pre_header
    _
  $region3: #{_lambda_.38} parent=0 // loop_header
    %s10 = sphi 0, %s14
    %p11 = scmp.ge.s32.totalorder %s10, 4
    %s20 = sphi 0, %s22
    %s23 = sphi 0, %s20
    %s24 = sphi 0, %s23
    %s40 = sphi 0, %s24
    %s46 = sphi 0, %s48
    %s49 = sphi 0, %s46
    %s50 = sphi 0, %s49
    %s66 = sphi 0, %s50
    %s70 = sphi 0, %s70
    %s72 = sphi 0, %s70
    %s73 = sphi 0, %s72
    %s87 = sphi 0, %s73
    %s91 = sphi 0, %s91
    %s93 = sphi 0, %s91
    %s94 = sphi 0, %s93
    %s108 = sphi 0, %s94
    %s114 = sphi 0, %s116
    %s117 = sphi 0, %s114
    %s118 = sphi 0, %s117
    %s134 = sphi 0, %s118
  $region4: #{_lambda_.38} parent=0 // loop_header_branch
    %13 = sbr.rel (%p11) target = $region8
  $region5: #{_lambda_.38} parent=0 // loop_body
    %s15 = ssub.s32 %s10, 1
    %s16 = ssub.s32 %s10, 2
    %s17 = sadd.s32 %s10, 1
    %s18 = ssub.s32 %s10, %s17
    %p19 = scmp.eq.s32.totalorder %s18, 0
    %s21 = sadd.s32 %s20, 1
    %s22 = scalar_select %p19, %s20, %s21
    %p25 = pneg %p19
    %p26 = scmp.eq.s32.totalorder %s10, 1
    %p27 = por %p25, %p26
    %p28 = scmp.ne.s32.totalorder %s20, %s23
    %p29 = scmp.eq.s32.totalorder %s10, 0
    %p30 = por %p28, %p29
    %p31 = scmp.ne.s32.totalorder %s20, %s23
    %p32 = scmp.eq.s32.totalorder %s15, 1
    %p33 = por %p31, %p32
    %p34 = scmp.ne.s32.totalorder %s23, %s24
    %p35 = scmp.eq.s32.totalorder %s15, 0
    %p36 = por %p34, %p35
    %p37 = scmp.ne.s32.totalorder %s23, %s24
    %p38 = scmp.eq.s32.totalorder %s16, 1
    %p39 = por %p37, %p38
    %p41 = scmp.ne.s32.totalorder %s24, %s40
    %p42 = scmp.eq.s32.totalorder %s16, 0
    %p43 = por %p41, %p42
    %s44 = ssub.s32 %s10, %s17
    %p45 = scmp.eq.s32.totalorder %s44, 0
    %s47 = sadd.s32 %s46, 1
    %s48 = scalar_select %p45, %s46, %s47
    %p51 = pneg %p45
    %p52 = scmp.eq.s32.totalorder %s10, 1
    %p53 = por %p51, %p52
    %p54 = scmp.ne.s32.totalorder %s46, %s49
    %p55 = scmp.eq.s32.totalorder %s10, 0
    %p56 = por %p54, %p55
    %p57 = scmp.ne.s32.totalorder %s46, %s49
    %p58 = scmp.eq.s32.totalorder %s15, 1
    %p59 = por %p57, %p58
    %p60 = scmp.ne.s32.totalorder %s49, %s50
    %p61 = scmp.eq.s32.totalorder %s15, 0
    %p62 = por %p60, %p61
    %p63 = scmp.ne.s32.totalorder %s49, %s50
    %p64 = scmp.eq.s32.totalorder %s16, 1
    %p65 = por %p63, %p64
    %p67 = scmp.ne.s32.totalorder %s50, %s66
    %p68 = scmp.eq.s32.totalorder %s16, 0
    %p69 = por %p67, %p68
    %s71 = sadd.s32 %s70, 1
    %p74 = scmp.eq.s32.totalorder %s10, 1
    %p75 = scmp.ne.s32.totalorder %s70, %s72
    %p76 = scmp.eq.s32.totalorder %s10, 0
    %p77 = por %p75, %p76
    %p78 = scmp.ne.s32.totalorder %s70, %s72
    %p79 = scmp.eq.s32.totalorder %s15, 1
    %p80 = por %p78, %p79
    %p81 = scmp.ne.s32.totalorder %s72, %s73
    %p82 = scmp.eq.s32.totalorder %s15, 0
    %p83 = por %p81, %p82
    %p84 = scmp.ne.s32.totalorder %s72, %s73
    %p85 = scmp.eq.s32.totalorder %s16, 1
    %p86 = por %p84, %p85
    %p88 = scmp.ne.s32.totalorder %s73, %s87
    %p89 = scmp.eq.s32.totalorder %s16, 0
    %p90 = por %p88, %p89
    %s92 = sadd.s32 %s91, 1
    %p95 = scmp.eq.s32.totalorder %s10, 1
    %p96 = scmp.ne.s32.totalorder %s91, %s93
    %p97 = scmp.eq.s32.totalorder %s10, 0
    %p98 = por %p96, %p97
    %p99 = scmp.ne.s32.totalorder %s91, %s93
    %p100 = scmp.eq.s32.totalorder %s15, 1
    %p101 = por %p99, %p100
    %p102 = scmp.ne.s32.totalorder %s93, %s94
    %p103 = scmp.eq.s32.totalorder %s15, 0
    %p104 = por %p102, %p103
    %p105 = scmp.ne.s32.totalorder %s93, %s94
    %p106 = scmp.eq.s32.totalorder %s16, 1
    %p107 = por %p105, %p106
    %p109 = scmp.ne.s32.totalorder %s94, %s108
    %p110 = scmp.eq.s32.totalorder %s16, 0
    %p111 = por %p109, %p110
    %s112 = ssub.s32 %s10, %s17
    %p113 = scmp.eq.s32.totalorder %s112, 0
    %s115 = sadd.s32 %s114, 1
    %s116 = scalar_select %p113, %s114, %s115
    %p119 = pneg %p113
    %p120 = scmp.eq.s32.totalorder %s10, 1
    %p121 = por %p119, %p120
    %p122 = scmp.ne.s32.totalorder %s114, %s117
    %p123 = scmp.eq.s32.totalorder %s10, 0
    %p124 = por %p122, %p123
    %p125 = scmp.ne.s32.totalorder %s114, %s117
    %p126 = scmp.eq.s32.totalorder %s15, 1
    %p127 = por %p125, %p126
    %p128 = scmp.ne.s32.totalorder %s117, %s118
    %p129 = scmp.eq.s32.totalorder %s15, 0
    %p130 = por %p128, %p129
    %p131 = scmp.ne.s32.totalorder %s117, %s118
    %p132 = scmp.eq.s32.totalorder %s16, 1
    %p133 = por %p131, %p132
    %p135 = scmp.ne.s32.totalorder %s118, %s134
    %p136 = scmp.eq.s32.totalorder %s16, 0
    %p137 = por %p135, %p136
    %p138 = scmp.le.s32.totalorder 1, %s10
    %p139 = scmp.lt.s32.totalorder %s10, 3
    %p140 = pnand %p138, %p139
    %p141 = pneg %p140
    // Predicated region
    $region9: #{_lambda_.38} parent=5 // pred_check
      _
    $region10: #{_lambda_.38} parent=5 // pred_check_branch
      %143 = sbr.rel (%p140) target = $region12
    $region11: #{_lambda_.38} parent=5 // pred_region
      %s144 = ssub.s32 %s10, 1
      // Predicated region
      $region13: #{_lambda_.38} parent=11 // pred_check
        %p145 = pneg %p83
      $region14: #{_lambda_.38} parent=11 // pred_check_branch
        %147 = sbr.rel (%p145) target = $region16
      $region15: #{_lambda_.38} parent=11 // pred_region
        _
      $region16: #{_lambda_.38} parent=11 // pred_fallthru
        _
      // Predicated region
      $region17: #{_lambda_.38} parent=11 // pred_check
        %p148 = pneg %p104
      $region18: #{_lambda_.38} parent=11 // pred_check_branch
        %150 = sbr.rel (%p148) target = $region20
      $region19: #{_lambda_.38} parent=11 // pred_region
        _
      $region20: #{_lambda_.38} parent=11 // pred_fallthru
        _
    $region12: #{_lambda_.38} parent=5 // pred_fallthru
      _
    %p151 = scmp.lt.s32.totalorder %s10, 2
    // Predicated region
    $region21: #{_lambda_.38} parent=5 // pred_check
      %p152 = pneg %p151
    $region22: #{_lambda_.38} parent=5 // pred_check_branch
      %154 = sbr.rel (%p152) target = $region24
    $region23: #{_lambda_.38} parent=5 // pred_region
      // Predicated region
      $region25: #{_lambda_.38} parent=23 // pred_check
        %p155 = pneg %p30
      $region26: #{_lambda_.38} parent=23 // pred_check_branch
        %157 = sbr.rel (%p155) target = $region28
      $region27: #{_lambda_.38} parent=23 // pred_region
        %p158 = scmp.lt.s32.totalorder %s10, 1
        %s159 = scalar_select %p158, %s10, 1
        %s160 = smul.addr %s159, 4
        %s161 = scalar_lea.vmem %s0, %s160
      $region28: #{_lambda_.38} parent=23 // pred_fallthru
        _
      // Predicated region
      $region29: #{_lambda_.38} parent=23 // pred_check
        %p162 = pneg %p56
      $region30: #{_lambda_.38} parent=23 // pred_check_branch
        %164 = sbr.rel (%p162) target = $region32
      $region31: #{_lambda_.38} parent=23 // pred_region
        %p165 = scmp.lt.s32.totalorder %s10, 1
        %s166 = scalar_select %p165, %s10, 1
        %s167 = smul.addr %s166, 4
        %s168 = scalar_lea.vmem %s1, %s167
      $region32: #{_lambda_.38} parent=23 // pred_fallthru
        _
    $region24: #{_lambda_.38} parent=5 // pred_fallthru
      _
    %p169 = scmp.le.s32.totalorder 1, %s10
    %p170 = scmp.lt.s32.totalorder %s10, 3
    %p171 = pnand %p169, %p170
    %p172 = pneg %p171
    // Predicated region
    $region33: #{_lambda_.38} parent=5 // pred_check
      _
    $region34: #{_lambda_.38} parent=5 // pred_check_branch
      %174 = sbr.rel (%p171) target = $region36
    $region35: #{_lambda_.38} parent=5 // pred_region
      %s175 = ssub.s32 %s10, 1
      %p176 = scmp.lt.s32.totalorder %s15, 1
      %s177 = scalar_select %p176, %s15, 1
      %s178 = smul.addr %s177, 4
      %s179 = scalar_lea.vmem %s0, %s178
      %p180 = pneg %p36
      %p181 = pneg %p33
      %p182 = scmp.lt.s32.totalorder %s15, 1
      %s183 = scalar_select %p182, %s15, 1
      %s184 = smul.addr %s183, 4
      %s185 = scalar_lea.vmem %s1, %s184
      %p186 = pneg %p62
      %p187 = pneg %p59
      %p188 = pneg %p83
      %p189 = pneg %p80
      %p190 = pneg %p104
      %p191 = pneg %p101
      %p192 = pneg %p130
      %p193 = pneg %p127
      %p194 = scmp.lt.s32.totalorder %s15, 1
      %s195 = scalar_select %p194, %s15, 1
      %s196 = smul.addr %s195, 4
      %s197 = scalar_lea.vmem %s4, %s196
      %p198 = scmp.lt.s32.totalorder %s15, 1
      %s199 = scalar_select %p198, %s15, 1
      %s200 = smul.addr %s199, 4
      %s201 = scalar_lea.vmem %s0, %s200
      %p202 = scmp.lt.s32.totalorder %s15, 1
      %s203 = scalar_select %p202, %s15, 1
      %s204 = smul.addr %s203, 4
      %s205 = scalar_lea.vmem %s1, %s204
      %p206 = scmp.lt.s32.totalorder %s15, 1
      %s207 = scalar_select %p206, %s15, 1
      %s208 = smul.addr %s207, 4
      %s209 = scalar_lea.vmem %s4, %s208
      %v211 = vld [vmem:[%s201] sm:$0xf]
      %v212 = vld [vmem:[%s205] sm:$0xf]
      %v213 = vadd.bf16 %v211, %v212
      %v214 = vld [vmem:[%s2] sm:$0xf]
      %v215 = vld [vmem:[%s2 + $0x4] sm:$0xf]
      %v216 = vld [vmem:[%s2 + $0x8] sm:$0xf]
      %v217 = vld [vmem:[%s2 + $0xc] sm:$0xf]
      %v218 = vld [vmem:[%s3] sm:$0x1]
      %v220 = vlaneseq
      %v221 = vshrl.u32 %v220, 7
      %v222 = vsub.s32 0, %v221
      %v223 = vrot.slane %v218, %v222
      %v229 = vunpack.c.l.b16 %v214
      %v230 = vunpack.c.l.b16 %v215
      %v231 = vunpack.c.l.b16 %v216
      %v232 = vunpack.c.l.b16 %v217
      %v233 = vpack.c.b16 %v230, %v229
      %v234 = vpack.c.b16 %v232, %v231
      %vm237 = vcmask 261120
      %v239 = vsel %vm237, %v213, 0
      %241 = vmatprep.subr.bf16.mxu0 0
      %242 = vmatpush1.bf16.msra.mxu0 %v233
      %243 = vmatprep.subr.bf16.mxu0 0
      %244 = vmatpush1.bf16.msra.mxu0 %v234
      %245 = vmatprep.subr.bf16.mxu0 0
      %246 = vmatpush1.bf16.msra.mxu0 0
      %247 = vmatprep.subr.bf16.mxu0 0
      %248 = vmatpush1.bf16.msra.mxu0 0
      %249 = vmatprep.subr.bf16.mxu0 0
      %250 = vmatpush1.bf16.msra.mxu0 0
      %251 = vmatprep.subr.bf16.mxu0 0
      %252 = vmatpush1.bf16.msra.mxu0 0
      %253 = vmatprep.subr.bf16.mxu0 0
      %254 = vmatpush1.bf16.msra.mxu0 0
      %255 = vmatprep.subr.bf16.mxu0 0
      %256 = vmatpush1.bf16.msra.mxu0 0
      %257 = vmatprep.subr.bf16.mxu0 0
      %258 = vmatpush1.bf16.msra.mxu0 0
      %259 = vmatprep.subr.bf16.mxu0 0
      %260 = vmatpush1.bf16.msra.mxu0 0
      %261 = vmatprep.subr.bf16.mxu0 0
      %262 = vmatpush1.bf16.msra.mxu0 0
      %263 = vmatprep.subr.bf16.mxu0 0
      %264 = vmatpush1.bf16.msra.mxu0 0
      %265 = vmatprep.subr.bf16.mxu0 0
      %266 = vmatpush1.bf16.msra.mxu0 0
      %267 = vmatprep.subr.bf16.mxu0 0
      %268 = vmatpush1.bf16.msra.mxu0 0
      %269 = vmatprep.subr.bf16.mxu0 0
      %270 = vmatpush1.bf16.msra.mxu0 0
      %271 = vmatprep.subr.bf16.mxu0 0
      %272 = vmatpush1.bf16.msra.mxu0 0
      %273 = vmatprep.mubr.bf16.mxu0 0
      %274 = vmatmul.mubr.bf16.gmra.mrb[0].mxu0 %v239
      %v275 = vpop.f32.mrb[0].mxu0
      %v276 = vadd.f32 %v223, %v275
      %v277 = vpop.f32.mrb[0].mxu0
      %v278 = vpop.f32.mrb[0].mxu0
      %v279 = vpop.f32.mrb[0].mxu0
      %280 = vdwg.mxu0
      %v281 = vpack.c.bf16 %v276, %v276
      %vm282 = vcmask 257024
      %283 = vst.msk [vmem:[%s209] sm:$0xf] %vm282, %v281
      %p284 = scmp.lt.s32.totalorder %s15, 1
      %s285 = scalar_select %p284, %s15, 1
      %s286 = smul.addr %s285, 4
      %s287 = scalar_lea.vmem %s4, %s286
      // Predicated region
      $region37: #{_lambda_.38} parent=35 // pred_check
        %p288 = pneg %p127
      $region38: #{_lambda_.38} parent=35 // pred_check_branch
        %290 = sbr.rel (%p288) target = $region40
      $region39: #{_lambda_.38} parent=35 // pred_region
        _
      $region40: #{_lambda_.38} parent=35 // pred_fallthru
        _
    $region36: #{_lambda_.38} parent=5 // pred_fallthru
      _
    %p291 = scmp.le.s32.totalorder 2, %s10
    // Predicated region
    $region41: #{_lambda_.38} parent=5 // pred_check
      %p292 = pneg %p291
    $region42: #{_lambda_.38} parent=5 // pred_check_branch
      %294 = sbr.rel (%p292) target = $region44
    $region43: #{_lambda_.38} parent=5 // pred_region
      %s295 = ssub.s32 %s10, 2
      // Predicated region
      $region45: #{_lambda_.38} parent=43 // pred_check
        %p296 = pneg %p133
      $region46: #{_lambda_.38} parent=43 // pred_check_branch
        %298 = sbr.rel (%p296) target = $region48
      $region47: #{_lambda_.38} parent=43 // pred_region
        %p299 = scmp.lt.s32.totalorder %s16, 1
        %s300 = scalar_select %p299, %s16, 1
        %s301 = smul.addr %s300, 4
        %s302 = scalar_lea.vmem %s4, %s301
      $region48: #{_lambda_.38} parent=43 // pred_fallthru
        _
    $region44: #{_lambda_.38} parent=5 // pred_fallthru
      _
  $region6: #{_lambda_.38} parent=0 // loop_footer
    %s14 = sadd.s32 1, %s10
  $region7: #{_lambda_.38} parent=0 // loop_footer_branch
    %9 = sbr.rel target = $region3
  $region8: #{_lambda_.38} parent=0 // loop_exit
    _

// kernel: _lambda_.40
$region0: #{_lambda_.40}
  #allocation0 [shape = 'u32[]', space=smem, size = 0x4, offset = 0x4, fixed_abs, tag = 'smem constant byte address 0x4 - core index']
  #allocation1 [shape = 'u32[144,128]{1,0:T(1,128)}', space=vmem, size = 0x12000, scoped, tag = 'internal scratch']
  %s0 = inlined_call_operand.vmem [shape: bf16[2,8,32], index: 0, kind: input, shape index: {}]
  %s1 = inlined_call_operand.vmem [shape: bf16[2,64,64], index: 1, kind: input, shape index: {}]
  %s2 = inlined_call_operand.vmem [shape: bf16[2,8,32], index: 2, kind: output, shape index: {}]
  %s3 = sld [smem:[#allocation0]]
  $region41: #{_lambda_.40} parent=0
    _
  %s5 = ssub.s32 1, %s3
  %s6 = scalar_select 0, %s5, %s3
  loop: start=0, step=1, limit=4
  $region2: #{_lambda_.40} parent=0 // loop_pre_header
    _
  $region3: #{_lambda_.40} parent=0 // loop_header
    %s8 = sphi 0, %s12
    %p9 = scmp.ge.s32.totalorder %s8, 4
    %s15 = sphi 0, %s27
    %s16 = sphi 0, %s23
    %s17 = sphi 0, %s15
    %s18 = sphi 0, %s16
    %s19 = sphi 0, %s17
    %s20 = sphi 0, %s18
    %s32 = sphi 0, %s34
    %s35 = sphi 0, %s32
    %s36 = sphi 0, %s35
    %s52 = sphi 0, %s36
    %s58 = sphi 0, %s60
    %s61 = sphi 0, %s58
    %s62 = sphi 0, %s61
    %s78 = sphi 0, %s62
    %s86 = sphi 0, %s88
    %s89 = sphi 0, %s86
    %s90 = sphi 0, %s89
    %s106 = sphi 0, %s90
  $region4: #{_lambda_.40} parent=0 // loop_header_branch
    %11 = sbr.rel (%p9) target = $region8
  $region5: #{_lambda_.40} parent=0 // loop_body
    %s13 = ssub.s32 %s8, 1
    %s14 = ssub.s32 %s8, 2
    %s21 = sadd.s32 1, %s16
    %p22 = scmp.ge.s32.totalorder %s21, 1
    %s23 = scalar_select %p22, 0, %s21
    %s24 = sadd.s32 1, %s15
    %s25 = scalar_select %p22, %s24, %s15
    %p26 = scmp.ge.s32.totalorder %s25, 2
    %s27 = scalar_select %p26, 0, %s25
    %s28 = ssub.s32 %s15, %s27
    %s29 = ssub.s32 %s16, %s23
    %s30 = sor.u32 %s28, %s29
    %p31 = scmp.eq.s32.totalorder %s30, 0
    %s33 = sadd.s32 %s32, 1
    %s34 = scalar_select %p31, %s32, %s33
    %p37 = pneg %p31
    %p38 = scmp.eq.s32.totalorder %s8, 1
    %p39 = por %p37, %p38
    %p40 = scmp.ne.s32.totalorder %s32, %s35
    %p41 = scmp.eq.s32.totalorder %s8, 0
    %p42 = por %p40, %p41
    %p43 = scmp.ne.s32.totalorder %s32, %s35
    %p44 = scmp.eq.s32.totalorder %s13, 1
    %p45 = por %p43, %p44
    %p46 = scmp.ne.s32.totalorder %s35, %s36
    %p47 = scmp.eq.s32.totalorder %s13, 0
    %p48 = por %p46, %p47
    %p49 = scmp.ne.s32.totalorder %s35, %s36
    %p50 = scmp.eq.s32.totalorder %s14, 1
    %p51 = por %p49, %p50
    %p53 = scmp.ne.s32.totalorder %s36, %s52
    %p54 = scmp.eq.s32.totalorder %s14, 0
    %p55 = por %p53, %p54
    %s56 = ssub.s32 %s15, %s27
    %p57 = scmp.eq.s32.totalorder %s56, 0
    %s59 = sadd.s32 %s58, 1
    %s60 = scalar_select %p57, %s58, %s59
    %p63 = pneg %p57
    %p64 = scmp.eq.s32.totalorder %s8, 1
    %p65 = por %p63, %p64
    %p66 = scmp.ne.s32.totalorder %s58, %s61
    %p67 = scmp.eq.s32.totalorder %s8, 0
    %p68 = por %p66, %p67
    %p69 = scmp.ne.s32.totalorder %s58, %s61
    %p70 = scmp.eq.s32.totalorder %s13, 1
    %p71 = por %p69, %p70
    %p72 = scmp.ne.s32.totalorder %s61, %s62
    %p73 = scmp.eq.s32.totalorder %s13, 0
    %p74 = por %p72, %p73
    %p75 = scmp.ne.s32.totalorder %s61, %s62
    %p76 = scmp.eq.s32.totalorder %s14, 1
    %p77 = por %p75, %p76
    %p79 = scmp.ne.s32.totalorder %s62, %s78
    %p80 = scmp.eq.s32.totalorder %s14, 0
    %p81 = por %p79, %p80
    %s82 = ssub.s32 %s15, %s27
    %s83 = ssub.s32 %s16, %s23
    %s84 = sor.u32 %s82, %s83
    %p85 = scmp.eq.s32.totalorder %s84, 0
    %s87 = sadd.s32 %s86, 1
    %s88 = scalar_select %p85, %s86, %s87
    %p91 = pneg %p85
    %p92 = scmp.eq.s32.totalorder %s8, 1
    %p93 = por %p91, %p92
    %p94 = scmp.ne.s32.totalorder %s86, %s89
    %p95 = scmp.eq.s32.totalorder %s8, 0
    %p96 = por %p94, %p95
    %p97 = scmp.ne.s32.totalorder %s86, %s89
    %p98 = scmp.eq.s32.totalorder %s13, 1
    %p99 = por %p97, %p98
    %p100 = scmp.ne.s32.totalorder %s89, %s90
    %p101 = scmp.eq.s32.totalorder %s13, 0
    %p102 = por %p100, %p101
    %p103 = scmp.ne.s32.totalorder %s89, %s90
    %p104 = scmp.eq.s32.totalorder %s14, 1
    %p105 = por %p103, %p104
    %p107 = scmp.ne.s32.totalorder %s90, %s106
    %p108 = scmp.eq.s32.totalorder %s14, 0
    %p109 = por %p107, %p108
    %p110 = scmp.le.s32.totalorder 1, %s8
    %p111 = scmp.lt.s32.totalorder %s8, 3
    %p112 = pnand %p110, %p111
    %p113 = pneg %p112
    // Predicated region
    $region9: #{_lambda_.40} parent=5 // pred_check
      _
    $region10: #{_lambda_.40} parent=5 // pred_check_branch
      %115 = sbr.rel (%p112) target = $region12
    $region11: #{_lambda_.40} parent=5 // pred_region
      %s116 = ssub.s32 %s8, 1
    $region12: #{_lambda_.40} parent=5 // pred_fallthru
      _
    %p117 = scmp.lt.s32.totalorder %s8, 2
    // Predicated region
    $region13: #{_lambda_.40} parent=5 // pred_check
      %p118 = pneg %p117
    $region14: #{_lambda_.40} parent=5 // pred_check_branch
      %120 = sbr.rel (%p118) target = $region16
    $region15: #{_lambda_.40} parent=5 // pred_region
      // Predicated region
      $region17: #{_lambda_.40} parent=15 // pred_check
        %p121 = pneg %p42
      $region18: #{_lambda_.40} parent=15 // pred_check_branch
        %123 = sbr.rel (%p121) target = $region20
      $region19: #{_lambda_.40} parent=15 // pred_region
        %p124 = scmp.lt.s32.totalorder %s15, 1
        %s125 = scalar_select %p124, %s15, 1
        %p126 = scmp.lt.s32.totalorder %s16, 0
        %s127 = scalar_select %p126, %s16, 0
        %s128 = sadd.s32 %s127, %s125
        %s129 = smul.addr %s128, 4
        %s130 = scalar_lea.vmem %s0, %s129
      $region20: #{_lambda_.40} parent=15 // pred_fallthru
        _
      // Predicated region
      $region21: #{_lambda_.40} parent=15 // pred_check
        %p131 = pneg %p68
      $region22: #{_lambda_.40} parent=15 // pred_check_branch
        %133 = sbr.rel (%p131) target = $region24
      $region23: #{_lambda_.40} parent=15 // pred_region
        %p134 = scmp.lt.s32.totalorder %s15, 1
        %s135 = scalar_select %p134, %s15, 1
        %s136 = smul.addr %s135, 8
        %s137 = smul.addr %s136, 4
        %s138 = scalar_lea.vmem %s1, %s137
      $region24: #{_lambda_.40} parent=15 // pred_fallthru
        _
    $region16: #{_lambda_.40} parent=5 // pred_fallthru
      _
    %p139 = scmp.le.s32.totalorder 1, %s8
    %p140 = scmp.lt.s32.totalorder %s8, 3
    %p141 = pnand %p139, %p140
    %p142 = pneg %p141
    // Predicated region
    $region25: #{_lambda_.40} parent=5 // pred_check
      _
    $region26: #{_lambda_.40} parent=5 // pred_check_branch
      %144 = sbr.rel (%p141) target = $region28
    $region27: #{_lambda_.40} parent=5 // pred_region
      %s145 = ssub.s32 %s8, 1
      %p146 = scmp.lt.s32.totalorder %s17, 1
      %s147 = scalar_select %p146, %s17, 1
      %p148 = scmp.lt.s32.totalorder %s18, 0
      %s149 = scalar_select %p148, %s18, 0
      %s150 = sadd.s32 %s149, %s147
      %s151 = smul.addr %s150, 4
      %s152 = scalar_lea.vmem %s0, %s151
      %p153 = pneg %p48
      %p154 = pneg %p45
      %p155 = scmp.lt.s32.totalorder %s17, 1
      %s156 = scalar_select %p155, %s17, 1
      %s157 = smul.addr %s156, 8
      %s158 = smul.addr %s157, 4
      %s159 = scalar_lea.vmem %s1, %s158
      %p160 = pneg %p74
      %p161 = pneg %p71
      %p162 = pneg %p102
      %p163 = pneg %p99
      %p164 = scmp.lt.s32.totalorder %s17, 1
      %s165 = scalar_select %p164, %s17, 1
      %p166 = scmp.lt.s32.totalorder %s18, 0
      %s167 = scalar_select %p166, %s18, 0
      %s168 = sadd.s32 %s167, %s165
      %s169 = smul.addr %s168, 4
      %s170 = scalar_lea.vmem %s2, %s169
      %p171 = scmp.lt.s32.totalorder %s17, 1
      %s172 = scalar_select %p171, %s17, 1
      %p173 = scmp.lt.s32.totalorder %s18, 0
      %s174 = scalar_select %p173, %s18, 0
      %s175 = sadd.s32 %s174, %s172
      %s176 = smul.addr %s175, 4
      %s177 = scalar_lea.vmem %s0, %s176
      %p178 = scmp.lt.s32.totalorder %s17, 1
      %s179 = scalar_select %p178, %s17, 1
      %s180 = smul.addr %s179, 8
      %s181 = smul.addr %s180, 4
      %s182 = scalar_lea.vmem %s1, %s181
      %p183 = scmp.lt.s32.totalorder %s17, 1
      %s184 = scalar_select %p183, %s17, 1
      %p185 = scmp.lt.s32.totalorder %s18, 0
      %s186 = scalar_select %p185, %s18, 0
      %s187 = sadd.s32 %s186, %s184
      %s188 = smul.addr %s187, 4
      %s189 = scalar_lea.vmem %s2, %s188
      %v191 = vld [vmem:[%s177] sm:$0xf]
      %v192 = vld [vmem:[%s182] sm:$0xf]
      %v193 = vld [vmem:[%s182 + $0x4] sm:$0xf]
      %v194 = vld [vmem:[%s182 + $0x8] sm:$0xf]
      %v195 = vld [vmem:[%s182 + $0xc] sm:$0xf]
      %v196 = vld [vmem:[%s182 + $0x10] sm:$0xf]
      %v197 = vld [vmem:[%s182 + $0x14] sm:$0xf]
      %v198 = vld [vmem:[%s182 + $0x18] sm:$0xf]
      %v199 = vld [vmem:[%s182 + $0x1c] sm:$0xf]
      %v208 = vunpack.c.l.b16 %v192
      %v209 = vunpack.c.l.b16 %v193
      %v210 = vunpack.c.l.b16 %v194
      %v211 = vunpack.c.l.b16 %v195
      %v212 = vunpack.c.l.b16 %v196
      %v213 = vunpack.c.l.b16 %v197
      %v214 = vunpack.c.l.b16 %v198
      %v215 = vunpack.c.l.b16 %v199
      %v216 = vpack.c.b16 %v209, %v208
      %v217 = vpack.c.b16 %v211, %v210
      %v218 = vpack.c.b16 %v213, %v212
      %v219 = vpack.c.b16 %v215, %v214
      %vm220 = vcmask 64512
      %v222 = vsel %vm220, %v191, 0
      %v225 = vsel %vm220, %v216, 0
      %v228 = vsel %vm220, %v217, 0
      %v231 = vsel %vm220, %v218, 0
      %v234 = vsel %vm220, %v219, 0
      %236 = vmatprep.subr.bf16.mxu0 0
      %237 = vmatpush1.bf16.xpose.msra.mxu0 %v225
      %238 = vmatprep.subr.bf16.mxu0 0
      %239 = vmatpush1.bf16.xpose.msra.mxu0 %v228
      %240 = vmatprep.subr.bf16.mxu0 0
      %241 = vmatpush1.bf16.xpose.msra.mxu0 %v231
      %242 = vmatprep.subr.bf16.mxu0 0
      %243 = vmatpush1.bf16.xpose.msra.mxu0 %v234
      %244 = vmatprep.subr.bf16.mxu0 0
      %245 = vmatpush1.bf16.xpose.msra.mxu0 0
      %246 = vmatprep.subr.bf16.mxu0 0
      %247 = vmatpush1.bf16.xpose.msra.mxu0 0
      %248 = vmatprep.subr.bf16.mxu0 0
      %249 = vmatpush1.bf16.xpose.msra.mxu0 0
      %250 = vmatprep.subr.bf16.mxu0 0
      %251 = vmatpush1.bf16.xpose.msra.mxu0 0
      %252 = vmatprep.subr.bf16.mxu0 0
      %253 = vmatpush1.bf16.xpose.msra.mxu0 0
      %254 = vmatprep.subr.bf16.mxu0 0
      %255 = vmatpush1.bf16.xpose.msra.mxu0 0
      %256 = vmatprep.subr.bf16.mxu0 0
      %257 = vmatpush1.bf16.xpose.msra.mxu0 0
      %258 = vmatprep.subr.bf16.mxu0 0
      %259 = vmatpush1.bf16.xpose.msra.mxu0 0
      %260 = vmatprep.subr.bf16.mxu0 0
      %261 = vmatpush1.bf16.xpose.msra.mxu0 0
      %262 = vmatprep.subr.bf16.mxu0 0
      %263 = vmatpush1.bf16.xpose.msra.mxu0 0
      %264 = vmatprep.subr.bf16.mxu0 0
      %265 = vmatpush1.bf16.xpose.msra.mxu0 0
      %266 = vmatprep.subr.bf16.mxu0 0
      %267 = vmatpush1.bf16.xpose.msra.mxu0 0
      %268 = vmatprep.mubr.bf16.mxu0 0
      %269 = vmatmul.mubr.bf16.gmra.mrb[0].mxu0 %v222
      %v270 = vpop.f32.mrb[0].mxu0
      %v271 = vadd.f32 0.0, %v270
      %v272 = vpop.f32.mrb[0].mxu0
      %v273 = vpop.f32.mrb[0].mxu0
      %v274 = vpop.f32.mrb[0].mxu0
      %275 = vdwg.mxu0
      %vm276 = vcmask 523264
      %v277 = vsel %vm276, %v271, -inf
      %278 = vmax.xlane.f32.xlu0 %v277
      %v279 = vpop.xlane.xlu0 %278
      %v280 = vsub.f32 %v271, %v279
      %v281 = vmul.f32 %v280, 1.442695
      %v282 = vpow.pop %v281
      %v283 = vsel %vm276, %v282, 0.0
      %284 = vadd.xlane.f32.xlu0 %v283
      %v285 = vpop.xlane.xlu0 %284
      %v286 = vrcp.pop %v285
      %v287 = vmul.f32 %v282, %v286
      %v288 = vpack.c.bf16 %v287, %v287
      %289 = vrot.lane.b32.xlu0 %v216, 96
      %v290 = vpop.permute.xlu0 %289
      %291 = vrot.lane.b32.xlu0 %v217, 96
      %v292 = vpop.permute.xlu0 %291
      %293 = vrot.lane.b32.xlu0 %v218, 96
      %v294 = vpop.permute.xlu0 %293
      %295 = vrot.lane.b32.xlu0 %v219, 96
      %v296 = vpop.permute.xlu0 %295
      %v302 = vsel %vm276, %v288, 0
      %304 = vmatprep.subr.bf16.mxu0 0
      %305 = vmatpush1.bf16.msra.mxu0 %v290
      %306 = vmatprep.subr.bf16.mxu0 0
      %307 = vmatpush1.bf16.msra.mxu0 %v292
      %308 = vmatprep.subr.bf16.mxu0 0
      %309 = vmatpush1.bf16.msra.mxu0 %v294
      %310 = vmatprep.subr.bf16.mxu0 0
      %311 = vmatpush1.bf16.msra.mxu0 %v296
      %312 = vmatprep.subr.bf16.mxu0 0
      %313 = vmatpush1.bf16.msra.mxu0 0
      %314 = vmatprep.subr.bf16.mxu0 0
      %315 = vmatpush1.bf16.msra.mxu0 0
      %316 = vmatprep.subr.bf16.mxu0 0
      %317 = vmatpush1.bf16.msra.mxu0 0
      %318 = vmatprep.subr.bf16.mxu0 0
      %319 = vmatpush1.bf16.msra.mxu0 0
      %320 = vmatprep.subr.bf16.mxu0 0
      %321 = vmatpush1.bf16.msra.mxu0 0
      %322 = vmatprep.subr.bf16.mxu0 0
      %323 = vmatpush1.bf16.msra.mxu0 0
      %324 = vmatprep.subr.bf16.mxu0 0
      %325 = vmatpush1.bf16.msra.mxu0 0
      %326 = vmatprep.subr.bf16.mxu0 0
      %327 = vmatpush1.bf16.msra.mxu0 0
      %328 = vmatprep.subr.bf16.mxu0 0
      %329 = vmatpush1.bf16.msra.mxu0 0
      %330 = vmatprep.subr.bf16.mxu0 0
      %331 = vmatpush1.bf16.msra.mxu0 0
      %332 = vmatprep.subr.bf16.mxu0 0
      %333 = vmatpush1.bf16.msra.mxu0 0
      %334 = vmatprep.subr.bf16.mxu0 0
      %335 = vmatpush1.bf16.msra.mxu0 0
      %336 = vmatprep.mubr.bf16.mxu0 0
      %337 = vmatmul.mubr.bf16.gmra.mrb[0].mxu0 %v302
      %v338 = vpop.f32.mrb[0].mxu0
      %v339 = vadd.f32 0.0, %v338
      %v340 = vpop.f32.mrb[0].mxu0
      %v341 = vpop.f32.mrb[0].mxu0
      %v342 = vpop.f32.mrb[0].mxu0
      %343 = vdwg.mxu0
      %v345 = vunpack.c.l.b16 %v191
      %v346 = vpack.c.b16 %v345, %v345
      %347 = vrot.lane.b32.xlu0 %v346, 120
      %v348 = vpop.permute.xlu0 %347
      %349 = vrot.lane.b32.xlu0 %v216, 120
      %v350 = vpop.permute.xlu0 %349
      %351 = vrot.lane.b32.xlu0 %v217, 120
      %v352 = vpop.permute.xlu0 %351
      %353 = vrot.lane.b32.xlu0 %v218, 120
      %v354 = vpop.permute.xlu0 %353
      %355 = vrot.lane.b32.xlu0 %v219, 120
      %v356 = vpop.permute.xlu0 %355
      %v358 = vsel %vm220, %v348, 0
      %v361 = vsel %vm220, %v350, 0
      %v364 = vsel %vm220, %v352, 0
      %v367 = vsel %vm220, %v354, 0
      %v370 = vsel %vm220, %v356, 0
      %372 = vmatprep.subr.bf16.mxu0 0
      %373 = vmatpush1.bf16.xpose.msra.mxu0 %v361
      %374 = vmatprep.subr.bf16.mxu0 0
      %375 = vmatpush1.bf16.xpose.msra.mxu0 %v364
      %376 = vmatprep.subr.bf16.mxu0 0
      %377 = vmatpush1.bf16.xpose.msra.mxu0 %v367
      %378 = vmatprep.subr.bf16.mxu0 0
      %379 = vmatpush1.bf16.xpose.msra.mxu0 %v370
      %380 = vmatprep.subr.bf16.mxu0 0
      %381 = vmatpush1.bf16.xpose.msra.mxu0 0
      %382 = vmatprep.subr.bf16.mxu0 0
      %383 = vmatpush1.bf16.xpose.msra.mxu0 0
      %384 = vmatprep.subr.bf16.mxu0 0
      %385 = vmatpush1.bf16.xpose.msra.mxu0 0
      %386 = vmatprep.subr.bf16.mxu0 0
      %387 = vmatpush1.bf16.xpose.msra.mxu0 0
      %388 = vmatprep.subr.bf16.mxu0 0
      %389 = vmatpush1.bf16.xpose.msra.mxu0 0
      %390 = vmatprep.subr.bf16.mxu0 0
      %391 = vmatpush1.bf16.xpose.msra.mxu0 0
      %392 = vmatprep.subr.bf16.mxu0 0
      %393 = vmatpush1.bf16.xpose.msra.mxu0 0
      %394 = vmatprep.subr.bf16.mxu0 0
      %395 = vmatpush1.bf16.xpose.msra.mxu0 0
      %396 = vmatprep.subr.bf16.mxu0 0
      %397 = vmatpush1.bf16.xpose.msra.mxu0 0
      %398 = vmatprep.subr.bf16.mxu0 0
      %399 = vmatpush1.bf16.xpose.msra.mxu0 0
      %400 = vmatprep.subr.bf16.mxu0 0
      %401 = vmatpush1.bf16.xpose.msra.mxu0 0
      %402 = vmatprep.subr.bf16.mxu0 0
      %403 = vmatpush1.bf16.xpose.msra.mxu0 0
      %404 = vmatprep.mubr.bf16.mxu0 0
      %405 = vmatmul.mubr.bf16.gmra.mrb[0].mxu0 %v358
      %v406 = vpop.f32.mrb[0].mxu0
      %v407 = vadd.f32 0.0, %v406
      %v408 = vpop.f32.mrb[0].mxu0
      %v409 = vpop.f32.mrb[0].mxu0
      %v410 = vpop.f32.mrb[0].mxu0
      %411 = vdwg.mxu0
      %v412 = vsel %vm276, %v407, -inf
      %413 = vmax.xlane.f32.xlu0 %v412
      %v414 = vpop.xlane.xlu0 %413
      %v415 = vsub.f32 %v407, %v414
      %v416 = vmul.f32 %v415, 1.442695
      %v417 = vpow.pop %v416
      %v418 = vsel %vm276, %v417, 0.0
      %419 = vadd.xlane.f32.xlu0 %v418
      %v420 = vpop.xlane.xlu0 %419
      %v421 = vrcp.pop %v420
      %v422 = vmul.f32 %v417, %v421
      %v423 = vpack.c.bf16 %v422, %v422
      %424 = vrot.lane.b32.xlu0 %v216, 88
      %v425 = vpop.permute.xlu0 %424
      %426 = vrot.lane.b32.xlu0 %v217, 88
      %v427 = vpop.permute.xlu0 %426
      %428 = vrot.lane.b32.xlu0 %v218, 88
      %v429 = vpop.permute.xlu0 %428
      %430 = vrot.lane.b32.xlu0 %v219, 88
      %v431 = vpop.permute.xlu0 %430
      %v437 = vsel %vm276, %v423, 0
      %439 = vmatprep.subr.bf16.mxu0 0
      %440 = vmatpush1.bf16.msra.mxu0 %v425
      %441 = vmatprep.subr.bf16.mxu0 0
      %442 = vmatpush1.bf16.msra.mxu0 %v427
      %443 = vmatprep.subr.bf16.mxu0 0
      %444 = vmatpush1.bf16.msra.mxu0 %v429
      %445 = vmatprep.subr.bf16.mxu0 0
      %446 = vmatpush1.bf16.msra.mxu0 %v431
      %447 = vmatprep.subr.bf16.mxu0 0
      %448 = vmatpush1.bf16.msra.mxu0 0
      %449 = vmatprep.subr.bf16.mxu0 0
      %450 = vmatpush1.bf16.msra.mxu0 0
      %451 = vmatprep.subr.bf16.mxu0 0
      %452 = vmatpush1.bf16.msra.mxu0 0
      %453 = vmatprep.subr.bf16.mxu0 0
      %454 = vmatpush1.bf16.msra.mxu0 0
      %455 = vmatprep.subr.bf16.mxu0 0
      %456 = vmatpush1.bf16.msra.mxu0 0
      %457 = vmatprep.subr.bf16.mxu0 0
      %458 = vmatpush1.bf16.msra.mxu0 0
      %459 = vmatprep.subr.bf16.mxu0 0
      %460 = vmatpush1.bf16.msra.mxu0 0
      %461 = vmatprep.subr.bf16.mxu0 0
      %462 = vmatpush1.bf16.msra.mxu0 0
      %463 = vmatprep.subr.bf16.mxu0 0
      %464 = vmatpush1.bf16.msra.mxu0 0
      %465 = vmatprep.subr.bf16.mxu0 0
      %466 = vmatpush1.bf16.msra.mxu0 0
      %467 = vmatprep.subr.bf16.mxu0 0
      %468 = vmatpush1.bf16.msra.mxu0 0
      %469 = vmatprep.subr.bf16.mxu0 0
      %470 = vmatpush1.bf16.msra.mxu0 0
      %471 = vmatprep.mubr.bf16.mxu0 0
      %472 = vmatmul.mubr.bf16.gmra.mrb[0].mxu0 %v437
      %v473 = vpop.f32.mrb[0].mxu0
      %v474 = vadd.f32 0.0, %v473
      %v475 = vpop.f32.mrb[0].mxu0
      %v476 = vpop.f32.mrb[0].mxu0
      %v477 = vpop.f32.mrb[0].mxu0
      %478 = vdwg.mxu0
      %479 = vrot.lane.b32.xlu0 %v346, 112
      %v480 = vpop.permute.xlu0 %479
      %481 = vrot.lane.b32.xlu0 %v216, 112
      %v482 = vpop.permute.xlu0 %481
      %483 = vrot.lane.b32.xlu0 %v217, 112
      %v484 = vpop.permute.xlu0 %483
      %485 = vrot.lane.b32.xlu0 %v218, 112
      %v486 = vpop.permute.xlu0 %485
      %487 = vrot.lane.b32.xlu0 %v219, 112
      %v488 = vpop.permute.xlu0 %487
      %v490 = vsel %vm220, %v480, 0
      %v493 = vsel %vm220, %v482, 0
      %v496 = vsel %vm220, %v484, 0
      %v499 = vsel %vm220, %v486, 0
      %v502 = vsel %vm220, %v488, 0
      %504 = vmatprep.subr.bf16.mxu0 0
      %505 = vmatpush1.bf16.xpose.msra.mxu0 %v493
      %506 = vmatprep.subr.bf16.mxu0 0
      %507 = vmatpush1.bf16.xpose.msra.mxu0 %v496
      %508 = vmatprep.subr.bf16.mxu0 0
      %509 = vmatpush1.bf16.xpose.msra.mxu0 %v499
      %510 = vmatprep.subr.bf16.mxu0 0
      %511 = vmatpush1.bf16.xpose.msra.mxu0 %v502
      %512 = vmatprep.subr.bf16.mxu0 0
      %513 = vmatpush1.bf16.xpose.msra.mxu0 0
      %514 = vmatprep.subr.bf16.mxu0 0
      %515 = vmatpush1.bf16.xpose.msra.mxu0 0
      %516 = vmatprep.subr.bf16.mxu0 0
      %517 = vmatpush1.bf16.xpose.msra.mxu0 0
      %518 = vmatprep.subr.bf16.mxu0 0
      %519 = vmatpush1.bf16.xpose.msra.mxu0 0
      %520 = vmatprep.subr.bf16.mxu0 0
      %521 = vmatpush1.bf16.xpose.msra.mxu0 0
      %522 = vmatprep.subr.bf16.mxu0 0
      %523 = vmatpush1.bf16.xpose.msra.mxu0 0
      %524 = vmatprep.subr.bf16.mxu0 0
      %525 = vmatpush1.bf16.xpose.msra.mxu0 0
      %526 = vmatprep.subr.bf16.mxu0 0
      %527 = vmatpush1.bf16.xpose.msra.mxu0 0
      %528 = vmatprep.subr.bf16.mxu0 0
      %529 = vmatpush1.bf16.xpose.msra.mxu0 0
      %530 = vmatprep.subr.bf16.mxu0 0
      %531 = vmatpush1.bf16.xpose.msra.mxu0 0
      %532 = vmatprep.subr.bf16.mxu0 0
      %533 = vmatpush1.bf16.xpose.msra.mxu0 0
      %534 = vmatprep.subr.bf16.mxu0 0
      %535 = vmatpush1.bf16.xpose.msra.mxu0 0
      %536 = vmatprep.mubr.bf16.mxu0 0
      %537 = vmatmul.mubr.bf16.gmra.mrb[0].mxu0 %v490
      %v538 = vpop.f32.mrb[0].mxu0
      %v539 = vadd.f32 0.0, %v538
      %v540 = vpop.f32.mrb[0].mxu0
      %v541 = vpop.f32.mrb[0].mxu0
      %v542 = vpop.f32.mrb[0].mxu0
      %543 = vdwg.mxu0
      %v544 = vsel %vm276, %v539, -inf
      %545 = vmax.xlane.f32.xlu0 %v544
      %v546 = vpop.xlane.xlu0 %545
      %v547 = vsub.f32 %v539, %v546
      %v548 = vmul.f32 %v547, 1.442695
      %v549 = vpow.pop %v548
      %v550 = vsel %vm276, %v549, 0.0
      %551 = vadd.xlane.f32.xlu0 %v550
      %v552 = vpop.xlane.xlu0 %551
      %v553 = vrcp.pop %v552
      %v554 = vmul.f32 %v549, %v553
      %v555 = vpack.c.bf16 %v554, %v554
      %556 = vrot.lane.b32.xlu0 %v216, 80
      %v557 = vpop.permute.xlu0 %556
      %558 = vrot.lane.b32.xlu0 %v217, 80
      %v559 = vpop.permute.xlu0 %558
      %560 = vrot.lane.b32.xlu0 %v218, 80
      %v561 = vpop.permute.xlu0 %560
      %562 = vrot.lane.b32.xlu0 %v219, 80
      %v563 = vpop.permute.xlu0 %562
      %v569 = vsel %vm276, %v555, 0
      %571 = vmatprep.subr.bf16.mxu0 0
      %572 = vmatpush1.bf16.msra.mxu0 %v557
      %573 = vmatprep.subr.bf16.mxu0 0
      %574 = vmatpush1.bf16.msra.mxu0 %v559
      %575 = vmatprep.subr.bf16.mxu0 0
      %576 = vmatpush1.bf16.msra.mxu0 %v561
      %577 = vmatprep.subr.bf16.mxu0 0
      %578 = vmatpush1.bf16.msra.mxu0 %v563
      %579 = vmatprep.subr.bf16.mxu0 0
      %580 = vmatpush1.bf16.msra.mxu0 0
      %581 = vmatprep.subr.bf16.mxu0 0
      %582 = vmatpush1.bf16.msra.mxu0 0
      %583 = vmatprep.subr.bf16.mxu0 0
      %584 = vmatpush1.bf16.msra.mxu0 0
      %585 = vmatprep.subr.bf16.mxu0 0
      %586 = vmatpush1.bf16.msra.mxu0 0
      %587 = vmatprep.subr.bf16.mxu0 0
      %588 = vmatpush1.bf16.msra.mxu0 0
      %589 = vmatprep.subr.bf16.mxu0 0
      %590 = vmatpush1.bf16.msra.mxu0 0
      %591 = vmatprep.subr.bf16.mxu0 0
      %592 = vmatpush1.bf16.msra.mxu0 0
      %593 = vmatprep.subr.bf16.mxu0 0
      %594 = vmatpush1.bf16.msra.mxu0 0
      %595 = vmatprep.subr.bf16.mxu0 0
      %596 = vmatpush1.bf16.msra.mxu0 0
      %597 = vmatprep.subr.bf16.mxu0 0
      %598 = vmatpush1.bf16.msra.mxu0 0
      %599 = vmatprep.subr.bf16.mxu0 0
      %600 = vmatpush1.bf16.msra.mxu0 0
      %601 = vmatprep.subr.bf16.mxu0 0
      %602 = vmatpush1.bf16.msra.mxu0 0
      %603 = vmatprep.mubr.bf16.mxu0 0
      %604 = vmatmul.mubr.bf16.gmra.mrb[0].mxu0 %v569
      %v605 = vpop.f32.mrb[0].mxu0
      %v606 = vadd.f32 0.0, %v605
      %v607 = vpop.f32.mrb[0].mxu0
      %v608 = vpop.f32.mrb[0].mxu0
      %v609 = vpop.f32.mrb[0].mxu0
      %610 = vdwg.mxu0
      %611 = vrot.lane.b32.xlu0 %v346, 104
      %v612 = vpop.permute.xlu0 %611
      %613 = vrot.lane.b32.xlu0 %v216, 104
      %v614 = vpop.permute.xlu0 %613
      %615 = vrot.lane.b32.xlu0 %v217, 104
      %v616 = vpop.permute.xlu0 %615
      %617 = vrot.lane.b32.xlu0 %v218, 104
      %v618 = vpop.permute.xlu0 %617
      %619 = vrot.lane.b32.xlu0 %v219, 104
      %v620 = vpop.permute.xlu0 %619
      %v622 = vsel %vm220, %v612, 0
      %v625 = vsel %vm220, %v614, 0
      %v628 = vsel %vm220, %v616, 0
      %v631 = vsel %vm220, %v618, 0
      %v634 = vsel %vm220, %v620, 0
      %636 = vmatprep.subr.bf16.mxu0 0
      %637 = vmatpush1.bf16.xpose.msra.mxu0 %v625
      %638 = vmatprep.subr.bf16.mxu0 0
      %639 = vmatpush1.bf16.xpose.msra.mxu0 %v628
      %640 = vmatprep.subr.bf16.mxu0 0
      %641 = vmatpush1.bf16.xpose.msra.mxu0 %v631
      %642 = vmatprep.subr.bf16.mxu0 0
      %643 = vmatpush1.bf16.xpose.msra.mxu0 %v634
      %644 = vmatprep.subr.bf16.mxu0 0
      %645 = vmatpush1.bf16.xpose.msra.mxu0 0
      %646 = vmatprep.subr.bf16.mxu0 0
      %647 = vmatpush1.bf16.xpose.msra.mxu0 0
      %648 = vmatprep.subr.bf16.mxu0 0
      %649 = vmatpush1.bf16.xpose.msra.mxu0 0
      %650 = vmatprep.subr.bf16.mxu0 0
      %651 = vmatpush1.bf16.xpose.msra.mxu0 0
      %652 = vmatprep.subr.bf16.mxu0 0
      %653 = vmatpush1.bf16.xpose.msra.mxu0 0
      %654 = vmatprep.subr.bf16.mxu0 0
      %655 = vmatpush1.bf16.xpose.msra.mxu0 0
      %656 = vmatprep.subr.bf16.mxu0 0
      %657 = vmatpush1.bf16.xpose.msra.mxu0 0
      %658 = vmatprep.subr.bf16.mxu0 0
      %659 = vmatpush1.bf16.xpose.msra.mxu0 0
      %660 = vmatprep.subr.bf16.mxu0 0
      %661 = vmatpush1.bf16.xpose.msra.mxu0 0
      %662 = vmatprep.subr.bf16.mxu0 0
      %663 = vmatpush1.bf16.xpose.msra.mxu0 0
      %664 = vmatprep.subr.bf16.mxu0 0
      %665 = vmatpush1.bf16.xpose.msra.mxu0 0
      %666 = vmatprep.subr.bf16.mxu0 0
      %667 = vmatpush1.bf16.xpose.msra.mxu0 0
      %668 = vmatprep.mubr.bf16.mxu0 0
      %669 = vmatmul.mubr.bf16.gmra.mrb[0].mxu0 %v622
      %v670 = vpop.f32.mrb[0].mxu0
      %v671 = vadd.f32 0.0, %v670
      %v672 = vpop.f32.mrb[0].mxu0
      %v673 = vpop.f32.mrb[0].mxu0
      %v674 = vpop.f32.mrb[0].mxu0
      %675 = vdwg.mxu0
      %v676 = vsel %vm276, %v671, -inf
      %677 = vmax.xlane.f32.xlu0 %v676
      %v678 = vpop.xlane.xlu0 %677
      %v679 = vsub.f32 %v671, %v678
      %v680 = vmul.f32 %v679, 1.442695
      %v681 = vpow.pop %v680
      %v682 = vsel %vm276, %v681, 0.0
      %683 = vadd.xlane.f32.xlu0 %v682
      %v684 = vpop.xlane.xlu0 %683
      %v685 = vrcp.pop %v684
      %v686 = vmul.f32 %v681, %v685
      %v687 = vpack.c.bf16 %v686, %v686
      %688 = vrot.lane.b32.xlu0 %v216, 72
      %v689 = vpop.permute.xlu0 %688
      %690 = vrot.lane.b32.xlu0 %v217, 72
      %v691 = vpop.permute.xlu0 %690
      %692 = vrot.lane.b32.xlu0 %v218, 72
      %v693 = vpop.permute.xlu0 %692
      %694 = vrot.lane.b32.xlu0 %v219, 72
      %v695 = vpop.permute.xlu0 %694
      %v701 = vsel %vm276, %v687, 0
      %703 = vmatprep.subr.bf16.mxu0 0
      %704 = vmatpush1.bf16.msra.mxu0 %v689
      %705 = vmatprep.subr.bf16.mxu0 0
      %706 = vmatpush1.bf16.msra.mxu0 %v691
      %707 = vmatprep.subr.bf16.mxu0 0
      %708 = vmatpush1.bf16.msra.mxu0 %v693
      %709 = vmatprep.subr.bf16.mxu0 0
      %710 = vmatpush1.bf16.msra.mxu0 %v695
      %711 = vmatprep.subr.bf16.mxu0 0
      %712 = vmatpush1.bf16.msra.mxu0 0
      %713 = vmatprep.subr.bf16.mxu0 0
      %714 = vmatpush1.bf16.msra.mxu0 0
      %715 = vmatprep.subr.bf16.mxu0 0
      %716 = vmatpush1.bf16.msra.mxu0 0
      %717 = vmatprep.subr.bf16.mxu0 0
      %718 = vmatpush1.bf16.msra.mxu0 0
      %719 = vmatprep.subr.bf16.mxu0 0
      %720 = vmatpush1.bf16.msra.mxu0 0
      %721 = vmatprep.subr.bf16.mxu0 0
      %722 = vmatpush1.bf16.msra.mxu0 0
      %723 = vmatprep.subr.bf16.mxu0 0
      %724 = vmatpush1.bf16.msra.mxu0 0
      %725 = vmatprep.subr.bf16.mxu0 0
      %726 = vmatpush1.bf16.msra.mxu0 0
      %727 = vmatprep.subr.bf16.mxu0 0
      %728 = vmatpush1.bf16.msra.mxu0 0
      %729 = vmatprep.subr.bf16.mxu0 0
      %730 = vmatpush1.bf16.msra.mxu0 0
      %731 = vmatprep.subr.bf16.mxu0 0
      %732 = vmatpush1.bf16.msra.mxu0 0
      %733 = vmatprep.subr.bf16.mxu0 0
      %734 = vmatpush1.bf16.msra.mxu0 0
      %735 = vmatprep.mubr.bf16.mxu0 0
      %736 = vmatmul.mubr.bf16.gmra.mrb[0].mxu0 %v701
      %v737 = vpop.f32.mrb[0].mxu0
      %v738 = vadd.f32 0.0, %v737
      %v739 = vpop.f32.mrb[0].mxu0
      %v740 = vpop.f32.mrb[0].mxu0
      %v741 = vpop.f32.mrb[0].mxu0
      %742 = vdwg.mxu0
      %744 = vrot.lane.b32.xlu0 %v474, 8
      %v745 = vpop.permute.xlu0 %744
      %748 = vrot.lane.b32.xlu0 %v606, 16
      %v749 = vpop.permute.xlu0 %748
      %752 = vrot.lane.b32.xlu0 %v738, 24
      %v753 = vpop.permute.xlu0 %752
      %v755 = vsel %vm220, %v339, %v745
      %vm756 = vcmask 130048
      %v757 = vsel %vm756, %v755, %v749
      %vm758 = vcmask 195584
      %v759 = vsel %vm758, %v757, %v753
      %v760 = vpack.c.bf16 %v759, %v759
      %vm761 = vcmask 257024
      %762 = vst.msk [vmem:[%s189] sm:$0xf] %vm761, %v760
      %p763 = scmp.lt.s32.totalorder %s17, 1
      %s764 = scalar_select %p763, %s17, 1
      %p765 = scmp.lt.s32.totalorder %s18, 0
      %s766 = scalar_select %p765, %s18, 0
      %s767 = sadd.s32 %s766, %s764
      %s768 = smul.addr %s767, 4
      %s769 = scalar_lea.vmem %s2, %s768
      // Predicated region
      $region29: #{_lambda_.40} parent=27 // pred_check
        %p770 = pneg %p99
      $region30: #{_lambda_.40} parent=27 // pred_check_branch
        %772 = sbr.rel (%p770) target = $region32
      $region31: #{_lambda_.40} parent=27 // pred_region
        _
      $region32: #{_lambda_.40} parent=27 // pred_fallthru
        _
    $region28: #{_lambda_.40} parent=5 // pred_fallthru
      _
    %p773 = scmp.le.s32.totalorder 2, %s8
    // Predicated region
    $region33: #{_lambda_.40} parent=5 // pred_check
      %p774 = pneg %p773
    $region34: #{_lambda_.40} parent=5 // pred_check_branch
      %776 = sbr.rel (%p774) target = $region36
    $region35: #{_lambda_.40} parent=5 // pred_region
      %s777 = ssub.s32 %s8, 2
      // Predicated region
      $region37: #{_lambda_.40} parent=35 // pred_check
        %p778 = pneg %p105
      $region38: #{_lambda_.40} parent=35 // pred_check_branch
        %780 = sbr.rel (%p778) target = $region40
      $region39: #{_lambda_.40} parent=35 // pred_region
        %p781 = scmp.lt.s32.totalorder %s19, 1
        %s782 = scalar_select %p781, %s19, 1
        %p783 = scmp.lt.s32.totalorder %s20, 0
        %s784 = scalar_select %p783, %s20, 0
        %s785 = sadd.s32 %s784, %s782
        %s786 = smul.addr %s785, 4
        %s787 = scalar_lea.vmem %s2, %s786
      $region40: #{_lambda_.40} parent=35 // pred_fallthru
        _
    $region36: #{_lambda_.40} parent=5 // pred_fallthru
      _
  $region6: #{_lambda_.40} parent=0 // loop_footer
    %s12 = sadd.s32 1, %s8
  $region7: #{_lambda_.40} parent=0 // loop_footer_branch
    %7 = sbr.rel target = $region3
  $region8: #{_lambda_.40} parent=0 // loop_exit
    _

// kernel: _lambda_.42
$region0: #{_lambda_.42}
  #allocation0 [shape = 'u32[]', space=smem, size = 0x4, offset = 0x4, fixed_abs, tag = 'smem constant byte address 0x4 - core index']
  #allocation1 [shape = 'u32[144,128]{1,0:T(1,128)}', space=vmem, size = 0x12000, scoped, tag = 'internal scratch']
  %s0 = inlined_call_operand.vmem [shape: bf16[16,32], index: 0, kind: input, shape index: {}]
  %s1 = inlined_call_operand.vmem [shape: bf16[32,64], index: 1, kind: input, shape index: {}]
  %s2 = inlined_call_operand.vmem [shape: f32[1,64], index: 2, kind: input, shape index: {}]
  %s3 = inlined_call_operand.vmem [shape: bf16[64,32], index: 3, kind: input, shape index: {}]
  %s4 = inlined_call_operand.vmem [shape: f32[1,32], index: 4, kind: input, shape index: {}]
  %s5 = inlined_call_operand.vmem [shape: f32[1,32], index: 5, kind: input, shape index: {}]
  %s6 = inlined_call_operand.vmem [shape: f32[1,32], index: 6, kind: input, shape index: {}]
  %s7 = inlined_call_operand.vmem [shape: bf16[16,32], index: 7, kind: output, shape index: {}]
  %s8 = sld [smem:[#allocation0]]
  $region61: #{_lambda_.42} parent=0
    _
  %s10 = ssub.s32 1, %s8
  %s11 = scalar_select 0, %s10, %s8
  loop: start=0, step=1, limit=4
  $region2: #{_lambda_.42} parent=0 // loop_pre_header
    _
  $region3: #{_lambda_.42} parent=0 // loop_header
    %s13 = sphi 0, %s17
    %p14 = scmp.ge.s32.totalorder %s13, 4
    %s23 = sphi 0, %s25
    %s26 = sphi 0, %s23
    %s27 = sphi 0, %s26
    %s43 = sphi 0, %s27
    %s47 = sphi 0, %s47
    %s49 = sphi 0, %s47
    %s50 = sphi 0, %s49
    %s64 = sphi 0, %s50
    %s68 = sphi 0, %s68
    %s70 = sphi 0, %s68
    %s71 = sphi 0, %s70
    %s85 = sphi 0, %s71
    %s89 = sphi 0, %s89
    %s91 = sphi 0, %s89
    %s92 = sphi 0, %s91
    %s106 = sphi 0, %s92
    %s110 = sphi 0, %s110
    %s112 = sphi 0, %s110
    %s113 = sphi 0, %s112
    %s127 = sphi 0, %s113
    %s131 = sphi 0, %s131
    %s133 = sphi 0, %s131
    %s134 = sphi 0, %s133
    %s148 = sphi 0, %s134
    %s152 = sphi 0, %s152
    %s154 = sphi 0, %s152
    %s155 = sphi 0, %s154
    %s169 = sphi 0, %s155
    %s175 = sphi 0, %s177
    %s178 = sphi 0, %s175
    %s179 = sphi 0, %s178
    %s195 = sphi 0, %s179
  $region4: #{_lambda_.42} parent=0 // loop_header_branch
    %16 = sbr.rel (%p14) target = $region8
  $region5: #{_lambda_.42} parent=0 // loop_body
    %s18 = ssub.s32 %s13, 1
    %s19 = ssub.s32 %s13, 2
    %s20 = sadd.s32 %s13, 1
    %s21 = ssub.s32 %s13, %s20
    %p22 = scmp.eq.s32.totalorder %s21, 0
    %s24 = sadd.s32 %s23, 1
    %s25 = scalar_select %p22, %s23, %s24
    %p28 = pneg %p22
    %p29 = scmp.eq.s32.totalorder %s13, 1
    %p30 = por %p28, %p29
    %p31 = scmp.ne.s32.totalorder %s23, %s26
    %p32 = scmp.eq.s32.totalorder %s13, 0
    %p33 = por %p31, %p32
    %p34 = scmp.ne.s32.totalorder %s23, %s26
    %p35 = scmp.eq.s32.totalorder %s18, 1
    %p36 = por %p34, %p35
    %p37 = scmp.ne.s32.totalorder %s26, %s27
    %p38 = scmp.eq.s32.totalorder %s18, 0
    %p39 = por %p37, %p38
    %p40 = scmp.ne.s32.totalorder %s26, %s27
    %p41 = scmp.eq.s32.totalorder %s19, 1
    %p42 = por %p40, %p41
    %p44 = scmp.ne.s32.totalorder %s27, %s43
    %p45 = scmp.eq.s32.totalorder %s19, 0
    %p46 = por %p44, %p45
    %s48 = sadd.s32 %s47, 1
    %p51 = scmp.eq.s32.totalorder %s13, 1
    %p52 = scmp.ne.s32.totalorder %s47, %s49
    %p53 = scmp.eq.s32.totalorder %s13, 0
    %p54 = por %p52, %p53
    %p55 = scmp.ne.s32.totalorder %s47, %s49
    %p56 = scmp.eq.s32.totalorder %s18, 1
    %p57 = por %p55, %p56
    %p58 = scmp.ne.s32.totalorder %s49, %s50
    %p59 = scmp.eq.s32.totalorder %s18, 0
    %p60 = por %p58, %p59
    %p61 = scmp.ne.s32.totalorder %s49, %s50
    %p62 = scmp.eq.s32.totalorder %s19, 1
    %p63 = por %p61, %p62
    %p65 = scmp.ne.s32.totalorder %s50, %s64
    %p66 = scmp.eq.s32.totalorder %s19, 0
    %p67 = por %p65, %p66
    %s69 = sadd.s32 %s68, 1
    %p72 = scmp.eq.s32.totalorder %s13, 1
    %p73 = scmp.ne.s32.totalorder %s68, %s70
    %p74 = scmp.eq.s32.totalorder %s13, 0
    %p75 = por %p73, %p74
    %p76 = scmp.ne.s32.totalorder %s68, %s70
    %p77 = scmp.eq.s32.totalorder %s18, 1
    %p78 = por %p76, %p77
    %p79 = scmp.ne.s32.totalorder %s70, %s71
    %p80 = scmp.eq.s32.totalorder %s18, 0
    %p81 = por %p79, %p80
    %p82 = scmp.ne.s32.totalorder %s70, %s71
    %p83 = scmp.eq.s32.totalorder %s19, 1
    %p84 = por %p82, %p83
    %p86 = scmp.ne.s32.totalorder %s71, %s85
    %p87 = scmp.eq.s32.totalorder %s19, 0
    %p88 = por %p86, %p87
    %s90 = sadd.s32 %s89, 1
    %p93 = scmp.eq.s32.totalorder %s13, 1
    %p94 = scmp.ne.s32.totalorder %s89, %s91
    %p95 = scmp.eq.s32.totalorder %s13, 0
    %p96 = por %p94, %p95
    %p97 = scmp.ne.s32.totalorder %s89, %s91
    %p98 = scmp.eq.s32.totalorder %s18, 1
    %p99 = por %p97, %p98
    %p100 = scmp.ne.s32.totalorder %s91, %s92
    %p101 = scmp.eq.s32.totalorder %s18, 0
    %p102 = por %p100, %p101
    %p103 = scmp.ne.s32.totalorder %s91, %s92
    %p104 = scmp.eq.s32.totalorder %s19, 1
    %p105 = por %p103, %p104
    %p107 = scmp.ne.s32.totalorder %s92, %s106
    %p108 = scmp.eq.s32.totalorder %s19, 0
    %p109 = por %p107, %p108
    %s111 = sadd.s32 %s110, 1
    %p114 = scmp.eq.s32.totalorder %s13, 1
    %p115 = scmp.ne.s32.totalorder %s110, %s112
    %p116 = scmp.eq.s32.totalorder %s13, 0
    %p117 = por %p115, %p116
    %p118 = scmp.ne.s32.totalorder %s110, %s112
    %p119 = scmp.eq.s32.totalorder %s18, 1
    %p120 = por %p118, %p119
    %p121 = scmp.ne.s32.totalorder %s112, %s113
    %p122 = scmp.eq.s32.totalorder %s18, 0
    %p123 = por %p121, %p122
    %p124 = scmp.ne.s32.totalorder %s112, %s113
    %p125 = scmp.eq.s32.totalorder %s19, 1
    %p126 = por %p124, %p125
    %p128 = scmp.ne.s32.totalorder %s113, %s127
    %p129 = scmp.eq.s32.totalorder %s19, 0
    %p130 = por %p128, %p129
    %s132 = sadd.s32 %s131, 1
    %p135 = scmp.eq.s32.totalorder %s13, 1
    %p136 = scmp.ne.s32.totalorder %s131, %s133
    %p137 = scmp.eq.s32.totalorder %s13, 0
    %p138 = por %p136, %p137
    %p139 = scmp.ne.s32.totalorder %s131, %s133
    %p140 = scmp.eq.s32.totalorder %s18, 1
    %p141 = por %p139, %p140
    %p142 = scmp.ne.s32.totalorder %s133, %s134
    %p143 = scmp.eq.s32.totalorder %s18, 0
    %p144 = por %p142, %p143
    %p145 = scmp.ne.s32.totalorder %s133, %s134
    %p146 = scmp.eq.s32.totalorder %s19, 1
    %p147 = por %p145, %p146
    %p149 = scmp.ne.s32.totalorder %s134, %s148
    %p150 = scmp.eq.s32.totalorder %s19, 0
    %p151 = por %p149, %p150
    %s153 = sadd.s32 %s152, 1
    %p156 = scmp.eq.s32.totalorder %s13, 1
    %p157 = scmp.ne.s32.totalorder %s152, %s154
    %p158 = scmp.eq.s32.totalorder %s13, 0
    %p159 = por %p157, %p158
    %p160 = scmp.ne.s32.totalorder %s152, %s154
    %p161 = scmp.eq.s32.totalorder %s18, 1
    %p162 = por %p160, %p161
    %p163 = scmp.ne.s32.totalorder %s154, %s155
    %p164 = scmp.eq.s32.totalorder %s18, 0
    %p165 = por %p163, %p164
    %p166 = scmp.ne.s32.totalorder %s154, %s155
    %p167 = scmp.eq.s32.totalorder %s19, 1
    %p168 = por %p166, %p167
    %p170 = scmp.ne.s32.totalorder %s155, %s169
    %p171 = scmp.eq.s32.totalorder %s19, 0
    %p172 = por %p170, %p171
    %s173 = ssub.s32 %s13, %s20
    %p174 = scmp.eq.s32.totalorder %s173, 0
    %s176 = sadd.s32 %s175, 1
    %s177 = scalar_select %p174, %s175, %s176
    %p180 = pneg %p174
    %p181 = scmp.eq.s32.totalorder %s13, 1
    %p182 = por %p180, %p181
    %p183 = scmp.ne.s32.totalorder %s175, %s178
    %p184 = scmp.eq.s32.totalorder %s13, 0
    %p185 = por %p183, %p184
    %p186 = scmp.ne.s32.totalorder %s175, %s178
    %p187 = scmp.eq.s32.totalorder %s18, 1
    %p188 = por %p186, %p187
    %p189 = scmp.ne.s32.totalorder %s178, %s179
    %p190 = scmp.eq.s32.totalorder %s18, 0
    %p191 = por %p189, %p190
    %p192 = scmp.ne.s32.totalorder %s178, %s179
    %p193 = scmp.eq.s32.totalorder %s19, 1
    %p194 = por %p192, %p193
    %p196 = scmp.ne.s32.totalorder %s179, %s195
    %p197 = scmp.eq.s32.totalorder %s19, 0
    %p198 = por %p196, %p197
    %p199 = scmp.le.s32.totalorder 1, %s13
    %p200 = scmp.lt.s32.totalorder %s13, 3
    %p201 = pnand %p199, %p200
    %p202 = pneg %p201
    // Predicated region
    $region9: #{_lambda_.42} parent=5 // pred_check
      _
    $region10: #{_lambda_.42} parent=5 // pred_check_branch
      %204 = sbr.rel (%p201) target = $region12
    $region11: #{_lambda_.42} parent=5 // pred_region
      %s205 = ssub.s32 %s13, 1
      // Predicated region
      $region13: #{_lambda_.42} parent=11 // pred_check
        %p206 = pneg %p60
      $region14: #{_lambda_.42} parent=11 // pred_check_branch
        %208 = sbr.rel (%p206) target = $region16
      $region15: #{_lambda_.42} parent=11 // pred_region
        _
      $region16: #{_lambda_.42} parent=11 // pred_fallthru
        _
      // Predicated region
      $region17: #{_lambda_.42} parent=11 // pred_check
        %p209 = pneg %p81
      $region18: #{_lambda_.42} parent=11 // pred_check_branch
        %211 = sbr.rel (%p209) target = $region20
      $region19: #{_lambda_.42} parent=11 // pred_region
        _
      $region20: #{_lambda_.42} parent=11 // pred_fallthru
        _
      // Predicated region
      $region21: #{_lambda_.42} parent=11 // pred_check
        %p212 = pneg %p102
      $region22: #{_lambda_.42} parent=11 // pred_check_branch
        %214 = sbr.rel (%p212) target = $region24
      $region23: #{_lambda_.42} parent=11 // pred_region
        _
      $region24: #{_lambda_.42} parent=11 // pred_fallthru
        _
      // Predicated region
      $region25: #{_lambda_.42} parent=11 // pred_check
        %p215 = pneg %p123
      $region26: #{_lambda_.42} parent=11 // pred_check_branch
        %217 = sbr.rel (%p215) target = $region28
      $region27: #{_lambda_.42} parent=11 // pred_region
        _
      $region28: #{_lambda_.42} parent=11 // pred_fallthru
        _
      // Predicated region
      $region29: #{_lambda_.42} parent=11 // pred_check
        %p218 = pneg %p144
      $region30: #{_lambda_.42} parent=11 // pred_check_branch
        %220 = sbr.rel (%p218) target = $region32
      $region31: #{_lambda_.42} parent=11 // pred_region
        _
      $region32: #{_lambda_.42} parent=11 // pred_fallthru
        _
      // Predicated region
      $region33: #{_lambda_.42} parent=11 // pred_check
        %p221 = pneg %p165
      $region34: #{_lambda_.42} parent=11 // pred_check_branch
        %223 = sbr.rel (%p221) target = $region36
      $region35: #{_lambda_.42} parent=11 // pred_region
        _
      $region36: #{_lambda_.42} parent=11 // pred_fallthru
        _
    $region12: #{_lambda_.42} parent=5 // pred_fallthru
      _
    %p224 = scmp.lt.s32.totalorder %s13, 2
    // Predicated region
    $region37: #{_lambda_.42} parent=5 // pred_check
      %p225 = pneg %p224
    $region38: #{_lambda_.42} parent=5 // pred_check_branch
      %227 = sbr.rel (%p225) target = $region40
    $region39: #{_lambda_.42} parent=5 // pred_region
      // Predicated region
      $region41: #{_lambda_.42} parent=39 // pred_check
        %p228 = pneg %p33
      $region42: #{_lambda_.42} parent=39 // pred_check_branch
        %230 = sbr.rel (%p228) target = $region44
      $region43: #{_lambda_.42} parent=39 // pred_region
        %p231 = scmp.lt.s32.totalorder %s13, 1
        %s232 = scalar_select %p231, %s13, 1
        %s233 = smul.addr %s232, 4
        %s234 = scalar_lea.vmem %s0, %s233
      $region44: #{_lambda_.42} parent=39 // pred_fallthru
        _
    $region40: #{_lambda_.42} parent=5 // pred_fallthru
      _
    %p235 = scmp.le.s32.totalorder 1, %s13
    %p236 = scmp.lt.s32.totalorder %s13, 3
    %p237 = pnand %p235, %p236
    %p238 = pneg %p237
    // Predicated region
    $region45: #{_lambda_.42} parent=5 // pred_check
      _
    $region46: #{_lambda_.42} parent=5 // pred_check_branch
      %240 = sbr.rel (%p237) target = $region48
    $region47: #{_lambda_.42} parent=5 // pred_region
      %s241 = ssub.s32 %s13, 1
      %p242 = scmp.lt.s32.totalorder %s18, 1
      %s243 = scalar_select %p242, %s18, 1
      %s244 = smul.addr %s243, 4
      %s245 = scalar_lea.vmem %s0, %s244
      %p246 = pneg %p39
      %p247 = pneg %p36
      %p248 = pneg %p60
      %p249 = pneg %p57
      %p250 = pneg %p81
      %p251 = pneg %p78
      %p252 = pneg %p102
      %p253 = pneg %p99
      %p254 = pneg %p123
      %p255 = pneg %p120
      %p256 = pneg %p144
      %p257 = pneg %p141
      %p258 = pneg %p165
      %p259 = pneg %p162
      %p260 = pneg %p191
      %p261 = pneg %p188
      %p262 = scmp.lt.s32.totalorder %s18, 1
      %s263 = scalar_select %p262, %s18, 1
      %s264 = smul.addr %s263, 4
      %s265 = scalar_lea.vmem %s7, %s264
      %p266 = scmp.lt.s32.totalorder %s18, 1
      %s267 = scalar_select %p266, %s18, 1
      %s268 = smul.addr %s267, 4
      %s269 = scalar_lea.vmem %s0, %s268
      %p270 = scmp.lt.s32.totalorder %s18, 1
      %s271 = scalar_select %p270, %s18, 1
      %s272 = smul.addr %s271, 4
      %s273 = scalar_lea.vmem %s7, %s272
      %v275 = vld [vmem:[%s269] sm:$0xf]
      %v276 = vld [vmem:[%s1] sm:$0xf]
      %v277 = vld [vmem:[%s1 + $0x4] sm:$0xf]
      %v278 = vld [vmem:[%s1 + $0x8] sm:$0xf]
      %v279 = vld [vmem:[%s1 + $0xc] sm:$0xf]
      %v280 = vld [vmem:[%s2] sm:$0x1]
      %v282 = vlaneseq
      %v283 = vshrl.u32 %v282, 7
      %v284 = vsub.s32 0, %v283
      %v285 = vrot.slane %v280, %v284
      %v291 = vunpack.c.l.b16 %v276
      %v292 = vunpack.c.l.b16 %v277
      %v293 = vunpack.c.l.b16 %v278
      %v294 = vunpack.c.l.b16 %v279
      %v295 = vpack.c.b16 %v292, %v291
      %v296 = vpack.c.b16 %v294, %v293
      %vm299 = vcmask 261120
      %v301 = vsel %vm299, %v275, 0
      %303 = vmatprep.subr.bf16.mxu0 0
      %304 = vmatpush1.bf16.msra.mxu0 %v295
      %305 = vmatprep.subr.bf16.mxu0 0
      %306 = vmatpush1.bf16.msra.mxu0 %v296
      %307 = vmatprep.subr.bf16.mxu0 0
      %308 = vmatpush1.bf16.msra.mxu0 0
      %309 = vmatprep.subr.bf16.mxu0 0
      %310 = vmatpush1.bf16.msra.mxu0 0
      %311 = vmatprep.subr.bf16.mxu0 0
      %312 = vmatpush1.bf16.msra.mxu0 0
      %313 = vmatprep.subr.bf16.mxu0 0
      %314 = vmatpush1.bf16.msra.mxu0 0
      %315 = vmatprep.subr.bf16.mxu0 0
      %316 = vmatpush1.bf16.msra.mxu0 0
      %317 = vmatprep.subr.bf16.mxu0 0
      %318 = vmatpush1.bf16.msra.mxu0 0
      %319 = vmatprep.subr.bf16.mxu0 0
      %320 = vmatpush1.bf16.msra.mxu0 0
      %321 = vmatprep.subr.bf16.mxu0 0
      %322 = vmatpush1.bf16.msra.mxu0 0
      %323 = vmatprep.subr.bf16.mxu0 0
      %324 = vmatpush1.bf16.msra.mxu0 0
      %325 = vmatprep.subr.bf16.mxu0 0
      %326 = vmatpush1.bf16.msra.mxu0 0
      %327 = vmatprep.subr.bf16.mxu0 0
      %328 = vmatpush1.bf16.msra.mxu0 0
      %329 = vmatprep.subr.bf16.mxu0 0
      %330 = vmatpush1.bf16.msra.mxu0 0
      %331 = vmatprep.subr.bf16.mxu0 0
      %332 = vmatpush1.bf16.msra.mxu0 0
      %333 = vmatprep.subr.bf16.mxu0 0
      %334 = vmatpush1.bf16.msra.mxu0 0
      %335 = vmatprep.mubr.bf16.mxu0 0
      %336 = vmatmul.mubr.bf16.gmra.mrb[0].mxu0 %v301
      %v337 = vpop.f32.mrb[0].mxu0
      %v338 = vadd.f32 %v285, %v337
      %v339 = vpop.f32.mrb[0].mxu0
      %v340 = vpop.f32.mrb[0].mxu0
      %v341 = vpop.f32.mrb[0].mxu0
      %342 = vdwg.mxu0
      %v343 = vmax.f32 %v338, 0.0
      %v344 = vpack.c.bf16 %v343, %v343
      %v345 = vld [vmem:[%s3] sm:$0xf]
      %v346 = vld [vmem:[%s3 + $0x4] sm:$0xf]
      %v347 = vld [vmem:[%s3 + $0x8] sm:$0xf]
      %v348 = vld [vmem:[%s3 + $0xc] sm:$0xf]
      %v349 = vld [vmem:[%s3 + $0x10] sm:$0xf]
      %v350 = vld [vmem:[%s3 + $0x14] sm:$0xf]
      %v351 = vld [vmem:[%s3 + $0x18] sm:$0xf]
      %v352 = vld [vmem:[%s3 + $0x1c] sm:$0xf]
      %v353 = vld [vmem:[%s4] sm:$0x1]
      %v355 = vlaneseq
      %v356 = vshrl.u32 %v355, 7
      %v357 = vsub.s32 0, %v356
      %v358 = vrot.slane %v353, %v357
      %v368 = vunpack.c.l.b16 %v345
      %v369 = vunpack.c.l.b16 %v346
      %v370 = vunpack.c.l.b16 %v347
      %v371 = vunpack.c.l.b16 %v348
      %v372 = vunpack.c.l.b16 %v349
      %v373 = vunpack.c.l.b16 %v350
      %v374 = vunpack.c.l.b16 %v351
      %v375 = vunpack.c.l.b16 %v352
      %v376 = vpack.c.b16 %v369, %v368
      %v377 = vpack.c.b16 %v371, %v370
      %v378 = vpack.c.b16 %v373, %v372
      %v379 = vpack.c.b16 %v375, %v374
      %vm384 = vcmask 523264
      %v386 = vsel %vm384, %v344, 0
      %388 = vmatprep.subr.bf16.mxu0 0
      %389 = vmatpush1.bf16.msra.mxu0 %v376
      %390 = vmatprep.subr.bf16.mxu0 0
      %391 = vmatpush1.bf16.msra.mxu0 %v377
      %392 = vmatprep.subr.bf16.mxu0 0
      %393 = vmatpush1.bf16.msra.mxu0 %v378
      %394 = vmatprep.subr.bf16.mxu0 0
      %395 = vmatpush1.bf16.msra.mxu0 %v379
      %396 = vmatprep.subr.bf16.mxu0 0
      %397 = vmatpush1.bf16.msra.mxu0 0
      %398 = vmatprep.subr.bf16.mxu0 0
      %399 = vmatpush1.bf16.msra.mxu0 0
      %400 = vmatprep.subr.bf16.mxu0 0
      %401 = vmatpush1.bf16.msra.mxu0 0
      %402 = vmatprep.subr.bf16.mxu0 0
      %403 = vmatpush1.bf16.msra.mxu0 0
      %404 = vmatprep.subr.bf16.mxu0 0
      %405 = vmatpush1.bf16.msra.mxu0 0
      %406 = vmatprep.subr.bf16.mxu0 0
      %407 = vmatpush1.bf16.msra.mxu0 0
      %408 = vmatprep.subr.bf16.mxu0 0
      %409 = vmatpush1.bf16.msra.mxu0 0
      %410 = vmatprep.subr.bf16.mxu0 0
      %411 = vmatpush1.bf16.msra.mxu0 0
      %412 = vmatprep.subr.bf16.mxu0 0
      %413 = vmatpush1.bf16.msra.mxu0 0
      %414 = vmatprep.subr.bf16.mxu0 0
      %415 = vmatpush1.bf16.msra.mxu0 0
      %416 = vmatprep.subr.bf16.mxu0 0
      %417 = vmatpush1.bf16.msra.mxu0 0
      %418 = vmatprep.subr.bf16.mxu0 0
      %419 = vmatpush1.bf16.msra.mxu0 0
      %420 = vmatprep.mubr.bf16.mxu0 0
      %421 = vmatmul.mubr.bf16.gmra.mrb[0].mxu0 %v386
      %v422 = vpop.f32.mrb[0].mxu0
      %v423 = vadd.f32 %v358, %v422
      %v424 = vpop.f32.mrb[0].mxu0
      %v425 = vpop.f32.mrb[0].mxu0
      %v426 = vpop.f32.mrb[0].mxu0
      %427 = vdwg.mxu0
      %v428 = vunpack.c.l.bf16 %v275
      %v429 = vadd.f32 %v428, %v423
      %v430 = vld [vmem:[%s5] sm:$0x1]
      %v431 = vld [vmem:[%s6] sm:$0x1]
      %v432 = vsel %vm299, %v429, 0.0
      %433 = vadd.xlane.f32.xlu0 %v432
      %v434 = vpop.xlane.xlu0 %433
      %v435 = vrcp.pop 32.0
      %v436 = vmul.f32 %v434, %v435
      %v437 = vsub.f32 %v429, %v436
      %v438 = vmul.f32 %v437, %v437
      %v439 = vsel %vm299, %v438, 0.0
      %440 = vadd.xlane.f32.xlu0 %v439
      %v441 = vpop.xlane.xlu0 %440
      %v442 = vmul.f32 %v441, %v435
      %v443 = vadd.f32 %v442, 1e-05
      %v444 = vrsqrt.pop %v443
      %v445 = vmul.f32 %v437, %v444
      %v447 = vlaneseq
      %v448 = vshrl.u32 %v447, 7
      %v449 = vsub.s32 0, %v448
      %v450 = vrot.slane %v430, %v449
      %v452 = vmul.f32 %v445, %v450
      %v454 = vlaneseq
      %v455 = vshrl.u32 %v454, 7
      %v456 = vsub.s32 0, %v455
      %v457 = vrot.slane %v431, %v456
      %v459 = vadd.f32 %v452, %v457
      %v460 = vpack.c.bf16 %v459, %v459
      %vm461 = vcmask 257024
      %462 = vst.msk [vmem:[%s273] sm:$0xf] %vm461, %v460
      %p463 = scmp.lt.s32.totalorder %s18, 1
      %s464 = scalar_select %p463, %s18, 1
      %s465 = smul.addr %s464, 4
      %s466 = scalar_lea.vmem %s7, %s465
      // Predicated region
      $region49: #{_lambda_.42} parent=47 // pred_check
        %p467 = pneg %p188
      $region50: #{_lambda_.42} parent=47 // pred_check_branch
        %469 = sbr.rel (%p467) target = $region52
      $region51: #{_lambda_.42} parent=47 // pred_region
        _
      $region52: #{_lambda_.42} parent=47 // pred_fallthru
        _
    $region48: #{_lambda_.42} parent=5 // pred_fallthru
      _
    %p470 = scmp.le.s32.totalorder 2, %s13
    // Predicated region
    $region53: #{_lambda_.42} parent=5 // pred_check
      %p471 = pneg %p470
    $region54: #{_lambda_.42} parent=5 // pred_check_branch
      %473 = sbr.rel (%p471) target = $region56
    $region55: #{_lambda_.42} parent=5 // pred_region
      %s474 = ssub.s32 %s13, 2
      // Predicated region
      $region57: #{_lambda_.42} parent=55 // pred_check
        %p475 = pneg %p194
      $region58: #{_lambda_.42} parent=55 // pred_check_branch
        %477 = sbr.rel (%p475) target = $region60
      $region59: #{_lambda_.42} parent=55 // pred_region
        %p478 = scmp.lt.s32.totalorder %s19, 1
        %s479 = scalar_select %p478, %s19, 1
        %s480 = smul.addr %s479, 4
        %s481 = scalar_lea.vmem %s7, %s480
      $region60: #{_lambda_.42} parent=55 // pred_fallthru
        _
    $region56: #{_lambda_.42} parent=5 // pred_fallthru
      _
  $region6: #{_lambda_.42} parent=0 // loop_footer
    %s17 = sadd.s32 1, %s13
  $region7: #{_lambda_.42} parent=0 // loop_footer_branch
    %12 = sbr.rel target = $region3
  $region8: #{_lambda_.42} parent=0 // loop_exit
    _

// kernel: _lambda_.51
$region0: #{_lambda_.51}
  #allocation0 [shape = 'u32[]', space=smem, size = 0x4, offset = 0x4, fixed_abs, tag = 'smem constant byte address 0x4 - core index']
  #allocation1 [shape = 'u32[144,128]{1,0:T(1,128)}', space=vmem, size = 0x12000, scoped, tag = 'internal scratch']
  %s0 = inlined_call_operand.vmem [shape: bf16[16,32], index: 0, kind: input, shape index: {}]
  %s1 = inlined_call_operand.vmem [shape: f32[1,32], index: 1, kind: input, shape index: {}]
  %s2 = inlined_call_operand.vmem [shape: f32[1,32], index: 2, kind: input, shape index: {}]
  %s3 = inlined_call_operand.vmem [shape: bf16[32,32], index: 3, kind: input, shape index: {}]
  %s4 = inlined_call_operand.vmem [shape: f32[1,32], index: 4, kind: input, shape index: {}]
  %s5 = inlined_call_operand.vmem [shape: bf16[32,32], index: 5, kind: input, shape index: {}]
  %s6 = inlined_call_operand.vmem [shape: f32[1,32], index: 6, kind: input, shape index: {}]
  %s7 = inlined_call_operand.vmem [shape: bf16[32,4], index: 7, kind: input, shape index: {}]
  %s8 = inlined_call_operand.vmem [shape: f32[1,4], index: 8, kind: input, shape index: {}]
  %s9 = inlined_call_operand.vmem [shape: f32[16,4], index: 9, kind: output, shape index: {}]
  %s10 = sld [smem:[#allocation0]]
  $region69: #{_lambda_.51} parent=0
    _
  %s12 = ssub.s32 1, %s10
  %s13 = scalar_select 0, %s12, %s10
  loop: start=0, step=1, limit=4
  $region2: #{_lambda_.51} parent=0 // loop_pre_header
    _
  $region3: #{_lambda_.51} parent=0 // loop_header
    %s15 = sphi 0, %s19
    %p16 = scmp.ge.s32.totalorder %s15, 4
    %s25 = sphi 0, %s27
    %s28 = sphi 0, %s25
    %s29 = sphi 0, %s28
    %s45 = sphi 0, %s29
    %s49 = sphi 0, %s49
    %s51 = sphi 0, %s49
    %s52 = sphi 0, %s51
    %s66 = sphi 0, %s52
    %s70 = sphi 0, %s70
    %s72 = sphi 0, %s70
    %s73 = sphi 0, %s72
    %s87 = sphi 0, %s73
    %s91 = sphi 0, %s91
    %s93 = sphi 0, %s91
    %s94 = sphi 0, %s93
    %s108 = sphi 0, %s94
    %s112 = sphi 0, %s112
    %s114 = sphi 0, %s112
    %s115 = sphi 0, %s114
    %s129 = sphi 0, %s115
    %s133 = sphi 0, %s133
    %s135 = sphi 0, %s133
    %s136 = sphi 0, %s135
    %s150 = sphi 0, %s136
    %s154 = sphi 0, %s154
    %s156 = sphi 0, %s154
    %s157 = sphi 0, %s156
    %s171 = sphi 0, %s157
    %s175 = sphi 0, %s175
    %s177 = sphi 0, %s175
    %s178 = sphi 0, %s177
    %s192 = sphi 0, %s178
    %s196 = sphi 0, %s196
    %s198 = sphi 0, %s196
    %s199 = sphi 0, %s198
    %s213 = sphi 0, %s199
    %s219 = sphi 0, %s221
    %s222 = sphi 0, %s219
    %s223 = sphi 0, %s222
    %s239 = sphi 0, %s223
  $region4: #{_lambda_.51} parent=0 // loop_header_branch
    %18 = sbr.rel (%p16) target = $region8
  $region5: #{_lambda_.51} parent=0 // loop_body
    %s20 = ssub.s32 %s15, 1
    %s21 = ssub.s32 %s15, 2
    %s22 = sadd.s32 %s15, 1
    %s23 = ssub.s32 %s15, %s22
    %p24 = scmp.eq.s32.totalorder %s23, 0
    %s26 = sadd.s32 %s25, 1
    %s27 = scalar_select %p24, %s25, %s26
    %p30 = pneg %p24
    %p31 = scmp.eq.s32.totalorder %s15, 1
    %p32 = por %p30, %p31
    %p33 = scmp.ne.s32.totalorder %s25, %s28
    %p34 = scmp.eq.s32.totalorder %s15, 0
    %p35 = por %p33, %p34
    %p36 = scmp.ne.s32.totalorder %s25, %s28
    %p37 = scmp.eq.s32.totalorder %s20, 1
    %p38 = por %p36, %p37
    %p39 = scmp.ne.s32.totalorder %s28, %s29
    %p40 = scmp.eq.s32.totalorder %s20, 0
    %p41 = por %p39, %p40
    %p42 = scmp.ne.s32.totalorder %s28, %s29
    %p43 = scmp.eq.s32.totalorder %s21, 1
    %p44 = por %p42, %p43
    %p46 = scmp.ne.s32.totalorder %s29, %s45
    %p47 = scmp.eq.s32.totalorder %s21, 0
    %p48 = por %p46, %p47
    %s50 = sadd.s32 %s49, 1
    %p53 = scmp.eq.s32.totalorder %s15, 1
    %p54 = scmp.ne.s32.totalorder %s49, %s51
    %p55 = scmp.eq.s32.totalorder %s15, 0
    %p56 = por %p54, %p55
    %p57 = scmp.ne.s32.totalorder %s49, %s51
    %p58 = scmp.eq.s32.totalorder %s20, 1
    %p59 = por %p57, %p58
    %p60 = scmp.ne.s32.totalorder %s51, %s52
    %p61 = scmp.eq.s32.totalorder %s20, 0
    %p62 = por %p60, %p61
    %p63 = scmp.ne.s32.totalorder %s51, %s52
    %p64 = scmp.eq.s32.totalorder %s21, 1
    %p65 = por %p63, %p64
    %p67 = scmp.ne.s32.totalorder %s52, %s66
    %p68 = scmp.eq.s32.totalorder %s21, 0
    %p69 = por %p67, %p68
    %s71 = sadd.s32 %s70, 1
    %p74 = scmp.eq.s32.totalorder %s15, 1
    %p75 = scmp.ne.s32.totalorder %s70, %s72
    %p76 = scmp.eq.s32.totalorder %s15, 0
    %p77 = por %p75, %p76
    %p78 = scmp.ne.s32.totalorder %s70, %s72
    %p79 = scmp.eq.s32.totalorder %s20, 1
    %p80 = por %p78, %p79
    %p81 = scmp.ne.s32.totalorder %s72, %s73
    %p82 = scmp.eq.s32.totalorder %s20, 0
    %p83 = por %p81, %p82
    %p84 = scmp.ne.s32.totalorder %s72, %s73
    %p85 = scmp.eq.s32.totalorder %s21, 1
    %p86 = por %p84, %p85
    %p88 = scmp.ne.s32.totalorder %s73, %s87
    %p89 = scmp.eq.s32.totalorder %s21, 0
    %p90 = por %p88, %p89
    %s92 = sadd.s32 %s91, 1
    %p95 = scmp.eq.s32.totalorder %s15, 1
    %p96 = scmp.ne.s32.totalorder %s91, %s93
    %p97 = scmp.eq.s32.totalorder %s15, 0
    %p98 = por %p96, %p97
    %p99 = scmp.ne.s32.totalorder %s91, %s93
    %p100 = scmp.eq.s32.totalorder %s20, 1
    %p101 = por %p99, %p100
    %p102 = scmp.ne.s32.totalorder %s93, %s94
    %p103 = scmp.eq.s32.totalorder %s20, 0
    %p104 = por %p102, %p103
    %p105 = scmp.ne.s32.totalorder %s93, %s94
    %p106 = scmp.eq.s32.totalorder %s21, 1
    %p107 = por %p105, %p106
    %p109 = scmp.ne.s32.totalorder %s94, %s108
    %p110 = scmp.eq.s32.totalorder %s21, 0
    %p111 = por %p109, %p110
    %s113 = sadd.s32 %s112, 1
    %p116 = scmp.eq.s32.totalorder %s15, 1
    %p117 = scmp.ne.s32.totalorder %s112, %s114
    %p118 = scmp.eq.s32.totalorder %s15, 0
    %p119 = por %p117, %p118
    %p120 = scmp.ne.s32.totalorder %s112, %s114
    %p121 = scmp.eq.s32.totalorder %s20, 1
    %p122 = por %p120, %p121
    %p123 = scmp.ne.s32.totalorder %s114, %s115
    %p124 = scmp.eq.s32.totalorder %s20, 0
    %p125 = por %p123, %p124
    %p126 = scmp.ne.s32.totalorder %s114, %s115
    %p127 = scmp.eq.s32.totalorder %s21, 1
    %p128 = por %p126, %p127
    %p130 = scmp.ne.s32.totalorder %s115, %s129
    %p131 = scmp.eq.s32.totalorder %s21, 0
    %p132 = por %p130, %p131
    %s134 = sadd.s32 %s133, 1
    %p137 = scmp.eq.s32.totalorder %s15, 1
    %p138 = scmp.ne.s32.totalorder %s133, %s135
    %p139 = scmp.eq.s32.totalorder %s15, 0
    %p140 = por %p138, %p139
    %p141 = scmp.ne.s32.totalorder %s133, %s135
    %p142 = scmp.eq.s32.totalorder %s20, 1
    %p143 = por %p141, %p142
    %p144 = scmp.ne.s32.totalorder %s135, %s136
    %p145 = scmp.eq.s32.totalorder %s20, 0
    %p146 = por %p144, %p145
    %p147 = scmp.ne.s32.totalorder %s135, %s136
    %p148 = scmp.eq.s32.totalorder %s21, 1
    %p149 = por %p147, %p148
    %p151 = scmp.ne.s32.totalorder %s136, %s150
    %p152 = scmp.eq.s32.totalorder %s21, 0
    %p153 = por %p151, %p152
    %s155 = sadd.s32 %s154, 1
    %p158 = scmp.eq.s32.totalorder %s15, 1
    %p159 = scmp.ne.s32.totalorder %s154, %s156
    %p160 = scmp.eq.s32.totalorder %s15, 0
    %p161 = por %p159, %p160
    %p162 = scmp.ne.s32.totalorder %s154, %s156
    %p163 = scmp.eq.s32.totalorder %s20, 1
    %p164 = por %p162, %p163
    %p165 = scmp.ne.s32.totalorder %s156, %s157
    %p166 = scmp.eq.s32.totalorder %s20, 0
    %p167 = por %p165, %p166
    %p168 = scmp.ne.s32.totalorder %s156, %s157
    %p169 = scmp.eq.s32.totalorder %s21, 1
    %p170 = por %p168, %p169
    %p172 = scmp.ne.s32.totalorder %s157, %s171
    %p173 = scmp.eq.s32.totalorder %s21, 0
    %p174 = por %p172, %p173
    %s176 = sadd.s32 %s175, 1
    %p179 = scmp.eq.s32.totalorder %s15, 1
    %p180 = scmp.ne.s32.totalorder %s175, %s177
    %p181 = scmp.eq.s32.totalorder %s15, 0
    %p182 = por %p180, %p181
    %p183 = scmp.ne.s32.totalorder %s175, %s177
    %p184 = scmp.eq.s32.totalorder %s20, 1
    %p185 = por %p183, %p184
    %p186 = scmp.ne.s32.totalorder %s177, %s178
    %p187 = scmp.eq.s32.totalorder %s20, 0
    %p188 = por %p186, %p187
    %p189 = scmp.ne.s32.totalorder %s177, %s178
    %p190 = scmp.eq.s32.totalorder %s21, 1
    %p191 = por %p189, %p190
    %p193 = scmp.ne.s32.totalorder %s178, %s192
    %p194 = scmp.eq.s32.totalorder %s21, 0
    %p195 = por %p193, %p194
    %s197 = sadd.s32 %s196, 1
    %p200 = scmp.eq.s32.totalorder %s15, 1
    %p201 = scmp.ne.s32.totalorder %s196, %s198
    %p202 = scmp.eq.s32.totalorder %s15, 0
    %p203 = por %p201, %p202
    %p204 = scmp.ne.s32.totalorder %s196, %s198
    %p205 = scmp.eq.s32.totalorder %s20, 1
    %p206 = por %p204, %p205
    %p207 = scmp.ne.s32.totalorder %s198, %s199
    %p208 = scmp.eq.s32.totalorder %s20, 0
    %p209 = por %p207, %p208
    %p210 = scmp.ne.s32.totalorder %s198, %s199
    %p211 = scmp.eq.s32.totalorder %s21, 1
    %p212 = por %p210, %p211
    %p214 = scmp.ne.s32.totalorder %s199, %s213
    %p215 = scmp.eq.s32.totalorder %s21, 0
    %p216 = por %p214, %p215
    %s217 = ssub.s32 %s15, %s22
    %p218 = scmp.eq.s32.totalorder %s217, 0
    %s220 = sadd.s32 %s219, 1
    %s221 = scalar_select %p218, %s219, %s220
    %p224 = pneg %p218
    %p225 = scmp.eq.s32.totalorder %s15, 1
    %p226 = por %p224, %p225
    %p227 = scmp.ne.s32.totalorder %s219, %s222
    %p228 = scmp.eq.s32.totalorder %s15, 0
    %p229 = por %p227, %p228
    %p230 = scmp.ne.s32.totalorder %s219, %s222
    %p231 = scmp.eq.s32.totalorder %s20, 1
    %p232 = por %p230, %p231
    %p233 = scmp.ne.s32.totalorder %s222, %s223
    %p234 = scmp.eq.s32.totalorder %s20, 0
    %p235 = por %p233, %p234
    %p236 = scmp.ne.s32.totalorder %s222, %s223
    %p237 = scmp.eq.s32.totalorder %s21, 1
    %p238 = por %p236, %p237
    %p240 = scmp.ne.s32.totalorder %s223, %s239
    %p241 = scmp.eq.s32.totalorder %s21, 0
    %p242 = por %p240, %p241
    %p243 = scmp.le.s32.totalorder 1, %s15
    %p244 = scmp.lt.s32.totalorder %s15, 3
    %p245 = pnand %p243, %p244
    %p246 = pneg %p245
    // Predicated region
    $region9: #{_lambda_.51} parent=5 // pred_check
      _
    $region10: #{_lambda_.51} parent=5 // pred_check_branch
      %248 = sbr.rel (%p245) target = $region12
    $region11: #{_lambda_.51} parent=5 // pred_region
      %s249 = ssub.s32 %s15, 1
      // Predicated region
      $region13: #{_lambda_.51} parent=11 // pred_check
        %p250 = pneg %p62
      $region14: #{_lambda_.51} parent=11 // pred_check_branch
        %252 = sbr.rel (%p250) target = $region16
      $region15: #{_lambda_.51} parent=11 // pred_region
        _
      $region16: #{_lambda_.51} parent=11 // pred_fallthru
        _
      // Predicated region
      $region17: #{_lambda_.51} parent=11 // pred_check
        %p253 = pneg %p83
      $region18: #{_lambda_.51} parent=11 // pred_check_branch
        %255 = sbr.rel (%p253) target = $region20
      $region19: #{_lambda_.51} parent=11 // pred_region
        _
      $region20: #{_lambda_.51} parent=11 // pred_fallthru
        _
      // Predicated region
      $region21: #{_lambda_.51} parent=11 // pred_check
        %p256 = pneg %p104
      $region22: #{_lambda_.51} parent=11 // pred_check_branch
        %258 = sbr.rel (%p256) target = $region24
      $region23: #{_lambda_.51} parent=11 // pred_region
        _
      $region24: #{_lambda_.51} parent=11 // pred_fallthru
        _
      // Predicated region
      $region25: #{_lambda_.51} parent=11 // pred_check
        %p259 = pneg %p125
      $region26: #{_lambda_.51} parent=11 // pred_check_branch
        %261 = sbr.rel (%p259) target = $region28
      $region27: #{_lambda_.51} parent=11 // pred_region
        _
      $region28: #{_lambda_.51} parent=11 // pred_fallthru
        _
      // Predicated region
      $region29: #{_lambda_.51} parent=11 // pred_check
        %p262 = pneg %p146
      $region30: #{_lambda_.51} parent=11 // pred_check_branch
        %264 = sbr.rel (%p262) target = $region32
      $region31: #{_lambda_.51} parent=11 // pred_region
        _
      $region32: #{_lambda_.51} parent=11 // pred_fallthru
        _
      // Predicated region
      $region33: #{_lambda_.51} parent=11 // pred_check
        %p265 = pneg %p167
      $region34: #{_lambda_.51} parent=11 // pred_check_branch
        %267 = sbr.rel (%p265) target = $region36
      $region35: #{_lambda_.51} parent=11 // pred_region
        _
      $region36: #{_lambda_.51} parent=11 // pred_fallthru
        _
      // Predicated region
      $region37: #{_lambda_.51} parent=11 // pred_check
        %p268 = pneg %p188
      $region38: #{_lambda_.51} parent=11 // pred_check_branch
        %270 = sbr.rel (%p268) target = $region40
      $region39: #{_lambda_.51} parent=11 // pred_region
        _
      $region40: #{_lambda_.51} parent=11 // pred_fallthru
        _
      // Predicated region
      $region41: #{_lambda_.51} parent=11 // pred_check
        %p271 = pneg %p209
      $region42: #{_lambda_.51} parent=11 // pred_check_branch
        %273 = sbr.rel (%p271) target = $region44
      $region43: #{_lambda_.51} parent=11 // pred_region
        _
      $region44: #{_lambda_.51} parent=11 // pred_fallthru
        _
    $region12: #{_lambda_.51} parent=5 // pred_fallthru
      _
    %p274 = scmp.lt.s32.totalorder %s15, 2
    // Predicated region
    $region45: #{_lambda_.51} parent=5 // pred_check
      %p275 = pneg %p274
    $region46: #{_lambda_.51} parent=5 // pred_check_branch
      %277 = sbr.rel (%p275) target = $region48
    $region47: #{_lambda_.51} parent=5 // pred_region
      // Predicated region
      $region49: #{_lambda_.51} parent=47 // pred_check
        %p278 = pneg %p35
      $region50: #{_lambda_.51} parent=47 // pred_check_branch
        %280 = sbr.rel (%p278) target = $region52
      $region51: #{_lambda_.51} parent=47 // pred_region
        %p281 = scmp.lt.s32.totalorder %s15, 1
        %s282 = scalar_select %p281, %s15, 1
        %s283 = smul.addr %s282, 4
        %s284 = scalar_lea.vmem %s0, %s283
      $region52: #{_lambda_.51} parent=47 // pred_fallthru
        _
    $region48: #{_lambda_.51} parent=5 // pred_fallthru
      _
    %p285 = scmp.le.s32.totalorder 1, %s15
    %p286 = scmp.lt.s32.totalorder %s15, 3
    %p287 = pnand %p285, %p286
    %p288 = pneg %p287
    // Predicated region
    $region53: #{_lambda_.51} parent=5 // pred_check
      _
    $region54: #{_lambda_.51} parent=5 // pred_check_branch
      %290 = sbr.rel (%p287) target = $region56
    $region55: #{_lambda_.51} parent=5 // pred_region
      %s291 = ssub.s32 %s15, 1
      %p292 = scmp.lt.s32.totalorder %s20, 1
      %s293 = scalar_select %p292, %s20, 1
      %s294 = smul.addr %s293, 4
      %s295 = scalar_lea.vmem %s0, %s294
      %p296 = pneg %p41
      %p297 = pneg %p38
      %p298 = pneg %p62
      %p299 = pneg %p59
      %p300 = pneg %p83
      %p301 = pneg %p80
      %p302 = pneg %p104
      %p303 = pneg %p101
      %p304 = pneg %p125
      %p305 = pneg %p122
      %p306 = pneg %p146
      %p307 = pneg %p143
      %p308 = pneg %p167
      %p309 = pneg %p164
      %p310 = pneg %p188
      %p311 = pneg %p185
      %p312 = pneg %p209
      %p313 = pneg %p206
      %p314 = pneg %p235
      %p315 = pneg %p232
      %p316 = scmp.lt.s32.totalorder %s20, 1
      %s317 = scalar_select %p316, %s20, 1
      %s318 = smul.addr %s317, 8
      %s319 = scalar_lea.vmem %s9, %s318
      %p320 = scmp.lt.s32.totalorder %s20, 1
      %s321 = scalar_select %p320, %s20, 1
      %s322 = smul.addr %s321, 4
      %s323 = scalar_lea.vmem %s0, %s322
      %p324 = scmp.lt.s32.totalorder %s20, 1
      %s325 = scalar_select %p324, %s20, 1
      %s326 = smul.addr %s325, 8
      %s327 = scalar_lea.vmem %s9, %s326
      %v329 = vld [vmem:[%s323] sm:$0xf]
      %v330 = vld [vmem:[%s1] sm:$0x1]
      %v331 = vld [vmem:[%s2] sm:$0x1]
      %v332 = vunpack.c.l.bf16 %v329
      %vm333 = vcmask 261120
      %v334 = vsel %vm333, %v332, 0.0
      %335 = vadd.xlane.f32.xlu0 %v334
      %v336 = vpop.xlane.xlu0 %335
      %v337 = vrcp.pop 32.0
      %v338 = vmul.f32 %v336, %v337
      %v339 = vsub.f32 %v332, %v338
      %v340 = vmul.f32 %v339, %v339
      %v341 = vsel %vm333, %v340, 0.0
      %342 = vadd.xlane.f32.xlu0 %v341
      %v343 = vpop.xlane.xlu0 %342
      %v344 = vmul.f32 %v343, %v337
      %v345 = vadd.f32 %v344, 1e-05
      %v346 = vrsqrt.pop %v345
      %v347 = vmul.f32 %v339, %v346
      %v349 = vlaneseq
      %v350 = vshrl.u32 %v349, 7
      %v351 = vsub.s32 0, %v350
      %v352 = vrot.slane %v330, %v351
      %v354 = vmul.f32 %v347, %v352
      %v356 = vlaneseq
      %v357 = vshrl.u32 %v356, 7
      %v358 = vsub.s32 0, %v357
      %v359 = vrot.slane %v331, %v358
      %v361 = vadd.f32 %v354, %v359
      %v362 = vpack.c.bf16 %v361, %v361
      %v363 = vld [vmem:[%s3] sm:$0xf]
      %v364 = vld [vmem:[%s3 + $0x4] sm:$0xf]
      %v365 = vld [vmem:[%s3 + $0x8] sm:$0xf]
      %v366 = vld [vmem:[%s3 + $0xc] sm:$0xf]
      %v367 = vld [vmem:[%s4] sm:$0x1]
      %v369 = vlaneseq
      %v370 = vshrl.u32 %v369, 7
      %v371 = vsub.s32 0, %v370
      %v372 = vrot.slane %v367, %v371
      %v378 = vunpack.c.l.b16 %v363
      %v379 = vunpack.c.l.b16 %v364
      %v380 = vunpack.c.l.b16 %v365
      %v381 = vunpack.c.l.b16 %v366
      %v382 = vpack.c.b16 %v379, %v378
      %v383 = vpack.c.b16 %v381, %v380
      %v387 = vsel %vm333, %v362, 0
      %389 = vmatprep.subr.bf16.mxu0 0
      %390 = vmatpush1.bf16.msra.mxu0 %v382
      %391 = vmatprep.subr.bf16.mxu0 0
      %392 = vmatpush1.bf16.msra.mxu0 %v383
      %393 = vmatprep.subr.bf16.mxu0 0
      %394 = vmatpush1.bf16.msra.mxu0 0
      %395 = vmatprep.subr.bf16.mxu0 0
      %396 = vmatpush1.bf16.msra.mxu0 0
      %397 = vmatprep.subr.bf16.mxu0 0
      %398 = vmatpush1.bf16.msra.mxu0 0
      %399 = vmatprep.subr.bf16.mxu0 0
      %400 = vmatpush1.bf16.msra.mxu0 0
      %401 = vmatprep.subr.bf16.mxu0 0
      %402 = vmatpush1.bf16.msra.mxu0 0
      %403 = vmatprep.subr.bf16.mxu0 0
      %404 = vmatpush1.bf16.msra.mxu0 0
      %405 = vmatprep.subr.bf16.mxu0 0
      %406 = vmatpush1.bf16.msra.mxu0 0
      %407 = vmatprep.subr.bf16.mxu0 0
      %408 = vmatpush1.bf16.msra.mxu0 0
      %409 = vmatprep.subr.bf16.mxu0 0
      %410 = vmatpush1.bf16.msra.mxu0 0
      %411 = vmatprep.subr.bf16.mxu0 0
      %412 = vmatpush1.bf16.msra.mxu0 0
      %413 = vmatprep.subr.bf16.mxu0 0
      %414 = vmatpush1.bf16.msra.mxu0 0
      %415 = vmatprep.subr.bf16.mxu0 0
      %416 = vmatpush1.bf16.msra.mxu0 0
      %417 = vmatprep.subr.bf16.mxu0 0
      %418 = vmatpush1.bf16.msra.mxu0 0
      %419 = vmatprep.subr.bf16.mxu0 0
      %420 = vmatpush1.bf16.msra.mxu0 0
      %421 = vmatprep.mubr.bf16.mxu0 0
      %422 = vmatmul.mubr.bf16.gmra.mrb[0].mxu0 %v387
      %v423 = vpop.f32.mrb[0].mxu0
      %v424 = vadd.f32 %v372, %v423
      %v425 = vpop.f32.mrb[0].mxu0
      %v426 = vpop.f32.mrb[0].mxu0
      %v427 = vpop.f32.mrb[0].mxu0
      %428 = vdwg.mxu0
      %v429 = vmax.f32 %v424, 0.0
      %v430 = vpack.c.bf16 %v429, %v429
      %v431 = vld [vmem:[%s5] sm:$0xf]
      %v432 = vld [vmem:[%s5 + $0x4] sm:$0xf]
      %v433 = vld [vmem:[%s5 + $0x8] sm:$0xf]
      %v434 = vld [vmem:[%s5 + $0xc] sm:$0xf]
      %v435 = vld [vmem:[%s6] sm:$0x1]
      %v437 = vlaneseq
      %v438 = vshrl.u32 %v437, 7
      %v439 = vsub.s32 0, %v438
      %v440 = vrot.slane %v435, %v439
      %v446 = vunpack.c.l.b16 %v431
      %v447 = vunpack.c.l.b16 %v432
      %v448 = vunpack.c.l.b16 %v433
      %v449 = vunpack.c.l.b16 %v434
      %v450 = vpack.c.b16 %v447, %v446
      %v451 = vpack.c.b16 %v449, %v448
      %v455 = vsel %vm333, %v430, 0
      %457 = vmatprep.subr.bf16.mxu0 0
      %458 = vmatpush1.bf16.msra.mxu0 %v450
      %459 = vmatprep.subr.bf16.mxu0 0
      %460 = vmatpush1.bf16.msra.mxu0 %v451
      %461 = vmatprep.subr.bf16.mxu0 0
      %462 = vmatpush1.bf16.msra.mxu0 0
      %463 = vmatprep.subr.bf16.mxu0 0
      %464 = vmatpush1.bf16.msra.mxu0 0
      %465 = vmatprep.subr.bf16.mxu0 0
      %466 = vmatpush1.bf16.msra.mxu0 0
      %467 = vmatprep.subr.bf16.mxu0 0
      %468 = vmatpush1.bf16.msra.mxu0 0
      %469 = vmatprep.subr.bf16.mxu0 0
      %470 = vmatpush1.bf16.msra.mxu0 0
      %471 = vmatprep.subr.bf16.mxu0 0
      %472 = vmatpush1.bf16.msra.mxu0 0
      %473 = vmatprep.subr.bf16.mxu0 0
      %474 = vmatpush1.bf16.msra.mxu0 0
      %475 = vmatprep.subr.bf16.mxu0 0
      %476 = vmatpush1.bf16.msra.mxu0 0
      %477 = vmatprep.subr.bf16.mxu0 0
      %478 = vmatpush1.bf16.msra.mxu0 0
      %479 = vmatprep.subr.bf16.mxu0 0
      %480 = vmatpush1.bf16.msra.mxu0 0
      %481 = vmatprep.subr.bf16.mxu0 0
      %482 = vmatpush1.bf16.msra.mxu0 0
      %483 = vmatprep.subr.bf16.mxu0 0
      %484 = vmatpush1.bf16.msra.mxu0 0
      %485 = vmatprep.subr.bf16.mxu0 0
      %486 = vmatpush1.bf16.msra.mxu0 0
      %487 = vmatprep.subr.bf16.mxu0 0
      %488 = vmatpush1.bf16.msra.mxu0 0
      %489 = vmatprep.mubr.bf16.mxu0 0
      %490 = vmatmul.mubr.bf16.gmra.mrb[0].mxu0 %v455
      %v491 = vpop.f32.mrb[0].mxu0
      %v492 = vadd.f32 %v440, %v491
      %v493 = vpop.f32.mrb[0].mxu0
      %v494 = vpop.f32.mrb[0].mxu0
      %v495 = vpop.f32.mrb[0].mxu0
      %496 = vdwg.mxu0
      %v497 = vmax.f32 %v492, 0.0
      %v498 = vpack.c.bf16 %v497, %v497
      %v499 = vld [vmem:[%s7] sm:$0xf]
      %v500 = vld [vmem:[%s7 + $0x4] sm:$0xf]
      %v501 = vld [vmem:[%s7 + $0x8] sm:$0xf]
      %v502 = vld [vmem:[%s7 + $0xc] sm:$0xf]
      %v503 = vld [vmem:[%s8] sm:$0x1]
      %v505 = vlaneseq
      %v506 = vshrl.u32 %v505, 7
      %v507 = vsub.s32 0, %v506
      %v508 = vrot.slane %v503, %v507
      %v514 = vunpack.c.l.b16 %v499
      %v515 = vunpack.c.l.b16 %v500
      %v516 = vunpack.c.l.b16 %v501
      %v517 = vunpack.c.l.b16 %v502
      %v518 = vpack.c.b16 %v515, %v514
      %v519 = vpack.c.b16 %v517, %v516
      %v523 = vsel %vm333, %v498, 0
      %525 = vmatprep.subr.bf16.mxu0 0
      %526 = vmatpush1.bf16.msra.mxu0 %v518
      %527 = vmatprep.subr.bf16.mxu0 0
      %528 = vmatpush1.bf16.msra.mxu0 %v519
      %529 = vmatprep.subr.bf16.mxu0 0
      %530 = vmatpush1.bf16.msra.mxu0 0
      %531 = vmatprep.subr.bf16.mxu0 0
      %532 = vmatpush1.bf16.msra.mxu0 0
      %533 = vmatprep.subr.bf16.mxu0 0
      %534 = vmatpush1.bf16.msra.mxu0 0
      %535 = vmatprep.subr.bf16.mxu0 0
      %536 = vmatpush1.bf16.msra.mxu0 0
      %537 = vmatprep.subr.bf16.mxu0 0
      %538 = vmatpush1.bf16.msra.mxu0 0
      %539 = vmatprep.subr.bf16.mxu0 0
      %540 = vmatpush1.bf16.msra.mxu0 0
      %541 = vmatprep.subr.bf16.mxu0 0
      %542 = vmatpush1.bf16.msra.mxu0 0
      %543 = vmatprep.subr.bf16.mxu0 0
      %544 = vmatpush1.bf16.msra.mxu0 0
      %545 = vmatprep.subr.bf16.mxu0 0
      %546 = vmatpush1.bf16.msra.mxu0 0
      %547 = vmatprep.subr.bf16.mxu0 0
      %548 = vmatpush1.bf16.msra.mxu0 0
      %549 = vmatprep.subr.bf16.mxu0 0
      %550 = vmatpush1.bf16.msra.mxu0 0
      %551 = vmatprep.subr.bf16.mxu0 0
      %552 = vmatpush1.bf16.msra.mxu0 0
      %553 = vmatprep.subr.bf16.mxu0 0
      %554 = vmatpush1.bf16.msra.mxu0 0
      %555 = vmatprep.subr.bf16.mxu0 0
      %556 = vmatpush1.bf16.msra.mxu0 0
      %557 = vmatprep.mubr.bf16.mxu0 0
      %558 = vmatmul.mubr.bf16.gmra.mrb[0].mxu0 %v523
      %v559 = vpop.f32.mrb[0].mxu0
      %v560 = vadd.f32 %v508, %v559
      %v561 = vpop.f32.mrb[0].mxu0
      %v562 = vpop.f32.mrb[0].mxu0
      %v563 = vpop.f32.mrb[0].mxu0
      %564 = vdwg.mxu0
      %v565 = vxor.u32 %v560, 2147483648
      %v566 = vmul.f32 %v565, 1.442695
      %v567 = vpow.pop %v566
      %v568 = vadd.f32 %v567, 1.0
      %v569 = vrcp.pop %v568
      %v570 = vmul.f32 1.0, %v569
      %vm571 = vcmask 31744
      %572 = vst.msk [vmem:[%s327] sm:$0xff] %vm571, %v570
      %p573 = scmp.lt.s32.totalorder %s20, 1
      %s574 = scalar_select %p573, %s20, 1
      %s575 = smul.addr %s574, 8
      %s576 = scalar_lea.vmem %s9, %s575
      // Predicated region
      $region57: #{_lambda_.51} parent=55 // pred_check
        %p577 = pneg %p232
      $region58: #{_lambda_.51} parent=55 // pred_check_branch
        %579 = sbr.rel (%p577) target = $region60
      $region59: #{_lambda_.51} parent=55 // pred_region
        _
      $region60: #{_lambda_.51} parent=55 // pred_fallthru
        _
    $region56: #{_lambda_.51} parent=5 // pred_fallthru
      _
    %p580 = scmp.le.s32.totalorder 2, %s15
    // Predicated region
    $region61: #{_lambda_.51} parent=5 // pred_check
      %p581 = pneg %p580
    $region62: #{_lambda_.51} parent=5 // pred_check_branch
      %583 = sbr.rel (%p581) target = $region64
    $region63: #{_lambda_.51} parent=5 // pred_region
      %s584 = ssub.s32 %s15, 2
      // Predicated region
      $region65: #{_lambda_.51} parent=63 // pred_check
        %p585 = pneg %p238
      $region66: #{_lambda_.51} parent=63 // pred_check_branch
        %587 = sbr.rel (%p585) target = $region68
      $region67: #{_lambda_.51} parent=63 // pred_region
        %p588 = scmp.lt.s32.totalorder %s21, 1
        %s589 = scalar_select %p588, %s21, 1
        %s590 = smul.addr %s589, 8
        %s591 = scalar_lea.vmem %s9, %s590
      $region68: #{_lambda_.51} parent=63 // pred_fallthru
        _
    $region64: #{_lambda_.51} parent=5 // pred_fallthru
      _
  $region6: #{_lambda_.51} parent=0 // loop_footer
    %s19 = sadd.s32 1, %s15
  $region7: #{_lambda_.51} parent=0 // loop_footer_branch
    %14 = sbr.rel target = $region3
  $region8: #{_lambda_.51} parent=0 // loop_exit
    _

</llo_original>
